<compile_context>
chip_gen: v5e
topology: v5e:2x2
jax: 0.10.0
libtpu: 0.0.40
codegen_flags: <defaults>
</compile_context>

<pallas_src>
import functools

import jax
import jax.numpy as jnp
from jax.experimental import pallas as pl
from jax.experimental.pallas import tpu as pltpu


def _ffn_kernel(x_ref, w1_ref, b1_ref, w2_ref, b2_ref, o_ref):
    # x_ref:(tm,E) f32   w1:(E,P) bf16   b1:(1,P) f32   w2:(P,E) bf16   b2:(1,E) f32
    x16 = x_ref[...].astype(jnp.bfloat16)          # in-kernel cast (VPU, hidden under DMA/MXU)
    h = jnp.dot(x16, w1_ref[...], preferred_element_type=jnp.float32)
    h = jnp.maximum(h + b1_ref[...], 0.0)          # fc_1 bias + ReLU in f32
    # dropout(p=0.35) -> identity in eval mode
    out = jnp.dot(h.astype(jnp.bfloat16), w2_ref[...],
                  preferred_element_type=jnp.float32)
    o_ref[...] = (out + b2_ref[...]).astype(o_ref.dtype)


def _round_up(x, m):
    return ((x + m - 1) // m) * m


@functools.lru_cache(maxsize=1)
def _single_buffered_weights_supported():
    """One-time capability probe for pipeline_mode=pl.Buffered(1) on constant-index blocks."""
    if not hasattr(pl, "Buffered"):
        return False

    def _probe(x_ref, o_ref):
        o_ref[...] = x_ref[...]

    try:
        x = jnp.zeros((8, 128), jnp.float32)
        out = pl.pallas_call(
            _probe,
            out_shape=jax.ShapeDtypeStruct((8, 128), jnp.float32),
            grid=(1,),
            in_specs=[pl.BlockSpec((8, 128), lambda i: (0, 0),
                                   pipeline_mode=pl.Buffered(1))],
            out_specs=pl.BlockSpec((8, 128), lambda i: (0, 0)),
        )(x)
        jax.block_until_ready(out)
        return True
    except Exception:
        # Probe only decides the weight-buffering mode; the real kernel is never
        # wrapped in a try/except, so genuine errors are not swallowed.
        return False


def _is_two_core_tensorcore():
    """v7x has 2 TensorCores per chip; v5e/v6e have 1."""
    kind = str(getattr(jax.devices()[0], "device_kind", "")).lower()
    return "v7" in kind


def _pick_tm(m_rows, two_cores):
    """Largest 128-multiple row tile (<=512); on 2-TC chips prefer an even grid."""
    m_al = _round_up(m_rows, 128)
    if not two_cores:
        # Single TensorCore: the grid is a serial loop, so fewest steps win.
        return min(m_al, 512)
    if m_al <= 128:
        return 128
    # v7x: even number of grid steps so the parallel M-axis splits evenly.
    for t in (512, 256, 128):
        if t < m_al and pl.cdiv(m_rows, t) % 2 == 0:
            return t
    return min(m_al, 512)


def _vmem_limit_bytes(tm, E, P, out_itemsize, single_buffer_weights):
    wmul = 1 if single_buffer_weights else 2
    x_bytes = 2 * tm * E * 4                  # f32 input tile, double-buffered
    o_bytes = 2 * tm * E * out_itemsize       # output tile, double-buffered
    w_bytes = wmul * (E * P + P * E) * 2      # bf16 weights (VMEM-resident)
    b_bytes = wmul * 8 * (P + E) * 4          # biases (sublane-padded)
    h_bytes = tm * P * (4 + 2)                # f32 hidden + bf16 recast temp
    need = x_bytes + o_bytes + w_bytes + b_bytes + h_bytes
    # 2x headroom for compiler-internal scratch; clamp safely under v7x's 64 MiB physical VMEM.
    return int(min(max(2 * need, 32 * 1024 * 1024), 48 * 1024 * 1024))


def positionwise_feedforward(x, w1, b1, w2, b2, *, out_dtype=None, tm=None,
                             training=False):
    """Fused fc_2(relu(fc_1(x))).  x:[B,S,E]; w1:[E,P]; b1:[P]; w2:[P,E]; b2:[E]."""
    if training:
        # TODO(synk): training-mode dropout (p=0.35) via pltpu.prng_* not implemented.
        raise NotImplementedError("training-mode dropout not implemented; eval mode only")

    B, S, E = x.shape
    P = w1.shape[1]
    assert w1.shape == (E, P) and w2.shape == (P, E)
    assert b1.shape == (P,) and b2.shape == (E,)
    assert E % 128 == 0 and P % 128 == 0, "embed_dim / pf_dim must be multiples of 128"

    out_dtype = x.dtype if out_dtype is None else jnp.dtype(out_dtype)
    M = B * S
    x2 = x.reshape(M, E)   # no pad, no wrapper cast: the kernel handles both

    if tm is None:
        tm = _pick_tm(M, _is_two_core_tensorcore())
    grid = (pl.cdiv(M, tm),)

    single_w = _single_buffered_weights_supported()
    w_kw = dict(pipeline_mode=pl.Buffered(1)) if single_w else {}

    # bf16 weight storage (half the resident VMEM + weight DMA); biases stay f32.
    w1_bf = w1.astype(jnp.bfloat16)
    w2_bf = w2.astype(jnp.bfloat16)
    b1_2 = b1.reshape(1, P).astype(jnp.float32)
    b2_2 = b2.reshape(1, E).astype(jnp.float32)

    out2 = pl.pallas_call(
        _ffn_kernel,
        out_shape=jax.ShapeDtypeStruct((M, E), out_dtype),
        grid=grid,
        in_specs=[
            pl.BlockSpec((tm, E), lambda i: (i, 0)),           # x rows (pipelined, f32)
            pl.BlockSpec((E, P), lambda i: (0, 0), **w_kw),    # W1 (resident)
            pl.BlockSpec((1, P), lambda i: (0, 0), **w_kw),    # b1
            pl.BlockSpec((P, E), lambda i: (0, 0), **w_kw),    # W2 (resident)
            pl.BlockSpec((1, E), lambda i: (0, 0), **w_kw),    # b2
        ],
        out_specs=pl.BlockSpec((tm, E), lambda i: (i, 0)),
        compiler_params=pltpu.CompilerParams(
            dimension_semantics=("parallel",),
            vmem_limit_bytes=_vmem_limit_bytes(tm, E, P, out_dtype.itemsize, single_w),
        ),
    )(x2, w1_bf, b1_2, w2_bf, b2_2)

    return out2.reshape(B, S, E)


if __name__ == "__main__":
    # Module constants: embed_dim=1024, pf_dim=512; small batch/seq for the demo.
    B, S, E, P = 2, 128, 1024, 512

    key = jax.random.PRNGKey(0)
    kx, kw1, kb1, kw2, kb2 = jax.random.split(key, 5)

    x = jax.random.normal(kx, (B, S, E), dtype=jnp.float32)
    # nn.Linear parameters, stored pre-transposed as [in, out].
    w1 = jax.random.normal(kw1, (E, P), dtype=jnp.float32) * (1.0 / E) ** 0.5
    b1 = jax.random.normal(kb1, (P,), dtype=jnp.float32) * 0.01
    w2 = jax.random.normal(kw2, (P, E), dtype=jnp.float32) * (1.0 / P) ** 0.5
    b2 = jax.random.normal(kb2, (E,), dtype=jnp.float32) * 0.01

    out = positionwise_feedforward(x, w1, b1, w2, b2)
    out = jax.block_until_ready(out)

    # Reference: fc_2(relu(fc_1(x))) in f32, dropout identity (eval mode).
    # Tolerance loosened because the kernel's GEMMs run in bf16 with f32 accumulation.
    ref = (jnp.maximum(x.reshape(-1, E) @ w1 + b1, 0.0) @ w2 + b2).reshape(B, S, E)
    assert out.shape == (B, S, E)
    assert out.dtype == x.dtype
    assert jnp.allclose(out, ref, atol=5e-2, rtol=5e-2)

    print("KERNEL_OK")
</pallas_src>

<mosaic_0001>
module attributes {stable_mosaic.version = 11 : i64} {
  func.func @_probe(%arg0: i32, %arg1: memref<8x128xf32, #tpu.memory_space<vmem>>, %arg2: memref<8x128xf32, #tpu.memory_space<vmem>>) attributes {dimension_semantics = [#tpu.dimension_semantics<arbitrary>], iteration_bounds = array<i64: 1>, scalar_prefetch = 0 : i64, scratch_operands = 0 : i64, tpu.core_type = #tpu.core_type<tc>, window_params = [{pipeline_mode = #tpu.pipeline_mode<synchronous>, transform_indices = @transform_0, window_bounds = array<i64: 8, 128>}, {pipeline_mode = #tpu.pipeline_mode<synchronous>, transform_indices = @transform_1, window_bounds = array<i64: 8, 128>}]} {
    %c0 = arith.constant 0 : index
    %c0_0 = arith.constant 0 : index
    %0 = vector.load %arg1[%c0, %c0_0] : memref<8x128xf32, #tpu.memory_space<vmem>>, vector<8x128xf32>
    %c0_1 = arith.constant 0 : index
    %c0_2 = arith.constant 0 : index
    %1 = vector.load %arg2[%c0_1, %c0_2] : memref<8x128xf32, #tpu.memory_space<vmem>>, vector<8x128xf32>
    tpu.vector_store %arg2[%c0_1, %c0_2], %0 {strides = array<i32>} : memref<8x128xf32, #tpu.memory_space<vmem>>, vector<8x128xf32>,
    return
  }
  func.func @transform_0(%arg0: i32) -> (i32, i32) {
    %c0_i32 = arith.constant 0 : i32
    %c0_i32_0 = arith.constant 0 : i32
    %c0_i32_1 = arith.constant 0 : i32
    return %c0_i32, %c0_i32_0 : i32, i32
  }
  func.func @transform_1(%arg0: i32) -> (i32, i32) {
    %c0_i32 = arith.constant 0 : i32
    %c0_i32_0 = arith.constant 0 : i32
    %c0_i32_1 = arith.constant 0 : i32
    return %c0_i32, %c0_i32_0 : i32, i32
  }
}

module attributes {stable_mosaic.version = 11 : i64} {
  func.func @_ffn_kernel(%arg0: i32, %arg1: memref<256x1024xf32, #tpu.memory_space<vmem>>, %arg2: memref<1024x512xbf16, #tpu.memory_space<vmem>>, %arg3: memref<1x512xf32, #tpu.memory_space<vmem>>, %arg4: memref<512x1024xbf16, #tpu.memory_space<vmem>>, %arg5: memref<1x1024xf32, #tpu.memory_space<vmem>>, %arg6: memref<256x1024xf32, #tpu.memory_space<vmem>>) attributes {dimension_semantics = [#tpu.dimension_semantics<parallel>], iteration_bounds = array<i64: 1>, scalar_prefetch = 0 : i64, scratch_operands = 0 : i64, tpu.core_type = #tpu.core_type<tc>, window_params = [{transform_indices = @transform_0, window_bounds = array<i64: 256, 1024>}, {pipeline_mode = #tpu.pipeline_mode<synchronous>, transform_indices = @transform_1, window_bounds = array<i64: 1024, 512>}, {pipeline_mode = #tpu.pipeline_mode<synchronous>, transform_indices = @transform_2, window_bounds = array<i64: 1, 512>}, {pipeline_mode = #tpu.pipeline_mode<synchronous>, transform_indices = @transform_3, window_bounds = array<i64: 512, 1024>}, {pipeline_mode = #tpu.pipeline_mode<synchronous>, transform_indices = @transform_4, window_bounds = array<i64: 1, 1024>}, {transform_indices = @transform_5, window_bounds = array<i64: 256, 1024>}]} {
    %c0 = arith.constant 0 : index
    %c0_0 = arith.constant 0 : index
    %0 = vector.load %arg1[%c0, %c0_0] : memref<256x1024xf32, #tpu.memory_space<vmem>>, vector<256x1024xf32>
    %1 = arith.truncf %0 : vector<256x1024xf32> to vector<256x1024xbf16>
    %c0_1 = arith.constant 0 : index
    %c0_2 = arith.constant 0 : index
    %2 = vector.load %arg2[%c0_1, %c0_2] : memref<1024x512xbf16, #tpu.memory_space<vmem>>, vector<1024x512xbf16>
    %cst = arith.constant dense<0.000000e+00> : vector<256x512xf32>
    %3 = tpu.matmul %1, %2, %cst {dimension_numbers = #tpu.dot_dimension_numbers<[1], [0], [0], [1], [0, 0, 1, 1], [], []>} : vector<256x1024xbf16>, vector<1024x512xbf16>, vector<256x512xf32> -> vector<256x512xf32>
    %c0_3 = arith.constant 0 : index
    %c0_4 = arith.constant 0 : index
    %4 = vector.load %arg3[%c0_3, %c0_4] : memref<1x512xf32, #tpu.memory_space<vmem>>, vector<1x512xf32>
    %5 = vector.broadcast %4 : vector<1x512xf32> to vector<256x512xf32>
    %6 = arith.addf %3, %5 : vector<256x512xf32>
    %cst_5 = arith.constant 0.000000e+00 : f32
    %7 = vector.broadcast %cst_5 : f32 to vector<256x512xf32>
    %8 = arith.maximumf %6, %7 : vector<256x512xf32>
    %9 = arith.truncf %8 : vector<256x512xf32> to vector<256x512xbf16>
    %c0_6 = arith.constant 0 : index
    %c0_7 = arith.constant 0 : index
    %10 = vector.load %arg4[%c0_6, %c0_7] : memref<512x1024xbf16, #tpu.memory_space<vmem>>, vector<512x1024xbf16>
    %cst_8 = arith.constant dense<0.000000e+00> : vector<256x1024xf32>
    %11 = tpu.matmul %9, %10, %cst_8 {dimension_numbers = #tpu.dot_dimension_numbers<[1], [0], [0], [1], [0, 0, 1, 1], [], []>} : vector<256x512xbf16>, vector<512x1024xbf16>, vector<256x1024xf32> -> vector<256x1024xf32>
    %c0_9 = arith.constant 0 : index
    %c0_10 = arith.constant 0 : index
    %12 = vector.load %arg5[%c0_9, %c0_10] : memref<1x1024xf32, #tpu.memory_space<vmem>>, vector<1x1024xf32>
    %13 = vector.broadcast %12 : vector<1x1024xf32> to vector<256x1024xf32>
    %14 = arith.addf %11, %13 : vector<256x1024xf32>
    %c0_11 = arith.constant 0 : index
    %c0_12 = arith.constant 0 : index
    %15 = vector.load %arg6[%c0_11, %c0_12] : memref<256x1024xf32, #tpu.memory_space<vmem>>, vector<256x1024xf32>
    tpu.vector_store %arg6[%c0_11, %c0_12], %14 {strides = array<i32>} : memref<256x1024xf32, #tpu.memory_space<vmem>>, vector<256x1024xf32>,
    return
  }
  func.func @transform_0(%arg0: i32) -> (i32, i32) {
    %c0_i32 = arith.constant 0 : i32
    %c0_i32_0 = arith.constant 0 : i32
    return %arg0, %c0_i32 : i32, i32
  }
  func.func @transform_1(%arg0: i32) -> (i32, i32) {
    %c0_i32 = arith.constant 0 : i32
    %c0_i32_0 = arith.constant 0 : i32
    %c0_i32_1 = arith.constant 0 : i32
    return %c0_i32, %c0_i32_0 : i32, i32
  }
  func.func @transform_2(%arg0: i32) -> (i32, i32) {
    %c0_i32 = arith.constant 0 : i32
    %c0_i32_0 = arith.constant 0 : i32
    %c0_i32_1 = arith.constant 0 : i32
    return %c0_i32, %c0_i32_0 : i32, i32
  }
  func.func @transform_3(%arg0: i32) -> (i32, i32) {
    %c0_i32 = arith.constant 0 : i32
    %c0_i32_0 = arith.constant 0 : i32
    %c0_i32_1 = arith.constant 0 : i32
    return %c0_i32, %c0_i32_0 : i32, i32
  }
  func.func @transform_4(%arg0: i32) -> (i32, i32) {
    %c0_i32 = arith.constant 0 : i32
    %c0_i32_0 = arith.constant 0 : i32
    %c0_i32_1 = arith.constant 0 : i32
    return %c0_i32, %c0_i32_0 : i32, i32
  }
  func.func @transform_5(%arg0: i32) -> (i32, i32) {
    %c0_i32 = arith.constant 0 : i32
    %c0_i32_0 = arith.constant 0 : i32
    return %arg0, %c0_i32 : i32, i32
  }
}

</mosaic_0001>

<llo_original>
// kernel: tpu_custom_call.1
$region0: #{tpu_custom_call.1}
  #allocation0 [shape = 'u32[]', space=smem, size = 0x4, offset = 0x4, fixed_abs, tag = 'smem constant byte address 0x4 - core index']
  #allocation1 [shape = 'u32[72,128]{1,0:T(1,128)}', space=vmem, size = 0x9000, scoped, tag = 'internal scratch']
  %s0 = inlined_call_operand.hbm [shape: f32[8,128], index: 0, kind: input, shape index: {}]
  %s1 = inlined_call_operand.hbm [shape: f32[8,128], index: 1, kind: output, shape index: {}]
  %s2 = sld [smem:[#allocation0]]
  $region18: #{tpu_custom_call.1} parent=0
    _
  %s4 = ssub.s32 1, %s2
  %s5 = scalar_select 0, %s4, %s2
  $region1: #{tpu_custom_call.1} parent=0
    #allocation2 [shape = 'u8[4096]{0}', space=vmem, size = 0x1000, scoped, tag = 'input window, operand 0, single buffered']
    #allocation3 [shape = 's32[1]{0}', space=sflag, size = 0x4, scoped, tag = 'scoped memory for tpu_custom_call.1']
    #allocation4 [shape = 's32[1]{0}', space=sflag, size = 0x4, scoped, tag = 'scoped memory for tpu_custom_call.1']
    #allocation5 [shape = 'u8[4096]{0}', space=vmem, size = 0x1000, scoped, tag = 'output window, operand 0, single buffered']
    %6 = vsyncpa [#allocation3], 0
    %7 = vsyncpa [#allocation4], 0
    // Predicated region
    $region2: #{tpu_custom_call.1} parent=1 // pred_check
      _
    $region3: #{tpu_custom_call.1} parent=1 // pred_check_branch
      %9 = sbr.rel (0) target = $region5
    $region4: #{tpu_custom_call.1} parent=1 // pred_region
      %11 = vsyncadd [#allocation3], 0
      %s13 = sshll.u32 %s0, 4
      %s14 = int_to_ptr.hbm [resolvable:$true] %s13
      %s15 = sshll.u32 [#allocation2], 4
      %s16 = int_to_ptr.vmem [resolvable:$true] %s15
      %18 = dma.hbm_to_vmem [thread:$0]  %s14, 128, %s16, [#allocation3]
    $region5: #{tpu_custom_call.1} parent=1 // pred_fallthru
      _
    // Predicated region
    $region6: #{tpu_custom_call.1} parent=1 // pred_check
      _
    $region7: #{tpu_custom_call.1} parent=1 // pred_check_branch
      %20 = sbr.rel (0) target = $region9
    $region8: #{tpu_custom_call.1} parent=1 // pred_region
      %22 = dma.done [#allocation3], 128
    $region9: #{tpu_custom_call.1} parent=1 // pred_fallthru
      _
    %v23 = vld [vmem:[#allocation2] sm:$0xff]
    %24 = vst [vmem:[#allocation5] sm:$0xff] %v23
    // Predicated region
    $region10: #{tpu_custom_call.1} parent=1 // pred_check
      _
    $region11: #{tpu_custom_call.1} parent=1 // pred_check_branch
      %26 = sbr.rel (0) target = $region13
    $region12: #{tpu_custom_call.1} parent=1 // pred_region
      %28 = vsyncadd [#allocation4], 0
      %s30 = sshll.u32 [#allocation5], 4
      %s31 = int_to_ptr.vmem [resolvable:$true] %s30
      %s32 = sshll.u32 %s1, 4
      %s33 = int_to_ptr.hbm [resolvable:$true] %s32
      %35 = dma.vmem_to_hbm [thread:$0]  %s31, 128, %s33, [#allocation4]
    $region13: #{tpu_custom_call.1} parent=1 // pred_fallthru
      _
    // Predicated region
    $region14: #{tpu_custom_call.1} parent=1 // pred_check
      _
    $region15: #{tpu_custom_call.1} parent=1 // pred_check_branch
      %37 = sbr.rel (0) target = $region17
    $region16: #{tpu_custom_call.1} parent=1 // pred_region
      %39 = dma.done [#allocation4], 128
    $region17: #{tpu_custom_call.1} parent=1 // pred_fallthru
      _
    %40 = vsyncpa [#allocation3], 1
    %41 = vsyncpa [#allocation4], 1

// kernel: tpu_custom_call.1
$region0: #{tpu_custom_call.1}
  #allocation0 [shape = 'u32[]', space=smem, size = 0x4, offset = 0x4, fixed_abs, tag = 'smem constant byte address 0x4 - core index']
  #allocation1 [shape = 'u32[72,128]{1,0:T(1,128)}', space=vmem, size = 0x9000, scoped, tag = 'internal scratch']
  %s0 = inlined_call_operand.hbm [shape: f32[256,1024], index: 0, kind: input, shape index: {}]
  %s1 = inlined_call_operand.hbm [shape: bf16[1024,512], index: 1, kind: input, shape index: {}]
  %s2 = inlined_call_operand.hbm [shape: f32[1,512], index: 2, kind: input, shape index: {}]
  %s3 = inlined_call_operand.hbm [shape: bf16[512,1024], index: 3, kind: input, shape index: {}]
  %s4 = inlined_call_operand.hbm [shape: f32[1,1024], index: 4, kind: input, shape index: {}]
  %s5 = inlined_call_operand.hbm [shape: f32[256,1024], index: 5, kind: output, shape index: {}]
  %s6 = sld [smem:[#allocation0]]
  $region50: #{tpu_custom_call.1} parent=0
    _
  %s8 = ssub.s32 1, %s6
  %s9 = scalar_select 0, %s8, %s6
  $region1: #{tpu_custom_call.1} parent=0
    #allocation2 [shape = 'u8[1048576]{0}', space=vmem, size = 0x100000, scoped, tag = 'input window, operand 0, single buffered']
    #allocation3 [shape = 's32[1]{0}', space=sflag, size = 0x4, scoped, tag = 'scoped memory for tpu_custom_call.1']
    #allocation4 [shape = 's32[1]{0}', space=sflag, size = 0x4, scoped, tag = 'scoped memory for tpu_custom_call.1']
    #allocation5 [shape = 'u8[1048576]{0}', space=vmem, size = 0x100000, scoped, tag = 'input window, operand 1, single buffered']
    #allocation6 [shape = 's32[1]{0}', space=sflag, size = 0x4, scoped, tag = 'scoped memory for tpu_custom_call.1']
    #allocation7 [shape = 'u8[2048]{0}', space=vmem, size = 0x800, scoped, tag = 'input window, operand 2, single buffered']
    #allocation8 [shape = 'u8[1048576]{0}', space=vmem, size = 0x100000, scoped, tag = 'input window, operand 3, single buffered']
    #allocation9 [shape = 's32[1]{0}', space=sflag, size = 0x4, scoped, tag = 'scoped memory for tpu_custom_call.1']
    #allocation10 [shape = 'u8[4096]{0}', space=vmem, size = 0x1000, scoped, tag = 'input window, operand 4, single buffered']
    #allocation11 [shape = 'u8[1048576]{0}', space=vmem, size = 0x100000, scoped, tag = 'output window, operand 0, single buffered']
    %10 = vsyncpa [#allocation3], 0
    %11 = vsyncpa [#allocation6], 0
    %12 = vsyncpa [#allocation9], 0
    %13 = vsyncpa [#allocation4], 0
    // Predicated region
    $region2: #{tpu_custom_call.1} parent=1 // pred_check
      _
    $region3: #{tpu_custom_call.1} parent=1 // pred_check_branch
      %15 = sbr.rel (0) target = $region5
    $region4: #{tpu_custom_call.1} parent=1 // pred_region
      %17 = vsyncadd [#allocation3], 0
      %s18 = sshll.u32 %s0, 4
      %s19 = int_to_ptr.hbm [resolvable:$true] %s18
      %s20 = sshll.u32 [#allocation2], 4
      %s21 = int_to_ptr.vmem [resolvable:$true] %s20
      %26 = dma.hbm_to_vmem [thread:$0]  %s19, 32768, %s21, [#allocation3], 1024, 1024, 64
    $region5: #{tpu_custom_call.1} parent=1 // pred_fallthru
      _
    // Predicated region
    $region6: #{tpu_custom_call.1} parent=1 // pred_check
      _
    $region7: #{tpu_custom_call.1} parent=1 // pred_check_branch
      %28 = sbr.rel (0) target = $region9
    $region8: #{tpu_custom_call.1} parent=1 // pred_region
      %30 = vsyncadd [#allocation6], 0
      %s31 = sshll.u32 %s1, 4
      %s32 = int_to_ptr.hbm [resolvable:$true] %s31
      %s33 = sshll.u32 [#allocation5], 4
      %s34 = int_to_ptr.vmem [resolvable:$true] %s33
      %39 = dma.hbm_to_vmem [thread:$0]  %s32, 32768, %s34, [#allocation6], 256, 256, 16
    $region9: #{tpu_custom_call.1} parent=1 // pred_fallthru
      _
    // Predicated region
    $region10: #{tpu_custom_call.1} parent=1 // pred_check
      _
    $region11: #{tpu_custom_call.1} parent=1 // pred_check_branch
      %41 = sbr.rel (0) target = $region13
    $region12: #{tpu_custom_call.1} parent=1 // pred_region
      %43 = vsyncadd [#allocation6], 0
      %s45 = sshll.u32 %s2, 4
      %s46 = int_to_ptr.hbm [resolvable:$true] %s45
      %s47 = sshll.u32 [#allocation7], 4
      %s48 = int_to_ptr.vmem [resolvable:$true] %s47
      %50 = dma.hbm_to_vmem [thread:$0]  %s46, 64, %s48, [#allocation6]
    $region13: #{tpu_custom_call.1} parent=1 // pred_fallthru
      _
    // Predicated region
    $region14: #{tpu_custom_call.1} parent=1 // pred_check
      _
    $region15: #{tpu_custom_call.1} parent=1 // pred_check_branch
      %52 = sbr.rel (0) target = $region17
    $region16: #{tpu_custom_call.1} parent=1 // pred_region
      %54 = vsyncadd [#allocation9], 0
      %s55 = sshll.u32 %s3, 4
      %s56 = int_to_ptr.hbm [resolvable:$true] %s55
      %s57 = sshll.u32 [#allocation8], 4
      %s58 = int_to_ptr.vmem [resolvable:$true] %s57
      %63 = dma.hbm_to_vmem [thread:$0]  %s56, 32768, %s58, [#allocation9], 512, 512, 32
    $region17: #{tpu_custom_call.1} parent=1 // pred_fallthru
      _
    // Predicated region
    $region18: #{tpu_custom_call.1} parent=1 // pred_check
      _
    $region19: #{tpu_custom_call.1} parent=1 // pred_check_branch
      %65 = sbr.rel (0) target = $region21
    $region20: #{tpu_custom_call.1} parent=1 // pred_region
      %67 = vsyncadd [#allocation9], 0
      %s69 = sshll.u32 %s4, 4
      %s70 = int_to_ptr.hbm [resolvable:$true] %s69
      %s71 = sshll.u32 [#allocation10], 4
      %s72 = int_to_ptr.vmem [resolvable:$true] %s71
      %74 = dma.hbm_to_vmem [thread:$0]  %s70, 128, %s72, [#allocation9]
    $region21: #{tpu_custom_call.1} parent=1 // pred_fallthru
      _
    // Predicated region
    $region22: #{tpu_custom_call.1} parent=1 // pred_check
      _
    $region23: #{tpu_custom_call.1} parent=1 // pred_check_branch
      %76 = sbr.rel (0) target = $region25
    $region24: #{tpu_custom_call.1} parent=1 // pred_region
      %78 = dma.done [#allocation3], 32768
    $region25: #{tpu_custom_call.1} parent=1 // pred_fallthru
      _
    // Predicated region
    $region26: #{tpu_custom_call.1} parent=1 // pred_check
      _
    $region27: #{tpu_custom_call.1} parent=1 // pred_check_branch
      %80 = sbr.rel (0) target = $region29
    $region28: #{tpu_custom_call.1} parent=1 // pred_region
      %82 = dma.done [#allocation6], 32768
    $region29: #{tpu_custom_call.1} parent=1 // pred_fallthru
      _
    // Predicated region
    $region30: #{tpu_custom_call.1} parent=1 // pred_check
      _
    $region31: #{tpu_custom_call.1} parent=1 // pred_check_branch
      %84 = sbr.rel (0) target = $region33
    $region32: #{tpu_custom_call.1} parent=1 // pred_region
      %86 = dma.done [#allocation6], 64
    $region33: #{tpu_custom_call.1} parent=1 // pred_fallthru
      _
    // Predicated region
    $region34: #{tpu_custom_call.1} parent=1 // pred_check
      _
    $region35: #{tpu_custom_call.1} parent=1 // pred_check_branch
      %88 = sbr.rel (0) target = $region37
    $region36: #{tpu_custom_call.1} parent=1 // pred_region
      %90 = dma.done [#allocation9], 32768
    $region37: #{tpu_custom_call.1} parent=1 // pred_fallthru
      _
    // Predicated region
    $region38: #{tpu_custom_call.1} parent=1 // pred_check
      _
    $region39: #{tpu_custom_call.1} parent=1 // pred_check_branch
      %92 = sbr.rel (0) target = $region41
    $region40: #{tpu_custom_call.1} parent=1 // pred_region
      %94 = dma.done [#allocation9], 128
    $region41: #{tpu_custom_call.1} parent=1 // pred_fallthru
      _
    %v95 = vld [vmem:[#allocation2] sm:$0xff]
    %v96 = vld [vmem:[#allocation2 + $0x8] sm:$0xff]
    %v97 = vld [vmem:[#allocation2 + $0x10] sm:$0xff]
    %v98 = vld [vmem:[#allocation2 + $0x18] sm:$0xff]
    %v99 = vld [vmem:[#allocation2 + $0x20] sm:$0xff]
    %v100 = vld [vmem:[#allocation2 + $0x28] sm:$0xff]
    %v101 = vld [vmem:[#allocation2 + $0x30] sm:$0xff]
    %v102 = vld [vmem:[#allocation2 + $0x38] sm:$0xff]
    %v103 = vld [vmem:[#allocation2 + $0x40] sm:$0xff]
    %v104 = vld [vmem:[#allocation2 + $0x48] sm:$0xff]
    %v105 = vld [vmem:[#allocation2 + $0x50] sm:$0xff]
    %v106 = vld [vmem:[#allocation2 + $0x58] sm:$0xff]
    %v107 = vld [vmem:[#allocation2 + $0x60] sm:$0xff]
    %v108 = vld [vmem:[#allocation2 + $0x68] sm:$0xff]
    %v109 = vld [vmem:[#allocation2 + $0x70] sm:$0xff]
    %v110 = vld [vmem:[#allocation2 + $0x78] sm:$0xff]
    %v111 = vld [vmem:[#allocation2 + $0x80] sm:$0xff]
    %v112 = vld [vmem:[#allocation2 + $0x88] sm:$0xff]
    %v113 = vld [vmem:[#allocation2 + $0x90] sm:$0xff]
    %v114 = vld [vmem:[#allocation2 + $0x98] sm:$0xff]
    %v115 = vld [vmem:[#allocation2 + $0xa0] sm:$0xff]
    %v116 = vld [vmem:[#allocation2 + $0xa8] sm:$0xff]
    %v117 = vld [vmem:[#allocation2 + $0xb0] sm:$0xff]
    %v118 = vld [vmem:[#allocation2 + $0xb8] sm:$0xff]
    %v119 = vld [vmem:[#allocation2 + $0xc0] sm:$0xff]
    %v120 = vld [vmem:[#allocation2 + $0xc8] sm:$0xff]
    %v121 = vld [vmem:[#allocation2 + $0xd0] sm:$0xff]
    %v122 = vld [vmem:[#allocation2 + $0xd8] sm:$0xff]
    %v123 = vld [vmem:[#allocation2 + $0xe0] sm:$0xff]
    %v124 = vld [vmem:[#allocation2 + $0xe8] sm:$0xff]
    %v125 = vld [vmem:[#allocation2 + $0xf0] sm:$0xff]
    %v126 = vld [vmem:[#allocation2 + $0xf8] sm:$0xff]
    %v127 = vld [vmem:[#allocation2 + $0x100] sm:$0xff]
    %v128 = vld [vmem:[#allocation2 + $0x108] sm:$0xff]
    %v129 = vld [vmem:[#allocation2 + $0x110] sm:$0xff]
    %v130 = vld [vmem:[#allocation2 + $0x118] sm:$0xff]
    %v131 = vld [vmem:[#allocation2 + $0x120] sm:$0xff]
    %v132 = vld [vmem:[#allocation2 + $0x128] sm:$0xff]
    %v133 = vld [vmem:[#allocation2 + $0x130] sm:$0xff]
    %v134 = vld [vmem:[#allocation2 + $0x138] sm:$0xff]
    %v135 = vld [vmem:[#allocation2 + $0x140] sm:$0xff]
    %v136 = vld [vmem:[#allocation2 + $0x148] sm:$0xff]
    %v137 = vld [vmem:[#allocation2 + $0x150] sm:$0xff]
    %v138 = vld [vmem:[#allocation2 + $0x158] sm:$0xff]
    %v139 = vld [vmem:[#allocation2 + $0x160] sm:$0xff]
    %v140 = vld [vmem:[#allocation2 + $0x168] sm:$0xff]
    %v141 = vld [vmem:[#allocation2 + $0x170] sm:$0xff]
    %v142 = vld [vmem:[#allocation2 + $0x178] sm:$0xff]
    %v143 = vld [vmem:[#allocation2 + $0x180] sm:$0xff]
    %v144 = vld [vmem:[#allocation2 + $0x188] sm:$0xff]
    %v145 = vld [vmem:[#allocation2 + $0x190] sm:$0xff]
    %v146 = vld [vmem:[#allocation2 + $0x198] sm:$0xff]
    %v147 = vld [vmem:[#allocation2 + $0x1a0] sm:$0xff]
    %v148 = vld [vmem:[#allocation2 + $0x1a8] sm:$0xff]
    %v149 = vld [vmem:[#allocation2 + $0x1b0] sm:$0xff]
    %v150 = vld [vmem:[#allocation2 + $0x1b8] sm:$0xff]
    %v151 = vld [vmem:[#allocation2 + $0x1c0] sm:$0xff]
    %v152 = vld [vmem:[#allocation2 + $0x1c8] sm:$0xff]
    %v153 = vld [vmem:[#allocation2 + $0x1d0] sm:$0xff]
    %v154 = vld [vmem:[#allocation2 + $0x1d8] sm:$0xff]
    %v155 = vld [vmem:[#allocation2 + $0x1e0] sm:$0xff]
    %v156 = vld [vmem:[#allocation2 + $0x1e8] sm:$0xff]
    %v157 = vld [vmem:[#allocation2 + $0x1f0] sm:$0xff]
    %v158 = vld [vmem:[#allocation2 + $0x1f8] sm:$0xff]
    %v159 = vld [vmem:[#allocation2 + $0x200] sm:$0xff]
    %v160 = vld [vmem:[#allocation2 + $0x208] sm:$0xff]
    %v161 = vld [vmem:[#allocation2 + $0x210] sm:$0xff]
    %v162 = vld [vmem:[#allocation2 + $0x218] sm:$0xff]
    %v163 = vld [vmem:[#allocation2 + $0x220] sm:$0xff]
    %v164 = vld [vmem:[#allocation2 + $0x228] sm:$0xff]
    %v165 = vld [vmem:[#allocation2 + $0x230] sm:$0xff]
    %v166 = vld [vmem:[#allocation2 + $0x238] sm:$0xff]
    %v167 = vld [vmem:[#allocation2 + $0x240] sm:$0xff]
    %v168 = vld [vmem:[#allocation2 + $0x248] sm:$0xff]
    %v169 = vld [vmem:[#allocation2 + $0x250] sm:$0xff]
    %v170 = vld [vmem:[#allocation2 + $0x258] sm:$0xff]
    %v171 = vld [vmem:[#allocation2 + $0x260] sm:$0xff]
    %v172 = vld [vmem:[#allocation2 + $0x268] sm:$0xff]
    %v173 = vld [vmem:[#allocation2 + $0x270] sm:$0xff]
    %v174 = vld [vmem:[#allocation2 + $0x278] sm:$0xff]
    %v175 = vld [vmem:[#allocation2 + $0x280] sm:$0xff]
    %v176 = vld [vmem:[#allocation2 + $0x288] sm:$0xff]
    %v177 = vld [vmem:[#allocation2 + $0x290] sm:$0xff]
    %v178 = vld [vmem:[#allocation2 + $0x298] sm:$0xff]
    %v179 = vld [vmem:[#allocation2 + $0x2a0] sm:$0xff]
    %v180 = vld [vmem:[#allocation2 + $0x2a8] sm:$0xff]
    %v181 = vld [vmem:[#allocation2 + $0x2b0] sm:$0xff]
    %v182 = vld [vmem:[#allocation2 + $0x2b8] sm:$0xff]
    %v183 = vld [vmem:[#allocation2 + $0x2c0] sm:$0xff]
    %v184 = vld [vmem:[#allocation2 + $0x2c8] sm:$0xff]
    %v185 = vld [vmem:[#allocation2 + $0x2d0] sm:$0xff]
    %v186 = vld [vmem:[#allocation2 + $0x2d8] sm:$0xff]
    %v187 = vld [vmem:[#allocation2 + $0x2e0] sm:$0xff]
    %v188 = vld [vmem:[#allocation2 + $0x2e8] sm:$0xff]
    %v189 = vld [vmem:[#allocation2 + $0x2f0] sm:$0xff]
    %v190 = vld [vmem:[#allocation2 + $0x2f8] sm:$0xff]
    %v191 = vld [vmem:[#allocation2 + $0x300] sm:$0xff]
    %v192 = vld [vmem:[#allocation2 + $0x308] sm:$0xff]
    %v193 = vld [vmem:[#allocation2 + $0x310] sm:$0xff]
    %v194 = vld [vmem:[#allocation2 + $0x318] sm:$0xff]
    %v195 = vld [vmem:[#allocation2 + $0x320] sm:$0xff]
    %v196 = vld [vmem:[#allocation2 + $0x328] sm:$0xff]
    %v197 = vld [vmem:[#allocation2 + $0x330] sm:$0xff]
    %v198 = vld [vmem:[#allocation2 + $0x338] sm:$0xff]
    %v199 = vld [vmem:[#allocation2 + $0x340] sm:$0xff]
    %v200 = vld [vmem:[#allocation2 + $0x348] sm:$0xff]
    %v201 = vld [vmem:[#allocation2 + $0x350] sm:$0xff]
    %v202 = vld [vmem:[#allocation2 + $0x358] sm:$0xff]
    %v203 = vld [vmem:[#allocation2 + $0x360] sm:$0xff]
    %v204 = vld [vmem:[#allocation2 + $0x368] sm:$0xff]
    %v205 = vld [vmem:[#allocation2 + $0x370] sm:$0xff]
    %v206 = vld [vmem:[#allocation2 + $0x378] sm:$0xff]
    %v207 = vld [vmem:[#allocation2 + $0x380] sm:$0xff]
    %v208 = vld [vmem:[#allocation2 + $0x388] sm:$0xff]
    %v209 = vld [vmem:[#allocation2 + $0x390] sm:$0xff]
    %v210 = vld [vmem:[#allocation2 + $0x398] sm:$0xff]
    %v211 = vld [vmem:[#allocation2 + $0x3a0] sm:$0xff]
    %v212 = vld [vmem:[#allocation2 + $0x3a8] sm:$0xff]
    %v213 = vld [vmem:[#allocation2 + $0x3b0] sm:$0xff]
    %v214 = vld [vmem:[#allocation2 + $0x3b8] sm:$0xff]
    %v215 = vld [vmem:[#allocation2 + $0x3c0] sm:$0xff]
    %v216 = vld [vmem:[#allocation2 + $0x3c8] sm:$0xff]
    %v217 = vld [vmem:[#allocation2 + $0x3d0] sm:$0xff]
    %v218 = vld [vmem:[#allocation2 + $0x3d8] sm:$0xff]
    %v219 = vld [vmem:[#allocation2 + $0x3e0] sm:$0xff]
    %v220 = vld [vmem:[#allocation2 + $0x3e8] sm:$0xff]
    %v221 = vld [vmem:[#allocation2 + $0x3f0] sm:$0xff]
    %v222 = vld [vmem:[#allocation2 + $0x3f8] sm:$0xff]
    %v223 = vld [vmem:[#allocation2 + $0x400] sm:$0xff]
    %v224 = vld [vmem:[#allocation2 + $0x408] sm:$0xff]
    %v225 = vld [vmem:[#allocation2 + $0x410] sm:$0xff]
    %v226 = vld [vmem:[#allocation2 + $0x418] sm:$0xff]
    %v227 = vld [vmem:[#allocation2 + $0x420] sm:$0xff]
    %v228 = vld [vmem:[#allocation2 + $0x428] sm:$0xff]
    %v229 = vld [vmem:[#allocation2 + $0x430] sm:$0xff]
    %v230 = vld [vmem:[#allocation2 + $0x438] sm:$0xff]
    %v231 = vld [vmem:[#allocation2 + $0x440] sm:$0xff]
    %v232 = vld [vmem:[#allocation2 + $0x448] sm:$0xff]
    %v233 = vld [vmem:[#allocation2 + $0x450] sm:$0xff]
    %v234 = vld [vmem:[#allocation2 + $0x458] sm:$0xff]
    %v235 = vld [vmem:[#allocation2 + $0x460] sm:$0xff]
    %v236 = vld [vmem:[#allocation2 + $0x468] sm:$0xff]
    %v237 = vld [vmem:[#allocation2 + $0x470] sm:$0xff]
    %v238 = vld [vmem:[#allocation2 + $0x478] sm:$0xff]
    %v239 = vld [vmem:[#allocation2 + $0x480] sm:$0xff]
    %v240 = vld [vmem:[#allocation2 + $0x488] sm:$0xff]
    %v241 = vld [vmem:[#allocation2 + $0x490] sm:$0xff]
    %v242 = vld [vmem:[#allocation2 + $0x498] sm:$0xff]
    %v243 = vld [vmem:[#allocation2 + $0x4a0] sm:$0xff]
    %v244 = vld [vmem:[#allocation2 + $0x4a8] sm:$0xff]
    %v245 = vld [vmem:[#allocation2 + $0x4b0] sm:$0xff]
    %v246 = vld [vmem:[#allocation2 + $0x4b8] sm:$0xff]
    %v247 = vld [vmem:[#allocation2 + $0x4c0] sm:$0xff]
    %v248 = vld [vmem:[#allocation2 + $0x4c8] sm:$0xff]
    %v249 = vld [vmem:[#allocation2 + $0x4d0] sm:$0xff]
    %v250 = vld [vmem:[#allocation2 + $0x4d8] sm:$0xff]
    %v251 = vld [vmem:[#allocation2 + $0x4e0] sm:$0xff]
    %v252 = vld [vmem:[#allocation2 + $0x4e8] sm:$0xff]
    %v253 = vld [vmem:[#allocation2 + $0x4f0] sm:$0xff]
    %v254 = vld [vmem:[#allocation2 + $0x4f8] sm:$0xff]
    %v255 = vld [vmem:[#allocation2 + $0x500] sm:$0xff]
    %v256 = vld [vmem:[#allocation2 + $0x508] sm:$0xff]
    %v257 = vld [vmem:[#allocation2 + $0x510] sm:$0xff]
    %v258 = vld [vmem:[#allocation2 + $0x518] sm:$0xff]
    %v259 = vld [vmem:[#allocation2 + $0x520] sm:$0xff]
    %v260 = vld [vmem:[#allocation2 + $0x528] sm:$0xff]
    %v261 = vld [vmem:[#allocation2 + $0x530] sm:$0xff]
    %v262 = vld [vmem:[#allocation2 + $0x538] sm:$0xff]
    %v263 = vld [vmem:[#allocation2 + $0x540] sm:$0xff]
    %v264 = vld [vmem:[#allocation2 + $0x548] sm:$0xff]
    %v265 = vld [vmem:[#allocation2 + $0x550] sm:$0xff]
    %v266 = vld [vmem:[#allocation2 + $0x558] sm:$0xff]
    %v267 = vld [vmem:[#allocation2 + $0x560] sm:$0xff]
    %v268 = vld [vmem:[#allocation2 + $0x568] sm:$0xff]
    %v269 = vld [vmem:[#allocation2 + $0x570] sm:$0xff]
    %v270 = vld [vmem:[#allocation2 + $0x578] sm:$0xff]
    %v271 = vld [vmem:[#allocation2 + $0x580] sm:$0xff]
    %v272 = vld [vmem:[#allocation2 + $0x588] sm:$0xff]
    %v273 = vld [vmem:[#allocation2 + $0x590] sm:$0xff]
    %v274 = vld [vmem:[#allocation2 + $0x598] sm:$0xff]
    %v275 = vld [vmem:[#allocation2 + $0x5a0] sm:$0xff]
    %v276 = vld [vmem:[#allocation2 + $0x5a8] sm:$0xff]
    %v277 = vld [vmem:[#allocation2 + $0x5b0] sm:$0xff]
    %v278 = vld [vmem:[#allocation2 + $0x5b8] sm:$0xff]
    %v279 = vld [vmem:[#allocation2 + $0x5c0] sm:$0xff]
    %v280 = vld [vmem:[#allocation2 + $0x5c8] sm:$0xff]
    %v281 = vld [vmem:[#allocation2 + $0x5d0] sm:$0xff]
    %v282 = vld [vmem:[#allocation2 + $0x5d8] sm:$0xff]
    %v283 = vld [vmem:[#allocation2 + $0x5e0] sm:$0xff]
    %v284 = vld [vmem:[#allocation2 + $0x5e8] sm:$0xff]
    %v285 = vld [vmem:[#allocation2 + $0x5f0] sm:$0xff]
    %v286 = vld [vmem:[#allocation2 + $0x5f8] sm:$0xff]
    %v287 = vld [vmem:[#allocation2 + $0x600] sm:$0xff]
    %v288 = vld [vmem:[#allocation2 + $0x608] sm:$0xff]
    %v289 = vld [vmem:[#allocation2 + $0x610] sm:$0xff]
    %v290 = vld [vmem:[#allocation2 + $0x618] sm:$0xff]
    %v291 = vld [vmem:[#allocation2 + $0x620] sm:$0xff]
    %v292 = vld [vmem:[#allocation2 + $0x628] sm:$0xff]
    %v293 = vld [vmem:[#allocation2 + $0x630] sm:$0xff]
    %v294 = vld [vmem:[#allocation2 + $0x638] sm:$0xff]
    %v295 = vld [vmem:[#allocation2 + $0x640] sm:$0xff]
    %v296 = vld [vmem:[#allocation2 + $0x648] sm:$0xff]
    %v297 = vld [vmem:[#allocation2 + $0x650] sm:$0xff]
    %v298 = vld [vmem:[#allocation2 + $0x658] sm:$0xff]
    %v299 = vld [vmem:[#allocation2 + $0x660] sm:$0xff]
    %v300 = vld [vmem:[#allocation2 + $0x668] sm:$0xff]
    %v301 = vld [vmem:[#allocation2 + $0x670] sm:$0xff]
    %v302 = vld [vmem:[#allocation2 + $0x678] sm:$0xff]
    %v303 = vld [vmem:[#allocation2 + $0x680] sm:$0xff]
    %v304 = vld [vmem:[#allocation2 + $0x688] sm:$0xff]
    %v305 = vld [vmem:[#allocation2 + $0x690] sm:$0xff]
    %v306 = vld [vmem:[#allocation2 + $0x698] sm:$0xff]
    %v307 = vld [vmem:[#allocation2 + $0x6a0] sm:$0xff]
    %v308 = vld [vmem:[#allocation2 + $0x6a8] sm:$0xff]
    %v309 = vld [vmem:[#allocation2 + $0x6b0] sm:$0xff]
    %v310 = vld [vmem:[#allocation2 + $0x6b8] sm:$0xff]
    %v311 = vld [vmem:[#allocation2 + $0x6c0] sm:$0xff]
    %v312 = vld [vmem:[#allocation2 + $0x6c8] sm:$0xff]
    %v313 = vld [vmem:[#allocation2 + $0x6d0] sm:$0xff]
    %v314 = vld [vmem:[#allocation2 + $0x6d8] sm:$0xff]
    %v315 = vld [vmem:[#allocation2 + $0x6e0] sm:$0xff]
    %v316 = vld [vmem:[#allocation2 + $0x6e8] sm:$0xff]
    %v317 = vld [vmem:[#allocation2 + $0x6f0] sm:$0xff]
    %v318 = vld [vmem:[#allocation2 + $0x6f8] sm:$0xff]
    %v319 = vld [vmem:[#allocation2 + $0x700] sm:$0xff]
    %v320 = vld [vmem:[#allocation2 + $0x708] sm:$0xff]
    %v321 = vld [vmem:[#allocation2 + $0x710] sm:$0xff]
    %v322 = vld [vmem:[#allocation2 + $0x718] sm:$0xff]
    %v323 = vld [vmem:[#allocation2 + $0x720] sm:$0xff]
    %v324 = vld [vmem:[#allocation2 + $0x728] sm:$0xff]
    %v325 = vld [vmem:[#allocation2 + $0x730] sm:$0xff]
    %v326 = vld [vmem:[#allocation2 + $0x738] sm:$0xff]
    %v327 = vld [vmem:[#allocation2 + $0x740] sm:$0xff]
    %v328 = vld [vmem:[#allocation2 + $0x748] sm:$0xff]
    %v329 = vld [vmem:[#allocation2 + $0x750] sm:$0xff]
    %v330 = vld [vmem:[#allocation2 + $0x758] sm:$0xff]
    %v331 = vld [vmem:[#allocation2 + $0x760] sm:$0xff]
    %v332 = vld [vmem:[#allocation2 + $0x768] sm:$0xff]
    %v333 = vld [vmem:[#allocation2 + $0x770] sm:$0xff]
    %v334 = vld [vmem:[#allocation2 + $0x778] sm:$0xff]
    %v335 = vld [vmem:[#allocation2 + $0x780] sm:$0xff]
    %v336 = vld [vmem:[#allocation2 + $0x788] sm:$0xff]
    %v337 = vld [vmem:[#allocation2 + $0x790] sm:$0xff]
    %v338 = vld [vmem:[#allocation2 + $0x798] sm:$0xff]
    %v339 = vld [vmem:[#allocation2 + $0x7a0] sm:$0xff]
    %v340 = vld [vmem:[#allocation2 + $0x7a8] sm:$0xff]
    %v341 = vld [vmem:[#allocation2 + $0x7b0] sm:$0xff]
    %v342 = vld [vmem:[#allocation2 + $0x7b8] sm:$0xff]
    %v343 = vld [vmem:[#allocation2 + $0x7c0] sm:$0xff]
    %v344 = vld [vmem:[#allocation2 + $0x7c8] sm:$0xff]
    %v345 = vld [vmem:[#allocation2 + $0x7d0] sm:$0xff]
    %v346 = vld [vmem:[#allocation2 + $0x7d8] sm:$0xff]
    %v347 = vld [vmem:[#allocation2 + $0x7e0] sm:$0xff]
    %v348 = vld [vmem:[#allocation2 + $0x7e8] sm:$0xff]
    %v349 = vld [vmem:[#allocation2 + $0x7f0] sm:$0xff]
    %v350 = vld [vmem:[#allocation2 + $0x7f8] sm:$0xff]
    %v351 = vpack.c.bf16 %v103, %v95
    %v352 = vpack.c.bf16 %v104, %v96
    %v353 = vpack.c.bf16 %v105, %v97
    %v354 = vpack.c.bf16 %v106, %v98
    %v355 = vpack.c.bf16 %v107, %v99
    %v356 = vpack.c.bf16 %v108, %v100
    %v357 = vpack.c.bf16 %v109, %v101
    %v358 = vpack.c.bf16 %v110, %v102
    %v359 = vpack.c.bf16 %v119, %v111
    %v360 = vpack.c.bf16 %v120, %v112
    %v361 = vpack.c.bf16 %v121, %v113
    %v362 = vpack.c.bf16 %v122, %v114
    %v363 = vpack.c.bf16 %v123, %v115
    %v364 = vpack.c.bf16 %v124, %v116
    %v365 = vpack.c.bf16 %v125, %v117
    %v366 = vpack.c.bf16 %v126, %v118
    %v367 = vpack.c.bf16 %v135, %v127
    %v368 = vpack.c.bf16 %v136, %v128
    %v369 = vpack.c.bf16 %v137, %v129
    %v370 = vpack.c.bf16 %v138, %v130
    %v371 = vpack.c.bf16 %v139, %v131
    %v372 = vpack.c.bf16 %v140, %v132
    %v373 = vpack.c.bf16 %v141, %v133
    %v374 = vpack.c.bf16 %v142, %v134
    %v375 = vpack.c.bf16 %v151, %v143
    %v376 = vpack.c.bf16 %v152, %v144
    %v377 = vpack.c.bf16 %v153, %v145
    %v378 = vpack.c.bf16 %v154, %v146
    %v379 = vpack.c.bf16 %v155, %v147
    %v380 = vpack.c.bf16 %v156, %v148
    %v381 = vpack.c.bf16 %v157, %v149
    %v382 = vpack.c.bf16 %v158, %v150
    %v383 = vpack.c.bf16 %v167, %v159
    %v384 = vpack.c.bf16 %v168, %v160
    %v385 = vpack.c.bf16 %v169, %v161
    %v386 = vpack.c.bf16 %v170, %v162
    %v387 = vpack.c.bf16 %v171, %v163
    %v388 = vpack.c.bf16 %v172, %v164
    %v389 = vpack.c.bf16 %v173, %v165
    %v390 = vpack.c.bf16 %v174, %v166
    %v391 = vpack.c.bf16 %v183, %v175
    %v392 = vpack.c.bf16 %v184, %v176
    %v393 = vpack.c.bf16 %v185, %v177
    %v394 = vpack.c.bf16 %v186, %v178
    %v395 = vpack.c.bf16 %v187, %v179
    %v396 = vpack.c.bf16 %v188, %v180
    %v397 = vpack.c.bf16 %v189, %v181
    %v398 = vpack.c.bf16 %v190, %v182
    %v399 = vpack.c.bf16 %v199, %v191
    %v400 = vpack.c.bf16 %v200, %v192
    %v401 = vpack.c.bf16 %v201, %v193
    %v402 = vpack.c.bf16 %v202, %v194
    %v403 = vpack.c.bf16 %v203, %v195
    %v404 = vpack.c.bf16 %v204, %v196
    %v405 = vpack.c.bf16 %v205, %v197
    %v406 = vpack.c.bf16 %v206, %v198
    %v407 = vpack.c.bf16 %v215, %v207
    %v408 = vpack.c.bf16 %v216, %v208
    %v409 = vpack.c.bf16 %v217, %v209
    %v410 = vpack.c.bf16 %v218, %v210
    %v411 = vpack.c.bf16 %v219, %v211
    %v412 = vpack.c.bf16 %v220, %v212
    %v413 = vpack.c.bf16 %v221, %v213
    %v414 = vpack.c.bf16 %v222, %v214
    %v415 = vpack.c.bf16 %v231, %v223
    %v416 = vpack.c.bf16 %v232, %v224
    %v417 = vpack.c.bf16 %v233, %v225
    %v418 = vpack.c.bf16 %v234, %v226
    %v419 = vpack.c.bf16 %v235, %v227
    %v420 = vpack.c.bf16 %v236, %v228
    %v421 = vpack.c.bf16 %v237, %v229
    %v422 = vpack.c.bf16 %v238, %v230
    %v423 = vpack.c.bf16 %v247, %v239
    %v424 = vpack.c.bf16 %v248, %v240
    %v425 = vpack.c.bf16 %v249, %v241
    %v426 = vpack.c.bf16 %v250, %v242
    %v427 = vpack.c.bf16 %v251, %v243
    %v428 = vpack.c.bf16 %v252, %v244
    %v429 = vpack.c.bf16 %v253, %v245
    %v430 = vpack.c.bf16 %v254, %v246
    %v431 = vpack.c.bf16 %v263, %v255
    %v432 = vpack.c.bf16 %v264, %v256
    %v433 = vpack.c.bf16 %v265, %v257
    %v434 = vpack.c.bf16 %v266, %v258
    %v435 = vpack.c.bf16 %v267, %v259
    %v436 = vpack.c.bf16 %v268, %v260
    %v437 = vpack.c.bf16 %v269, %v261
    %v438 = vpack.c.bf16 %v270, %v262
    %v439 = vpack.c.bf16 %v279, %v271
    %v440 = vpack.c.bf16 %v280, %v272
    %v441 = vpack.c.bf16 %v281, %v273
    %v442 = vpack.c.bf16 %v282, %v274
    %v443 = vpack.c.bf16 %v283, %v275
    %v444 = vpack.c.bf16 %v284, %v276
    %v445 = vpack.c.bf16 %v285, %v277
    %v446 = vpack.c.bf16 %v286, %v278
    %v447 = vpack.c.bf16 %v295, %v287
    %v448 = vpack.c.bf16 %v296, %v288
    %v449 = vpack.c.bf16 %v297, %v289
    %v450 = vpack.c.bf16 %v298, %v290
    %v451 = vpack.c.bf16 %v299, %v291
    %v452 = vpack.c.bf16 %v300, %v292
    %v453 = vpack.c.bf16 %v301, %v293
    %v454 = vpack.c.bf16 %v302, %v294
    %v455 = vpack.c.bf16 %v311, %v303
    %v456 = vpack.c.bf16 %v312, %v304
    %v457 = vpack.c.bf16 %v313, %v305
    %v458 = vpack.c.bf16 %v314, %v306
    %v459 = vpack.c.bf16 %v315, %v307
    %v460 = vpack.c.bf16 %v316, %v308
    %v461 = vpack.c.bf16 %v317, %v309
    %v462 = vpack.c.bf16 %v318, %v310
    %v463 = vpack.c.bf16 %v327, %v319
    %v464 = vpack.c.bf16 %v328, %v320
    %v465 = vpack.c.bf16 %v329, %v321
    %v466 = vpack.c.bf16 %v330, %v322
    %v467 = vpack.c.bf16 %v331, %v323
    %v468 = vpack.c.bf16 %v332, %v324
    %v469 = vpack.c.bf16 %v333, %v325
    %v470 = vpack.c.bf16 %v334, %v326
    %v471 = vpack.c.bf16 %v343, %v335
    %v472 = vpack.c.bf16 %v344, %v336
    %v473 = vpack.c.bf16 %v345, %v337
    %v474 = vpack.c.bf16 %v346, %v338
    %v475 = vpack.c.bf16 %v347, %v339
    %v476 = vpack.c.bf16 %v348, %v340
    %v477 = vpack.c.bf16 %v349, %v341
    %v478 = vpack.c.bf16 %v350, %v342
    %v479 = vld [vmem:[#allocation5] sm:$0xff]
    %v480 = vld [vmem:[#allocation5 + $0x8] sm:$0xff]
    %v481 = vld [vmem:[#allocation5 + $0x10] sm:$0xff]
    %v482 = vld [vmem:[#allocation5 + $0x18] sm:$0xff]
    %v483 = vld [vmem:[#allocation5 + $0x20] sm:$0xff]
    %v484 = vld [vmem:[#allocation5 + $0x28] sm:$0xff]
    %v485 = vld [vmem:[#allocation5 + $0x30] sm:$0xff]
    %v486 = vld [vmem:[#allocation5 + $0x38] sm:$0xff]
    %v487 = vld [vmem:[#allocation5 + $0x40] sm:$0xff]
    %v488 = vld [vmem:[#allocation5 + $0x48] sm:$0xff]
    %v489 = vld [vmem:[#allocation5 + $0x50] sm:$0xff]
    %v490 = vld [vmem:[#allocation5 + $0x58] sm:$0xff]
    %v491 = vld [vmem:[#allocation5 + $0x60] sm:$0xff]
    %v492 = vld [vmem:[#allocation5 + $0x68] sm:$0xff]
    %v493 = vld [vmem:[#allocation5 + $0x70] sm:$0xff]
    %v494 = vld [vmem:[#allocation5 + $0x78] sm:$0xff]
    %v495 = vld [vmem:[#allocation5 + $0x80] sm:$0xff]
    %v496 = vld [vmem:[#allocation5 + $0x88] sm:$0xff]
    %v497 = vld [vmem:[#allocation5 + $0x90] sm:$0xff]
    %v498 = vld [vmem:[#allocation5 + $0x98] sm:$0xff]
    %v499 = vld [vmem:[#allocation5 + $0xa0] sm:$0xff]
    %v500 = vld [vmem:[#allocation5 + $0xa8] sm:$0xff]
    %v501 = vld [vmem:[#allocation5 + $0xb0] sm:$0xff]
    %v502 = vld [vmem:[#allocation5 + $0xb8] sm:$0xff]
    %v503 = vld [vmem:[#allocation5 + $0xc0] sm:$0xff]
    %v504 = vld [vmem:[#allocation5 + $0xc8] sm:$0xff]
    %v505 = vld [vmem:[#allocation5 + $0xd0] sm:$0xff]
    %v506 = vld [vmem:[#allocation5 + $0xd8] sm:$0xff]
    %v507 = vld [vmem:[#allocation5 + $0xe0] sm:$0xff]
    %v508 = vld [vmem:[#allocation5 + $0xe8] sm:$0xff]
    %v509 = vld [vmem:[#allocation5 + $0xf0] sm:$0xff]
    %v510 = vld [vmem:[#allocation5 + $0xf8] sm:$0xff]
    %v511 = vld [vmem:[#allocation5 + $0x100] sm:$0xff]
    %v512 = vld [vmem:[#allocation5 + $0x108] sm:$0xff]
    %v513 = vld [vmem:[#allocation5 + $0x110] sm:$0xff]
    %v514 = vld [vmem:[#allocation5 + $0x118] sm:$0xff]
    %v515 = vld [vmem:[#allocation5 + $0x120] sm:$0xff]
    %v516 = vld [vmem:[#allocation5 + $0x128] sm:$0xff]
    %v517 = vld [vmem:[#allocation5 + $0x130] sm:$0xff]
    %v518 = vld [vmem:[#allocation5 + $0x138] sm:$0xff]
    %v519 = vld [vmem:[#allocation5 + $0x140] sm:$0xff]
    %v520 = vld [vmem:[#allocation5 + $0x148] sm:$0xff]
    %v521 = vld [vmem:[#allocation5 + $0x150] sm:$0xff]
    %v522 = vld [vmem:[#allocation5 + $0x158] sm:$0xff]
    %v523 = vld [vmem:[#allocation5 + $0x160] sm:$0xff]
    %v524 = vld [vmem:[#allocation5 + $0x168] sm:$0xff]
    %v525 = vld [vmem:[#allocation5 + $0x170] sm:$0xff]
    %v526 = vld [vmem:[#allocation5 + $0x178] sm:$0xff]
    %v527 = vld [vmem:[#allocation5 + $0x180] sm:$0xff]
    %v528 = vld [vmem:[#allocation5 + $0x188] sm:$0xff]
    %v529 = vld [vmem:[#allocation5 + $0x190] sm:$0xff]
    %v530 = vld [vmem:[#allocation5 + $0x198] sm:$0xff]
    %v531 = vld [vmem:[#allocation5 + $0x1a0] sm:$0xff]
    %v532 = vld [vmem:[#allocation5 + $0x1a8] sm:$0xff]
    %v533 = vld [vmem:[#allocation5 + $0x1b0] sm:$0xff]
    %v534 = vld [vmem:[#allocation5 + $0x1b8] sm:$0xff]
    %v535 = vld [vmem:[#allocation5 + $0x1c0] sm:$0xff]
    %v536 = vld [vmem:[#allocation5 + $0x1c8] sm:$0xff]
    %v537 = vld [vmem:[#allocation5 + $0x1d0] sm:$0xff]
    %v538 = vld [vmem:[#allocation5 + $0x1d8] sm:$0xff]
    %v539 = vld [vmem:[#allocation5 + $0x1e0] sm:$0xff]
    %v540 = vld [vmem:[#allocation5 + $0x1e8] sm:$0xff]
    %v541 = vld [vmem:[#allocation5 + $0x1f0] sm:$0xff]
    %v542 = vld [vmem:[#allocation5 + $0x1f8] sm:$0xff]
    %v543 = vld [vmem:[#allocation5 + $0x200] sm:$0xff]
    %v544 = vld [vmem:[#allocation5 + $0x208] sm:$0xff]
    %v545 = vld [vmem:[#allocation5 + $0x210] sm:$0xff]
    %v546 = vld [vmem:[#allocation5 + $0x218] sm:$0xff]
    %v547 = vld [vmem:[#allocation5 + $0x220] sm:$0xff]
    %v548 = vld [vmem:[#allocation5 + $0x228] sm:$0xff]
    %v549 = vld [vmem:[#allocation5 + $0x230] sm:$0xff]
    %v550 = vld [vmem:[#allocation5 + $0x238] sm:$0xff]
    %v551 = vld [vmem:[#allocation5 + $0x240] sm:$0xff]
    %v552 = vld [vmem:[#allocation5 + $0x248] sm:$0xff]
    %v553 = vld [vmem:[#allocation5 + $0x250] sm:$0xff]
    %v554 = vld [vmem:[#allocation5 + $0x258] sm:$0xff]
    %v555 = vld [vmem:[#allocation5 + $0x260] sm:$0xff]
    %v556 = vld [vmem:[#allocation5 + $0x268] sm:$0xff]
    %v557 = vld [vmem:[#allocation5 + $0x270] sm:$0xff]
    %v558 = vld [vmem:[#allocation5 + $0x278] sm:$0xff]
    %v559 = vld [vmem:[#allocation5 + $0x280] sm:$0xff]
    %v560 = vld [vmem:[#allocation5 + $0x288] sm:$0xff]
    %v561 = vld [vmem:[#allocation5 + $0x290] sm:$0xff]
    %v562 = vld [vmem:[#allocation5 + $0x298] sm:$0xff]
    %v563 = vld [vmem:[#allocation5 + $0x2a0] sm:$0xff]
    %v564 = vld [vmem:[#allocation5 + $0x2a8] sm:$0xff]
    %v565 = vld [vmem:[#allocation5 + $0x2b0] sm:$0xff]
    %v566 = vld [vmem:[#allocation5 + $0x2b8] sm:$0xff]
    %v567 = vld [vmem:[#allocation5 + $0x2c0] sm:$0xff]
    %v568 = vld [vmem:[#allocation5 + $0x2c8] sm:$0xff]
    %v569 = vld [vmem:[#allocation5 + $0x2d0] sm:$0xff]
    %v570 = vld [vmem:[#allocation5 + $0x2d8] sm:$0xff]
    %v571 = vld [vmem:[#allocation5 + $0x2e0] sm:$0xff]
    %v572 = vld [vmem:[#allocation5 + $0x2e8] sm:$0xff]
    %v573 = vld [vmem:[#allocation5 + $0x2f0] sm:$0xff]
    %v574 = vld [vmem:[#allocation5 + $0x2f8] sm:$0xff]
    %v575 = vld [vmem:[#allocation5 + $0x300] sm:$0xff]
    %v576 = vld [vmem:[#allocation5 + $0x308] sm:$0xff]
    %v577 = vld [vmem:[#allocation5 + $0x310] sm:$0xff]
    %v578 = vld [vmem:[#allocation5 + $0x318] sm:$0xff]
    %v579 = vld [vmem:[#allocation5 + $0x320] sm:$0xff]
    %v580 = vld [vmem:[#allocation5 + $0x328] sm:$0xff]
    %v581 = vld [vmem:[#allocation5 + $0x330] sm:$0xff]
    %v582 = vld [vmem:[#allocation5 + $0x338] sm:$0xff]
    %v583 = vld [vmem:[#allocation5 + $0x340] sm:$0xff]
    %v584 = vld [vmem:[#allocation5 + $0x348] sm:$0xff]
    %v585 = vld [vmem:[#allocation5 + $0x350] sm:$0xff]
    %v586 = vld [vmem:[#allocation5 + $0x358] sm:$0xff]
    %v587 = vld [vmem:[#allocation5 + $0x360] sm:$0xff]
    %v588 = vld [vmem:[#allocation5 + $0x368] sm:$0xff]
    %v589 = vld [vmem:[#allocation5 + $0x370] sm:$0xff]
    %v590 = vld [vmem:[#allocation5 + $0x378] sm:$0xff]
    %v591 = vld [vmem:[#allocation5 + $0x380] sm:$0xff]
    %v592 = vld [vmem:[#allocation5 + $0x388] sm:$0xff]
    %v593 = vld [vmem:[#allocation5 + $0x390] sm:$0xff]
    %v594 = vld [vmem:[#allocation5 + $0x398] sm:$0xff]
    %v595 = vld [vmem:[#allocation5 + $0x3a0] sm:$0xff]
    %v596 = vld [vmem:[#allocation5 + $0x3a8] sm:$0xff]
    %v597 = vld [vmem:[#allocation5 + $0x3b0] sm:$0xff]
    %v598 = vld [vmem:[#allocation5 + $0x3b8] sm:$0xff]
    %v599 = vld [vmem:[#allocation5 + $0x3c0] sm:$0xff]
    %v600 = vld [vmem:[#allocation5 + $0x3c8] sm:$0xff]
    %v601 = vld [vmem:[#allocation5 + $0x3d0] sm:$0xff]
    %v602 = vld [vmem:[#allocation5 + $0x3d8] sm:$0xff]
    %v603 = vld [vmem:[#allocation5 + $0x3e0] sm:$0xff]
    %v604 = vld [vmem:[#allocation5 + $0x3e8] sm:$0xff]
    %v605 = vld [vmem:[#allocation5 + $0x3f0] sm:$0xff]
    %v606 = vld [vmem:[#allocation5 + $0x3f8] sm:$0xff]
    %v607 = vld [vmem:[#allocation5 + $0x400] sm:$0xff]
    %v608 = vld [vmem:[#allocation5 + $0x408] sm:$0xff]
    %v609 = vld [vmem:[#allocation5 + $0x410] sm:$0xff]
    %v610 = vld [vmem:[#allocation5 + $0x418] sm:$0xff]
    %v611 = vld [vmem:[#allocation5 + $0x420] sm:$0xff]
    %v612 = vld [vmem:[#allocation5 + $0x428] sm:$0xff]
    %v613 = vld [vmem:[#allocation5 + $0x430] sm:$0xff]
    %v614 = vld [vmem:[#allocation5 + $0x438] sm:$0xff]
    %v615 = vld [vmem:[#allocation5 + $0x440] sm:$0xff]
    %v616 = vld [vmem:[#allocation5 + $0x448] sm:$0xff]
    %v617 = vld [vmem:[#allocation5 + $0x450] sm:$0xff]
    %v618 = vld [vmem:[#allocation5 + $0x458] sm:$0xff]
    %v619 = vld [vmem:[#allocation5 + $0x460] sm:$0xff]
    %v620 = vld [vmem:[#allocation5 + $0x468] sm:$0xff]
    %v621 = vld [vmem:[#allocation5 + $0x470] sm:$0xff]
    %v622 = vld [vmem:[#allocation5 + $0x478] sm:$0xff]
    %v623 = vld [vmem:[#allocation5 + $0x480] sm:$0xff]
    %v624 = vld [vmem:[#allocation5 + $0x488] sm:$0xff]
    %v625 = vld [vmem:[#allocation5 + $0x490] sm:$0xff]
    %v626 = vld [vmem:[#allocation5 + $0x498] sm:$0xff]
    %v627 = vld [vmem:[#allocation5 + $0x4a0] sm:$0xff]
    %v628 = vld [vmem:[#allocation5 + $0x4a8] sm:$0xff]
    %v629 = vld [vmem:[#allocation5 + $0x4b0] sm:$0xff]
    %v630 = vld [vmem:[#allocation5 + $0x4b8] sm:$0xff]
    %v631 = vld [vmem:[#allocation5 + $0x4c0] sm:$0xff]
    %v632 = vld [vmem:[#allocation5 + $0x4c8] sm:$0xff]
    %v633 = vld [vmem:[#allocation5 + $0x4d0] sm:$0xff]
    %v634 = vld [vmem:[#allocation5 + $0x4d8] sm:$0xff]
    %v635 = vld [vmem:[#allocation5 + $0x4e0] sm:$0xff]
    %v636 = vld [vmem:[#allocation5 + $0x4e8] sm:$0xff]
    %v637 = vld [vmem:[#allocation5 + $0x4f0] sm:$0xff]
    %v638 = vld [vmem:[#allocation5 + $0x4f8] sm:$0xff]
    %v639 = vld [vmem:[#allocation5 + $0x500] sm:$0xff]
    %v640 = vld [vmem:[#allocation5 + $0x508] sm:$0xff]
    %v641 = vld [vmem:[#allocation5 + $0x510] sm:$0xff]
    %v642 = vld [vmem:[#allocation5 + $0x518] sm:$0xff]
    %v643 = vld [vmem:[#allocation5 + $0x520] sm:$0xff]
    %v644 = vld [vmem:[#allocation5 + $0x528] sm:$0xff]
    %v645 = vld [vmem:[#allocation5 + $0x530] sm:$0xff]
    %v646 = vld [vmem:[#allocation5 + $0x538] sm:$0xff]
    %v647 = vld [vmem:[#allocation5 + $0x540] sm:$0xff]
    %v648 = vld [vmem:[#allocation5 + $0x548] sm:$0xff]
    %v649 = vld [vmem:[#allocation5 + $0x550] sm:$0xff]
    %v650 = vld [vmem:[#allocation5 + $0x558] sm:$0xff]
    %v651 = vld [vmem:[#allocation5 + $0x560] sm:$0xff]
    %v652 = vld [vmem:[#allocation5 + $0x568] sm:$0xff]
    %v653 = vld [vmem:[#allocation5 + $0x570] sm:$0xff]
    %v654 = vld [vmem:[#allocation5 + $0x578] sm:$0xff]
    %v655 = vld [vmem:[#allocation5 + $0x580] sm:$0xff]
    %v656 = vld [vmem:[#allocation5 + $0x588] sm:$0xff]
    %v657 = vld [vmem:[#allocation5 + $0x590] sm:$0xff]
    %v658 = vld [vmem:[#allocation5 + $0x598] sm:$0xff]
    %v659 = vld [vmem:[#allocation5 + $0x5a0] sm:$0xff]
    %v660 = vld [vmem:[#allocation5 + $0x5a8] sm:$0xff]
    %v661 = vld [vmem:[#allocation5 + $0x5b0] sm:$0xff]
    %v662 = vld [vmem:[#allocation5 + $0x5b8] sm:$0xff]
    %v663 = vld [vmem:[#allocation5 + $0x5c0] sm:$0xff]
    %v664 = vld [vmem:[#allocation5 + $0x5c8] sm:$0xff]
    %v665 = vld [vmem:[#allocation5 + $0x5d0] sm:$0xff]
    %v666 = vld [vmem:[#allocation5 + $0x5d8] sm:$0xff]
    %v667 = vld [vmem:[#allocation5 + $0x5e0] sm:$0xff]
    %v668 = vld [vmem:[#allocation5 + $0x5e8] sm:$0xff]
    %v669 = vld [vmem:[#allocation5 + $0x5f0] sm:$0xff]
    %v670 = vld [vmem:[#allocation5 + $0x5f8] sm:$0xff]
    %v671 = vld [vmem:[#allocation5 + $0x600] sm:$0xff]
    %v672 = vld [vmem:[#allocation5 + $0x608] sm:$0xff]
    %v673 = vld [vmem:[#allocation5 + $0x610] sm:$0xff]
    %v674 = vld [vmem:[#allocation5 + $0x618] sm:$0xff]
    %v675 = vld [vmem:[#allocation5 + $0x620] sm:$0xff]
    %v676 = vld [vmem:[#allocation5 + $0x628] sm:$0xff]
    %v677 = vld [vmem:[#allocation5 + $0x630] sm:$0xff]
    %v678 = vld [vmem:[#allocation5 + $0x638] sm:$0xff]
    %v679 = vld [vmem:[#allocation5 + $0x640] sm:$0xff]
    %v680 = vld [vmem:[#allocation5 + $0x648] sm:$0xff]
    %v681 = vld [vmem:[#allocation5 + $0x650] sm:$0xff]
    %v682 = vld [vmem:[#allocation5 + $0x658] sm:$0xff]
    %v683 = vld [vmem:[#allocation5 + $0x660] sm:$0xff]
    %v684 = vld [vmem:[#allocation5 + $0x668] sm:$0xff]
    %v685 = vld [vmem:[#allocation5 + $0x670] sm:$0xff]
    %v686 = vld [vmem:[#allocation5 + $0x678] sm:$0xff]
    %v687 = vld [vmem:[#allocation5 + $0x680] sm:$0xff]
    %v688 = vld [vmem:[#allocation5 + $0x688] sm:$0xff]
    %v689 = vld [vmem:[#allocation5 + $0x690] sm:$0xff]
    %v690 = vld [vmem:[#allocation5 + $0x698] sm:$0xff]
    %v691 = vld [vmem:[#allocation5 + $0x6a0] sm:$0xff]
    %v692 = vld [vmem:[#allocation5 + $0x6a8] sm:$0xff]
    %v693 = vld [vmem:[#allocation5 + $0x6b0] sm:$0xff]
    %v694 = vld [vmem:[#allocation5 + $0x6b8] sm:$0xff]
    %v695 = vld [vmem:[#allocation5 + $0x6c0] sm:$0xff]
    %v696 = vld [vmem:[#allocation5 + $0x6c8] sm:$0xff]
    %v697 = vld [vmem:[#allocation5 + $0x6d0] sm:$0xff]
    %v698 = vld [vmem:[#allocation5 + $0x6d8] sm:$0xff]
    %v699 = vld [vmem:[#allocation5 + $0x6e0] sm:$0xff]
    %v700 = vld [vmem:[#allocation5 + $0x6e8] sm:$0xff]
    %v701 = vld [vmem:[#allocation5 + $0x6f0] sm:$0xff]
    %v702 = vld [vmem:[#allocation5 + $0x6f8] sm:$0xff]
    %v703 = vld [vmem:[#allocation5 + $0x700] sm:$0xff]
    %v704 = vld [vmem:[#allocation5 + $0x708] sm:$0xff]
    %v705 = vld [vmem:[#allocation5 + $0x710] sm:$0xff]
    %v706 = vld [vmem:[#allocation5 + $0x718] sm:$0xff]
    %v707 = vld [vmem:[#allocation5 + $0x720] sm:$0xff]
    %v708 = vld [vmem:[#allocation5 + $0x728] sm:$0xff]
    %v709 = vld [vmem:[#allocation5 + $0x730] sm:$0xff]
    %v710 = vld [vmem:[#allocation5 + $0x738] sm:$0xff]
    %v711 = vld [vmem:[#allocation5 + $0x740] sm:$0xff]
    %v712 = vld [vmem:[#allocation5 + $0x748] sm:$0xff]
    %v713 = vld [vmem:[#allocation5 + $0x750] sm:$0xff]
    %v714 = vld [vmem:[#allocation5 + $0x758] sm:$0xff]
    %v715 = vld [vmem:[#allocation5 + $0x760] sm:$0xff]
    %v716 = vld [vmem:[#allocation5 + $0x768] sm:$0xff]
    %v717 = vld [vmem:[#allocation5 + $0x770] sm:$0xff]
    %v718 = vld [vmem:[#allocation5 + $0x778] sm:$0xff]
    %v719 = vld [vmem:[#allocation5 + $0x780] sm:$0xff]
    %v720 = vld [vmem:[#allocation5 + $0x788] sm:$0xff]
    %v721 = vld [vmem:[#allocation5 + $0x790] sm:$0xff]
    %v722 = vld [vmem:[#allocation5 + $0x798] sm:$0xff]
    %v723 = vld [vmem:[#allocation5 + $0x7a0] sm:$0xff]
    %v724 = vld [vmem:[#allocation5 + $0x7a8] sm:$0xff]
    %v725 = vld [vmem:[#allocation5 + $0x7b0] sm:$0xff]
    %v726 = vld [vmem:[#allocation5 + $0x7b8] sm:$0xff]
    %v727 = vld [vmem:[#allocation5 + $0x7c0] sm:$0xff]
    %v728 = vld [vmem:[#allocation5 + $0x7c8] sm:$0xff]
    %v729 = vld [vmem:[#allocation5 + $0x7d0] sm:$0xff]
    %v730 = vld [vmem:[#allocation5 + $0x7d8] sm:$0xff]
    %v731 = vld [vmem:[#allocation5 + $0x7e0] sm:$0xff]
    %v732 = vld [vmem:[#allocation5 + $0x7e8] sm:$0xff]
    %v733 = vld [vmem:[#allocation5 + $0x7f0] sm:$0xff]
    %v734 = vld [vmem:[#allocation5 + $0x7f8] sm:$0xff]
    %v735 = vld [vmem:[#allocation7] sm:$0xf]
    %v737 = vperm.slane %v735, 0
    %v738 = vperm.slane %v735, 1
    %v739 = vperm.slane %v735, 2
    %v740 = vperm.slane %v735, 3
    %v1001 = vunpack.c.l.b16 %v479
    %v1002 = vunpack.c.h.b16 %v479
    %v1003 = vunpack.c.l.b16 %v480
    %v1004 = vunpack.c.h.b16 %v480
    %v1005 = vunpack.c.l.b16 %v481
    %v1006 = vunpack.c.h.b16 %v481
    %v1007 = vunpack.c.l.b16 %v482
    %v1008 = vunpack.c.h.b16 %v482
    %v1009 = vunpack.c.l.b16 %v483
    %v1010 = vunpack.c.h.b16 %v483
    %v1011 = vunpack.c.l.b16 %v484
    %v1012 = vunpack.c.h.b16 %v484
    %v1013 = vunpack.c.l.b16 %v485
    %v1014 = vunpack.c.h.b16 %v485
    %v1015 = vunpack.c.l.b16 %v486
    %v1016 = vunpack.c.h.b16 %v486
    %v1017 = vunpack.c.l.b16 %v487
    %v1018 = vunpack.c.h.b16 %v487
    %v1019 = vunpack.c.l.b16 %v488
    %v1020 = vunpack.c.h.b16 %v488
    %v1021 = vunpack.c.l.b16 %v489
    %v1022 = vunpack.c.h.b16 %v489
    %v1023 = vunpack.c.l.b16 %v490
    %v1024 = vunpack.c.h.b16 %v490
    %v1025 = vunpack.c.l.b16 %v491
    %v1026 = vunpack.c.h.b16 %v491
    %v1027 = vunpack.c.l.b16 %v492
    %v1028 = vunpack.c.h.b16 %v492
    %v1029 = vunpack.c.l.b16 %v493
    %v1030 = vunpack.c.h.b16 %v493
    %v1031 = vunpack.c.l.b16 %v494
    %v1032 = vunpack.c.h.b16 %v494
    %v1033 = vunpack.c.l.b16 %v495
    %v1034 = vunpack.c.h.b16 %v495
    %v1035 = vunpack.c.l.b16 %v496
    %v1036 = vunpack.c.h.b16 %v496
    %v1037 = vunpack.c.l.b16 %v497
    %v1038 = vunpack.c.h.b16 %v497
    %v1039 = vunpack.c.l.b16 %v498
    %v1040 = vunpack.c.h.b16 %v498
    %v1041 = vunpack.c.l.b16 %v499
    %v1042 = vunpack.c.h.b16 %v499
    %v1043 = vunpack.c.l.b16 %v500
    %v1044 = vunpack.c.h.b16 %v500
    %v1045 = vunpack.c.l.b16 %v501
    %v1046 = vunpack.c.h.b16 %v501
    %v1047 = vunpack.c.l.b16 %v502
    %v1048 = vunpack.c.h.b16 %v502
    %v1049 = vunpack.c.l.b16 %v503
    %v1050 = vunpack.c.h.b16 %v503
    %v1051 = vunpack.c.l.b16 %v504
    %v1052 = vunpack.c.h.b16 %v504
    %v1053 = vunpack.c.l.b16 %v505
    %v1054 = vunpack.c.h.b16 %v505
    %v1055 = vunpack.c.l.b16 %v506
    %v1056 = vunpack.c.h.b16 %v506
    %v1057 = vunpack.c.l.b16 %v507
    %v1058 = vunpack.c.h.b16 %v507
    %v1059 = vunpack.c.l.b16 %v508
    %v1060 = vunpack.c.h.b16 %v508
    %v1061 = vunpack.c.l.b16 %v509
    %v1062 = vunpack.c.h.b16 %v509
    %v1063 = vunpack.c.l.b16 %v510
    %v1064 = vunpack.c.h.b16 %v510
    %v1065 = vunpack.c.l.b16 %v511
    %v1066 = vunpack.c.h.b16 %v511
    %v1067 = vunpack.c.l.b16 %v512
    %v1068 = vunpack.c.h.b16 %v512
    %v1069 = vunpack.c.l.b16 %v513
    %v1070 = vunpack.c.h.b16 %v513
    %v1071 = vunpack.c.l.b16 %v514
    %v1072 = vunpack.c.h.b16 %v514
    %v1073 = vunpack.c.l.b16 %v515
    %v1074 = vunpack.c.h.b16 %v515
    %v1075 = vunpack.c.l.b16 %v516
    %v1076 = vunpack.c.h.b16 %v516
    %v1077 = vunpack.c.l.b16 %v517
    %v1078 = vunpack.c.h.b16 %v517
    %v1079 = vunpack.c.l.b16 %v518
    %v1080 = vunpack.c.h.b16 %v518
    %v1081 = vunpack.c.l.b16 %v519
    %v1082 = vunpack.c.h.b16 %v519
    %v1083 = vunpack.c.l.b16 %v520
    %v1084 = vunpack.c.h.b16 %v520
    %v1085 = vunpack.c.l.b16 %v521
    %v1086 = vunpack.c.h.b16 %v521
    %v1087 = vunpack.c.l.b16 %v522
    %v1088 = vunpack.c.h.b16 %v522
    %v1089 = vunpack.c.l.b16 %v523
    %v1090 = vunpack.c.h.b16 %v523
    %v1091 = vunpack.c.l.b16 %v524
    %v1092 = vunpack.c.h.b16 %v524
    %v1093 = vunpack.c.l.b16 %v525
    %v1094 = vunpack.c.h.b16 %v525
    %v1095 = vunpack.c.l.b16 %v526
    %v1096 = vunpack.c.h.b16 %v526
    %v1097 = vunpack.c.l.b16 %v527
    %v1098 = vunpack.c.h.b16 %v527
    %v1099 = vunpack.c.l.b16 %v528
    %v1100 = vunpack.c.h.b16 %v528
    %v1101 = vunpack.c.l.b16 %v529
    %v1102 = vunpack.c.h.b16 %v529
    %v1103 = vunpack.c.l.b16 %v530
    %v1104 = vunpack.c.h.b16 %v530
    %v1105 = vunpack.c.l.b16 %v531
    %v1106 = vunpack.c.h.b16 %v531
    %v1107 = vunpack.c.l.b16 %v532
    %v1108 = vunpack.c.h.b16 %v532
    %v1109 = vunpack.c.l.b16 %v533
    %v1110 = vunpack.c.h.b16 %v533
    %v1111 = vunpack.c.l.b16 %v534
    %v1112 = vunpack.c.h.b16 %v534
    %v1113 = vunpack.c.l.b16 %v535
    %v1114 = vunpack.c.h.b16 %v535
    %v1115 = vunpack.c.l.b16 %v536
    %v1116 = vunpack.c.h.b16 %v536
    %v1117 = vunpack.c.l.b16 %v537
    %v1118 = vunpack.c.h.b16 %v537
    %v1119 = vunpack.c.l.b16 %v538
    %v1120 = vunpack.c.h.b16 %v538
    %v1121 = vunpack.c.l.b16 %v539
    %v1122 = vunpack.c.h.b16 %v539
    %v1123 = vunpack.c.l.b16 %v540
    %v1124 = vunpack.c.h.b16 %v540
    %v1125 = vunpack.c.l.b16 %v541
    %v1126 = vunpack.c.h.b16 %v541
    %v1127 = vunpack.c.l.b16 %v542
    %v1128 = vunpack.c.h.b16 %v542
    %v1129 = vunpack.c.l.b16 %v543
    %v1130 = vunpack.c.h.b16 %v543
    %v1131 = vunpack.c.l.b16 %v544
    %v1132 = vunpack.c.h.b16 %v544
    %v1133 = vunpack.c.l.b16 %v545
    %v1134 = vunpack.c.h.b16 %v545
    %v1135 = vunpack.c.l.b16 %v546
    %v1136 = vunpack.c.h.b16 %v546
    %v1137 = vunpack.c.l.b16 %v547
    %v1138 = vunpack.c.h.b16 %v547
    %v1139 = vunpack.c.l.b16 %v548
    %v1140 = vunpack.c.h.b16 %v548
    %v1141 = vunpack.c.l.b16 %v549
    %v1142 = vunpack.c.h.b16 %v549
    %v1143 = vunpack.c.l.b16 %v550
    %v1144 = vunpack.c.h.b16 %v550
    %v1145 = vunpack.c.l.b16 %v551
    %v1146 = vunpack.c.h.b16 %v551
    %v1147 = vunpack.c.l.b16 %v552
    %v1148 = vunpack.c.h.b16 %v552
    %v1149 = vunpack.c.l.b16 %v553
    %v1150 = vunpack.c.h.b16 %v553
    %v1151 = vunpack.c.l.b16 %v554
    %v1152 = vunpack.c.h.b16 %v554
    %v1153 = vunpack.c.l.b16 %v555
    %v1154 = vunpack.c.h.b16 %v555
    %v1155 = vunpack.c.l.b16 %v556
    %v1156 = vunpack.c.h.b16 %v556
    %v1157 = vunpack.c.l.b16 %v557
    %v1158 = vunpack.c.h.b16 %v557
    %v1159 = vunpack.c.l.b16 %v558
    %v1160 = vunpack.c.h.b16 %v558
    %v1161 = vunpack.c.l.b16 %v559
    %v1162 = vunpack.c.h.b16 %v559
    %v1163 = vunpack.c.l.b16 %v560
    %v1164 = vunpack.c.h.b16 %v560
    %v1165 = vunpack.c.l.b16 %v561
    %v1166 = vunpack.c.h.b16 %v561
    %v1167 = vunpack.c.l.b16 %v562
    %v1168 = vunpack.c.h.b16 %v562
    %v1169 = vunpack.c.l.b16 %v563
    %v1170 = vunpack.c.h.b16 %v563
    %v1171 = vunpack.c.l.b16 %v564
    %v1172 = vunpack.c.h.b16 %v564
    %v1173 = vunpack.c.l.b16 %v565
    %v1174 = vunpack.c.h.b16 %v565
    %v1175 = vunpack.c.l.b16 %v566
    %v1176 = vunpack.c.h.b16 %v566
    %v1177 = vunpack.c.l.b16 %v567
    %v1178 = vunpack.c.h.b16 %v567
    %v1179 = vunpack.c.l.b16 %v568
    %v1180 = vunpack.c.h.b16 %v568
    %v1181 = vunpack.c.l.b16 %v569
    %v1182 = vunpack.c.h.b16 %v569
    %v1183 = vunpack.c.l.b16 %v570
    %v1184 = vunpack.c.h.b16 %v570
    %v1185 = vunpack.c.l.b16 %v571
    %v1186 = vunpack.c.h.b16 %v571
    %v1187 = vunpack.c.l.b16 %v572
    %v1188 = vunpack.c.h.b16 %v572
    %v1189 = vunpack.c.l.b16 %v573
    %v1190 = vunpack.c.h.b16 %v573
    %v1191 = vunpack.c.l.b16 %v574
    %v1192 = vunpack.c.h.b16 %v574
    %v1193 = vunpack.c.l.b16 %v575
    %v1194 = vunpack.c.h.b16 %v575
    %v1195 = vunpack.c.l.b16 %v576
    %v1196 = vunpack.c.h.b16 %v576
    %v1197 = vunpack.c.l.b16 %v577
    %v1198 = vunpack.c.h.b16 %v577
    %v1199 = vunpack.c.l.b16 %v578
    %v1200 = vunpack.c.h.b16 %v578
    %v1201 = vunpack.c.l.b16 %v579
    %v1202 = vunpack.c.h.b16 %v579
    %v1203 = vunpack.c.l.b16 %v580
    %v1204 = vunpack.c.h.b16 %v580
    %v1205 = vunpack.c.l.b16 %v581
    %v1206 = vunpack.c.h.b16 %v581
    %v1207 = vunpack.c.l.b16 %v582
    %v1208 = vunpack.c.h.b16 %v582
    %v1209 = vunpack.c.l.b16 %v583
    %v1210 = vunpack.c.h.b16 %v583
    %v1211 = vunpack.c.l.b16 %v584
    %v1212 = vunpack.c.h.b16 %v584
    %v1213 = vunpack.c.l.b16 %v585
    %v1214 = vunpack.c.h.b16 %v585
    %v1215 = vunpack.c.l.b16 %v586
    %v1216 = vunpack.c.h.b16 %v586
    %v1217 = vunpack.c.l.b16 %v587
    %v1218 = vunpack.c.h.b16 %v587
    %v1219 = vunpack.c.l.b16 %v588
    %v1220 = vunpack.c.h.b16 %v588
    %v1221 = vunpack.c.l.b16 %v589
    %v1222 = vunpack.c.h.b16 %v589
    %v1223 = vunpack.c.l.b16 %v590
    %v1224 = vunpack.c.h.b16 %v590
    %v1225 = vunpack.c.l.b16 %v591
    %v1226 = vunpack.c.h.b16 %v591
    %v1227 = vunpack.c.l.b16 %v592
    %v1228 = vunpack.c.h.b16 %v592
    %v1229 = vunpack.c.l.b16 %v593
    %v1230 = vunpack.c.h.b16 %v593
    %v1231 = vunpack.c.l.b16 %v594
    %v1232 = vunpack.c.h.b16 %v594
    %v1233 = vunpack.c.l.b16 %v595
    %v1234 = vunpack.c.h.b16 %v595
    %v1235 = vunpack.c.l.b16 %v596
    %v1236 = vunpack.c.h.b16 %v596
    %v1237 = vunpack.c.l.b16 %v597
    %v1238 = vunpack.c.h.b16 %v597
    %v1239 = vunpack.c.l.b16 %v598
    %v1240 = vunpack.c.h.b16 %v598
    %v1241 = vunpack.c.l.b16 %v599
    %v1242 = vunpack.c.h.b16 %v599
    %v1243 = vunpack.c.l.b16 %v600
    %v1244 = vunpack.c.h.b16 %v600
    %v1245 = vunpack.c.l.b16 %v601
    %v1246 = vunpack.c.h.b16 %v601
    %v1247 = vunpack.c.l.b16 %v602
    %v1248 = vunpack.c.h.b16 %v602
    %v1249 = vunpack.c.l.b16 %v603
    %v1250 = vunpack.c.h.b16 %v603
    %v1251 = vunpack.c.l.b16 %v604
    %v1252 = vunpack.c.h.b16 %v604
    %v1253 = vunpack.c.l.b16 %v605
    %v1254 = vunpack.c.h.b16 %v605
    %v1255 = vunpack.c.l.b16 %v606
    %v1256 = vunpack.c.h.b16 %v606
    %v1257 = vunpack.c.l.b16 %v607
    %v1258 = vunpack.c.h.b16 %v607
    %v1259 = vunpack.c.l.b16 %v608
    %v1260 = vunpack.c.h.b16 %v608
    %v1261 = vunpack.c.l.b16 %v609
    %v1262 = vunpack.c.h.b16 %v609
    %v1263 = vunpack.c.l.b16 %v610
    %v1264 = vunpack.c.h.b16 %v610
    %v1265 = vunpack.c.l.b16 %v611
    %v1266 = vunpack.c.h.b16 %v611
    %v1267 = vunpack.c.l.b16 %v612
    %v1268 = vunpack.c.h.b16 %v612
    %v1269 = vunpack.c.l.b16 %v613
    %v1270 = vunpack.c.h.b16 %v613
    %v1271 = vunpack.c.l.b16 %v614
    %v1272 = vunpack.c.h.b16 %v614
    %v1273 = vunpack.c.l.b16 %v615
    %v1274 = vunpack.c.h.b16 %v615
    %v1275 = vunpack.c.l.b16 %v616
    %v1276 = vunpack.c.h.b16 %v616
    %v1277 = vunpack.c.l.b16 %v617
    %v1278 = vunpack.c.h.b16 %v617
    %v1279 = vunpack.c.l.b16 %v618
    %v1280 = vunpack.c.h.b16 %v618
    %v1281 = vunpack.c.l.b16 %v619
    %v1282 = vunpack.c.h.b16 %v619
    %v1283 = vunpack.c.l.b16 %v620
    %v1284 = vunpack.c.h.b16 %v620
    %v1285 = vunpack.c.l.b16 %v621
    %v1286 = vunpack.c.h.b16 %v621
    %v1287 = vunpack.c.l.b16 %v622
    %v1288 = vunpack.c.h.b16 %v622
    %v1289 = vunpack.c.l.b16 %v623
    %v1290 = vunpack.c.h.b16 %v623
    %v1291 = vunpack.c.l.b16 %v624
    %v1292 = vunpack.c.h.b16 %v624
    %v1293 = vunpack.c.l.b16 %v625
    %v1294 = vunpack.c.h.b16 %v625
    %v1295 = vunpack.c.l.b16 %v626
    %v1296 = vunpack.c.h.b16 %v626
    %v1297 = vunpack.c.l.b16 %v627
    %v1298 = vunpack.c.h.b16 %v627
    %v1299 = vunpack.c.l.b16 %v628
    %v1300 = vunpack.c.h.b16 %v628
    %v1301 = vunpack.c.l.b16 %v629
    %v1302 = vunpack.c.h.b16 %v629
    %v1303 = vunpack.c.l.b16 %v630
    %v1304 = vunpack.c.h.b16 %v630
    %v1305 = vunpack.c.l.b16 %v631
    %v1306 = vunpack.c.h.b16 %v631
    %v1307 = vunpack.c.l.b16 %v632
    %v1308 = vunpack.c.h.b16 %v632
    %v1309 = vunpack.c.l.b16 %v633
    %v1310 = vunpack.c.h.b16 %v633
    %v1311 = vunpack.c.l.b16 %v634
    %v1312 = vunpack.c.h.b16 %v634
    %v1313 = vunpack.c.l.b16 %v635
    %v1314 = vunpack.c.h.b16 %v635
    %v1315 = vunpack.c.l.b16 %v636
    %v1316 = vunpack.c.h.b16 %v636
    %v1317 = vunpack.c.l.b16 %v637
    %v1318 = vunpack.c.h.b16 %v637
    %v1319 = vunpack.c.l.b16 %v638
    %v1320 = vunpack.c.h.b16 %v638
    %v1321 = vunpack.c.l.b16 %v639
    %v1322 = vunpack.c.h.b16 %v639
    %v1323 = vunpack.c.l.b16 %v640
    %v1324 = vunpack.c.h.b16 %v640
    %v1325 = vunpack.c.l.b16 %v641
    %v1326 = vunpack.c.h.b16 %v641
    %v1327 = vunpack.c.l.b16 %v642
    %v1328 = vunpack.c.h.b16 %v642
    %v1329 = vunpack.c.l.b16 %v643
    %v1330 = vunpack.c.h.b16 %v643
    %v1331 = vunpack.c.l.b16 %v644
    %v1332 = vunpack.c.h.b16 %v644
    %v1333 = vunpack.c.l.b16 %v645
    %v1334 = vunpack.c.h.b16 %v645
    %v1335 = vunpack.c.l.b16 %v646
    %v1336 = vunpack.c.h.b16 %v646
    %v1337 = vunpack.c.l.b16 %v647
    %v1338 = vunpack.c.h.b16 %v647
    %v1339 = vunpack.c.l.b16 %v648
    %v1340 = vunpack.c.h.b16 %v648
    %v1341 = vunpack.c.l.b16 %v649
    %v1342 = vunpack.c.h.b16 %v649
    %v1343 = vunpack.c.l.b16 %v650
    %v1344 = vunpack.c.h.b16 %v650
    %v1345 = vunpack.c.l.b16 %v651
    %v1346 = vunpack.c.h.b16 %v651
    %v1347 = vunpack.c.l.b16 %v652
    %v1348 = vunpack.c.h.b16 %v652
    %v1349 = vunpack.c.l.b16 %v653
    %v1350 = vunpack.c.h.b16 %v653
    %v1351 = vunpack.c.l.b16 %v654
    %v1352 = vunpack.c.h.b16 %v654
    %v1353 = vunpack.c.l.b16 %v655
    %v1354 = vunpack.c.h.b16 %v655
    %v1355 = vunpack.c.l.b16 %v656
    %v1356 = vunpack.c.h.b16 %v656
    %v1357 = vunpack.c.l.b16 %v657
    %v1358 = vunpack.c.h.b16 %v657
    %v1359 = vunpack.c.l.b16 %v658
    %v1360 = vunpack.c.h.b16 %v658
    %v1361 = vunpack.c.l.b16 %v659
    %v1362 = vunpack.c.h.b16 %v659
    %v1363 = vunpack.c.l.b16 %v660
    %v1364 = vunpack.c.h.b16 %v660
    %v1365 = vunpack.c.l.b16 %v661
    %v1366 = vunpack.c.h.b16 %v661
    %v1367 = vunpack.c.l.b16 %v662
    %v1368 = vunpack.c.h.b16 %v662
    %v1369 = vunpack.c.l.b16 %v663
    %v1370 = vunpack.c.h.b16 %v663
    %v1371 = vunpack.c.l.b16 %v664
    %v1372 = vunpack.c.h.b16 %v664
    %v1373 = vunpack.c.l.b16 %v665
    %v1374 = vunpack.c.h.b16 %v665
    %v1375 = vunpack.c.l.b16 %v666
    %v1376 = vunpack.c.h.b16 %v666
    %v1377 = vunpack.c.l.b16 %v667
    %v1378 = vunpack.c.h.b16 %v667
    %v1379 = vunpack.c.l.b16 %v668
    %v1380 = vunpack.c.h.b16 %v668
    %v1381 = vunpack.c.l.b16 %v669
    %v1382 = vunpack.c.h.b16 %v669
    %v1383 = vunpack.c.l.b16 %v670
    %v1384 = vunpack.c.h.b16 %v670
    %v1385 = vunpack.c.l.b16 %v671
    %v1386 = vunpack.c.h.b16 %v671
    %v1387 = vunpack.c.l.b16 %v672
    %v1388 = vunpack.c.h.b16 %v672
    %v1389 = vunpack.c.l.b16 %v673
    %v1390 = vunpack.c.h.b16 %v673
    %v1391 = vunpack.c.l.b16 %v674
    %v1392 = vunpack.c.h.b16 %v674
    %v1393 = vunpack.c.l.b16 %v675
    %v1394 = vunpack.c.h.b16 %v675
    %v1395 = vunpack.c.l.b16 %v676
    %v1396 = vunpack.c.h.b16 %v676
    %v1397 = vunpack.c.l.b16 %v677
    %v1398 = vunpack.c.h.b16 %v677
    %v1399 = vunpack.c.l.b16 %v678
    %v1400 = vunpack.c.h.b16 %v678
    %v1401 = vunpack.c.l.b16 %v679
    %v1402 = vunpack.c.h.b16 %v679
    %v1403 = vunpack.c.l.b16 %v680
    %v1404 = vunpack.c.h.b16 %v680
    %v1405 = vunpack.c.l.b16 %v681
    %v1406 = vunpack.c.h.b16 %v681
    %v1407 = vunpack.c.l.b16 %v682
    %v1408 = vunpack.c.h.b16 %v682
    %v1409 = vunpack.c.l.b16 %v683
    %v1410 = vunpack.c.h.b16 %v683
    %v1411 = vunpack.c.l.b16 %v684
    %v1412 = vunpack.c.h.b16 %v684
    %v1413 = vunpack.c.l.b16 %v685
    %v1414 = vunpack.c.h.b16 %v685
    %v1415 = vunpack.c.l.b16 %v686
    %v1416 = vunpack.c.h.b16 %v686
    %v1417 = vunpack.c.l.b16 %v687
    %v1418 = vunpack.c.h.b16 %v687
    %v1419 = vunpack.c.l.b16 %v688
    %v1420 = vunpack.c.h.b16 %v688
    %v1421 = vunpack.c.l.b16 %v689
    %v1422 = vunpack.c.h.b16 %v689
    %v1423 = vunpack.c.l.b16 %v690
    %v1424 = vunpack.c.h.b16 %v690
    %v1425 = vunpack.c.l.b16 %v691
    %v1426 = vunpack.c.h.b16 %v691
    %v1427 = vunpack.c.l.b16 %v692
    %v1428 = vunpack.c.h.b16 %v692
    %v1429 = vunpack.c.l.b16 %v693
    %v1430 = vunpack.c.h.b16 %v693
    %v1431 = vunpack.c.l.b16 %v694
    %v1432 = vunpack.c.h.b16 %v694
    %v1433 = vunpack.c.l.b16 %v695
    %v1434 = vunpack.c.h.b16 %v695
    %v1435 = vunpack.c.l.b16 %v696
    %v1436 = vunpack.c.h.b16 %v696
    %v1437 = vunpack.c.l.b16 %v697
    %v1438 = vunpack.c.h.b16 %v697
    %v1439 = vunpack.c.l.b16 %v698
    %v1440 = vunpack.c.h.b16 %v698
    %v1441 = vunpack.c.l.b16 %v699
    %v1442 = vunpack.c.h.b16 %v699
    %v1443 = vunpack.c.l.b16 %v700
    %v1444 = vunpack.c.h.b16 %v700
    %v1445 = vunpack.c.l.b16 %v701
    %v1446 = vunpack.c.h.b16 %v701
    %v1447 = vunpack.c.l.b16 %v702
    %v1448 = vunpack.c.h.b16 %v702
    %v1449 = vunpack.c.l.b16 %v703
    %v1450 = vunpack.c.h.b16 %v703
    %v1451 = vunpack.c.l.b16 %v704
    %v1452 = vunpack.c.h.b16 %v704
    %v1453 = vunpack.c.l.b16 %v705
    %v1454 = vunpack.c.h.b16 %v705
    %v1455 = vunpack.c.l.b16 %v706
    %v1456 = vunpack.c.h.b16 %v706
    %v1457 = vunpack.c.l.b16 %v707
    %v1458 = vunpack.c.h.b16 %v707
    %v1459 = vunpack.c.l.b16 %v708
    %v1460 = vunpack.c.h.b16 %v708
    %v1461 = vunpack.c.l.b16 %v709
    %v1462 = vunpack.c.h.b16 %v709
    %v1463 = vunpack.c.l.b16 %v710
    %v1464 = vunpack.c.h.b16 %v710
    %v1465 = vunpack.c.l.b16 %v711
    %v1466 = vunpack.c.h.b16 %v711
    %v1467 = vunpack.c.l.b16 %v712
    %v1468 = vunpack.c.h.b16 %v712
    %v1469 = vunpack.c.l.b16 %v713
    %v1470 = vunpack.c.h.b16 %v713
    %v1471 = vunpack.c.l.b16 %v714
    %v1472 = vunpack.c.h.b16 %v714
    %v1473 = vunpack.c.l.b16 %v715
    %v1474 = vunpack.c.h.b16 %v715
    %v1475 = vunpack.c.l.b16 %v716
    %v1476 = vunpack.c.h.b16 %v716
    %v1477 = vunpack.c.l.b16 %v717
    %v1478 = vunpack.c.h.b16 %v717
    %v1479 = vunpack.c.l.b16 %v718
    %v1480 = vunpack.c.h.b16 %v718
    %v1481 = vunpack.c.l.b16 %v719
    %v1482 = vunpack.c.h.b16 %v719
    %v1483 = vunpack.c.l.b16 %v720
    %v1484 = vunpack.c.h.b16 %v720
    %v1485 = vunpack.c.l.b16 %v721
    %v1486 = vunpack.c.h.b16 %v721
    %v1487 = vunpack.c.l.b16 %v722
    %v1488 = vunpack.c.h.b16 %v722
    %v1489 = vunpack.c.l.b16 %v723
    %v1490 = vunpack.c.h.b16 %v723
    %v1491 = vunpack.c.l.b16 %v724
    %v1492 = vunpack.c.h.b16 %v724
    %v1493 = vunpack.c.l.b16 %v725
    %v1494 = vunpack.c.h.b16 %v725
    %v1495 = vunpack.c.l.b16 %v726
    %v1496 = vunpack.c.h.b16 %v726
    %v1497 = vunpack.c.l.b16 %v727
    %v1498 = vunpack.c.h.b16 %v727
    %v1499 = vunpack.c.l.b16 %v728
    %v1500 = vunpack.c.h.b16 %v728
    %v1501 = vunpack.c.l.b16 %v729
    %v1502 = vunpack.c.h.b16 %v729
    %v1503 = vunpack.c.l.b16 %v730
    %v1504 = vunpack.c.h.b16 %v730
    %v1505 = vunpack.c.l.b16 %v731
    %v1506 = vunpack.c.h.b16 %v731
    %v1507 = vunpack.c.l.b16 %v732
    %v1508 = vunpack.c.h.b16 %v732
    %v1509 = vunpack.c.l.b16 %v733
    %v1510 = vunpack.c.h.b16 %v733
    %v1511 = vunpack.c.l.b16 %v734
    %v1512 = vunpack.c.h.b16 %v734
    %v1513 = vpack.c.b16 %v1005, %v1001
    %v1514 = vpack.c.b16 %v1006, %v1002
    %v1515 = vpack.c.b16 %v1007, %v1003
    %v1516 = vpack.c.b16 %v1008, %v1004
    %v1517 = vpack.c.b16 %v1013, %v1009
    %v1518 = vpack.c.b16 %v1014, %v1010
    %v1519 = vpack.c.b16 %v1015, %v1011
    %v1520 = vpack.c.b16 %v1016, %v1012
    %v1521 = vpack.c.b16 %v1021, %v1017
    %v1522 = vpack.c.b16 %v1022, %v1018
    %v1523 = vpack.c.b16 %v1023, %v1019
    %v1524 = vpack.c.b16 %v1024, %v1020
    %v1525 = vpack.c.b16 %v1029, %v1025
    %v1526 = vpack.c.b16 %v1030, %v1026
    %v1527 = vpack.c.b16 %v1031, %v1027
    %v1528 = vpack.c.b16 %v1032, %v1028
    %v1529 = vpack.c.b16 %v1037, %v1033
    %v1530 = vpack.c.b16 %v1038, %v1034
    %v1531 = vpack.c.b16 %v1039, %v1035
    %v1532 = vpack.c.b16 %v1040, %v1036
    %v1533 = vpack.c.b16 %v1045, %v1041
    %v1534 = vpack.c.b16 %v1046, %v1042
    %v1535 = vpack.c.b16 %v1047, %v1043
    %v1536 = vpack.c.b16 %v1048, %v1044
    %v1537 = vpack.c.b16 %v1053, %v1049
    %v1538 = vpack.c.b16 %v1054, %v1050
    %v1539 = vpack.c.b16 %v1055, %v1051
    %v1540 = vpack.c.b16 %v1056, %v1052
    %v1541 = vpack.c.b16 %v1061, %v1057
    %v1542 = vpack.c.b16 %v1062, %v1058
    %v1543 = vpack.c.b16 %v1063, %v1059
    %v1544 = vpack.c.b16 %v1064, %v1060
    %v1545 = vpack.c.b16 %v1069, %v1065
    %v1546 = vpack.c.b16 %v1070, %v1066
    %v1547 = vpack.c.b16 %v1071, %v1067
    %v1548 = vpack.c.b16 %v1072, %v1068
    %v1549 = vpack.c.b16 %v1077, %v1073
    %v1550 = vpack.c.b16 %v1078, %v1074
    %v1551 = vpack.c.b16 %v1079, %v1075
    %v1552 = vpack.c.b16 %v1080, %v1076
    %v1553 = vpack.c.b16 %v1085, %v1081
    %v1554 = vpack.c.b16 %v1086, %v1082
    %v1555 = vpack.c.b16 %v1087, %v1083
    %v1556 = vpack.c.b16 %v1088, %v1084
    %v1557 = vpack.c.b16 %v1093, %v1089
    %v1558 = vpack.c.b16 %v1094, %v1090
    %v1559 = vpack.c.b16 %v1095, %v1091
    %v1560 = vpack.c.b16 %v1096, %v1092
    %v1561 = vpack.c.b16 %v1101, %v1097
    %v1562 = vpack.c.b16 %v1102, %v1098
    %v1563 = vpack.c.b16 %v1103, %v1099
    %v1564 = vpack.c.b16 %v1104, %v1100
    %v1565 = vpack.c.b16 %v1109, %v1105
    %v1566 = vpack.c.b16 %v1110, %v1106
    %v1567 = vpack.c.b16 %v1111, %v1107
    %v1568 = vpack.c.b16 %v1112, %v1108
    %v1569 = vpack.c.b16 %v1117, %v1113
    %v1570 = vpack.c.b16 %v1118, %v1114
    %v1571 = vpack.c.b16 %v1119, %v1115
    %v1572 = vpack.c.b16 %v1120, %v1116
    %v1573 = vpack.c.b16 %v1125, %v1121
    %v1574 = vpack.c.b16 %v1126, %v1122
    %v1575 = vpack.c.b16 %v1127, %v1123
    %v1576 = vpack.c.b16 %v1128, %v1124
    %v1577 = vpack.c.b16 %v1133, %v1129
    %v1578 = vpack.c.b16 %v1134, %v1130
    %v1579 = vpack.c.b16 %v1135, %v1131
    %v1580 = vpack.c.b16 %v1136, %v1132
    %v1581 = vpack.c.b16 %v1141, %v1137
    %v1582 = vpack.c.b16 %v1142, %v1138
    %v1583 = vpack.c.b16 %v1143, %v1139
    %v1584 = vpack.c.b16 %v1144, %v1140
    %v1585 = vpack.c.b16 %v1149, %v1145
    %v1586 = vpack.c.b16 %v1150, %v1146
    %v1587 = vpack.c.b16 %v1151, %v1147
    %v1588 = vpack.c.b16 %v1152, %v1148
    %v1589 = vpack.c.b16 %v1157, %v1153
    %v1590 = vpack.c.b16 %v1158, %v1154
    %v1591 = vpack.c.b16 %v1159, %v1155
    %v1592 = vpack.c.b16 %v1160, %v1156
    %v1593 = vpack.c.b16 %v1165, %v1161
    %v1594 = vpack.c.b16 %v1166, %v1162
    %v1595 = vpack.c.b16 %v1167, %v1163
    %v1596 = vpack.c.b16 %v1168, %v1164
    %v1597 = vpack.c.b16 %v1173, %v1169
    %v1598 = vpack.c.b16 %v1174, %v1170
    %v1599 = vpack.c.b16 %v1175, %v1171
    %v1600 = vpack.c.b16 %v1176, %v1172
    %v1601 = vpack.c.b16 %v1181, %v1177
    %v1602 = vpack.c.b16 %v1182, %v1178
    %v1603 = vpack.c.b16 %v1183, %v1179
    %v1604 = vpack.c.b16 %v1184, %v1180
    %v1605 = vpack.c.b16 %v1189, %v1185
    %v1606 = vpack.c.b16 %v1190, %v1186
    %v1607 = vpack.c.b16 %v1191, %v1187
    %v1608 = vpack.c.b16 %v1192, %v1188
    %v1609 = vpack.c.b16 %v1197, %v1193
    %v1610 = vpack.c.b16 %v1198, %v1194
    %v1611 = vpack.c.b16 %v1199, %v1195
    %v1612 = vpack.c.b16 %v1200, %v1196
    %v1613 = vpack.c.b16 %v1205, %v1201
    %v1614 = vpack.c.b16 %v1206, %v1202
    %v1615 = vpack.c.b16 %v1207, %v1203
    %v1616 = vpack.c.b16 %v1208, %v1204
    %v1617 = vpack.c.b16 %v1213, %v1209
    %v1618 = vpack.c.b16 %v1214, %v1210
    %v1619 = vpack.c.b16 %v1215, %v1211
    %v1620 = vpack.c.b16 %v1216, %v1212
    %v1621 = vpack.c.b16 %v1221, %v1217
    %v1622 = vpack.c.b16 %v1222, %v1218
    %v1623 = vpack.c.b16 %v1223, %v1219
    %v1624 = vpack.c.b16 %v1224, %v1220
    %v1625 = vpack.c.b16 %v1229, %v1225
    %v1626 = vpack.c.b16 %v1230, %v1226
    %v1627 = vpack.c.b16 %v1231, %v1227
    %v1628 = vpack.c.b16 %v1232, %v1228
    %v1629 = vpack.c.b16 %v1237, %v1233
    %v1630 = vpack.c.b16 %v1238, %v1234
    %v1631 = vpack.c.b16 %v1239, %v1235
    %v1632 = vpack.c.b16 %v1240, %v1236
    %v1633 = vpack.c.b16 %v1245, %v1241
    %v1634 = vpack.c.b16 %v1246, %v1242
    %v1635 = vpack.c.b16 %v1247, %v1243
    %v1636 = vpack.c.b16 %v1248, %v1244
    %v1637 = vpack.c.b16 %v1253, %v1249
    %v1638 = vpack.c.b16 %v1254, %v1250
    %v1639 = vpack.c.b16 %v1255, %v1251
    %v1640 = vpack.c.b16 %v1256, %v1252
    %v1641 = vpack.c.b16 %v1261, %v1257
    %v1642 = vpack.c.b16 %v1262, %v1258
    %v1643 = vpack.c.b16 %v1263, %v1259
    %v1644 = vpack.c.b16 %v1264, %v1260
    %v1645 = vpack.c.b16 %v1269, %v1265
    %v1646 = vpack.c.b16 %v1270, %v1266
    %v1647 = vpack.c.b16 %v1271, %v1267
    %v1648 = vpack.c.b16 %v1272, %v1268
    %v1649 = vpack.c.b16 %v1277, %v1273
    %v1650 = vpack.c.b16 %v1278, %v1274
    %v1651 = vpack.c.b16 %v1279, %v1275
    %v1652 = vpack.c.b16 %v1280, %v1276
    %v1653 = vpack.c.b16 %v1285, %v1281
    %v1654 = vpack.c.b16 %v1286, %v1282
    %v1655 = vpack.c.b16 %v1287, %v1283
    %v1656 = vpack.c.b16 %v1288, %v1284
    %v1657 = vpack.c.b16 %v1293, %v1289
    %v1658 = vpack.c.b16 %v1294, %v1290
    %v1659 = vpack.c.b16 %v1295, %v1291
    %v1660 = vpack.c.b16 %v1296, %v1292
    %v1661 = vpack.c.b16 %v1301, %v1297
    %v1662 = vpack.c.b16 %v1302, %v1298
    %v1663 = vpack.c.b16 %v1303, %v1299
    %v1664 = vpack.c.b16 %v1304, %v1300
    %v1665 = vpack.c.b16 %v1309, %v1305
    %v1666 = vpack.c.b16 %v1310, %v1306
    %v1667 = vpack.c.b16 %v1311, %v1307
    %v1668 = vpack.c.b16 %v1312, %v1308
    %v1669 = vpack.c.b16 %v1317, %v1313
    %v1670 = vpack.c.b16 %v1318, %v1314
    %v1671 = vpack.c.b16 %v1319, %v1315
    %v1672 = vpack.c.b16 %v1320, %v1316
    %v1673 = vpack.c.b16 %v1325, %v1321
    %v1674 = vpack.c.b16 %v1326, %v1322
    %v1675 = vpack.c.b16 %v1327, %v1323
    %v1676 = vpack.c.b16 %v1328, %v1324
    %v1677 = vpack.c.b16 %v1333, %v1329
    %v1678 = vpack.c.b16 %v1334, %v1330
    %v1679 = vpack.c.b16 %v1335, %v1331
    %v1680 = vpack.c.b16 %v1336, %v1332
    %v1681 = vpack.c.b16 %v1341, %v1337
    %v1682 = vpack.c.b16 %v1342, %v1338
    %v1683 = vpack.c.b16 %v1343, %v1339
    %v1684 = vpack.c.b16 %v1344, %v1340
    %v1685 = vpack.c.b16 %v1349, %v1345
    %v1686 = vpack.c.b16 %v1350, %v1346
    %v1687 = vpack.c.b16 %v1351, %v1347
    %v1688 = vpack.c.b16 %v1352, %v1348
    %v1689 = vpack.c.b16 %v1357, %v1353
    %v1690 = vpack.c.b16 %v1358, %v1354
    %v1691 = vpack.c.b16 %v1359, %v1355
    %v1692 = vpack.c.b16 %v1360, %v1356
    %v1693 = vpack.c.b16 %v1365, %v1361
    %v1694 = vpack.c.b16 %v1366, %v1362
    %v1695 = vpack.c.b16 %v1367, %v1363
    %v1696 = vpack.c.b16 %v1368, %v1364
    %v1697 = vpack.c.b16 %v1373, %v1369
    %v1698 = vpack.c.b16 %v1374, %v1370
    %v1699 = vpack.c.b16 %v1375, %v1371
    %v1700 = vpack.c.b16 %v1376, %v1372
    %v1701 = vpack.c.b16 %v1381, %v1377
    %v1702 = vpack.c.b16 %v1382, %v1378
    %v1703 = vpack.c.b16 %v1383, %v1379
    %v1704 = vpack.c.b16 %v1384, %v1380
    %v1705 = vpack.c.b16 %v1389, %v1385
    %v1706 = vpack.c.b16 %v1390, %v1386
    %v1707 = vpack.c.b16 %v1391, %v1387
    %v1708 = vpack.c.b16 %v1392, %v1388
    %v1709 = vpack.c.b16 %v1397, %v1393
    %v1710 = vpack.c.b16 %v1398, %v1394
    %v1711 = vpack.c.b16 %v1399, %v1395
    %v1712 = vpack.c.b16 %v1400, %v1396
    %v1713 = vpack.c.b16 %v1405, %v1401
    %v1714 = vpack.c.b16 %v1406, %v1402
    %v1715 = vpack.c.b16 %v1407, %v1403
    %v1716 = vpack.c.b16 %v1408, %v1404
    %v1717 = vpack.c.b16 %v1413, %v1409
    %v1718 = vpack.c.b16 %v1414, %v1410
    %v1719 = vpack.c.b16 %v1415, %v1411
    %v1720 = vpack.c.b16 %v1416, %v1412
    %v1721 = vpack.c.b16 %v1421, %v1417
    %v1722 = vpack.c.b16 %v1422, %v1418
    %v1723 = vpack.c.b16 %v1423, %v1419
    %v1724 = vpack.c.b16 %v1424, %v1420
    %v1725 = vpack.c.b16 %v1429, %v1425
    %v1726 = vpack.c.b16 %v1430, %v1426
    %v1727 = vpack.c.b16 %v1431, %v1427
    %v1728 = vpack.c.b16 %v1432, %v1428
    %v1729 = vpack.c.b16 %v1437, %v1433
    %v1730 = vpack.c.b16 %v1438, %v1434
    %v1731 = vpack.c.b16 %v1439, %v1435
    %v1732 = vpack.c.b16 %v1440, %v1436
    %v1733 = vpack.c.b16 %v1445, %v1441
    %v1734 = vpack.c.b16 %v1446, %v1442
    %v1735 = vpack.c.b16 %v1447, %v1443
    %v1736 = vpack.c.b16 %v1448, %v1444
    %v1737 = vpack.c.b16 %v1453, %v1449
    %v1738 = vpack.c.b16 %v1454, %v1450
    %v1739 = vpack.c.b16 %v1455, %v1451
    %v1740 = vpack.c.b16 %v1456, %v1452
    %v1741 = vpack.c.b16 %v1461, %v1457
    %v1742 = vpack.c.b16 %v1462, %v1458
    %v1743 = vpack.c.b16 %v1463, %v1459
    %v1744 = vpack.c.b16 %v1464, %v1460
    %v1745 = vpack.c.b16 %v1469, %v1465
    %v1746 = vpack.c.b16 %v1470, %v1466
    %v1747 = vpack.c.b16 %v1471, %v1467
    %v1748 = vpack.c.b16 %v1472, %v1468
    %v1749 = vpack.c.b16 %v1477, %v1473
    %v1750 = vpack.c.b16 %v1478, %v1474
    %v1751 = vpack.c.b16 %v1479, %v1475
    %v1752 = vpack.c.b16 %v1480, %v1476
    %v1753 = vpack.c.b16 %v1485, %v1481
    %v1754 = vpack.c.b16 %v1486, %v1482
    %v1755 = vpack.c.b16 %v1487, %v1483
    %v1756 = vpack.c.b16 %v1488, %v1484
    %v1757 = vpack.c.b16 %v1493, %v1489
    %v1758 = vpack.c.b16 %v1494, %v1490
    %v1759 = vpack.c.b16 %v1495, %v1491
    %v1760 = vpack.c.b16 %v1496, %v1492
    %v1761 = vpack.c.b16 %v1501, %v1497
    %v1762 = vpack.c.b16 %v1502, %v1498
    %v1763 = vpack.c.b16 %v1503, %v1499
    %v1764 = vpack.c.b16 %v1504, %v1500
    %v1765 = vpack.c.b16 %v1509, %v1505
    %v1766 = vpack.c.b16 %v1510, %v1506
    %v1767 = vpack.c.b16 %v1511, %v1507
    %v1768 = vpack.c.b16 %v1512, %v1508
    %2025 = vmatpush.bf16.msra.mxu0 %v1541
    %2026 = vmatpush.bf16.msra.mxu0 %v1537
    %2027 = vmatpush.bf16.msra.mxu0 %v1533
    %2028 = vmatpush.bf16.msra.mxu0 %v1529
    %2029 = vmatpush.bf16.msra.mxu0 %v1525
    %2030 = vmatpush.bf16.msra.mxu0 %v1521
    %2031 = vmatpush.bf16.msra.mxu0 %v1517
    %2032 = vmatpush.bf16.msra.mxu0 %v1513
    %2033 = vmatmul.bf16.gmra.mxu0 %v351
    %v2034 = vpop.f32.mrf.mxu0
    %v2035 = vadd.f32 %v737, %v2034
    %v2036 = vpop.f32.mrf.mxu0
    %v2037 = vadd.f32 %v737, %v2036
    %2038 = vmatmul.bf16.gmra.mxu0 %v359
    %v2039 = vpop.f32.mrf.mxu0
    %v2040 = vadd.f32 %v737, %v2039
    %v2041 = vpop.f32.mrf.mxu0
    %v2042 = vadd.f32 %v737, %v2041
    %2043 = vmatmul.bf16.gmra.mxu0 %v367
    %v2044 = vpop.f32.mrf.mxu0
    %v2045 = vadd.f32 %v737, %v2044
    %v2046 = vpop.f32.mrf.mxu0
    %v2047 = vadd.f32 %v737, %v2046
    %2048 = vmatmul.bf16.gmra.mxu0 %v375
    %v2049 = vpop.f32.mrf.mxu0
    %v2050 = vadd.f32 %v737, %v2049
    %v2051 = vpop.f32.mrf.mxu0
    %v2052 = vadd.f32 %v737, %v2051
    %2053 = vmatmul.bf16.gmra.mxu0 %v383
    %v2054 = vpop.f32.mrf.mxu0
    %v2055 = vadd.f32 %v737, %v2054
    %v2056 = vpop.f32.mrf.mxu0
    %v2057 = vadd.f32 %v737, %v2056
    %2058 = vmatmul.bf16.gmra.mxu0 %v391
    %v2059 = vpop.f32.mrf.mxu0
    %v2060 = vadd.f32 %v737, %v2059
    %v2061 = vpop.f32.mrf.mxu0
    %v2062 = vadd.f32 %v737, %v2061
    %2063 = vmatmul.bf16.gmra.mxu0 %v399
    %v2064 = vpop.f32.mrf.mxu0
    %v2065 = vadd.f32 %v737, %v2064
    %v2066 = vpop.f32.mrf.mxu0
    %v2067 = vadd.f32 %v737, %v2066
    %2068 = vmatmul.bf16.gmra.mxu0 %v407
    %v2069 = vpop.f32.mrf.mxu0
    %v2070 = vadd.f32 %v737, %v2069
    %v2071 = vpop.f32.mrf.mxu0
    %v2072 = vadd.f32 %v737, %v2071
    %2073 = vmatmul.bf16.gmra.mxu0 %v415
    %v2074 = vpop.f32.mrf.mxu0
    %v2075 = vadd.f32 %v737, %v2074
    %v2076 = vpop.f32.mrf.mxu0
    %v2077 = vadd.f32 %v737, %v2076
    %2078 = vmatmul.bf16.gmra.mxu0 %v423
    %v2079 = vpop.f32.mrf.mxu0
    %v2080 = vadd.f32 %v737, %v2079
    %v2081 = vpop.f32.mrf.mxu0
    %v2082 = vadd.f32 %v737, %v2081
    %2083 = vmatmul.bf16.gmra.mxu0 %v431
    %v2084 = vpop.f32.mrf.mxu0
    %v2085 = vadd.f32 %v737, %v2084
    %v2086 = vpop.f32.mrf.mxu0
    %v2087 = vadd.f32 %v737, %v2086
    %2088 = vmatmul.bf16.gmra.mxu0 %v439
    %v2089 = vpop.f32.mrf.mxu0
    %v2090 = vadd.f32 %v737, %v2089
    %v2091 = vpop.f32.mrf.mxu0
    %v2092 = vadd.f32 %v737, %v2091
    %2093 = vmatmul.bf16.gmra.mxu0 %v447
    %v2094 = vpop.f32.mrf.mxu0
    %v2095 = vadd.f32 %v737, %v2094
    %v2096 = vpop.f32.mrf.mxu0
    %v2097 = vadd.f32 %v737, %v2096
    %2098 = vmatmul.bf16.gmra.mxu0 %v455
    %v2099 = vpop.f32.mrf.mxu0
    %v2100 = vadd.f32 %v737, %v2099
    %v2101 = vpop.f32.mrf.mxu0
    %v2102 = vadd.f32 %v737, %v2101
    %2103 = vmatmul.bf16.gmra.mxu0 %v463
    %v2104 = vpop.f32.mrf.mxu0
    %v2105 = vadd.f32 %v737, %v2104
    %v2106 = vpop.f32.mrf.mxu0
    %v2107 = vadd.f32 %v737, %v2106
    %2108 = vmatmul.bf16.gmra.mxu0 %v471
    %v2109 = vpop.f32.mrf.mxu0
    %v2110 = vadd.f32 %v737, %v2109
    %v2111 = vpop.f32.mrf.mxu0
    %v2112 = vadd.f32 %v737, %v2111
    %2113 = vdwg.mxu0
    %2114 = vmatpush.bf16.msra.mxu0 %v1573
    %2115 = vmatpush.bf16.msra.mxu0 %v1569
    %2116 = vmatpush.bf16.msra.mxu0 %v1565
    %2117 = vmatpush.bf16.msra.mxu0 %v1561
    %2118 = vmatpush.bf16.msra.mxu0 %v1557
    %2119 = vmatpush.bf16.msra.mxu0 %v1553
    %2120 = vmatpush.bf16.msra.mxu0 %v1549
    %2121 = vmatpush.bf16.msra.mxu0 %v1545
    %2122 = vmatmul.bf16.gmra.mxu0 %v352
    %v2123 = vpop.f32.mrf.mxu0
    %v2124 = vadd.f32 %v2035, %v2123
    %v2125 = vpop.f32.mrf.mxu0
    %v2126 = vadd.f32 %v2037, %v2125
    %2127 = vmatmul.bf16.gmra.mxu0 %v360
    %v2128 = vpop.f32.mrf.mxu0
    %v2129 = vadd.f32 %v2040, %v2128
    %v2130 = vpop.f32.mrf.mxu0
    %v2131 = vadd.f32 %v2042, %v2130
    %2132 = vmatmul.bf16.gmra.mxu0 %v368
    %v2133 = vpop.f32.mrf.mxu0
    %v2134 = vadd.f32 %v2045, %v2133
    %v2135 = vpop.f32.mrf.mxu0
    %v2136 = vadd.f32 %v2047, %v2135
    %2137 = vmatmul.bf16.gmra.mxu0 %v376
    %v2138 = vpop.f32.mrf.mxu0
    %v2139 = vadd.f32 %v2050, %v2138
    %v2140 = vpop.f32.mrf.mxu0
    %v2141 = vadd.f32 %v2052, %v2140
    %2142 = vmatmul.bf16.gmra.mxu0 %v384
    %v2143 = vpop.f32.mrf.mxu0
    %v2144 = vadd.f32 %v2055, %v2143
    %v2145 = vpop.f32.mrf.mxu0
    %v2146 = vadd.f32 %v2057, %v2145
    %2147 = vmatmul.bf16.gmra.mxu0 %v392
    %v2148 = vpop.f32.mrf.mxu0
    %v2149 = vadd.f32 %v2060, %v2148
    %v2150 = vpop.f32.mrf.mxu0
    %v2151 = vadd.f32 %v2062, %v2150
    %2152 = vmatmul.bf16.gmra.mxu0 %v400
    %v2153 = vpop.f32.mrf.mxu0
    %v2154 = vadd.f32 %v2065, %v2153
    %v2155 = vpop.f32.mrf.mxu0
    %v2156 = vadd.f32 %v2067, %v2155
    %2157 = vmatmul.bf16.gmra.mxu0 %v408
    %v2158 = vpop.f32.mrf.mxu0
    %v2159 = vadd.f32 %v2070, %v2158
    %v2160 = vpop.f32.mrf.mxu0
    %v2161 = vadd.f32 %v2072, %v2160
    %2162 = vmatmul.bf16.gmra.mxu0 %v416
    %v2163 = vpop.f32.mrf.mxu0
    %v2164 = vadd.f32 %v2075, %v2163
    %v2165 = vpop.f32.mrf.mxu0
    %v2166 = vadd.f32 %v2077, %v2165
    %2167 = vmatmul.bf16.gmra.mxu0 %v424
    %v2168 = vpop.f32.mrf.mxu0
    %v2169 = vadd.f32 %v2080, %v2168
    %v2170 = vpop.f32.mrf.mxu0
    %v2171 = vadd.f32 %v2082, %v2170
    %2172 = vmatmul.bf16.gmra.mxu0 %v432
    %v2173 = vpop.f32.mrf.mxu0
    %v2174 = vadd.f32 %v2085, %v2173
    %v2175 = vpop.f32.mrf.mxu0
    %v2176 = vadd.f32 %v2087, %v2175
    %2177 = vmatmul.bf16.gmra.mxu0 %v440
    %v2178 = vpop.f32.mrf.mxu0
    %v2179 = vadd.f32 %v2090, %v2178
    %v2180 = vpop.f32.mrf.mxu0
    %v2181 = vadd.f32 %v2092, %v2180
    %2182 = vmatmul.bf16.gmra.mxu0 %v448
    %v2183 = vpop.f32.mrf.mxu0
    %v2184 = vadd.f32 %v2095, %v2183
    %v2185 = vpop.f32.mrf.mxu0
    %v2186 = vadd.f32 %v2097, %v2185
    %2187 = vmatmul.bf16.gmra.mxu0 %v456
    %v2188 = vpop.f32.mrf.mxu0
    %v2189 = vadd.f32 %v2100, %v2188
    %v2190 = vpop.f32.mrf.mxu0
    %v2191 = vadd.f32 %v2102, %v2190
    %2192 = vmatmul.bf16.gmra.mxu0 %v464
    %v2193 = vpop.f32.mrf.mxu0
    %v2194 = vadd.f32 %v2105, %v2193
    %v2195 = vpop.f32.mrf.mxu0
    %v2196 = vadd.f32 %v2107, %v2195
    %2197 = vmatmul.bf16.gmra.mxu0 %v472
    %v2198 = vpop.f32.mrf.mxu0
    %v2199 = vadd.f32 %v2110, %v2198
    %v2200 = vpop.f32.mrf.mxu0
    %v2201 = vadd.f32 %v2112, %v2200
    %2202 = vdwg.mxu0
    %2203 = vmatpush.bf16.msra.mxu0 %v1605
    %2204 = vmatpush.bf16.msra.mxu0 %v1601
    %2205 = vmatpush.bf16.msra.mxu0 %v1597
    %2206 = vmatpush.bf16.msra.mxu0 %v1593
    %2207 = vmatpush.bf16.msra.mxu0 %v1589
    %2208 = vmatpush.bf16.msra.mxu0 %v1585
    %2209 = vmatpush.bf16.msra.mxu0 %v1581
    %2210 = vmatpush.bf16.msra.mxu0 %v1577
    %2211 = vmatmul.bf16.gmra.mxu0 %v353
    %v2212 = vpop.f32.mrf.mxu0
    %v2213 = vadd.f32 %v2124, %v2212
    %v2214 = vpop.f32.mrf.mxu0
    %v2215 = vadd.f32 %v2126, %v2214
    %2216 = vmatmul.bf16.gmra.mxu0 %v361
    %v2217 = vpop.f32.mrf.mxu0
    %v2218 = vadd.f32 %v2129, %v2217
    %v2219 = vpop.f32.mrf.mxu0
    %v2220 = vadd.f32 %v2131, %v2219
    %2221 = vmatmul.bf16.gmra.mxu0 %v369
    %v2222 = vpop.f32.mrf.mxu0
    %v2223 = vadd.f32 %v2134, %v2222
    %v2224 = vpop.f32.mrf.mxu0
    %v2225 = vadd.f32 %v2136, %v2224
    %2226 = vmatmul.bf16.gmra.mxu0 %v377
    %v2227 = vpop.f32.mrf.mxu0
    %v2228 = vadd.f32 %v2139, %v2227
    %v2229 = vpop.f32.mrf.mxu0
    %v2230 = vadd.f32 %v2141, %v2229
    %2231 = vmatmul.bf16.gmra.mxu0 %v385
    %v2232 = vpop.f32.mrf.mxu0
    %v2233 = vadd.f32 %v2144, %v2232
    %v2234 = vpop.f32.mrf.mxu0
    %v2235 = vadd.f32 %v2146, %v2234
    %2236 = vmatmul.bf16.gmra.mxu0 %v393
    %v2237 = vpop.f32.mrf.mxu0
    %v2238 = vadd.f32 %v2149, %v2237
    %v2239 = vpop.f32.mrf.mxu0
    %v2240 = vadd.f32 %v2151, %v2239
    %2241 = vmatmul.bf16.gmra.mxu0 %v401
    %v2242 = vpop.f32.mrf.mxu0
    %v2243 = vadd.f32 %v2154, %v2242
    %v2244 = vpop.f32.mrf.mxu0
    %v2245 = vadd.f32 %v2156, %v2244
    %2246 = vmatmul.bf16.gmra.mxu0 %v409
    %v2247 = vpop.f32.mrf.mxu0
    %v2248 = vadd.f32 %v2159, %v2247
    %v2249 = vpop.f32.mrf.mxu0
    %v2250 = vadd.f32 %v2161, %v2249
    %2251 = vmatmul.bf16.gmra.mxu0 %v417
    %v2252 = vpop.f32.mrf.mxu0
    %v2253 = vadd.f32 %v2164, %v2252
    %v2254 = vpop.f32.mrf.mxu0
    %v2255 = vadd.f32 %v2166, %v2254
    %2256 = vmatmul.bf16.gmra.mxu0 %v425
    %v2257 = vpop.f32.mrf.mxu0
    %v2258 = vadd.f32 %v2169, %v2257
    %v2259 = vpop.f32.mrf.mxu0
    %v2260 = vadd.f32 %v2171, %v2259
    %2261 = vmatmul.bf16.gmra.mxu0 %v433
    %v2262 = vpop.f32.mrf.mxu0
    %v2263 = vadd.f32 %v2174, %v2262
    %v2264 = vpop.f32.mrf.mxu0
    %v2265 = vadd.f32 %v2176, %v2264
    %2266 = vmatmul.bf16.gmra.mxu0 %v441
    %v2267 = vpop.f32.mrf.mxu0
    %v2268 = vadd.f32 %v2179, %v2267
    %v2269 = vpop.f32.mrf.mxu0
    %v2270 = vadd.f32 %v2181, %v2269
    %2271 = vmatmul.bf16.gmra.mxu0 %v449
    %v2272 = vpop.f32.mrf.mxu0
    %v2273 = vadd.f32 %v2184, %v2272
    %v2274 = vpop.f32.mrf.mxu0
    %v2275 = vadd.f32 %v2186, %v2274
    %2276 = vmatmul.bf16.gmra.mxu0 %v457
    %v2277 = vpop.f32.mrf.mxu0
    %v2278 = vadd.f32 %v2189, %v2277
    %v2279 = vpop.f32.mrf.mxu0
    %v2280 = vadd.f32 %v2191, %v2279
    %2281 = vmatmul.bf16.gmra.mxu0 %v465
    %v2282 = vpop.f32.mrf.mxu0
    %v2283 = vadd.f32 %v2194, %v2282
    %v2284 = vpop.f32.mrf.mxu0
    %v2285 = vadd.f32 %v2196, %v2284
    %2286 = vmatmul.bf16.gmra.mxu0 %v473
    %v2287 = vpop.f32.mrf.mxu0
    %v2288 = vadd.f32 %v2199, %v2287
    %v2289 = vpop.f32.mrf.mxu0
    %v2290 = vadd.f32 %v2201, %v2289
    %2291 = vdwg.mxu0
    %2292 = vmatpush.bf16.msra.mxu0 %v1637
    %2293 = vmatpush.bf16.msra.mxu0 %v1633
    %2294 = vmatpush.bf16.msra.mxu0 %v1629
    %2295 = vmatpush.bf16.msra.mxu0 %v1625
    %2296 = vmatpush.bf16.msra.mxu0 %v1621
    %2297 = vmatpush.bf16.msra.mxu0 %v1617
    %2298 = vmatpush.bf16.msra.mxu0 %v1613
    %2299 = vmatpush.bf16.msra.mxu0 %v1609
    %2300 = vmatmul.bf16.gmra.mxu0 %v354
    %v2301 = vpop.f32.mrf.mxu0
    %v2302 = vadd.f32 %v2213, %v2301
    %v2303 = vpop.f32.mrf.mxu0
    %v2304 = vadd.f32 %v2215, %v2303
    %2305 = vmatmul.bf16.gmra.mxu0 %v362
    %v2306 = vpop.f32.mrf.mxu0
    %v2307 = vadd.f32 %v2218, %v2306
    %v2308 = vpop.f32.mrf.mxu0
    %v2309 = vadd.f32 %v2220, %v2308
    %2310 = vmatmul.bf16.gmra.mxu0 %v370
    %v2311 = vpop.f32.mrf.mxu0
    %v2312 = vadd.f32 %v2223, %v2311
    %v2313 = vpop.f32.mrf.mxu0
    %v2314 = vadd.f32 %v2225, %v2313
    %2315 = vmatmul.bf16.gmra.mxu0 %v378
    %v2316 = vpop.f32.mrf.mxu0
    %v2317 = vadd.f32 %v2228, %v2316
    %v2318 = vpop.f32.mrf.mxu0
    %v2319 = vadd.f32 %v2230, %v2318
    %2320 = vmatmul.bf16.gmra.mxu0 %v386
    %v2321 = vpop.f32.mrf.mxu0
    %v2322 = vadd.f32 %v2233, %v2321
    %v2323 = vpop.f32.mrf.mxu0
    %v2324 = vadd.f32 %v2235, %v2323
    %2325 = vmatmul.bf16.gmra.mxu0 %v394
    %v2326 = vpop.f32.mrf.mxu0
    %v2327 = vadd.f32 %v2238, %v2326
    %v2328 = vpop.f32.mrf.mxu0
    %v2329 = vadd.f32 %v2240, %v2328
    %2330 = vmatmul.bf16.gmra.mxu0 %v402
    %v2331 = vpop.f32.mrf.mxu0
    %v2332 = vadd.f32 %v2243, %v2331
    %v2333 = vpop.f32.mrf.mxu0
    %v2334 = vadd.f32 %v2245, %v2333
    %2335 = vmatmul.bf16.gmra.mxu0 %v410
    %v2336 = vpop.f32.mrf.mxu0
    %v2337 = vadd.f32 %v2248, %v2336
    %v2338 = vpop.f32.mrf.mxu0
    %v2339 = vadd.f32 %v2250, %v2338
    %2340 = vmatmul.bf16.gmra.mxu0 %v418
    %v2341 = vpop.f32.mrf.mxu0
    %v2342 = vadd.f32 %v2253, %v2341
    %v2343 = vpop.f32.mrf.mxu0
    %v2344 = vadd.f32 %v2255, %v2343
    %2345 = vmatmul.bf16.gmra.mxu0 %v426
    %v2346 = vpop.f32.mrf.mxu0
    %v2347 = vadd.f32 %v2258, %v2346
    %v2348 = vpop.f32.mrf.mxu0
    %v2349 = vadd.f32 %v2260, %v2348
    %2350 = vmatmul.bf16.gmra.mxu0 %v434
    %v2351 = vpop.f32.mrf.mxu0
    %v2352 = vadd.f32 %v2263, %v2351
    %v2353 = vpop.f32.mrf.mxu0
    %v2354 = vadd.f32 %v2265, %v2353
    %2355 = vmatmul.bf16.gmra.mxu0 %v442
    %v2356 = vpop.f32.mrf.mxu0
    %v2357 = vadd.f32 %v2268, %v2356
    %v2358 = vpop.f32.mrf.mxu0
    %v2359 = vadd.f32 %v2270, %v2358
    %2360 = vmatmul.bf16.gmra.mxu0 %v450
    %v2361 = vpop.f32.mrf.mxu0
    %v2362 = vadd.f32 %v2273, %v2361
    %v2363 = vpop.f32.mrf.mxu0
    %v2364 = vadd.f32 %v2275, %v2363
    %2365 = vmatmul.bf16.gmra.mxu0 %v458
    %v2366 = vpop.f32.mrf.mxu0
    %v2367 = vadd.f32 %v2278, %v2366
    %v2368 = vpop.f32.mrf.mxu0
    %v2369 = vadd.f32 %v2280, %v2368
    %2370 = vmatmul.bf16.gmra.mxu0 %v466
    %v2371 = vpop.f32.mrf.mxu0
    %v2372 = vadd.f32 %v2283, %v2371
    %v2373 = vpop.f32.mrf.mxu0
    %v2374 = vadd.f32 %v2285, %v2373
    %2375 = vmatmul.bf16.gmra.mxu0 %v474
    %v2376 = vpop.f32.mrf.mxu0
    %v2377 = vadd.f32 %v2288, %v2376
    %v2378 = vpop.f32.mrf.mxu0
    %v2379 = vadd.f32 %v2290, %v2378
    %2380 = vdwg.mxu0
    %2381 = vmatpush.bf16.msra.mxu0 %v1669
    %2382 = vmatpush.bf16.msra.mxu0 %v1665
    %2383 = vmatpush.bf16.msra.mxu0 %v1661
    %2384 = vmatpush.bf16.msra.mxu0 %v1657
    %2385 = vmatpush.bf16.msra.mxu0 %v1653
    %2386 = vmatpush.bf16.msra.mxu0 %v1649
    %2387 = vmatpush.bf16.msra.mxu0 %v1645
    %2388 = vmatpush.bf16.msra.mxu0 %v1641
    %2389 = vmatmul.bf16.gmra.mxu0 %v355
    %v2390 = vpop.f32.mrf.mxu0
    %v2391 = vadd.f32 %v2302, %v2390
    %v2392 = vpop.f32.mrf.mxu0
    %v2393 = vadd.f32 %v2304, %v2392
    %2394 = vmatmul.bf16.gmra.mxu0 %v363
    %v2395 = vpop.f32.mrf.mxu0
    %v2396 = vadd.f32 %v2307, %v2395
    %v2397 = vpop.f32.mrf.mxu0
    %v2398 = vadd.f32 %v2309, %v2397
    %2399 = vmatmul.bf16.gmra.mxu0 %v371
    %v2400 = vpop.f32.mrf.mxu0
    %v2401 = vadd.f32 %v2312, %v2400
    %v2402 = vpop.f32.mrf.mxu0
    %v2403 = vadd.f32 %v2314, %v2402
    %2404 = vmatmul.bf16.gmra.mxu0 %v379
    %v2405 = vpop.f32.mrf.mxu0
    %v2406 = vadd.f32 %v2317, %v2405
    %v2407 = vpop.f32.mrf.mxu0
    %v2408 = vadd.f32 %v2319, %v2407
    %2409 = vmatmul.bf16.gmra.mxu0 %v387
    %v2410 = vpop.f32.mrf.mxu0
    %v2411 = vadd.f32 %v2322, %v2410
    %v2412 = vpop.f32.mrf.mxu0
    %v2413 = vadd.f32 %v2324, %v2412
    %2414 = vmatmul.bf16.gmra.mxu0 %v395
    %v2415 = vpop.f32.mrf.mxu0
    %v2416 = vadd.f32 %v2327, %v2415
    %v2417 = vpop.f32.mrf.mxu0
    %v2418 = vadd.f32 %v2329, %v2417
    %2419 = vmatmul.bf16.gmra.mxu0 %v403
    %v2420 = vpop.f32.mrf.mxu0
    %v2421 = vadd.f32 %v2332, %v2420
    %v2422 = vpop.f32.mrf.mxu0
    %v2423 = vadd.f32 %v2334, %v2422
    %2424 = vmatmul.bf16.gmra.mxu0 %v411
    %v2425 = vpop.f32.mrf.mxu0
    %v2426 = vadd.f32 %v2337, %v2425
    %v2427 = vpop.f32.mrf.mxu0
    %v2428 = vadd.f32 %v2339, %v2427
    %2429 = vmatmul.bf16.gmra.mxu0 %v419
    %v2430 = vpop.f32.mrf.mxu0
    %v2431 = vadd.f32 %v2342, %v2430
    %v2432 = vpop.f32.mrf.mxu0
    %v2433 = vadd.f32 %v2344, %v2432
    %2434 = vmatmul.bf16.gmra.mxu0 %v427
    %v2435 = vpop.f32.mrf.mxu0
    %v2436 = vadd.f32 %v2347, %v2435
    %v2437 = vpop.f32.mrf.mxu0
    %v2438 = vadd.f32 %v2349, %v2437
    %2439 = vmatmul.bf16.gmra.mxu0 %v435
    %v2440 = vpop.f32.mrf.mxu0
    %v2441 = vadd.f32 %v2352, %v2440
    %v2442 = vpop.f32.mrf.mxu0
    %v2443 = vadd.f32 %v2354, %v2442
    %2444 = vmatmul.bf16.gmra.mxu0 %v443
    %v2445 = vpop.f32.mrf.mxu0
    %v2446 = vadd.f32 %v2357, %v2445
    %v2447 = vpop.f32.mrf.mxu0
    %v2448 = vadd.f32 %v2359, %v2447
    %2449 = vmatmul.bf16.gmra.mxu0 %v451
    %v2450 = vpop.f32.mrf.mxu0
    %v2451 = vadd.f32 %v2362, %v2450
    %v2452 = vpop.f32.mrf.mxu0
    %v2453 = vadd.f32 %v2364, %v2452
    %2454 = vmatmul.bf16.gmra.mxu0 %v459
    %v2455 = vpop.f32.mrf.mxu0
    %v2456 = vadd.f32 %v2367, %v2455
    %v2457 = vpop.f32.mrf.mxu0
    %v2458 = vadd.f32 %v2369, %v2457
    %2459 = vmatmul.bf16.gmra.mxu0 %v467
    %v2460 = vpop.f32.mrf.mxu0
    %v2461 = vadd.f32 %v2372, %v2460
    %v2462 = vpop.f32.mrf.mxu0
    %v2463 = vadd.f32 %v2374, %v2462
    %2464 = vmatmul.bf16.gmra.mxu0 %v475
    %v2465 = vpop.f32.mrf.mxu0
    %v2466 = vadd.f32 %v2377, %v2465
    %v2467 = vpop.f32.mrf.mxu0
    %v2468 = vadd.f32 %v2379, %v2467
    %2469 = vdwg.mxu0
    %2470 = vmatpush.bf16.msra.mxu0 %v1701
    %2471 = vmatpush.bf16.msra.mxu0 %v1697
    %2472 = vmatpush.bf16.msra.mxu0 %v1693
    %2473 = vmatpush.bf16.msra.mxu0 %v1689
    %2474 = vmatpush.bf16.msra.mxu0 %v1685
    %2475 = vmatpush.bf16.msra.mxu0 %v1681
    %2476 = vmatpush.bf16.msra.mxu0 %v1677
    %2477 = vmatpush.bf16.msra.mxu0 %v1673
    %2478 = vmatmul.bf16.gmra.mxu0 %v356
    %v2479 = vpop.f32.mrf.mxu0
    %v2480 = vadd.f32 %v2391, %v2479
    %v2481 = vpop.f32.mrf.mxu0
    %v2482 = vadd.f32 %v2393, %v2481
    %2483 = vmatmul.bf16.gmra.mxu0 %v364
    %v2484 = vpop.f32.mrf.mxu0
    %v2485 = vadd.f32 %v2396, %v2484
    %v2486 = vpop.f32.mrf.mxu0
    %v2487 = vadd.f32 %v2398, %v2486
    %2488 = vmatmul.bf16.gmra.mxu0 %v372
    %v2489 = vpop.f32.mrf.mxu0
    %v2490 = vadd.f32 %v2401, %v2489
    %v2491 = vpop.f32.mrf.mxu0
    %v2492 = vadd.f32 %v2403, %v2491
    %2493 = vmatmul.bf16.gmra.mxu0 %v380
    %v2494 = vpop.f32.mrf.mxu0
    %v2495 = vadd.f32 %v2406, %v2494
    %v2496 = vpop.f32.mrf.mxu0
    %v2497 = vadd.f32 %v2408, %v2496
    %2498 = vmatmul.bf16.gmra.mxu0 %v388
    %v2499 = vpop.f32.mrf.mxu0
    %v2500 = vadd.f32 %v2411, %v2499
    %v2501 = vpop.f32.mrf.mxu0
    %v2502 = vadd.f32 %v2413, %v2501
    %2503 = vmatmul.bf16.gmra.mxu0 %v396
    %v2504 = vpop.f32.mrf.mxu0
    %v2505 = vadd.f32 %v2416, %v2504
    %v2506 = vpop.f32.mrf.mxu0
    %v2507 = vadd.f32 %v2418, %v2506
    %2508 = vmatmul.bf16.gmra.mxu0 %v404
    %v2509 = vpop.f32.mrf.mxu0
    %v2510 = vadd.f32 %v2421, %v2509
    %v2511 = vpop.f32.mrf.mxu0
    %v2512 = vadd.f32 %v2423, %v2511
    %2513 = vmatmul.bf16.gmra.mxu0 %v412
    %v2514 = vpop.f32.mrf.mxu0
    %v2515 = vadd.f32 %v2426, %v2514
    %v2516 = vpop.f32.mrf.mxu0
    %v2517 = vadd.f32 %v2428, %v2516
    %2518 = vmatmul.bf16.gmra.mxu0 %v420
    %v2519 = vpop.f32.mrf.mxu0
    %v2520 = vadd.f32 %v2431, %v2519
    %v2521 = vpop.f32.mrf.mxu0
    %v2522 = vadd.f32 %v2433, %v2521
    %2523 = vmatmul.bf16.gmra.mxu0 %v428
    %v2524 = vpop.f32.mrf.mxu0
    %v2525 = vadd.f32 %v2436, %v2524
    %v2526 = vpop.f32.mrf.mxu0
    %v2527 = vadd.f32 %v2438, %v2526
    %2528 = vmatmul.bf16.gmra.mxu0 %v436
    %v2529 = vpop.f32.mrf.mxu0
    %v2530 = vadd.f32 %v2441, %v2529
    %v2531 = vpop.f32.mrf.mxu0
    %v2532 = vadd.f32 %v2443, %v2531
    %2533 = vmatmul.bf16.gmra.mxu0 %v444
    %v2534 = vpop.f32.mrf.mxu0
    %v2535 = vadd.f32 %v2446, %v2534
    %v2536 = vpop.f32.mrf.mxu0
    %v2537 = vadd.f32 %v2448, %v2536
    %2538 = vmatmul.bf16.gmra.mxu0 %v452
    %v2539 = vpop.f32.mrf.mxu0
    %v2540 = vadd.f32 %v2451, %v2539
    %v2541 = vpop.f32.mrf.mxu0
    %v2542 = vadd.f32 %v2453, %v2541
    %2543 = vmatmul.bf16.gmra.mxu0 %v460
    %v2544 = vpop.f32.mrf.mxu0
    %v2545 = vadd.f32 %v2456, %v2544
    %v2546 = vpop.f32.mrf.mxu0
    %v2547 = vadd.f32 %v2458, %v2546
    %2548 = vmatmul.bf16.gmra.mxu0 %v468
    %v2549 = vpop.f32.mrf.mxu0
    %v2550 = vadd.f32 %v2461, %v2549
    %v2551 = vpop.f32.mrf.mxu0
    %v2552 = vadd.f32 %v2463, %v2551
    %2553 = vmatmul.bf16.gmra.mxu0 %v476
    %v2554 = vpop.f32.mrf.mxu0
    %v2555 = vadd.f32 %v2466, %v2554
    %v2556 = vpop.f32.mrf.mxu0
    %v2557 = vadd.f32 %v2468, %v2556
    %2558 = vdwg.mxu0
    %2559 = vmatpush.bf16.msra.mxu0 %v1733
    %2560 = vmatpush.bf16.msra.mxu0 %v1729
    %2561 = vmatpush.bf16.msra.mxu0 %v1725
    %2562 = vmatpush.bf16.msra.mxu0 %v1721
    %2563 = vmatpush.bf16.msra.mxu0 %v1717
    %2564 = vmatpush.bf16.msra.mxu0 %v1713
    %2565 = vmatpush.bf16.msra.mxu0 %v1709
    %2566 = vmatpush.bf16.msra.mxu0 %v1705
    %2567 = vmatmul.bf16.gmra.mxu0 %v357
    %v2568 = vpop.f32.mrf.mxu0
    %v2569 = vadd.f32 %v2480, %v2568
    %v2570 = vpop.f32.mrf.mxu0
    %v2571 = vadd.f32 %v2482, %v2570
    %2572 = vmatmul.bf16.gmra.mxu0 %v365
    %v2573 = vpop.f32.mrf.mxu0
    %v2574 = vadd.f32 %v2485, %v2573
    %v2575 = vpop.f32.mrf.mxu0
    %v2576 = vadd.f32 %v2487, %v2575
    %2577 = vmatmul.bf16.gmra.mxu0 %v373
    %v2578 = vpop.f32.mrf.mxu0
    %v2579 = vadd.f32 %v2490, %v2578
    %v2580 = vpop.f32.mrf.mxu0
    %v2581 = vadd.f32 %v2492, %v2580
    %2582 = vmatmul.bf16.gmra.mxu0 %v381
    %v2583 = vpop.f32.mrf.mxu0
    %v2584 = vadd.f32 %v2495, %v2583
    %v2585 = vpop.f32.mrf.mxu0
    %v2586 = vadd.f32 %v2497, %v2585
    %2587 = vmatmul.bf16.gmra.mxu0 %v389
    %v2588 = vpop.f32.mrf.mxu0
    %v2589 = vadd.f32 %v2500, %v2588
    %v2590 = vpop.f32.mrf.mxu0
    %v2591 = vadd.f32 %v2502, %v2590
    %2592 = vmatmul.bf16.gmra.mxu0 %v397
    %v2593 = vpop.f32.mrf.mxu0
    %v2594 = vadd.f32 %v2505, %v2593
    %v2595 = vpop.f32.mrf.mxu0
    %v2596 = vadd.f32 %v2507, %v2595
    %2597 = vmatmul.bf16.gmra.mxu0 %v405
    %v2598 = vpop.f32.mrf.mxu0
    %v2599 = vadd.f32 %v2510, %v2598
    %v2600 = vpop.f32.mrf.mxu0
    %v2601 = vadd.f32 %v2512, %v2600
    %2602 = vmatmul.bf16.gmra.mxu0 %v413
    %v2603 = vpop.f32.mrf.mxu0
    %v2604 = vadd.f32 %v2515, %v2603
    %v2605 = vpop.f32.mrf.mxu0
    %v2606 = vadd.f32 %v2517, %v2605
    %2607 = vmatmul.bf16.gmra.mxu0 %v421
    %v2608 = vpop.f32.mrf.mxu0
    %v2609 = vadd.f32 %v2520, %v2608
    %v2610 = vpop.f32.mrf.mxu0
    %v2611 = vadd.f32 %v2522, %v2610
    %2612 = vmatmul.bf16.gmra.mxu0 %v429
    %v2613 = vpop.f32.mrf.mxu0
    %v2614 = vadd.f32 %v2525, %v2613
    %v2615 = vpop.f32.mrf.mxu0
    %v2616 = vadd.f32 %v2527, %v2615
    %2617 = vmatmul.bf16.gmra.mxu0 %v437
    %v2618 = vpop.f32.mrf.mxu0
    %v2619 = vadd.f32 %v2530, %v2618
    %v2620 = vpop.f32.mrf.mxu0
    %v2621 = vadd.f32 %v2532, %v2620
    %2622 = vmatmul.bf16.gmra.mxu0 %v445
    %v2623 = vpop.f32.mrf.mxu0
    %v2624 = vadd.f32 %v2535, %v2623
    %v2625 = vpop.f32.mrf.mxu0
    %v2626 = vadd.f32 %v2537, %v2625
    %2627 = vmatmul.bf16.gmra.mxu0 %v453
    %v2628 = vpop.f32.mrf.mxu0
    %v2629 = vadd.f32 %v2540, %v2628
    %v2630 = vpop.f32.mrf.mxu0
    %v2631 = vadd.f32 %v2542, %v2630
    %2632 = vmatmul.bf16.gmra.mxu0 %v461
    %v2633 = vpop.f32.mrf.mxu0
    %v2634 = vadd.f32 %v2545, %v2633
    %v2635 = vpop.f32.mrf.mxu0
    %v2636 = vadd.f32 %v2547, %v2635
    %2637 = vmatmul.bf16.gmra.mxu0 %v469
    %v2638 = vpop.f32.mrf.mxu0
    %v2639 = vadd.f32 %v2550, %v2638
    %v2640 = vpop.f32.mrf.mxu0
    %v2641 = vadd.f32 %v2552, %v2640
    %2642 = vmatmul.bf16.gmra.mxu0 %v477
    %v2643 = vpop.f32.mrf.mxu0
    %v2644 = vadd.f32 %v2555, %v2643
    %v2645 = vpop.f32.mrf.mxu0
    %v2646 = vadd.f32 %v2557, %v2645
    %2647 = vdwg.mxu0
    %2648 = vmatpush.bf16.msra.mxu0 %v1765
    %2649 = vmatpush.bf16.msra.mxu0 %v1761
    %2650 = vmatpush.bf16.msra.mxu0 %v1757
    %2651 = vmatpush.bf16.msra.mxu0 %v1753
    %2652 = vmatpush.bf16.msra.mxu0 %v1749
    %2653 = vmatpush.bf16.msra.mxu0 %v1745
    %2654 = vmatpush.bf16.msra.mxu0 %v1741
    %2655 = vmatpush.bf16.msra.mxu0 %v1737
    %2656 = vmatmul.bf16.gmra.mxu0 %v358
    %v2657 = vpop.f32.mrf.mxu0
    %v2658 = vadd.f32 %v2569, %v2657
    %v2659 = vpop.f32.mrf.mxu0
    %v2660 = vadd.f32 %v2571, %v2659
    %2661 = vmatmul.bf16.gmra.mxu0 %v366
    %v2662 = vpop.f32.mrf.mxu0
    %v2663 = vadd.f32 %v2574, %v2662
    %v2664 = vpop.f32.mrf.mxu0
    %v2665 = vadd.f32 %v2576, %v2664
    %2666 = vmatmul.bf16.gmra.mxu0 %v374
    %v2667 = vpop.f32.mrf.mxu0
    %v2668 = vadd.f32 %v2579, %v2667
    %v2669 = vpop.f32.mrf.mxu0
    %v2670 = vadd.f32 %v2581, %v2669
    %2671 = vmatmul.bf16.gmra.mxu0 %v382
    %v2672 = vpop.f32.mrf.mxu0
    %v2673 = vadd.f32 %v2584, %v2672
    %v2674 = vpop.f32.mrf.mxu0
    %v2675 = vadd.f32 %v2586, %v2674
    %2676 = vmatmul.bf16.gmra.mxu0 %v390
    %v2677 = vpop.f32.mrf.mxu0
    %v2678 = vadd.f32 %v2589, %v2677
    %v2679 = vpop.f32.mrf.mxu0
    %v2680 = vadd.f32 %v2591, %v2679
    %2681 = vmatmul.bf16.gmra.mxu0 %v398
    %v2682 = vpop.f32.mrf.mxu0
    %v2683 = vadd.f32 %v2594, %v2682
    %v2684 = vpop.f32.mrf.mxu0
    %v2685 = vadd.f32 %v2596, %v2684
    %2686 = vmatmul.bf16.gmra.mxu0 %v406
    %v2687 = vpop.f32.mrf.mxu0
    %v2688 = vadd.f32 %v2599, %v2687
    %v2689 = vpop.f32.mrf.mxu0
    %v2690 = vadd.f32 %v2601, %v2689
    %2691 = vmatmul.bf16.gmra.mxu0 %v414
    %v2692 = vpop.f32.mrf.mxu0
    %v2693 = vadd.f32 %v2604, %v2692
    %v2694 = vpop.f32.mrf.mxu0
    %v2695 = vadd.f32 %v2606, %v2694
    %2696 = vmatmul.bf16.gmra.mxu0 %v422
    %v2697 = vpop.f32.mrf.mxu0
    %v2698 = vadd.f32 %v2609, %v2697
    %v2699 = vpop.f32.mrf.mxu0
    %v2700 = vadd.f32 %v2611, %v2699
    %2701 = vmatmul.bf16.gmra.mxu0 %v430
    %v2702 = vpop.f32.mrf.mxu0
    %v2703 = vadd.f32 %v2614, %v2702
    %v2704 = vpop.f32.mrf.mxu0
    %v2705 = vadd.f32 %v2616, %v2704
    %2706 = vmatmul.bf16.gmra.mxu0 %v438
    %v2707 = vpop.f32.mrf.mxu0
    %v2708 = vadd.f32 %v2619, %v2707
    %v2709 = vpop.f32.mrf.mxu0
    %v2710 = vadd.f32 %v2621, %v2709
    %2711 = vmatmul.bf16.gmra.mxu0 %v446
    %v2712 = vpop.f32.mrf.mxu0
    %v2713 = vadd.f32 %v2624, %v2712
    %v2714 = vpop.f32.mrf.mxu0
    %v2715 = vadd.f32 %v2626, %v2714
    %2716 = vmatmul.bf16.gmra.mxu0 %v454
    %v2717 = vpop.f32.mrf.mxu0
    %v2718 = vadd.f32 %v2629, %v2717
    %v2719 = vpop.f32.mrf.mxu0
    %v2720 = vadd.f32 %v2631, %v2719
    %2721 = vmatmul.bf16.gmra.mxu0 %v462
    %v2722 = vpop.f32.mrf.mxu0
    %v2723 = vadd.f32 %v2634, %v2722
    %v2724 = vpop.f32.mrf.mxu0
    %v2725 = vadd.f32 %v2636, %v2724
    %2726 = vmatmul.bf16.gmra.mxu0 %v470
    %v2727 = vpop.f32.mrf.mxu0
    %v2728 = vadd.f32 %v2639, %v2727
    %v2729 = vpop.f32.mrf.mxu0
    %v2730 = vadd.f32 %v2641, %v2729
    %2731 = vmatmul.bf16.gmra.mxu0 %v478
    %v2732 = vpop.f32.mrf.mxu0
    %v2733 = vadd.f32 %v2644, %v2732
    %v2734 = vpop.f32.mrf.mxu0
    %v2735 = vadd.f32 %v2646, %v2734
    %2736 = vdwg.mxu0
    %2737 = vmatpush.bf16.msra.mxu0 %v1542
    %2738 = vmatpush.bf16.msra.mxu0 %v1538
    %2739 = vmatpush.bf16.msra.mxu0 %v1534
    %2740 = vmatpush.bf16.msra.mxu0 %v1530
    %2741 = vmatpush.bf16.msra.mxu0 %v1526
    %2742 = vmatpush.bf16.msra.mxu0 %v1522
    %2743 = vmatpush.bf16.msra.mxu0 %v1518
    %2744 = vmatpush.bf16.msra.mxu0 %v1514
    %2745 = vmatmul.bf16.gmra.mxu0 %v351
    %v2746 = vpop.f32.mrf.mxu0
    %v2747 = vadd.f32 %v738, %v2746
    %v2748 = vpop.f32.mrf.mxu0
    %v2749 = vadd.f32 %v738, %v2748
    %2750 = vmatmul.bf16.gmra.mxu0 %v359
    %v2751 = vpop.f32.mrf.mxu0
    %v2752 = vadd.f32 %v738, %v2751
    %v2753 = vpop.f32.mrf.mxu0
    %v2754 = vadd.f32 %v738, %v2753
    %2755 = vmatmul.bf16.gmra.mxu0 %v367
    %v2756 = vpop.f32.mrf.mxu0
    %v2757 = vadd.f32 %v738, %v2756
    %v2758 = vpop.f32.mrf.mxu0
    %v2759 = vadd.f32 %v738, %v2758
    %2760 = vmatmul.bf16.gmra.mxu0 %v375
    %v2761 = vpop.f32.mrf.mxu0
    %v2762 = vadd.f32 %v738, %v2761
    %v2763 = vpop.f32.mrf.mxu0
    %v2764 = vadd.f32 %v738, %v2763
    %2765 = vmatmul.bf16.gmra.mxu0 %v383
    %v2766 = vpop.f32.mrf.mxu0
    %v2767 = vadd.f32 %v738, %v2766
    %v2768 = vpop.f32.mrf.mxu0
    %v2769 = vadd.f32 %v738, %v2768
    %2770 = vmatmul.bf16.gmra.mxu0 %v391
    %v2771 = vpop.f32.mrf.mxu0
    %v2772 = vadd.f32 %v738, %v2771
    %v2773 = vpop.f32.mrf.mxu0
    %v2774 = vadd.f32 %v738, %v2773
    %2775 = vmatmul.bf16.gmra.mxu0 %v399
    %v2776 = vpop.f32.mrf.mxu0
    %v2777 = vadd.f32 %v738, %v2776
    %v2778 = vpop.f32.mrf.mxu0
    %v2779 = vadd.f32 %v738, %v2778
    %2780 = vmatmul.bf16.gmra.mxu0 %v407
    %v2781 = vpop.f32.mrf.mxu0
    %v2782 = vadd.f32 %v738, %v2781
    %v2783 = vpop.f32.mrf.mxu0
    %v2784 = vadd.f32 %v738, %v2783
    %2785 = vmatmul.bf16.gmra.mxu0 %v415
    %v2786 = vpop.f32.mrf.mxu0
    %v2787 = vadd.f32 %v738, %v2786
    %v2788 = vpop.f32.mrf.mxu0
    %v2789 = vadd.f32 %v738, %v2788
    %2790 = vmatmul.bf16.gmra.mxu0 %v423
    %v2791 = vpop.f32.mrf.mxu0
    %v2792 = vadd.f32 %v738, %v2791
    %v2793 = vpop.f32.mrf.mxu0
    %v2794 = vadd.f32 %v738, %v2793
    %2795 = vmatmul.bf16.gmra.mxu0 %v431
    %v2796 = vpop.f32.mrf.mxu0
    %v2797 = vadd.f32 %v738, %v2796
    %v2798 = vpop.f32.mrf.mxu0
    %v2799 = vadd.f32 %v738, %v2798
    %2800 = vmatmul.bf16.gmra.mxu0 %v439
    %v2801 = vpop.f32.mrf.mxu0
    %v2802 = vadd.f32 %v738, %v2801
    %v2803 = vpop.f32.mrf.mxu0
    %v2804 = vadd.f32 %v738, %v2803
    %2805 = vmatmul.bf16.gmra.mxu0 %v447
    %v2806 = vpop.f32.mrf.mxu0
    %v2807 = vadd.f32 %v738, %v2806
    %v2808 = vpop.f32.mrf.mxu0
    %v2809 = vadd.f32 %v738, %v2808
    %2810 = vmatmul.bf16.gmra.mxu0 %v455
    %v2811 = vpop.f32.mrf.mxu0
    %v2812 = vadd.f32 %v738, %v2811
    %v2813 = vpop.f32.mrf.mxu0
    %v2814 = vadd.f32 %v738, %v2813
    %2815 = vmatmul.bf16.gmra.mxu0 %v463
    %v2816 = vpop.f32.mrf.mxu0
    %v2817 = vadd.f32 %v738, %v2816
    %v2818 = vpop.f32.mrf.mxu0
    %v2819 = vadd.f32 %v738, %v2818
    %2820 = vmatmul.bf16.gmra.mxu0 %v471
    %v2821 = vpop.f32.mrf.mxu0
    %v2822 = vadd.f32 %v738, %v2821
    %v2823 = vpop.f32.mrf.mxu0
    %v2824 = vadd.f32 %v738, %v2823
    %2825 = vdwg.mxu0
    %2826 = vmatpush.bf16.msra.mxu0 %v1574
    %2827 = vmatpush.bf16.msra.mxu0 %v1570
    %2828 = vmatpush.bf16.msra.mxu0 %v1566
    %2829 = vmatpush.bf16.msra.mxu0 %v1562
    %2830 = vmatpush.bf16.msra.mxu0 %v1558
    %2831 = vmatpush.bf16.msra.mxu0 %v1554
    %2832 = vmatpush.bf16.msra.mxu0 %v1550
    %2833 = vmatpush.bf16.msra.mxu0 %v1546
    %2834 = vmatmul.bf16.gmra.mxu0 %v352
    %v2835 = vpop.f32.mrf.mxu0
    %v2836 = vadd.f32 %v2747, %v2835
    %v2837 = vpop.f32.mrf.mxu0
    %v2838 = vadd.f32 %v2749, %v2837
    %2839 = vmatmul.bf16.gmra.mxu0 %v360
    %v2840 = vpop.f32.mrf.mxu0
    %v2841 = vadd.f32 %v2752, %v2840
    %v2842 = vpop.f32.mrf.mxu0
    %v2843 = vadd.f32 %v2754, %v2842
    %2844 = vmatmul.bf16.gmra.mxu0 %v368
    %v2845 = vpop.f32.mrf.mxu0
    %v2846 = vadd.f32 %v2757, %v2845
    %v2847 = vpop.f32.mrf.mxu0
    %v2848 = vadd.f32 %v2759, %v2847
    %2849 = vmatmul.bf16.gmra.mxu0 %v376
    %v2850 = vpop.f32.mrf.mxu0
    %v2851 = vadd.f32 %v2762, %v2850
    %v2852 = vpop.f32.mrf.mxu0
    %v2853 = vadd.f32 %v2764, %v2852
    %2854 = vmatmul.bf16.gmra.mxu0 %v384
    %v2855 = vpop.f32.mrf.mxu0
    %v2856 = vadd.f32 %v2767, %v2855
    %v2857 = vpop.f32.mrf.mxu0
    %v2858 = vadd.f32 %v2769, %v2857
    %2859 = vmatmul.bf16.gmra.mxu0 %v392
    %v2860 = vpop.f32.mrf.mxu0
    %v2861 = vadd.f32 %v2772, %v2860
    %v2862 = vpop.f32.mrf.mxu0
    %v2863 = vadd.f32 %v2774, %v2862
    %2864 = vmatmul.bf16.gmra.mxu0 %v400
    %v2865 = vpop.f32.mrf.mxu0
    %v2866 = vadd.f32 %v2777, %v2865
    %v2867 = vpop.f32.mrf.mxu0
    %v2868 = vadd.f32 %v2779, %v2867
    %2869 = vmatmul.bf16.gmra.mxu0 %v408
    %v2870 = vpop.f32.mrf.mxu0
    %v2871 = vadd.f32 %v2782, %v2870
    %v2872 = vpop.f32.mrf.mxu0
    %v2873 = vadd.f32 %v2784, %v2872
    %2874 = vmatmul.bf16.gmra.mxu0 %v416
    %v2875 = vpop.f32.mrf.mxu0
    %v2876 = vadd.f32 %v2787, %v2875
    %v2877 = vpop.f32.mrf.mxu0
    %v2878 = vadd.f32 %v2789, %v2877
    %2879 = vmatmul.bf16.gmra.mxu0 %v424
    %v2880 = vpop.f32.mrf.mxu0
    %v2881 = vadd.f32 %v2792, %v2880
    %v2882 = vpop.f32.mrf.mxu0
    %v2883 = vadd.f32 %v2794, %v2882
    %2884 = vmatmul.bf16.gmra.mxu0 %v432
    %v2885 = vpop.f32.mrf.mxu0
    %v2886 = vadd.f32 %v2797, %v2885
    %v2887 = vpop.f32.mrf.mxu0
    %v2888 = vadd.f32 %v2799, %v2887
    %2889 = vmatmul.bf16.gmra.mxu0 %v440
    %v2890 = vpop.f32.mrf.mxu0
    %v2891 = vadd.f32 %v2802, %v2890
    %v2892 = vpop.f32.mrf.mxu0
    %v2893 = vadd.f32 %v2804, %v2892
    %2894 = vmatmul.bf16.gmra.mxu0 %v448
    %v2895 = vpop.f32.mrf.mxu0
    %v2896 = vadd.f32 %v2807, %v2895
    %v2897 = vpop.f32.mrf.mxu0
    %v2898 = vadd.f32 %v2809, %v2897
    %2899 = vmatmul.bf16.gmra.mxu0 %v456
    %v2900 = vpop.f32.mrf.mxu0
    %v2901 = vadd.f32 %v2812, %v2900
    %v2902 = vpop.f32.mrf.mxu0
    %v2903 = vadd.f32 %v2814, %v2902
    %2904 = vmatmul.bf16.gmra.mxu0 %v464
    %v2905 = vpop.f32.mrf.mxu0
    %v2906 = vadd.f32 %v2817, %v2905
    %v2907 = vpop.f32.mrf.mxu0
    %v2908 = vadd.f32 %v2819, %v2907
    %2909 = vmatmul.bf16.gmra.mxu0 %v472
    %v2910 = vpop.f32.mrf.mxu0
    %v2911 = vadd.f32 %v2822, %v2910
    %v2912 = vpop.f32.mrf.mxu0
    %v2913 = vadd.f32 %v2824, %v2912
    %2914 = vdwg.mxu0
    %2915 = vmatpush.bf16.msra.mxu0 %v1606
    %2916 = vmatpush.bf16.msra.mxu0 %v1602
    %2917 = vmatpush.bf16.msra.mxu0 %v1598
    %2918 = vmatpush.bf16.msra.mxu0 %v1594
    %2919 = vmatpush.bf16.msra.mxu0 %v1590
    %2920 = vmatpush.bf16.msra.mxu0 %v1586
    %2921 = vmatpush.bf16.msra.mxu0 %v1582
    %2922 = vmatpush.bf16.msra.mxu0 %v1578
    %2923 = vmatmul.bf16.gmra.mxu0 %v353
    %v2924 = vpop.f32.mrf.mxu0
    %v2925 = vadd.f32 %v2836, %v2924
    %v2926 = vpop.f32.mrf.mxu0
    %v2927 = vadd.f32 %v2838, %v2926
    %2928 = vmatmul.bf16.gmra.mxu0 %v361
    %v2929 = vpop.f32.mrf.mxu0
    %v2930 = vadd.f32 %v2841, %v2929
    %v2931 = vpop.f32.mrf.mxu0
    %v2932 = vadd.f32 %v2843, %v2931
    %2933 = vmatmul.bf16.gmra.mxu0 %v369
    %v2934 = vpop.f32.mrf.mxu0
    %v2935 = vadd.f32 %v2846, %v2934
    %v2936 = vpop.f32.mrf.mxu0
    %v2937 = vadd.f32 %v2848, %v2936
    %2938 = vmatmul.bf16.gmra.mxu0 %v377
    %v2939 = vpop.f32.mrf.mxu0
    %v2940 = vadd.f32 %v2851, %v2939
    %v2941 = vpop.f32.mrf.mxu0
    %v2942 = vadd.f32 %v2853, %v2941
    %2943 = vmatmul.bf16.gmra.mxu0 %v385
    %v2944 = vpop.f32.mrf.mxu0
    %v2945 = vadd.f32 %v2856, %v2944
    %v2946 = vpop.f32.mrf.mxu0
    %v2947 = vadd.f32 %v2858, %v2946
    %2948 = vmatmul.bf16.gmra.mxu0 %v393
    %v2949 = vpop.f32.mrf.mxu0
    %v2950 = vadd.f32 %v2861, %v2949
    %v2951 = vpop.f32.mrf.mxu0
    %v2952 = vadd.f32 %v2863, %v2951
    %2953 = vmatmul.bf16.gmra.mxu0 %v401
    %v2954 = vpop.f32.mrf.mxu0
    %v2955 = vadd.f32 %v2866, %v2954
    %v2956 = vpop.f32.mrf.mxu0
    %v2957 = vadd.f32 %v2868, %v2956
    %2958 = vmatmul.bf16.gmra.mxu0 %v409
    %v2959 = vpop.f32.mrf.mxu0
    %v2960 = vadd.f32 %v2871, %v2959
    %v2961 = vpop.f32.mrf.mxu0
    %v2962 = vadd.f32 %v2873, %v2961
    %2963 = vmatmul.bf16.gmra.mxu0 %v417
    %v2964 = vpop.f32.mrf.mxu0
    %v2965 = vadd.f32 %v2876, %v2964
    %v2966 = vpop.f32.mrf.mxu0
    %v2967 = vadd.f32 %v2878, %v2966
    %2968 = vmatmul.bf16.gmra.mxu0 %v425
    %v2969 = vpop.f32.mrf.mxu0
    %v2970 = vadd.f32 %v2881, %v2969
    %v2971 = vpop.f32.mrf.mxu0
    %v2972 = vadd.f32 %v2883, %v2971
    %2973 = vmatmul.bf16.gmra.mxu0 %v433
    %v2974 = vpop.f32.mrf.mxu0
    %v2975 = vadd.f32 %v2886, %v2974
    %v2976 = vpop.f32.mrf.mxu0
    %v2977 = vadd.f32 %v2888, %v2976
    %2978 = vmatmul.bf16.gmra.mxu0 %v441
    %v2979 = vpop.f32.mrf.mxu0
    %v2980 = vadd.f32 %v2891, %v2979
    %v2981 = vpop.f32.mrf.mxu0
    %v2982 = vadd.f32 %v2893, %v2981
    %2983 = vmatmul.bf16.gmra.mxu0 %v449
    %v2984 = vpop.f32.mrf.mxu0
    %v2985 = vadd.f32 %v2896, %v2984
    %v2986 = vpop.f32.mrf.mxu0
    %v2987 = vadd.f32 %v2898, %v2986
    %2988 = vmatmul.bf16.gmra.mxu0 %v457
    %v2989 = vpop.f32.mrf.mxu0
    %v2990 = vadd.f32 %v2901, %v2989
    %v2991 = vpop.f32.mrf.mxu0
    %v2992 = vadd.f32 %v2903, %v2991
    %2993 = vmatmul.bf16.gmra.mxu0 %v465
    %v2994 = vpop.f32.mrf.mxu0
    %v2995 = vadd.f32 %v2906, %v2994
    %v2996 = vpop.f32.mrf.mxu0
    %v2997 = vadd.f32 %v2908, %v2996
    %2998 = vmatmul.bf16.gmra.mxu0 %v473
    %v2999 = vpop.f32.mrf.mxu0
    %v3000 = vadd.f32 %v2911, %v2999
    %v3001 = vpop.f32.mrf.mxu0
    %v3002 = vadd.f32 %v2913, %v3001
    %3003 = vdwg.mxu0
    %3004 = vmatpush.bf16.msra.mxu0 %v1638
    %3005 = vmatpush.bf16.msra.mxu0 %v1634
    %3006 = vmatpush.bf16.msra.mxu0 %v1630
    %3007 = vmatpush.bf16.msra.mxu0 %v1626
    %3008 = vmatpush.bf16.msra.mxu0 %v1622
    %3009 = vmatpush.bf16.msra.mxu0 %v1618
    %3010 = vmatpush.bf16.msra.mxu0 %v1614
    %3011 = vmatpush.bf16.msra.mxu0 %v1610
    %3012 = vmatmul.bf16.gmra.mxu0 %v354
    %v3013 = vpop.f32.mrf.mxu0
    %v3014 = vadd.f32 %v2925, %v3013
    %v3015 = vpop.f32.mrf.mxu0
    %v3016 = vadd.f32 %v2927, %v3015
    %3017 = vmatmul.bf16.gmra.mxu0 %v362
    %v3018 = vpop.f32.mrf.mxu0
    %v3019 = vadd.f32 %v2930, %v3018
    %v3020 = vpop.f32.mrf.mxu0
    %v3021 = vadd.f32 %v2932, %v3020
    %3022 = vmatmul.bf16.gmra.mxu0 %v370
    %v3023 = vpop.f32.mrf.mxu0
    %v3024 = vadd.f32 %v2935, %v3023
    %v3025 = vpop.f32.mrf.mxu0
    %v3026 = vadd.f32 %v2937, %v3025
    %3027 = vmatmul.bf16.gmra.mxu0 %v378
    %v3028 = vpop.f32.mrf.mxu0
    %v3029 = vadd.f32 %v2940, %v3028
    %v3030 = vpop.f32.mrf.mxu0
    %v3031 = vadd.f32 %v2942, %v3030
    %3032 = vmatmul.bf16.gmra.mxu0 %v386
    %v3033 = vpop.f32.mrf.mxu0
    %v3034 = vadd.f32 %v2945, %v3033
    %v3035 = vpop.f32.mrf.mxu0
    %v3036 = vadd.f32 %v2947, %v3035
    %3037 = vmatmul.bf16.gmra.mxu0 %v394
    %v3038 = vpop.f32.mrf.mxu0
    %v3039 = vadd.f32 %v2950, %v3038
    %v3040 = vpop.f32.mrf.mxu0
    %v3041 = vadd.f32 %v2952, %v3040
    %3042 = vmatmul.bf16.gmra.mxu0 %v402
    %v3043 = vpop.f32.mrf.mxu0
    %v3044 = vadd.f32 %v2955, %v3043
    %v3045 = vpop.f32.mrf.mxu0
    %v3046 = vadd.f32 %v2957, %v3045
    %3047 = vmatmul.bf16.gmra.mxu0 %v410
    %v3048 = vpop.f32.mrf.mxu0
    %v3049 = vadd.f32 %v2960, %v3048
    %v3050 = vpop.f32.mrf.mxu0
    %v3051 = vadd.f32 %v2962, %v3050
    %3052 = vmatmul.bf16.gmra.mxu0 %v418
    %v3053 = vpop.f32.mrf.mxu0
    %v3054 = vadd.f32 %v2965, %v3053
    %v3055 = vpop.f32.mrf.mxu0
    %v3056 = vadd.f32 %v2967, %v3055
    %3057 = vmatmul.bf16.gmra.mxu0 %v426
    %v3058 = vpop.f32.mrf.mxu0
    %v3059 = vadd.f32 %v2970, %v3058
    %v3060 = vpop.f32.mrf.mxu0
    %v3061 = vadd.f32 %v2972, %v3060
    %3062 = vmatmul.bf16.gmra.mxu0 %v434
    %v3063 = vpop.f32.mrf.mxu0
    %v3064 = vadd.f32 %v2975, %v3063
    %v3065 = vpop.f32.mrf.mxu0
    %v3066 = vadd.f32 %v2977, %v3065
    %3067 = vmatmul.bf16.gmra.mxu0 %v442
    %v3068 = vpop.f32.mrf.mxu0
    %v3069 = vadd.f32 %v2980, %v3068
    %v3070 = vpop.f32.mrf.mxu0
    %v3071 = vadd.f32 %v2982, %v3070
    %3072 = vmatmul.bf16.gmra.mxu0 %v450
    %v3073 = vpop.f32.mrf.mxu0
    %v3074 = vadd.f32 %v2985, %v3073
    %v3075 = vpop.f32.mrf.mxu0
    %v3076 = vadd.f32 %v2987, %v3075
    %3077 = vmatmul.bf16.gmra.mxu0 %v458
    %v3078 = vpop.f32.mrf.mxu0
    %v3079 = vadd.f32 %v2990, %v3078
    %v3080 = vpop.f32.mrf.mxu0
    %v3081 = vadd.f32 %v2992, %v3080
    %3082 = vmatmul.bf16.gmra.mxu0 %v466
    %v3083 = vpop.f32.mrf.mxu0
    %v3084 = vadd.f32 %v2995, %v3083
    %v3085 = vpop.f32.mrf.mxu0
    %v3086 = vadd.f32 %v2997, %v3085
    %3087 = vmatmul.bf16.gmra.mxu0 %v474
    %v3088 = vpop.f32.mrf.mxu0
    %v3089 = vadd.f32 %v3000, %v3088
    %v3090 = vpop.f32.mrf.mxu0
    %v3091 = vadd.f32 %v3002, %v3090
    %3092 = vdwg.mxu0
    %3093 = vmatpush.bf16.msra.mxu0 %v1670
    %3094 = vmatpush.bf16.msra.mxu0 %v1666
    %3095 = vmatpush.bf16.msra.mxu0 %v1662
    %3096 = vmatpush.bf16.msra.mxu0 %v1658
    %3097 = vmatpush.bf16.msra.mxu0 %v1654
    %3098 = vmatpush.bf16.msra.mxu0 %v1650
    %3099 = vmatpush.bf16.msra.mxu0 %v1646
    %3100 = vmatpush.bf16.msra.mxu0 %v1642
    %3101 = vmatmul.bf16.gmra.mxu0 %v355
    %v3102 = vpop.f32.mrf.mxu0
    %v3103 = vadd.f32 %v3014, %v3102
    %v3104 = vpop.f32.mrf.mxu0
    %v3105 = vadd.f32 %v3016, %v3104
    %3106 = vmatmul.bf16.gmra.mxu0 %v363
    %v3107 = vpop.f32.mrf.mxu0
    %v3108 = vadd.f32 %v3019, %v3107
    %v3109 = vpop.f32.mrf.mxu0
    %v3110 = vadd.f32 %v3021, %v3109
    %3111 = vmatmul.bf16.gmra.mxu0 %v371
    %v3112 = vpop.f32.mrf.mxu0
    %v3113 = vadd.f32 %v3024, %v3112
    %v3114 = vpop.f32.mrf.mxu0
    %v3115 = vadd.f32 %v3026, %v3114
    %3116 = vmatmul.bf16.gmra.mxu0 %v379
    %v3117 = vpop.f32.mrf.mxu0
    %v3118 = vadd.f32 %v3029, %v3117
    %v3119 = vpop.f32.mrf.mxu0
    %v3120 = vadd.f32 %v3031, %v3119
    %3121 = vmatmul.bf16.gmra.mxu0 %v387
    %v3122 = vpop.f32.mrf.mxu0
    %v3123 = vadd.f32 %v3034, %v3122
    %v3124 = vpop.f32.mrf.mxu0
    %v3125 = vadd.f32 %v3036, %v3124
    %3126 = vmatmul.bf16.gmra.mxu0 %v395
    %v3127 = vpop.f32.mrf.mxu0
    %v3128 = vadd.f32 %v3039, %v3127
    %v3129 = vpop.f32.mrf.mxu0
    %v3130 = vadd.f32 %v3041, %v3129
    %3131 = vmatmul.bf16.gmra.mxu0 %v403
    %v3132 = vpop.f32.mrf.mxu0
    %v3133 = vadd.f32 %v3044, %v3132
    %v3134 = vpop.f32.mrf.mxu0
    %v3135 = vadd.f32 %v3046, %v3134
    %3136 = vmatmul.bf16.gmra.mxu0 %v411
    %v3137 = vpop.f32.mrf.mxu0
    %v3138 = vadd.f32 %v3049, %v3137
    %v3139 = vpop.f32.mrf.mxu0
    %v3140 = vadd.f32 %v3051, %v3139
    %3141 = vmatmul.bf16.gmra.mxu0 %v419
    %v3142 = vpop.f32.mrf.mxu0
    %v3143 = vadd.f32 %v3054, %v3142
    %v3144 = vpop.f32.mrf.mxu0
    %v3145 = vadd.f32 %v3056, %v3144
    %3146 = vmatmul.bf16.gmra.mxu0 %v427
    %v3147 = vpop.f32.mrf.mxu0
    %v3148 = vadd.f32 %v3059, %v3147
    %v3149 = vpop.f32.mrf.mxu0
    %v3150 = vadd.f32 %v3061, %v3149
    %3151 = vmatmul.bf16.gmra.mxu0 %v435
    %v3152 = vpop.f32.mrf.mxu0
    %v3153 = vadd.f32 %v3064, %v3152
    %v3154 = vpop.f32.mrf.mxu0
    %v3155 = vadd.f32 %v3066, %v3154
    %3156 = vmatmul.bf16.gmra.mxu0 %v443
    %v3157 = vpop.f32.mrf.mxu0
    %v3158 = vadd.f32 %v3069, %v3157
    %v3159 = vpop.f32.mrf.mxu0
    %v3160 = vadd.f32 %v3071, %v3159
    %3161 = vmatmul.bf16.gmra.mxu0 %v451
    %v3162 = vpop.f32.mrf.mxu0
    %v3163 = vadd.f32 %v3074, %v3162
    %v3164 = vpop.f32.mrf.mxu0
    %v3165 = vadd.f32 %v3076, %v3164
    %3166 = vmatmul.bf16.gmra.mxu0 %v459
    %v3167 = vpop.f32.mrf.mxu0
    %v3168 = vadd.f32 %v3079, %v3167
    %v3169 = vpop.f32.mrf.mxu0
    %v3170 = vadd.f32 %v3081, %v3169
    %3171 = vmatmul.bf16.gmra.mxu0 %v467
    %v3172 = vpop.f32.mrf.mxu0
    %v3173 = vadd.f32 %v3084, %v3172
    %v3174 = vpop.f32.mrf.mxu0
    %v3175 = vadd.f32 %v3086, %v3174
    %3176 = vmatmul.bf16.gmra.mxu0 %v475
    %v3177 = vpop.f32.mrf.mxu0
    %v3178 = vadd.f32 %v3089, %v3177
    %v3179 = vpop.f32.mrf.mxu0
    %v3180 = vadd.f32 %v3091, %v3179
    %3181 = vdwg.mxu0
    %3182 = vmatpush.bf16.msra.mxu0 %v1702
    %3183 = vmatpush.bf16.msra.mxu0 %v1698
    %3184 = vmatpush.bf16.msra.mxu0 %v1694
    %3185 = vmatpush.bf16.msra.mxu0 %v1690
    %3186 = vmatpush.bf16.msra.mxu0 %v1686
    %3187 = vmatpush.bf16.msra.mxu0 %v1682
    %3188 = vmatpush.bf16.msra.mxu0 %v1678
    %3189 = vmatpush.bf16.msra.mxu0 %v1674
    %3190 = vmatmul.bf16.gmra.mxu0 %v356
    %v3191 = vpop.f32.mrf.mxu0
    %v3192 = vadd.f32 %v3103, %v3191
    %v3193 = vpop.f32.mrf.mxu0
    %v3194 = vadd.f32 %v3105, %v3193
    %3195 = vmatmul.bf16.gmra.mxu0 %v364
    %v3196 = vpop.f32.mrf.mxu0
    %v3197 = vadd.f32 %v3108, %v3196
    %v3198 = vpop.f32.mrf.mxu0
    %v3199 = vadd.f32 %v3110, %v3198
    %3200 = vmatmul.bf16.gmra.mxu0 %v372
    %v3201 = vpop.f32.mrf.mxu0
    %v3202 = vadd.f32 %v3113, %v3201
    %v3203 = vpop.f32.mrf.mxu0
    %v3204 = vadd.f32 %v3115, %v3203
    %3205 = vmatmul.bf16.gmra.mxu0 %v380
    %v3206 = vpop.f32.mrf.mxu0
    %v3207 = vadd.f32 %v3118, %v3206
    %v3208 = vpop.f32.mrf.mxu0
    %v3209 = vadd.f32 %v3120, %v3208
    %3210 = vmatmul.bf16.gmra.mxu0 %v388
    %v3211 = vpop.f32.mrf.mxu0
    %v3212 = vadd.f32 %v3123, %v3211
    %v3213 = vpop.f32.mrf.mxu0
    %v3214 = vadd.f32 %v3125, %v3213
    %3215 = vmatmul.bf16.gmra.mxu0 %v396
    %v3216 = vpop.f32.mrf.mxu0
    %v3217 = vadd.f32 %v3128, %v3216
    %v3218 = vpop.f32.mrf.mxu0
    %v3219 = vadd.f32 %v3130, %v3218
    %3220 = vmatmul.bf16.gmra.mxu0 %v404
    %v3221 = vpop.f32.mrf.mxu0
    %v3222 = vadd.f32 %v3133, %v3221
    %v3223 = vpop.f32.mrf.mxu0
    %v3224 = vadd.f32 %v3135, %v3223
    %3225 = vmatmul.bf16.gmra.mxu0 %v412
    %v3226 = vpop.f32.mrf.mxu0
    %v3227 = vadd.f32 %v3138, %v3226
    %v3228 = vpop.f32.mrf.mxu0
    %v3229 = vadd.f32 %v3140, %v3228
    %3230 = vmatmul.bf16.gmra.mxu0 %v420
    %v3231 = vpop.f32.mrf.mxu0
    %v3232 = vadd.f32 %v3143, %v3231
    %v3233 = vpop.f32.mrf.mxu0
    %v3234 = vadd.f32 %v3145, %v3233
    %3235 = vmatmul.bf16.gmra.mxu0 %v428
    %v3236 = vpop.f32.mrf.mxu0
    %v3237 = vadd.f32 %v3148, %v3236
    %v3238 = vpop.f32.mrf.mxu0
    %v3239 = vadd.f32 %v3150, %v3238
    %3240 = vmatmul.bf16.gmra.mxu0 %v436
    %v3241 = vpop.f32.mrf.mxu0
    %v3242 = vadd.f32 %v3153, %v3241
    %v3243 = vpop.f32.mrf.mxu0
    %v3244 = vadd.f32 %v3155, %v3243
    %3245 = vmatmul.bf16.gmra.mxu0 %v444
    %v3246 = vpop.f32.mrf.mxu0
    %v3247 = vadd.f32 %v3158, %v3246
    %v3248 = vpop.f32.mrf.mxu0
    %v3249 = vadd.f32 %v3160, %v3248
    %3250 = vmatmul.bf16.gmra.mxu0 %v452
    %v3251 = vpop.f32.mrf.mxu0
    %v3252 = vadd.f32 %v3163, %v3251
    %v3253 = vpop.f32.mrf.mxu0
    %v3254 = vadd.f32 %v3165, %v3253
    %3255 = vmatmul.bf16.gmra.mxu0 %v460
    %v3256 = vpop.f32.mrf.mxu0
    %v3257 = vadd.f32 %v3168, %v3256
    %v3258 = vpop.f32.mrf.mxu0
    %v3259 = vadd.f32 %v3170, %v3258
    %3260 = vmatmul.bf16.gmra.mxu0 %v468
    %v3261 = vpop.f32.mrf.mxu0
    %v3262 = vadd.f32 %v3173, %v3261
    %v3263 = vpop.f32.mrf.mxu0
    %v3264 = vadd.f32 %v3175, %v3263
    %3265 = vmatmul.bf16.gmra.mxu0 %v476
    %v3266 = vpop.f32.mrf.mxu0
    %v3267 = vadd.f32 %v3178, %v3266
    %v3268 = vpop.f32.mrf.mxu0
    %v3269 = vadd.f32 %v3180, %v3268
    %3270 = vdwg.mxu0
    %3271 = vmatpush.bf16.msra.mxu0 %v1734
    %3272 = vmatpush.bf16.msra.mxu0 %v1730
    %3273 = vmatpush.bf16.msra.mxu0 %v1726
    %3274 = vmatpush.bf16.msra.mxu0 %v1722
    %3275 = vmatpush.bf16.msra.mxu0 %v1718
    %3276 = vmatpush.bf16.msra.mxu0 %v1714
    %3277 = vmatpush.bf16.msra.mxu0 %v1710
    %3278 = vmatpush.bf16.msra.mxu0 %v1706
    %3279 = vmatmul.bf16.gmra.mxu0 %v357
    %v3280 = vpop.f32.mrf.mxu0
    %v3281 = vadd.f32 %v3192, %v3280
    %v3282 = vpop.f32.mrf.mxu0
    %v3283 = vadd.f32 %v3194, %v3282
    %3284 = vmatmul.bf16.gmra.mxu0 %v365
    %v3285 = vpop.f32.mrf.mxu0
    %v3286 = vadd.f32 %v3197, %v3285
    %v3287 = vpop.f32.mrf.mxu0
    %v3288 = vadd.f32 %v3199, %v3287
    %3289 = vmatmul.bf16.gmra.mxu0 %v373
    %v3290 = vpop.f32.mrf.mxu0
    %v3291 = vadd.f32 %v3202, %v3290
    %v3292 = vpop.f32.mrf.mxu0
    %v3293 = vadd.f32 %v3204, %v3292
    %3294 = vmatmul.bf16.gmra.mxu0 %v381
    %v3295 = vpop.f32.mrf.mxu0
    %v3296 = vadd.f32 %v3207, %v3295
    %v3297 = vpop.f32.mrf.mxu0
    %v3298 = vadd.f32 %v3209, %v3297
    %3299 = vmatmul.bf16.gmra.mxu0 %v389
    %v3300 = vpop.f32.mrf.mxu0
    %v3301 = vadd.f32 %v3212, %v3300
    %v3302 = vpop.f32.mrf.mxu0
    %v3303 = vadd.f32 %v3214, %v3302
    %3304 = vmatmul.bf16.gmra.mxu0 %v397
    %v3305 = vpop.f32.mrf.mxu0
    %v3306 = vadd.f32 %v3217, %v3305
    %v3307 = vpop.f32.mrf.mxu0
    %v3308 = vadd.f32 %v3219, %v3307
    %3309 = vmatmul.bf16.gmra.mxu0 %v405
    %v3310 = vpop.f32.mrf.mxu0
    %v3311 = vadd.f32 %v3222, %v3310
    %v3312 = vpop.f32.mrf.mxu0
    %v3313 = vadd.f32 %v3224, %v3312
    %3314 = vmatmul.bf16.gmra.mxu0 %v413
    %v3315 = vpop.f32.mrf.mxu0
    %v3316 = vadd.f32 %v3227, %v3315
    %v3317 = vpop.f32.mrf.mxu0
    %v3318 = vadd.f32 %v3229, %v3317
    %3319 = vmatmul.bf16.gmra.mxu0 %v421
    %v3320 = vpop.f32.mrf.mxu0
    %v3321 = vadd.f32 %v3232, %v3320
    %v3322 = vpop.f32.mrf.mxu0
    %v3323 = vadd.f32 %v3234, %v3322
    %3324 = vmatmul.bf16.gmra.mxu0 %v429
    %v3325 = vpop.f32.mrf.mxu0
    %v3326 = vadd.f32 %v3237, %v3325
    %v3327 = vpop.f32.mrf.mxu0
    %v3328 = vadd.f32 %v3239, %v3327
    %3329 = vmatmul.bf16.gmra.mxu0 %v437
    %v3330 = vpop.f32.mrf.mxu0
    %v3331 = vadd.f32 %v3242, %v3330
    %v3332 = vpop.f32.mrf.mxu0
    %v3333 = vadd.f32 %v3244, %v3332
    %3334 = vmatmul.bf16.gmra.mxu0 %v445
    %v3335 = vpop.f32.mrf.mxu0
    %v3336 = vadd.f32 %v3247, %v3335
    %v3337 = vpop.f32.mrf.mxu0
    %v3338 = vadd.f32 %v3249, %v3337
    %3339 = vmatmul.bf16.gmra.mxu0 %v453
    %v3340 = vpop.f32.mrf.mxu0
    %v3341 = vadd.f32 %v3252, %v3340
    %v3342 = vpop.f32.mrf.mxu0
    %v3343 = vadd.f32 %v3254, %v3342
    %3344 = vmatmul.bf16.gmra.mxu0 %v461
    %v3345 = vpop.f32.mrf.mxu0
    %v3346 = vadd.f32 %v3257, %v3345
    %v3347 = vpop.f32.mrf.mxu0
    %v3348 = vadd.f32 %v3259, %v3347
    %3349 = vmatmul.bf16.gmra.mxu0 %v469
    %v3350 = vpop.f32.mrf.mxu0
    %v3351 = vadd.f32 %v3262, %v3350
    %v3352 = vpop.f32.mrf.mxu0
    %v3353 = vadd.f32 %v3264, %v3352
    %3354 = vmatmul.bf16.gmra.mxu0 %v477
    %v3355 = vpop.f32.mrf.mxu0
    %v3356 = vadd.f32 %v3267, %v3355
    %v3357 = vpop.f32.mrf.mxu0
    %v3358 = vadd.f32 %v3269, %v3357
    %3359 = vdwg.mxu0
    %3360 = vmatpush.bf16.msra.mxu0 %v1766
    %3361 = vmatpush.bf16.msra.mxu0 %v1762
    %3362 = vmatpush.bf16.msra.mxu0 %v1758
    %3363 = vmatpush.bf16.msra.mxu0 %v1754
    %3364 = vmatpush.bf16.msra.mxu0 %v1750
    %3365 = vmatpush.bf16.msra.mxu0 %v1746
    %3366 = vmatpush.bf16.msra.mxu0 %v1742
    %3367 = vmatpush.bf16.msra.mxu0 %v1738
    %3368 = vmatmul.bf16.gmra.mxu0 %v358
    %v3369 = vpop.f32.mrf.mxu0
    %v3370 = vadd.f32 %v3281, %v3369
    %v3371 = vpop.f32.mrf.mxu0
    %v3372 = vadd.f32 %v3283, %v3371
    %3373 = vmatmul.bf16.gmra.mxu0 %v366
    %v3374 = vpop.f32.mrf.mxu0
    %v3375 = vadd.f32 %v3286, %v3374
    %v3376 = vpop.f32.mrf.mxu0
    %v3377 = vadd.f32 %v3288, %v3376
    %3378 = vmatmul.bf16.gmra.mxu0 %v374
    %v3379 = vpop.f32.mrf.mxu0
    %v3380 = vadd.f32 %v3291, %v3379
    %v3381 = vpop.f32.mrf.mxu0
    %v3382 = vadd.f32 %v3293, %v3381
    %3383 = vmatmul.bf16.gmra.mxu0 %v382
    %v3384 = vpop.f32.mrf.mxu0
    %v3385 = vadd.f32 %v3296, %v3384
    %v3386 = vpop.f32.mrf.mxu0
    %v3387 = vadd.f32 %v3298, %v3386
    %3388 = vmatmul.bf16.gmra.mxu0 %v390
    %v3389 = vpop.f32.mrf.mxu0
    %v3390 = vadd.f32 %v3301, %v3389
    %v3391 = vpop.f32.mrf.mxu0
    %v3392 = vadd.f32 %v3303, %v3391
    %3393 = vmatmul.bf16.gmra.mxu0 %v398
    %v3394 = vpop.f32.mrf.mxu0
    %v3395 = vadd.f32 %v3306, %v3394
    %v3396 = vpop.f32.mrf.mxu0
    %v3397 = vadd.f32 %v3308, %v3396
    %3398 = vmatmul.bf16.gmra.mxu0 %v406
    %v3399 = vpop.f32.mrf.mxu0
    %v3400 = vadd.f32 %v3311, %v3399
    %v3401 = vpop.f32.mrf.mxu0
    %v3402 = vadd.f32 %v3313, %v3401
    %3403 = vmatmul.bf16.gmra.mxu0 %v414
    %v3404 = vpop.f32.mrf.mxu0
    %v3405 = vadd.f32 %v3316, %v3404
    %v3406 = vpop.f32.mrf.mxu0
    %v3407 = vadd.f32 %v3318, %v3406
    %3408 = vmatmul.bf16.gmra.mxu0 %v422
    %v3409 = vpop.f32.mrf.mxu0
    %v3410 = vadd.f32 %v3321, %v3409
    %v3411 = vpop.f32.mrf.mxu0
    %v3412 = vadd.f32 %v3323, %v3411
    %3413 = vmatmul.bf16.gmra.mxu0 %v430
    %v3414 = vpop.f32.mrf.mxu0
    %v3415 = vadd.f32 %v3326, %v3414
    %v3416 = vpop.f32.mrf.mxu0
    %v3417 = vadd.f32 %v3328, %v3416
    %3418 = vmatmul.bf16.gmra.mxu0 %v438
    %v3419 = vpop.f32.mrf.mxu0
    %v3420 = vadd.f32 %v3331, %v3419
    %v3421 = vpop.f32.mrf.mxu0
    %v3422 = vadd.f32 %v3333, %v3421
    %3423 = vmatmul.bf16.gmra.mxu0 %v446
    %v3424 = vpop.f32.mrf.mxu0
    %v3425 = vadd.f32 %v3336, %v3424
    %v3426 = vpop.f32.mrf.mxu0
    %v3427 = vadd.f32 %v3338, %v3426
    %3428 = vmatmul.bf16.gmra.mxu0 %v454
    %v3429 = vpop.f32.mrf.mxu0
    %v3430 = vadd.f32 %v3341, %v3429
    %v3431 = vpop.f32.mrf.mxu0
    %v3432 = vadd.f32 %v3343, %v3431
    %3433 = vmatmul.bf16.gmra.mxu0 %v462
    %v3434 = vpop.f32.mrf.mxu0
    %v3435 = vadd.f32 %v3346, %v3434
    %v3436 = vpop.f32.mrf.mxu0
    %v3437 = vadd.f32 %v3348, %v3436
    %3438 = vmatmul.bf16.gmra.mxu0 %v470
    %v3439 = vpop.f32.mrf.mxu0
    %v3440 = vadd.f32 %v3351, %v3439
    %v3441 = vpop.f32.mrf.mxu0
    %v3442 = vadd.f32 %v3353, %v3441
    %3443 = vmatmul.bf16.gmra.mxu0 %v478
    %v3444 = vpop.f32.mrf.mxu0
    %v3445 = vadd.f32 %v3356, %v3444
    %v3446 = vpop.f32.mrf.mxu0
    %v3447 = vadd.f32 %v3358, %v3446
    %3448 = vdwg.mxu0
    %3449 = vmatpush.bf16.msra.mxu0 %v1543
    %3450 = vmatpush.bf16.msra.mxu0 %v1539
    %3451 = vmatpush.bf16.msra.mxu0 %v1535
    %3452 = vmatpush.bf16.msra.mxu0 %v1531
    %3453 = vmatpush.bf16.msra.mxu0 %v1527
    %3454 = vmatpush.bf16.msra.mxu0 %v1523
    %3455 = vmatpush.bf16.msra.mxu0 %v1519
    %3456 = vmatpush.bf16.msra.mxu0 %v1515
    %3457 = vmatmul.bf16.gmra.mxu0 %v351
    %v3458 = vpop.f32.mrf.mxu0
    %v3459 = vadd.f32 %v739, %v3458
    %v3460 = vpop.f32.mrf.mxu0
    %v3461 = vadd.f32 %v739, %v3460
    %3462 = vmatmul.bf16.gmra.mxu0 %v359
    %v3463 = vpop.f32.mrf.mxu0
    %v3464 = vadd.f32 %v739, %v3463
    %v3465 = vpop.f32.mrf.mxu0
    %v3466 = vadd.f32 %v739, %v3465
    %3467 = vmatmul.bf16.gmra.mxu0 %v367
    %v3468 = vpop.f32.mrf.mxu0
    %v3469 = vadd.f32 %v739, %v3468
    %v3470 = vpop.f32.mrf.mxu0
    %v3471 = vadd.f32 %v739, %v3470
    %3472 = vmatmul.bf16.gmra.mxu0 %v375
    %v3473 = vpop.f32.mrf.mxu0
    %v3474 = vadd.f32 %v739, %v3473
    %v3475 = vpop.f32.mrf.mxu0
    %v3476 = vadd.f32 %v739, %v3475
    %3477 = vmatmul.bf16.gmra.mxu0 %v383
    %v3478 = vpop.f32.mrf.mxu0
    %v3479 = vadd.f32 %v739, %v3478
    %v3480 = vpop.f32.mrf.mxu0
    %v3481 = vadd.f32 %v739, %v3480
    %3482 = vmatmul.bf16.gmra.mxu0 %v391
    %v3483 = vpop.f32.mrf.mxu0
    %v3484 = vadd.f32 %v739, %v3483
    %v3485 = vpop.f32.mrf.mxu0
    %v3486 = vadd.f32 %v739, %v3485
    %3487 = vmatmul.bf16.gmra.mxu0 %v399
    %v3488 = vpop.f32.mrf.mxu0
    %v3489 = vadd.f32 %v739, %v3488
    %v3490 = vpop.f32.mrf.mxu0
    %v3491 = vadd.f32 %v739, %v3490
    %3492 = vmatmul.bf16.gmra.mxu0 %v407
    %v3493 = vpop.f32.mrf.mxu0
    %v3494 = vadd.f32 %v739, %v3493
    %v3495 = vpop.f32.mrf.mxu0
    %v3496 = vadd.f32 %v739, %v3495
    %3497 = vmatmul.bf16.gmra.mxu0 %v415
    %v3498 = vpop.f32.mrf.mxu0
    %v3499 = vadd.f32 %v739, %v3498
    %v3500 = vpop.f32.mrf.mxu0
    %v3501 = vadd.f32 %v739, %v3500
    %3502 = vmatmul.bf16.gmra.mxu0 %v423
    %v3503 = vpop.f32.mrf.mxu0
    %v3504 = vadd.f32 %v739, %v3503
    %v3505 = vpop.f32.mrf.mxu0
    %v3506 = vadd.f32 %v739, %v3505
    %3507 = vmatmul.bf16.gmra.mxu0 %v431
    %v3508 = vpop.f32.mrf.mxu0
    %v3509 = vadd.f32 %v739, %v3508
    %v3510 = vpop.f32.mrf.mxu0
    %v3511 = vadd.f32 %v739, %v3510
    %3512 = vmatmul.bf16.gmra.mxu0 %v439
    %v3513 = vpop.f32.mrf.mxu0
    %v3514 = vadd.f32 %v739, %v3513
    %v3515 = vpop.f32.mrf.mxu0
    %v3516 = vadd.f32 %v739, %v3515
    %3517 = vmatmul.bf16.gmra.mxu0 %v447
    %v3518 = vpop.f32.mrf.mxu0
    %v3519 = vadd.f32 %v739, %v3518
    %v3520 = vpop.f32.mrf.mxu0
    %v3521 = vadd.f32 %v739, %v3520
    %3522 = vmatmul.bf16.gmra.mxu0 %v455
    %v3523 = vpop.f32.mrf.mxu0
    %v3524 = vadd.f32 %v739, %v3523
    %v3525 = vpop.f32.mrf.mxu0
    %v3526 = vadd.f32 %v739, %v3525
    %3527 = vmatmul.bf16.gmra.mxu0 %v463
    %v3528 = vpop.f32.mrf.mxu0
    %v3529 = vadd.f32 %v739, %v3528
    %v3530 = vpop.f32.mrf.mxu0
    %v3531 = vadd.f32 %v739, %v3530
    %3532 = vmatmul.bf16.gmra.mxu0 %v471
    %v3533 = vpop.f32.mrf.mxu0
    %v3534 = vadd.f32 %v739, %v3533
    %v3535 = vpop.f32.mrf.mxu0
    %v3536 = vadd.f32 %v739, %v3535
    %3537 = vdwg.mxu0
    %3538 = vmatpush.bf16.msra.mxu0 %v1575
    %3539 = vmatpush.bf16.msra.mxu0 %v1571
    %3540 = vmatpush.bf16.msra.mxu0 %v1567
    %3541 = vmatpush.bf16.msra.mxu0 %v1563
    %3542 = vmatpush.bf16.msra.mxu0 %v1559
    %3543 = vmatpush.bf16.msra.mxu0 %v1555
    %3544 = vmatpush.bf16.msra.mxu0 %v1551
    %3545 = vmatpush.bf16.msra.mxu0 %v1547
    %3546 = vmatmul.bf16.gmra.mxu0 %v352
    %v3547 = vpop.f32.mrf.mxu0
    %v3548 = vadd.f32 %v3459, %v3547
    %v3549 = vpop.f32.mrf.mxu0
    %v3550 = vadd.f32 %v3461, %v3549
    %3551 = vmatmul.bf16.gmra.mxu0 %v360
    %v3552 = vpop.f32.mrf.mxu0
    %v3553 = vadd.f32 %v3464, %v3552
    %v3554 = vpop.f32.mrf.mxu0
    %v3555 = vadd.f32 %v3466, %v3554
    %3556 = vmatmul.bf16.gmra.mxu0 %v368
    %v3557 = vpop.f32.mrf.mxu0
    %v3558 = vadd.f32 %v3469, %v3557
    %v3559 = vpop.f32.mrf.mxu0
    %v3560 = vadd.f32 %v3471, %v3559
    %3561 = vmatmul.bf16.gmra.mxu0 %v376
    %v3562 = vpop.f32.mrf.mxu0
    %v3563 = vadd.f32 %v3474, %v3562
    %v3564 = vpop.f32.mrf.mxu0
    %v3565 = vadd.f32 %v3476, %v3564
    %3566 = vmatmul.bf16.gmra.mxu0 %v384
    %v3567 = vpop.f32.mrf.mxu0
    %v3568 = vadd.f32 %v3479, %v3567
    %v3569 = vpop.f32.mrf.mxu0
    %v3570 = vadd.f32 %v3481, %v3569
    %3571 = vmatmul.bf16.gmra.mxu0 %v392
    %v3572 = vpop.f32.mrf.mxu0
    %v3573 = vadd.f32 %v3484, %v3572
    %v3574 = vpop.f32.mrf.mxu0
    %v3575 = vadd.f32 %v3486, %v3574
    %3576 = vmatmul.bf16.gmra.mxu0 %v400
    %v3577 = vpop.f32.mrf.mxu0
    %v3578 = vadd.f32 %v3489, %v3577
    %v3579 = vpop.f32.mrf.mxu0
    %v3580 = vadd.f32 %v3491, %v3579
    %3581 = vmatmul.bf16.gmra.mxu0 %v408
    %v3582 = vpop.f32.mrf.mxu0
    %v3583 = vadd.f32 %v3494, %v3582
    %v3584 = vpop.f32.mrf.mxu0
    %v3585 = vadd.f32 %v3496, %v3584
    %3586 = vmatmul.bf16.gmra.mxu0 %v416
    %v3587 = vpop.f32.mrf.mxu0
    %v3588 = vadd.f32 %v3499, %v3587
    %v3589 = vpop.f32.mrf.mxu0
    %v3590 = vadd.f32 %v3501, %v3589
    %3591 = vmatmul.bf16.gmra.mxu0 %v424
    %v3592 = vpop.f32.mrf.mxu0
    %v3593 = vadd.f32 %v3504, %v3592
    %v3594 = vpop.f32.mrf.mxu0
    %v3595 = vadd.f32 %v3506, %v3594
    %3596 = vmatmul.bf16.gmra.mxu0 %v432
    %v3597 = vpop.f32.mrf.mxu0
    %v3598 = vadd.f32 %v3509, %v3597
    %v3599 = vpop.f32.mrf.mxu0
    %v3600 = vadd.f32 %v3511, %v3599
    %3601 = vmatmul.bf16.gmra.mxu0 %v440
    %v3602 = vpop.f32.mrf.mxu0
    %v3603 = vadd.f32 %v3514, %v3602
    %v3604 = vpop.f32.mrf.mxu0
    %v3605 = vadd.f32 %v3516, %v3604
    %3606 = vmatmul.bf16.gmra.mxu0 %v448
    %v3607 = vpop.f32.mrf.mxu0
    %v3608 = vadd.f32 %v3519, %v3607
    %v3609 = vpop.f32.mrf.mxu0
    %v3610 = vadd.f32 %v3521, %v3609
    %3611 = vmatmul.bf16.gmra.mxu0 %v456
    %v3612 = vpop.f32.mrf.mxu0
    %v3613 = vadd.f32 %v3524, %v3612
    %v3614 = vpop.f32.mrf.mxu0
    %v3615 = vadd.f32 %v3526, %v3614
    %3616 = vmatmul.bf16.gmra.mxu0 %v464
    %v3617 = vpop.f32.mrf.mxu0
    %v3618 = vadd.f32 %v3529, %v3617
    %v3619 = vpop.f32.mrf.mxu0
    %v3620 = vadd.f32 %v3531, %v3619
    %3621 = vmatmul.bf16.gmra.mxu0 %v472
    %v3622 = vpop.f32.mrf.mxu0
    %v3623 = vadd.f32 %v3534, %v3622
    %v3624 = vpop.f32.mrf.mxu0
    %v3625 = vadd.f32 %v3536, %v3624
    %3626 = vdwg.mxu0
    %3627 = vmatpush.bf16.msra.mxu0 %v1607
    %3628 = vmatpush.bf16.msra.mxu0 %v1603
    %3629 = vmatpush.bf16.msra.mxu0 %v1599
    %3630 = vmatpush.bf16.msra.mxu0 %v1595
    %3631 = vmatpush.bf16.msra.mxu0 %v1591
    %3632 = vmatpush.bf16.msra.mxu0 %v1587
    %3633 = vmatpush.bf16.msra.mxu0 %v1583
    %3634 = vmatpush.bf16.msra.mxu0 %v1579
    %3635 = vmatmul.bf16.gmra.mxu0 %v353
    %v3636 = vpop.f32.mrf.mxu0
    %v3637 = vadd.f32 %v3548, %v3636
    %v3638 = vpop.f32.mrf.mxu0
    %v3639 = vadd.f32 %v3550, %v3638
    %3640 = vmatmul.bf16.gmra.mxu0 %v361
    %v3641 = vpop.f32.mrf.mxu0
    %v3642 = vadd.f32 %v3553, %v3641
    %v3643 = vpop.f32.mrf.mxu0
    %v3644 = vadd.f32 %v3555, %v3643
    %3645 = vmatmul.bf16.gmra.mxu0 %v369
    %v3646 = vpop.f32.mrf.mxu0
    %v3647 = vadd.f32 %v3558, %v3646
    %v3648 = vpop.f32.mrf.mxu0
    %v3649 = vadd.f32 %v3560, %v3648
    %3650 = vmatmul.bf16.gmra.mxu0 %v377
    %v3651 = vpop.f32.mrf.mxu0
    %v3652 = vadd.f32 %v3563, %v3651
    %v3653 = vpop.f32.mrf.mxu0
    %v3654 = vadd.f32 %v3565, %v3653
    %3655 = vmatmul.bf16.gmra.mxu0 %v385
    %v3656 = vpop.f32.mrf.mxu0
    %v3657 = vadd.f32 %v3568, %v3656
    %v3658 = vpop.f32.mrf.mxu0
    %v3659 = vadd.f32 %v3570, %v3658
    %3660 = vmatmul.bf16.gmra.mxu0 %v393
    %v3661 = vpop.f32.mrf.mxu0
    %v3662 = vadd.f32 %v3573, %v3661
    %v3663 = vpop.f32.mrf.mxu0
    %v3664 = vadd.f32 %v3575, %v3663
    %3665 = vmatmul.bf16.gmra.mxu0 %v401
    %v3666 = vpop.f32.mrf.mxu0
    %v3667 = vadd.f32 %v3578, %v3666
    %v3668 = vpop.f32.mrf.mxu0
    %v3669 = vadd.f32 %v3580, %v3668
    %3670 = vmatmul.bf16.gmra.mxu0 %v409
    %v3671 = vpop.f32.mrf.mxu0
    %v3672 = vadd.f32 %v3583, %v3671
    %v3673 = vpop.f32.mrf.mxu0
    %v3674 = vadd.f32 %v3585, %v3673
    %3675 = vmatmul.bf16.gmra.mxu0 %v417
    %v3676 = vpop.f32.mrf.mxu0
    %v3677 = vadd.f32 %v3588, %v3676
    %v3678 = vpop.f32.mrf.mxu0
    %v3679 = vadd.f32 %v3590, %v3678
    %3680 = vmatmul.bf16.gmra.mxu0 %v425
    %v3681 = vpop.f32.mrf.mxu0
    %v3682 = vadd.f32 %v3593, %v3681
    %v3683 = vpop.f32.mrf.mxu0
    %v3684 = vadd.f32 %v3595, %v3683
    %3685 = vmatmul.bf16.gmra.mxu0 %v433
    %v3686 = vpop.f32.mrf.mxu0
    %v3687 = vadd.f32 %v3598, %v3686
    %v3688 = vpop.f32.mrf.mxu0
    %v3689 = vadd.f32 %v3600, %v3688
    %3690 = vmatmul.bf16.gmra.mxu0 %v441
    %v3691 = vpop.f32.mrf.mxu0
    %v3692 = vadd.f32 %v3603, %v3691
    %v3693 = vpop.f32.mrf.mxu0
    %v3694 = vadd.f32 %v3605, %v3693
    %3695 = vmatmul.bf16.gmra.mxu0 %v449
    %v3696 = vpop.f32.mrf.mxu0
    %v3697 = vadd.f32 %v3608, %v3696
    %v3698 = vpop.f32.mrf.mxu0
    %v3699 = vadd.f32 %v3610, %v3698
    %3700 = vmatmul.bf16.gmra.mxu0 %v457
    %v3701 = vpop.f32.mrf.mxu0
    %v3702 = vadd.f32 %v3613, %v3701
    %v3703 = vpop.f32.mrf.mxu0
    %v3704 = vadd.f32 %v3615, %v3703
    %3705 = vmatmul.bf16.gmra.mxu0 %v465
    %v3706 = vpop.f32.mrf.mxu0
    %v3707 = vadd.f32 %v3618, %v3706
    %v3708 = vpop.f32.mrf.mxu0
    %v3709 = vadd.f32 %v3620, %v3708
    %3710 = vmatmul.bf16.gmra.mxu0 %v473
    %v3711 = vpop.f32.mrf.mxu0
    %v3712 = vadd.f32 %v3623, %v3711
    %v3713 = vpop.f32.mrf.mxu0
    %v3714 = vadd.f32 %v3625, %v3713
    %3715 = vdwg.mxu0
    %3716 = vmatpush.bf16.msra.mxu0 %v1639
    %3717 = vmatpush.bf16.msra.mxu0 %v1635
    %3718 = vmatpush.bf16.msra.mxu0 %v1631
    %3719 = vmatpush.bf16.msra.mxu0 %v1627
    %3720 = vmatpush.bf16.msra.mxu0 %v1623
    %3721 = vmatpush.bf16.msra.mxu0 %v1619
    %3722 = vmatpush.bf16.msra.mxu0 %v1615
    %3723 = vmatpush.bf16.msra.mxu0 %v1611
    %3724 = vmatmul.bf16.gmra.mxu0 %v354
    %v3725 = vpop.f32.mrf.mxu0
    %v3726 = vadd.f32 %v3637, %v3725
    %v3727 = vpop.f32.mrf.mxu0
    %v3728 = vadd.f32 %v3639, %v3727
    %3729 = vmatmul.bf16.gmra.mxu0 %v362
    %v3730 = vpop.f32.mrf.mxu0
    %v3731 = vadd.f32 %v3642, %v3730
    %v3732 = vpop.f32.mrf.mxu0
    %v3733 = vadd.f32 %v3644, %v3732
    %3734 = vmatmul.bf16.gmra.mxu0 %v370
    %v3735 = vpop.f32.mrf.mxu0
    %v3736 = vadd.f32 %v3647, %v3735
    %v3737 = vpop.f32.mrf.mxu0
    %v3738 = vadd.f32 %v3649, %v3737
    %3739 = vmatmul.bf16.gmra.mxu0 %v378
    %v3740 = vpop.f32.mrf.mxu0
    %v3741 = vadd.f32 %v3652, %v3740
    %v3742 = vpop.f32.mrf.mxu0
    %v3743 = vadd.f32 %v3654, %v3742
    %3744 = vmatmul.bf16.gmra.mxu0 %v386
    %v3745 = vpop.f32.mrf.mxu0
    %v3746 = vadd.f32 %v3657, %v3745
    %v3747 = vpop.f32.mrf.mxu0
    %v3748 = vadd.f32 %v3659, %v3747
    %3749 = vmatmul.bf16.gmra.mxu0 %v394
    %v3750 = vpop.f32.mrf.mxu0
    %v3751 = vadd.f32 %v3662, %v3750
    %v3752 = vpop.f32.mrf.mxu0
    %v3753 = vadd.f32 %v3664, %v3752
    %3754 = vmatmul.bf16.gmra.mxu0 %v402
    %v3755 = vpop.f32.mrf.mxu0
    %v3756 = vadd.f32 %v3667, %v3755
    %v3757 = vpop.f32.mrf.mxu0
    %v3758 = vadd.f32 %v3669, %v3757
    %3759 = vmatmul.bf16.gmra.mxu0 %v410
    %v3760 = vpop.f32.mrf.mxu0
    %v3761 = vadd.f32 %v3672, %v3760
    %v3762 = vpop.f32.mrf.mxu0
    %v3763 = vadd.f32 %v3674, %v3762
    %3764 = vmatmul.bf16.gmra.mxu0 %v418
    %v3765 = vpop.f32.mrf.mxu0
    %v3766 = vadd.f32 %v3677, %v3765
    %v3767 = vpop.f32.mrf.mxu0
    %v3768 = vadd.f32 %v3679, %v3767
    %3769 = vmatmul.bf16.gmra.mxu0 %v426
    %v3770 = vpop.f32.mrf.mxu0
    %v3771 = vadd.f32 %v3682, %v3770
    %v3772 = vpop.f32.mrf.mxu0
    %v3773 = vadd.f32 %v3684, %v3772
    %3774 = vmatmul.bf16.gmra.mxu0 %v434
    %v3775 = vpop.f32.mrf.mxu0
    %v3776 = vadd.f32 %v3687, %v3775
    %v3777 = vpop.f32.mrf.mxu0
    %v3778 = vadd.f32 %v3689, %v3777
    %3779 = vmatmul.bf16.gmra.mxu0 %v442
    %v3780 = vpop.f32.mrf.mxu0
    %v3781 = vadd.f32 %v3692, %v3780
    %v3782 = vpop.f32.mrf.mxu0
    %v3783 = vadd.f32 %v3694, %v3782
    %3784 = vmatmul.bf16.gmra.mxu0 %v450
    %v3785 = vpop.f32.mrf.mxu0
    %v3786 = vadd.f32 %v3697, %v3785
    %v3787 = vpop.f32.mrf.mxu0
    %v3788 = vadd.f32 %v3699, %v3787
    %3789 = vmatmul.bf16.gmra.mxu0 %v458
    %v3790 = vpop.f32.mrf.mxu0
    %v3791 = vadd.f32 %v3702, %v3790
    %v3792 = vpop.f32.mrf.mxu0
    %v3793 = vadd.f32 %v3704, %v3792
    %3794 = vmatmul.bf16.gmra.mxu0 %v466
    %v3795 = vpop.f32.mrf.mxu0
    %v3796 = vadd.f32 %v3707, %v3795
    %v3797 = vpop.f32.mrf.mxu0
    %v3798 = vadd.f32 %v3709, %v3797
    %3799 = vmatmul.bf16.gmra.mxu0 %v474
    %v3800 = vpop.f32.mrf.mxu0
    %v3801 = vadd.f32 %v3712, %v3800
    %v3802 = vpop.f32.mrf.mxu0
    %v3803 = vadd.f32 %v3714, %v3802
    %3804 = vdwg.mxu0
    %3805 = vmatpush.bf16.msra.mxu0 %v1671
    %3806 = vmatpush.bf16.msra.mxu0 %v1667
    %3807 = vmatpush.bf16.msra.mxu0 %v1663
    %3808 = vmatpush.bf16.msra.mxu0 %v1659
    %3809 = vmatpush.bf16.msra.mxu0 %v1655
    %3810 = vmatpush.bf16.msra.mxu0 %v1651
    %3811 = vmatpush.bf16.msra.mxu0 %v1647
    %3812 = vmatpush.bf16.msra.mxu0 %v1643
    %3813 = vmatmul.bf16.gmra.mxu0 %v355
    %v3814 = vpop.f32.mrf.mxu0
    %v3815 = vadd.f32 %v3726, %v3814
    %v3816 = vpop.f32.mrf.mxu0
    %v3817 = vadd.f32 %v3728, %v3816
    %3818 = vmatmul.bf16.gmra.mxu0 %v363
    %v3819 = vpop.f32.mrf.mxu0
    %v3820 = vadd.f32 %v3731, %v3819
    %v3821 = vpop.f32.mrf.mxu0
    %v3822 = vadd.f32 %v3733, %v3821
    %3823 = vmatmul.bf16.gmra.mxu0 %v371
    %v3824 = vpop.f32.mrf.mxu0
    %v3825 = vadd.f32 %v3736, %v3824
    %v3826 = vpop.f32.mrf.mxu0
    %v3827 = vadd.f32 %v3738, %v3826
    %3828 = vmatmul.bf16.gmra.mxu0 %v379
    %v3829 = vpop.f32.mrf.mxu0
    %v3830 = vadd.f32 %v3741, %v3829
    %v3831 = vpop.f32.mrf.mxu0
    %v3832 = vadd.f32 %v3743, %v3831
    %3833 = vmatmul.bf16.gmra.mxu0 %v387
    %v3834 = vpop.f32.mrf.mxu0
    %v3835 = vadd.f32 %v3746, %v3834
    %v3836 = vpop.f32.mrf.mxu0
    %v3837 = vadd.f32 %v3748, %v3836
    %3838 = vmatmul.bf16.gmra.mxu0 %v395
    %v3839 = vpop.f32.mrf.mxu0
    %v3840 = vadd.f32 %v3751, %v3839
    %v3841 = vpop.f32.mrf.mxu0
    %v3842 = vadd.f32 %v3753, %v3841
    %3843 = vmatmul.bf16.gmra.mxu0 %v403
    %v3844 = vpop.f32.mrf.mxu0
    %v3845 = vadd.f32 %v3756, %v3844
    %v3846 = vpop.f32.mrf.mxu0
    %v3847 = vadd.f32 %v3758, %v3846
    %3848 = vmatmul.bf16.gmra.mxu0 %v411
    %v3849 = vpop.f32.mrf.mxu0
    %v3850 = vadd.f32 %v3761, %v3849
    %v3851 = vpop.f32.mrf.mxu0
    %v3852 = vadd.f32 %v3763, %v3851
    %3853 = vmatmul.bf16.gmra.mxu0 %v419
    %v3854 = vpop.f32.mrf.mxu0
    %v3855 = vadd.f32 %v3766, %v3854
    %v3856 = vpop.f32.mrf.mxu0
    %v3857 = vadd.f32 %v3768, %v3856
    %3858 = vmatmul.bf16.gmra.mxu0 %v427
    %v3859 = vpop.f32.mrf.mxu0
    %v3860 = vadd.f32 %v3771, %v3859
    %v3861 = vpop.f32.mrf.mxu0
    %v3862 = vadd.f32 %v3773, %v3861
    %3863 = vmatmul.bf16.gmra.mxu0 %v435
    %v3864 = vpop.f32.mrf.mxu0
    %v3865 = vadd.f32 %v3776, %v3864
    %v3866 = vpop.f32.mrf.mxu0
    %v3867 = vadd.f32 %v3778, %v3866
    %3868 = vmatmul.bf16.gmra.mxu0 %v443
    %v3869 = vpop.f32.mrf.mxu0
    %v3870 = vadd.f32 %v3781, %v3869
    %v3871 = vpop.f32.mrf.mxu0
    %v3872 = vadd.f32 %v3783, %v3871
    %3873 = vmatmul.bf16.gmra.mxu0 %v451
    %v3874 = vpop.f32.mrf.mxu0
    %v3875 = vadd.f32 %v3786, %v3874
    %v3876 = vpop.f32.mrf.mxu0
    %v3877 = vadd.f32 %v3788, %v3876
    %3878 = vmatmul.bf16.gmra.mxu0 %v459
    %v3879 = vpop.f32.mrf.mxu0
    %v3880 = vadd.f32 %v3791, %v3879
    %v3881 = vpop.f32.mrf.mxu0
    %v3882 = vadd.f32 %v3793, %v3881
    %3883 = vmatmul.bf16.gmra.mxu0 %v467
    %v3884 = vpop.f32.mrf.mxu0
    %v3885 = vadd.f32 %v3796, %v3884
    %v3886 = vpop.f32.mrf.mxu0
    %v3887 = vadd.f32 %v3798, %v3886
    %3888 = vmatmul.bf16.gmra.mxu0 %v475
    %v3889 = vpop.f32.mrf.mxu0
    %v3890 = vadd.f32 %v3801, %v3889
    %v3891 = vpop.f32.mrf.mxu0
    %v3892 = vadd.f32 %v3803, %v3891
    %3893 = vdwg.mxu0
    %3894 = vmatpush.bf16.msra.mxu0 %v1703
    %3895 = vmatpush.bf16.msra.mxu0 %v1699
    %3896 = vmatpush.bf16.msra.mxu0 %v1695
    %3897 = vmatpush.bf16.msra.mxu0 %v1691
    %3898 = vmatpush.bf16.msra.mxu0 %v1687
    %3899 = vmatpush.bf16.msra.mxu0 %v1683
    %3900 = vmatpush.bf16.msra.mxu0 %v1679
    %3901 = vmatpush.bf16.msra.mxu0 %v1675
    %3902 = vmatmul.bf16.gmra.mxu0 %v356
    %v3903 = vpop.f32.mrf.mxu0
    %v3904 = vadd.f32 %v3815, %v3903
    %v3905 = vpop.f32.mrf.mxu0
    %v3906 = vadd.f32 %v3817, %v3905
    %3907 = vmatmul.bf16.gmra.mxu0 %v364
    %v3908 = vpop.f32.mrf.mxu0
    %v3909 = vadd.f32 %v3820, %v3908
    %v3910 = vpop.f32.mrf.mxu0
    %v3911 = vadd.f32 %v3822, %v3910
    %3912 = vmatmul.bf16.gmra.mxu0 %v372
    %v3913 = vpop.f32.mrf.mxu0
    %v3914 = vadd.f32 %v3825, %v3913
    %v3915 = vpop.f32.mrf.mxu0
    %v3916 = vadd.f32 %v3827, %v3915
    %3917 = vmatmul.bf16.gmra.mxu0 %v380
    %v3918 = vpop.f32.mrf.mxu0
    %v3919 = vadd.f32 %v3830, %v3918
    %v3920 = vpop.f32.mrf.mxu0
    %v3921 = vadd.f32 %v3832, %v3920
    %3922 = vmatmul.bf16.gmra.mxu0 %v388
    %v3923 = vpop.f32.mrf.mxu0
    %v3924 = vadd.f32 %v3835, %v3923
    %v3925 = vpop.f32.mrf.mxu0
    %v3926 = vadd.f32 %v3837, %v3925
    %3927 = vmatmul.bf16.gmra.mxu0 %v396
    %v3928 = vpop.f32.mrf.mxu0
    %v3929 = vadd.f32 %v3840, %v3928
    %v3930 = vpop.f32.mrf.mxu0
    %v3931 = vadd.f32 %v3842, %v3930
    %3932 = vmatmul.bf16.gmra.mxu0 %v404
    %v3933 = vpop.f32.mrf.mxu0
    %v3934 = vadd.f32 %v3845, %v3933
    %v3935 = vpop.f32.mrf.mxu0
    %v3936 = vadd.f32 %v3847, %v3935
    %3937 = vmatmul.bf16.gmra.mxu0 %v412
    %v3938 = vpop.f32.mrf.mxu0
    %v3939 = vadd.f32 %v3850, %v3938
    %v3940 = vpop.f32.mrf.mxu0
    %v3941 = vadd.f32 %v3852, %v3940
    %3942 = vmatmul.bf16.gmra.mxu0 %v420
    %v3943 = vpop.f32.mrf.mxu0
    %v3944 = vadd.f32 %v3855, %v3943
    %v3945 = vpop.f32.mrf.mxu0
    %v3946 = vadd.f32 %v3857, %v3945
    %3947 = vmatmul.bf16.gmra.mxu0 %v428
    %v3948 = vpop.f32.mrf.mxu0
    %v3949 = vadd.f32 %v3860, %v3948
    %v3950 = vpop.f32.mrf.mxu0
    %v3951 = vadd.f32 %v3862, %v3950
    %3952 = vmatmul.bf16.gmra.mxu0 %v436
    %v3953 = vpop.f32.mrf.mxu0
    %v3954 = vadd.f32 %v3865, %v3953
    %v3955 = vpop.f32.mrf.mxu0
    %v3956 = vadd.f32 %v3867, %v3955
    %3957 = vmatmul.bf16.gmra.mxu0 %v444
    %v3958 = vpop.f32.mrf.mxu0
    %v3959 = vadd.f32 %v3870, %v3958
    %v3960 = vpop.f32.mrf.mxu0
    %v3961 = vadd.f32 %v3872, %v3960
    %3962 = vmatmul.bf16.gmra.mxu0 %v452
    %v3963 = vpop.f32.mrf.mxu0
    %v3964 = vadd.f32 %v3875, %v3963
    %v3965 = vpop.f32.mrf.mxu0
    %v3966 = vadd.f32 %v3877, %v3965
    %3967 = vmatmul.bf16.gmra.mxu0 %v460
    %v3968 = vpop.f32.mrf.mxu0
    %v3969 = vadd.f32 %v3880, %v3968
    %v3970 = vpop.f32.mrf.mxu0
    %v3971 = vadd.f32 %v3882, %v3970
    %3972 = vmatmul.bf16.gmra.mxu0 %v468
    %v3973 = vpop.f32.mrf.mxu0
    %v3974 = vadd.f32 %v3885, %v3973
    %v3975 = vpop.f32.mrf.mxu0
    %v3976 = vadd.f32 %v3887, %v3975
    %3977 = vmatmul.bf16.gmra.mxu0 %v476
    %v3978 = vpop.f32.mrf.mxu0
    %v3979 = vadd.f32 %v3890, %v3978
    %v3980 = vpop.f32.mrf.mxu0
    %v3981 = vadd.f32 %v3892, %v3980
    %3982 = vdwg.mxu0
    %3983 = vmatpush.bf16.msra.mxu0 %v1735
    %3984 = vmatpush.bf16.msra.mxu0 %v1731
    %3985 = vmatpush.bf16.msra.mxu0 %v1727
    %3986 = vmatpush.bf16.msra.mxu0 %v1723
    %3987 = vmatpush.bf16.msra.mxu0 %v1719
    %3988 = vmatpush.bf16.msra.mxu0 %v1715
    %3989 = vmatpush.bf16.msra.mxu0 %v1711
    %3990 = vmatpush.bf16.msra.mxu0 %v1707
    %3991 = vmatmul.bf16.gmra.mxu0 %v357
    %v3992 = vpop.f32.mrf.mxu0
    %v3993 = vadd.f32 %v3904, %v3992
    %v3994 = vpop.f32.mrf.mxu0
    %v3995 = vadd.f32 %v3906, %v3994
    %3996 = vmatmul.bf16.gmra.mxu0 %v365
    %v3997 = vpop.f32.mrf.mxu0
    %v3998 = vadd.f32 %v3909, %v3997
    %v3999 = vpop.f32.mrf.mxu0
    %v4000 = vadd.f32 %v3911, %v3999
    %4001 = vmatmul.bf16.gmra.mxu0 %v373
    %v4002 = vpop.f32.mrf.mxu0
    %v4003 = vadd.f32 %v3914, %v4002
    %v4004 = vpop.f32.mrf.mxu0
    %v4005 = vadd.f32 %v3916, %v4004
    %4006 = vmatmul.bf16.gmra.mxu0 %v381
    %v4007 = vpop.f32.mrf.mxu0
    %v4008 = vadd.f32 %v3919, %v4007
    %v4009 = vpop.f32.mrf.mxu0
    %v4010 = vadd.f32 %v3921, %v4009
    %4011 = vmatmul.bf16.gmra.mxu0 %v389
    %v4012 = vpop.f32.mrf.mxu0
    %v4013 = vadd.f32 %v3924, %v4012
    %v4014 = vpop.f32.mrf.mxu0
    %v4015 = vadd.f32 %v3926, %v4014
    %4016 = vmatmul.bf16.gmra.mxu0 %v397
    %v4017 = vpop.f32.mrf.mxu0
    %v4018 = vadd.f32 %v3929, %v4017
    %v4019 = vpop.f32.mrf.mxu0
    %v4020 = vadd.f32 %v3931, %v4019
    %4021 = vmatmul.bf16.gmra.mxu0 %v405
    %v4022 = vpop.f32.mrf.mxu0
    %v4023 = vadd.f32 %v3934, %v4022
    %v4024 = vpop.f32.mrf.mxu0
    %v4025 = vadd.f32 %v3936, %v4024
    %4026 = vmatmul.bf16.gmra.mxu0 %v413
    %v4027 = vpop.f32.mrf.mxu0
    %v4028 = vadd.f32 %v3939, %v4027
    %v4029 = vpop.f32.mrf.mxu0
    %v4030 = vadd.f32 %v3941, %v4029
    %4031 = vmatmul.bf16.gmra.mxu0 %v421
    %v4032 = vpop.f32.mrf.mxu0
    %v4033 = vadd.f32 %v3944, %v4032
    %v4034 = vpop.f32.mrf.mxu0
    %v4035 = vadd.f32 %v3946, %v4034
    %4036 = vmatmul.bf16.gmra.mxu0 %v429
    %v4037 = vpop.f32.mrf.mxu0
    %v4038 = vadd.f32 %v3949, %v4037
    %v4039 = vpop.f32.mrf.mxu0
    %v4040 = vadd.f32 %v3951, %v4039
    %4041 = vmatmul.bf16.gmra.mxu0 %v437
    %v4042 = vpop.f32.mrf.mxu0
    %v4043 = vadd.f32 %v3954, %v4042
    %v4044 = vpop.f32.mrf.mxu0
    %v4045 = vadd.f32 %v3956, %v4044
    %4046 = vmatmul.bf16.gmra.mxu0 %v445
    %v4047 = vpop.f32.mrf.mxu0
    %v4048 = vadd.f32 %v3959, %v4047
    %v4049 = vpop.f32.mrf.mxu0
    %v4050 = vadd.f32 %v3961, %v4049
    %4051 = vmatmul.bf16.gmra.mxu0 %v453
    %v4052 = vpop.f32.mrf.mxu0
    %v4053 = vadd.f32 %v3964, %v4052
    %v4054 = vpop.f32.mrf.mxu0
    %v4055 = vadd.f32 %v3966, %v4054
    %4056 = vmatmul.bf16.gmra.mxu0 %v461
    %v4057 = vpop.f32.mrf.mxu0
    %v4058 = vadd.f32 %v3969, %v4057
    %v4059 = vpop.f32.mrf.mxu0
    %v4060 = vadd.f32 %v3971, %v4059
    %4061 = vmatmul.bf16.gmra.mxu0 %v469
    %v4062 = vpop.f32.mrf.mxu0
    %v4063 = vadd.f32 %v3974, %v4062
    %v4064 = vpop.f32.mrf.mxu0
    %v4065 = vadd.f32 %v3976, %v4064
    %4066 = vmatmul.bf16.gmra.mxu0 %v477
    %v4067 = vpop.f32.mrf.mxu0
    %v4068 = vadd.f32 %v3979, %v4067
    %v4069 = vpop.f32.mrf.mxu0
    %v4070 = vadd.f32 %v3981, %v4069
    %4071 = vdwg.mxu0
    %4072 = vmatpush.bf16.msra.mxu0 %v1767
    %4073 = vmatpush.bf16.msra.mxu0 %v1763
    %4074 = vmatpush.bf16.msra.mxu0 %v1759
    %4075 = vmatpush.bf16.msra.mxu0 %v1755
    %4076 = vmatpush.bf16.msra.mxu0 %v1751
    %4077 = vmatpush.bf16.msra.mxu0 %v1747
    %4078 = vmatpush.bf16.msra.mxu0 %v1743
    %4079 = vmatpush.bf16.msra.mxu0 %v1739
    %4080 = vmatmul.bf16.gmra.mxu0 %v358
    %v4081 = vpop.f32.mrf.mxu0
    %v4082 = vadd.f32 %v3993, %v4081
    %v4083 = vpop.f32.mrf.mxu0
    %v4084 = vadd.f32 %v3995, %v4083
    %4085 = vmatmul.bf16.gmra.mxu0 %v366
    %v4086 = vpop.f32.mrf.mxu0
    %v4087 = vadd.f32 %v3998, %v4086
    %v4088 = vpop.f32.mrf.mxu0
    %v4089 = vadd.f32 %v4000, %v4088
    %4090 = vmatmul.bf16.gmra.mxu0 %v374
    %v4091 = vpop.f32.mrf.mxu0
    %v4092 = vadd.f32 %v4003, %v4091
    %v4093 = vpop.f32.mrf.mxu0
    %v4094 = vadd.f32 %v4005, %v4093
    %4095 = vmatmul.bf16.gmra.mxu0 %v382
    %v4096 = vpop.f32.mrf.mxu0
    %v4097 = vadd.f32 %v4008, %v4096
    %v4098 = vpop.f32.mrf.mxu0
    %v4099 = vadd.f32 %v4010, %v4098
    %4100 = vmatmul.bf16.gmra.mxu0 %v390
    %v4101 = vpop.f32.mrf.mxu0
    %v4102 = vadd.f32 %v4013, %v4101
    %v4103 = vpop.f32.mrf.mxu0
    %v4104 = vadd.f32 %v4015, %v4103
    %4105 = vmatmul.bf16.gmra.mxu0 %v398
    %v4106 = vpop.f32.mrf.mxu0
    %v4107 = vadd.f32 %v4018, %v4106
    %v4108 = vpop.f32.mrf.mxu0
    %v4109 = vadd.f32 %v4020, %v4108
    %4110 = vmatmul.bf16.gmra.mxu0 %v406
    %v4111 = vpop.f32.mrf.mxu0
    %v4112 = vadd.f32 %v4023, %v4111
    %v4113 = vpop.f32.mrf.mxu0
    %v4114 = vadd.f32 %v4025, %v4113
    %4115 = vmatmul.bf16.gmra.mxu0 %v414
    %v4116 = vpop.f32.mrf.mxu0
    %v4117 = vadd.f32 %v4028, %v4116
    %v4118 = vpop.f32.mrf.mxu0
    %v4119 = vadd.f32 %v4030, %v4118
    %4120 = vmatmul.bf16.gmra.mxu0 %v422
    %v4121 = vpop.f32.mrf.mxu0
    %v4122 = vadd.f32 %v4033, %v4121
    %v4123 = vpop.f32.mrf.mxu0
    %v4124 = vadd.f32 %v4035, %v4123
    %4125 = vmatmul.bf16.gmra.mxu0 %v430
    %v4126 = vpop.f32.mrf.mxu0
    %v4127 = vadd.f32 %v4038, %v4126
    %v4128 = vpop.f32.mrf.mxu0
    %v4129 = vadd.f32 %v4040, %v4128
    %4130 = vmatmul.bf16.gmra.mxu0 %v438
    %v4131 = vpop.f32.mrf.mxu0
    %v4132 = vadd.f32 %v4043, %v4131
    %v4133 = vpop.f32.mrf.mxu0
    %v4134 = vadd.f32 %v4045, %v4133
    %4135 = vmatmul.bf16.gmra.mxu0 %v446
    %v4136 = vpop.f32.mrf.mxu0
    %v4137 = vadd.f32 %v4048, %v4136
    %v4138 = vpop.f32.mrf.mxu0
    %v4139 = vadd.f32 %v4050, %v4138
    %4140 = vmatmul.bf16.gmra.mxu0 %v454
    %v4141 = vpop.f32.mrf.mxu0
    %v4142 = vadd.f32 %v4053, %v4141
    %v4143 = vpop.f32.mrf.mxu0
    %v4144 = vadd.f32 %v4055, %v4143
    %4145 = vmatmul.bf16.gmra.mxu0 %v462
    %v4146 = vpop.f32.mrf.mxu0
    %v4147 = vadd.f32 %v4058, %v4146
    %v4148 = vpop.f32.mrf.mxu0
    %v4149 = vadd.f32 %v4060, %v4148
    %4150 = vmatmul.bf16.gmra.mxu0 %v470
    %v4151 = vpop.f32.mrf.mxu0
    %v4152 = vadd.f32 %v4063, %v4151
    %v4153 = vpop.f32.mrf.mxu0
    %v4154 = vadd.f32 %v4065, %v4153
    %4155 = vmatmul.bf16.gmra.mxu0 %v478
    %v4156 = vpop.f32.mrf.mxu0
    %v4157 = vadd.f32 %v4068, %v4156
    %v4158 = vpop.f32.mrf.mxu0
    %v4159 = vadd.f32 %v4070, %v4158
    %4160 = vdwg.mxu0
    %4161 = vmatpush.bf16.msra.mxu0 %v1544
    %4162 = vmatpush.bf16.msra.mxu0 %v1540
    %4163 = vmatpush.bf16.msra.mxu0 %v1536
    %4164 = vmatpush.bf16.msra.mxu0 %v1532
    %4165 = vmatpush.bf16.msra.mxu0 %v1528
    %4166 = vmatpush.bf16.msra.mxu0 %v1524
    %4167 = vmatpush.bf16.msra.mxu0 %v1520
    %4168 = vmatpush.bf16.msra.mxu0 %v1516
    %4169 = vmatmul.bf16.gmra.mxu0 %v351
    %v4170 = vpop.f32.mrf.mxu0
    %v4171 = vadd.f32 %v740, %v4170
    %v4172 = vpop.f32.mrf.mxu0
    %v4173 = vadd.f32 %v740, %v4172
    %4174 = vmatmul.bf16.gmra.mxu0 %v359
    %v4175 = vpop.f32.mrf.mxu0
    %v4176 = vadd.f32 %v740, %v4175
    %v4177 = vpop.f32.mrf.mxu0
    %v4178 = vadd.f32 %v740, %v4177
    %4179 = vmatmul.bf16.gmra.mxu0 %v367
    %v4180 = vpop.f32.mrf.mxu0
    %v4181 = vadd.f32 %v740, %v4180
    %v4182 = vpop.f32.mrf.mxu0
    %v4183 = vadd.f32 %v740, %v4182
    %4184 = vmatmul.bf16.gmra.mxu0 %v375
    %v4185 = vpop.f32.mrf.mxu0
    %v4186 = vadd.f32 %v740, %v4185
    %v4187 = vpop.f32.mrf.mxu0
    %v4188 = vadd.f32 %v740, %v4187
    %4189 = vmatmul.bf16.gmra.mxu0 %v383
    %v4190 = vpop.f32.mrf.mxu0
    %v4191 = vadd.f32 %v740, %v4190
    %v4192 = vpop.f32.mrf.mxu0
    %v4193 = vadd.f32 %v740, %v4192
    %4194 = vmatmul.bf16.gmra.mxu0 %v391
    %v4195 = vpop.f32.mrf.mxu0
    %v4196 = vadd.f32 %v740, %v4195
    %v4197 = vpop.f32.mrf.mxu0
    %v4198 = vadd.f32 %v740, %v4197
    %4199 = vmatmul.bf16.gmra.mxu0 %v399
    %v4200 = vpop.f32.mrf.mxu0
    %v4201 = vadd.f32 %v740, %v4200
    %v4202 = vpop.f32.mrf.mxu0
    %v4203 = vadd.f32 %v740, %v4202
    %4204 = vmatmul.bf16.gmra.mxu0 %v407
    %v4205 = vpop.f32.mrf.mxu0
    %v4206 = vadd.f32 %v740, %v4205
    %v4207 = vpop.f32.mrf.mxu0
    %v4208 = vadd.f32 %v740, %v4207
    %4209 = vmatmul.bf16.gmra.mxu0 %v415
    %v4210 = vpop.f32.mrf.mxu0
    %v4211 = vadd.f32 %v740, %v4210
    %v4212 = vpop.f32.mrf.mxu0
    %v4213 = vadd.f32 %v740, %v4212
    %4214 = vmatmul.bf16.gmra.mxu0 %v423
    %v4215 = vpop.f32.mrf.mxu0
    %v4216 = vadd.f32 %v740, %v4215
    %v4217 = vpop.f32.mrf.mxu0
    %v4218 = vadd.f32 %v740, %v4217
    %4219 = vmatmul.bf16.gmra.mxu0 %v431
    %v4220 = vpop.f32.mrf.mxu0
    %v4221 = vadd.f32 %v740, %v4220
    %v4222 = vpop.f32.mrf.mxu0
    %v4223 = vadd.f32 %v740, %v4222
    %4224 = vmatmul.bf16.gmra.mxu0 %v439
    %v4225 = vpop.f32.mrf.mxu0
    %v4226 = vadd.f32 %v740, %v4225
    %v4227 = vpop.f32.mrf.mxu0
    %v4228 = vadd.f32 %v740, %v4227
    %4229 = vmatmul.bf16.gmra.mxu0 %v447
    %v4230 = vpop.f32.mrf.mxu0
    %v4231 = vadd.f32 %v740, %v4230
    %v4232 = vpop.f32.mrf.mxu0
    %v4233 = vadd.f32 %v740, %v4232
    %4234 = vmatmul.bf16.gmra.mxu0 %v455
    %v4235 = vpop.f32.mrf.mxu0
    %v4236 = vadd.f32 %v740, %v4235
    %v4237 = vpop.f32.mrf.mxu0
    %v4238 = vadd.f32 %v740, %v4237
    %4239 = vmatmul.bf16.gmra.mxu0 %v463
    %v4240 = vpop.f32.mrf.mxu0
    %v4241 = vadd.f32 %v740, %v4240
    %v4242 = vpop.f32.mrf.mxu0
    %v4243 = vadd.f32 %v740, %v4242
    %4244 = vmatmul.bf16.gmra.mxu0 %v471
    %v4245 = vpop.f32.mrf.mxu0
    %v4246 = vadd.f32 %v740, %v4245
    %v4247 = vpop.f32.mrf.mxu0
    %v4248 = vadd.f32 %v740, %v4247
    %4249 = vdwg.mxu0
    %4250 = vmatpush.bf16.msra.mxu0 %v1576
    %4251 = vmatpush.bf16.msra.mxu0 %v1572
    %4252 = vmatpush.bf16.msra.mxu0 %v1568
    %4253 = vmatpush.bf16.msra.mxu0 %v1564
    %4254 = vmatpush.bf16.msra.mxu0 %v1560
    %4255 = vmatpush.bf16.msra.mxu0 %v1556
    %4256 = vmatpush.bf16.msra.mxu0 %v1552
    %4257 = vmatpush.bf16.msra.mxu0 %v1548
    %4258 = vmatmul.bf16.gmra.mxu0 %v352
    %v4259 = vpop.f32.mrf.mxu0
    %v4260 = vadd.f32 %v4171, %v4259
    %v4261 = vpop.f32.mrf.mxu0
    %v4262 = vadd.f32 %v4173, %v4261
    %4263 = vmatmul.bf16.gmra.mxu0 %v360
    %v4264 = vpop.f32.mrf.mxu0
    %v4265 = vadd.f32 %v4176, %v4264
    %v4266 = vpop.f32.mrf.mxu0
    %v4267 = vadd.f32 %v4178, %v4266
    %4268 = vmatmul.bf16.gmra.mxu0 %v368
    %v4269 = vpop.f32.mrf.mxu0
    %v4270 = vadd.f32 %v4181, %v4269
    %v4271 = vpop.f32.mrf.mxu0
    %v4272 = vadd.f32 %v4183, %v4271
    %4273 = vmatmul.bf16.gmra.mxu0 %v376
    %v4274 = vpop.f32.mrf.mxu0
    %v4275 = vadd.f32 %v4186, %v4274
    %v4276 = vpop.f32.mrf.mxu0
    %v4277 = vadd.f32 %v4188, %v4276
    %4278 = vmatmul.bf16.gmra.mxu0 %v384
    %v4279 = vpop.f32.mrf.mxu0
    %v4280 = vadd.f32 %v4191, %v4279
    %v4281 = vpop.f32.mrf.mxu0
    %v4282 = vadd.f32 %v4193, %v4281
    %4283 = vmatmul.bf16.gmra.mxu0 %v392
    %v4284 = vpop.f32.mrf.mxu0
    %v4285 = vadd.f32 %v4196, %v4284
    %v4286 = vpop.f32.mrf.mxu0
    %v4287 = vadd.f32 %v4198, %v4286
    %4288 = vmatmul.bf16.gmra.mxu0 %v400
    %v4289 = vpop.f32.mrf.mxu0
    %v4290 = vadd.f32 %v4201, %v4289
    %v4291 = vpop.f32.mrf.mxu0
    %v4292 = vadd.f32 %v4203, %v4291
    %4293 = vmatmul.bf16.gmra.mxu0 %v408
    %v4294 = vpop.f32.mrf.mxu0
    %v4295 = vadd.f32 %v4206, %v4294
    %v4296 = vpop.f32.mrf.mxu0
    %v4297 = vadd.f32 %v4208, %v4296
    %4298 = vmatmul.bf16.gmra.mxu0 %v416
    %v4299 = vpop.f32.mrf.mxu0
    %v4300 = vadd.f32 %v4211, %v4299
    %v4301 = vpop.f32.mrf.mxu0
    %v4302 = vadd.f32 %v4213, %v4301
    %4303 = vmatmul.bf16.gmra.mxu0 %v424
    %v4304 = vpop.f32.mrf.mxu0
    %v4305 = vadd.f32 %v4216, %v4304
    %v4306 = vpop.f32.mrf.mxu0
    %v4307 = vadd.f32 %v4218, %v4306
    %4308 = vmatmul.bf16.gmra.mxu0 %v432
    %v4309 = vpop.f32.mrf.mxu0
    %v4310 = vadd.f32 %v4221, %v4309
    %v4311 = vpop.f32.mrf.mxu0
    %v4312 = vadd.f32 %v4223, %v4311
    %4313 = vmatmul.bf16.gmra.mxu0 %v440
    %v4314 = vpop.f32.mrf.mxu0
    %v4315 = vadd.f32 %v4226, %v4314
    %v4316 = vpop.f32.mrf.mxu0
    %v4317 = vadd.f32 %v4228, %v4316
    %4318 = vmatmul.bf16.gmra.mxu0 %v448
    %v4319 = vpop.f32.mrf.mxu0
    %v4320 = vadd.f32 %v4231, %v4319
    %v4321 = vpop.f32.mrf.mxu0
    %v4322 = vadd.f32 %v4233, %v4321
    %4323 = vmatmul.bf16.gmra.mxu0 %v456
    %v4324 = vpop.f32.mrf.mxu0
    %v4325 = vadd.f32 %v4236, %v4324
    %v4326 = vpop.f32.mrf.mxu0
    %v4327 = vadd.f32 %v4238, %v4326
    %4328 = vmatmul.bf16.gmra.mxu0 %v464
    %v4329 = vpop.f32.mrf.mxu0
    %v4330 = vadd.f32 %v4241, %v4329
    %v4331 = vpop.f32.mrf.mxu0
    %v4332 = vadd.f32 %v4243, %v4331
    %4333 = vmatmul.bf16.gmra.mxu0 %v472
    %v4334 = vpop.f32.mrf.mxu0
    %v4335 = vadd.f32 %v4246, %v4334
    %v4336 = vpop.f32.mrf.mxu0
    %v4337 = vadd.f32 %v4248, %v4336
    %4338 = vdwg.mxu0
    %4339 = vmatpush.bf16.msra.mxu0 %v1608
    %4340 = vmatpush.bf16.msra.mxu0 %v1604
    %4341 = vmatpush.bf16.msra.mxu0 %v1600
    %4342 = vmatpush.bf16.msra.mxu0 %v1596
    %4343 = vmatpush.bf16.msra.mxu0 %v1592
    %4344 = vmatpush.bf16.msra.mxu0 %v1588
    %4345 = vmatpush.bf16.msra.mxu0 %v1584
    %4346 = vmatpush.bf16.msra.mxu0 %v1580
    %4347 = vmatmul.bf16.gmra.mxu0 %v353
    %v4348 = vpop.f32.mrf.mxu0
    %v4349 = vadd.f32 %v4260, %v4348
    %v4350 = vpop.f32.mrf.mxu0
    %v4351 = vadd.f32 %v4262, %v4350
    %4352 = vmatmul.bf16.gmra.mxu0 %v361
    %v4353 = vpop.f32.mrf.mxu0
    %v4354 = vadd.f32 %v4265, %v4353
    %v4355 = vpop.f32.mrf.mxu0
    %v4356 = vadd.f32 %v4267, %v4355
    %4357 = vmatmul.bf16.gmra.mxu0 %v369
    %v4358 = vpop.f32.mrf.mxu0
    %v4359 = vadd.f32 %v4270, %v4358
    %v4360 = vpop.f32.mrf.mxu0
    %v4361 = vadd.f32 %v4272, %v4360
    %4362 = vmatmul.bf16.gmra.mxu0 %v377
    %v4363 = vpop.f32.mrf.mxu0
    %v4364 = vadd.f32 %v4275, %v4363
    %v4365 = vpop.f32.mrf.mxu0
    %v4366 = vadd.f32 %v4277, %v4365
    %4367 = vmatmul.bf16.gmra.mxu0 %v385
    %v4368 = vpop.f32.mrf.mxu0
    %v4369 = vadd.f32 %v4280, %v4368
    %v4370 = vpop.f32.mrf.mxu0
    %v4371 = vadd.f32 %v4282, %v4370
    %4372 = vmatmul.bf16.gmra.mxu0 %v393
    %v4373 = vpop.f32.mrf.mxu0
    %v4374 = vadd.f32 %v4285, %v4373
    %v4375 = vpop.f32.mrf.mxu0
    %v4376 = vadd.f32 %v4287, %v4375
    %4377 = vmatmul.bf16.gmra.mxu0 %v401
    %v4378 = vpop.f32.mrf.mxu0
    %v4379 = vadd.f32 %v4290, %v4378
    %v4380 = vpop.f32.mrf.mxu0
    %v4381 = vadd.f32 %v4292, %v4380
    %4382 = vmatmul.bf16.gmra.mxu0 %v409
    %v4383 = vpop.f32.mrf.mxu0
    %v4384 = vadd.f32 %v4295, %v4383
    %v4385 = vpop.f32.mrf.mxu0
    %v4386 = vadd.f32 %v4297, %v4385
    %4387 = vmatmul.bf16.gmra.mxu0 %v417
    %v4388 = vpop.f32.mrf.mxu0
    %v4389 = vadd.f32 %v4300, %v4388
    %v4390 = vpop.f32.mrf.mxu0
    %v4391 = vadd.f32 %v4302, %v4390
    %4392 = vmatmul.bf16.gmra.mxu0 %v425
    %v4393 = vpop.f32.mrf.mxu0
    %v4394 = vadd.f32 %v4305, %v4393
    %v4395 = vpop.f32.mrf.mxu0
    %v4396 = vadd.f32 %v4307, %v4395
    %4397 = vmatmul.bf16.gmra.mxu0 %v433
    %v4398 = vpop.f32.mrf.mxu0
    %v4399 = vadd.f32 %v4310, %v4398
    %v4400 = vpop.f32.mrf.mxu0
    %v4401 = vadd.f32 %v4312, %v4400
    %4402 = vmatmul.bf16.gmra.mxu0 %v441
    %v4403 = vpop.f32.mrf.mxu0
    %v4404 = vadd.f32 %v4315, %v4403
    %v4405 = vpop.f32.mrf.mxu0
    %v4406 = vadd.f32 %v4317, %v4405
    %4407 = vmatmul.bf16.gmra.mxu0 %v449
    %v4408 = vpop.f32.mrf.mxu0
    %v4409 = vadd.f32 %v4320, %v4408
    %v4410 = vpop.f32.mrf.mxu0
    %v4411 = vadd.f32 %v4322, %v4410
    %4412 = vmatmul.bf16.gmra.mxu0 %v457
    %v4413 = vpop.f32.mrf.mxu0
    %v4414 = vadd.f32 %v4325, %v4413
    %v4415 = vpop.f32.mrf.mxu0
    %v4416 = vadd.f32 %v4327, %v4415
    %4417 = vmatmul.bf16.gmra.mxu0 %v465
    %v4418 = vpop.f32.mrf.mxu0
    %v4419 = vadd.f32 %v4330, %v4418
    %v4420 = vpop.f32.mrf.mxu0
    %v4421 = vadd.f32 %v4332, %v4420
    %4422 = vmatmul.bf16.gmra.mxu0 %v473
    %v4423 = vpop.f32.mrf.mxu0
    %v4424 = vadd.f32 %v4335, %v4423
    %v4425 = vpop.f32.mrf.mxu0
    %v4426 = vadd.f32 %v4337, %v4425
    %4427 = vdwg.mxu0
    %4428 = vmatpush.bf16.msra.mxu0 %v1640
    %4429 = vmatpush.bf16.msra.mxu0 %v1636
    %4430 = vmatpush.bf16.msra.mxu0 %v1632
    %4431 = vmatpush.bf16.msra.mxu0 %v1628
    %4432 = vmatpush.bf16.msra.mxu0 %v1624
    %4433 = vmatpush.bf16.msra.mxu0 %v1620
    %4434 = vmatpush.bf16.msra.mxu0 %v1616
    %4435 = vmatpush.bf16.msra.mxu0 %v1612
    %4436 = vmatmul.bf16.gmra.mxu0 %v354
    %v4437 = vpop.f32.mrf.mxu0
    %v4438 = vadd.f32 %v4349, %v4437
    %v4439 = vpop.f32.mrf.mxu0
    %v4440 = vadd.f32 %v4351, %v4439
    %4441 = vmatmul.bf16.gmra.mxu0 %v362
    %v4442 = vpop.f32.mrf.mxu0
    %v4443 = vadd.f32 %v4354, %v4442
    %v4444 = vpop.f32.mrf.mxu0
    %v4445 = vadd.f32 %v4356, %v4444
    %4446 = vmatmul.bf16.gmra.mxu0 %v370
    %v4447 = vpop.f32.mrf.mxu0
    %v4448 = vadd.f32 %v4359, %v4447
    %v4449 = vpop.f32.mrf.mxu0
    %v4450 = vadd.f32 %v4361, %v4449
    %4451 = vmatmul.bf16.gmra.mxu0 %v378
    %v4452 = vpop.f32.mrf.mxu0
    %v4453 = vadd.f32 %v4364, %v4452
    %v4454 = vpop.f32.mrf.mxu0
    %v4455 = vadd.f32 %v4366, %v4454
    %4456 = vmatmul.bf16.gmra.mxu0 %v386
    %v4457 = vpop.f32.mrf.mxu0
    %v4458 = vadd.f32 %v4369, %v4457
    %v4459 = vpop.f32.mrf.mxu0
    %v4460 = vadd.f32 %v4371, %v4459
    %4461 = vmatmul.bf16.gmra.mxu0 %v394
    %v4462 = vpop.f32.mrf.mxu0
    %v4463 = vadd.f32 %v4374, %v4462
    %v4464 = vpop.f32.mrf.mxu0
    %v4465 = vadd.f32 %v4376, %v4464
    %4466 = vmatmul.bf16.gmra.mxu0 %v402
    %v4467 = vpop.f32.mrf.mxu0
    %v4468 = vadd.f32 %v4379, %v4467
    %v4469 = vpop.f32.mrf.mxu0
    %v4470 = vadd.f32 %v4381, %v4469
    %4471 = vmatmul.bf16.gmra.mxu0 %v410
    %v4472 = vpop.f32.mrf.mxu0
    %v4473 = vadd.f32 %v4384, %v4472
    %v4474 = vpop.f32.mrf.mxu0
    %v4475 = vadd.f32 %v4386, %v4474
    %4476 = vmatmul.bf16.gmra.mxu0 %v418
    %v4477 = vpop.f32.mrf.mxu0
    %v4478 = vadd.f32 %v4389, %v4477
    %v4479 = vpop.f32.mrf.mxu0
    %v4480 = vadd.f32 %v4391, %v4479
    %4481 = vmatmul.bf16.gmra.mxu0 %v426
    %v4482 = vpop.f32.mrf.mxu0
    %v4483 = vadd.f32 %v4394, %v4482
    %v4484 = vpop.f32.mrf.mxu0
    %v4485 = vadd.f32 %v4396, %v4484
    %4486 = vmatmul.bf16.gmra.mxu0 %v434
    %v4487 = vpop.f32.mrf.mxu0
    %v4488 = vadd.f32 %v4399, %v4487
    %v4489 = vpop.f32.mrf.mxu0
    %v4490 = vadd.f32 %v4401, %v4489
    %4491 = vmatmul.bf16.gmra.mxu0 %v442
    %v4492 = vpop.f32.mrf.mxu0
    %v4493 = vadd.f32 %v4404, %v4492
    %v4494 = vpop.f32.mrf.mxu0
    %v4495 = vadd.f32 %v4406, %v4494
    %4496 = vmatmul.bf16.gmra.mxu0 %v450
    %v4497 = vpop.f32.mrf.mxu0
    %v4498 = vadd.f32 %v4409, %v4497
    %v4499 = vpop.f32.mrf.mxu0
    %v4500 = vadd.f32 %v4411, %v4499
    %4501 = vmatmul.bf16.gmra.mxu0 %v458
    %v4502 = vpop.f32.mrf.mxu0
    %v4503 = vadd.f32 %v4414, %v4502
    %v4504 = vpop.f32.mrf.mxu0
    %v4505 = vadd.f32 %v4416, %v4504
    %4506 = vmatmul.bf16.gmra.mxu0 %v466
    %v4507 = vpop.f32.mrf.mxu0
    %v4508 = vadd.f32 %v4419, %v4507
    %v4509 = vpop.f32.mrf.mxu0
    %v4510 = vadd.f32 %v4421, %v4509
    %4511 = vmatmul.bf16.gmra.mxu0 %v474
    %v4512 = vpop.f32.mrf.mxu0
    %v4513 = vadd.f32 %v4424, %v4512
    %v4514 = vpop.f32.mrf.mxu0
    %v4515 = vadd.f32 %v4426, %v4514
    %4516 = vdwg.mxu0
    %4517 = vmatpush.bf16.msra.mxu0 %v1672
    %4518 = vmatpush.bf16.msra.mxu0 %v1668
    %4519 = vmatpush.bf16.msra.mxu0 %v1664
    %4520 = vmatpush.bf16.msra.mxu0 %v1660
    %4521 = vmatpush.bf16.msra.mxu0 %v1656
    %4522 = vmatpush.bf16.msra.mxu0 %v1652
    %4523 = vmatpush.bf16.msra.mxu0 %v1648
    %4524 = vmatpush.bf16.msra.mxu0 %v1644
    %4525 = vmatmul.bf16.gmra.mxu0 %v355
    %v4526 = vpop.f32.mrf.mxu0
    %v4527 = vadd.f32 %v4438, %v4526
    %v4528 = vpop.f32.mrf.mxu0
    %v4529 = vadd.f32 %v4440, %v4528
    %4530 = vmatmul.bf16.gmra.mxu0 %v363
    %v4531 = vpop.f32.mrf.mxu0
    %v4532 = vadd.f32 %v4443, %v4531
    %v4533 = vpop.f32.mrf.mxu0
    %v4534 = vadd.f32 %v4445, %v4533
    %4535 = vmatmul.bf16.gmra.mxu0 %v371
    %v4536 = vpop.f32.mrf.mxu0
    %v4537 = vadd.f32 %v4448, %v4536
    %v4538 = vpop.f32.mrf.mxu0
    %v4539 = vadd.f32 %v4450, %v4538
    %4540 = vmatmul.bf16.gmra.mxu0 %v379
    %v4541 = vpop.f32.mrf.mxu0
    %v4542 = vadd.f32 %v4453, %v4541
    %v4543 = vpop.f32.mrf.mxu0
    %v4544 = vadd.f32 %v4455, %v4543
    %4545 = vmatmul.bf16.gmra.mxu0 %v387
    %v4546 = vpop.f32.mrf.mxu0
    %v4547 = vadd.f32 %v4458, %v4546
    %v4548 = vpop.f32.mrf.mxu0
    %v4549 = vadd.f32 %v4460, %v4548
    %4550 = vmatmul.bf16.gmra.mxu0 %v395
    %v4551 = vpop.f32.mrf.mxu0
    %v4552 = vadd.f32 %v4463, %v4551
    %v4553 = vpop.f32.mrf.mxu0
    %v4554 = vadd.f32 %v4465, %v4553
    %4555 = vmatmul.bf16.gmra.mxu0 %v403
    %v4556 = vpop.f32.mrf.mxu0
    %v4557 = vadd.f32 %v4468, %v4556
    %v4558 = vpop.f32.mrf.mxu0
    %v4559 = vadd.f32 %v4470, %v4558
    %4560 = vmatmul.bf16.gmra.mxu0 %v411
    %v4561 = vpop.f32.mrf.mxu0
    %v4562 = vadd.f32 %v4473, %v4561
    %v4563 = vpop.f32.mrf.mxu0
    %v4564 = vadd.f32 %v4475, %v4563
    %4565 = vmatmul.bf16.gmra.mxu0 %v419
    %v4566 = vpop.f32.mrf.mxu0
    %v4567 = vadd.f32 %v4478, %v4566
    %v4568 = vpop.f32.mrf.mxu0
    %v4569 = vadd.f32 %v4480, %v4568
    %4570 = vmatmul.bf16.gmra.mxu0 %v427
    %v4571 = vpop.f32.mrf.mxu0
    %v4572 = vadd.f32 %v4483, %v4571
    %v4573 = vpop.f32.mrf.mxu0
    %v4574 = vadd.f32 %v4485, %v4573
    %4575 = vmatmul.bf16.gmra.mxu0 %v435
    %v4576 = vpop.f32.mrf.mxu0
    %v4577 = vadd.f32 %v4488, %v4576
    %v4578 = vpop.f32.mrf.mxu0
    %v4579 = vadd.f32 %v4490, %v4578
    %4580 = vmatmul.bf16.gmra.mxu0 %v443
    %v4581 = vpop.f32.mrf.mxu0
    %v4582 = vadd.f32 %v4493, %v4581
    %v4583 = vpop.f32.mrf.mxu0
    %v4584 = vadd.f32 %v4495, %v4583
    %4585 = vmatmul.bf16.gmra.mxu0 %v451
    %v4586 = vpop.f32.mrf.mxu0
    %v4587 = vadd.f32 %v4498, %v4586
    %v4588 = vpop.f32.mrf.mxu0
    %v4589 = vadd.f32 %v4500, %v4588
    %4590 = vmatmul.bf16.gmra.mxu0 %v459
    %v4591 = vpop.f32.mrf.mxu0
    %v4592 = vadd.f32 %v4503, %v4591
    %v4593 = vpop.f32.mrf.mxu0
    %v4594 = vadd.f32 %v4505, %v4593
    %4595 = vmatmul.bf16.gmra.mxu0 %v467
    %v4596 = vpop.f32.mrf.mxu0
    %v4597 = vadd.f32 %v4508, %v4596
    %v4598 = vpop.f32.mrf.mxu0
    %v4599 = vadd.f32 %v4510, %v4598
    %4600 = vmatmul.bf16.gmra.mxu0 %v475
    %v4601 = vpop.f32.mrf.mxu0
    %v4602 = vadd.f32 %v4513, %v4601
    %v4603 = vpop.f32.mrf.mxu0
    %v4604 = vadd.f32 %v4515, %v4603
    %4605 = vdwg.mxu0
    %4606 = vmatpush.bf16.msra.mxu0 %v1704
    %4607 = vmatpush.bf16.msra.mxu0 %v1700
    %4608 = vmatpush.bf16.msra.mxu0 %v1696
    %4609 = vmatpush.bf16.msra.mxu0 %v1692
    %4610 = vmatpush.bf16.msra.mxu0 %v1688
    %4611 = vmatpush.bf16.msra.mxu0 %v1684
    %4612 = vmatpush.bf16.msra.mxu0 %v1680
    %4613 = vmatpush.bf16.msra.mxu0 %v1676
    %4614 = vmatmul.bf16.gmra.mxu0 %v356
    %v4615 = vpop.f32.mrf.mxu0
    %v4616 = vadd.f32 %v4527, %v4615
    %v4617 = vpop.f32.mrf.mxu0
    %v4618 = vadd.f32 %v4529, %v4617
    %4619 = vmatmul.bf16.gmra.mxu0 %v364
    %v4620 = vpop.f32.mrf.mxu0
    %v4621 = vadd.f32 %v4532, %v4620
    %v4622 = vpop.f32.mrf.mxu0
    %v4623 = vadd.f32 %v4534, %v4622
    %4624 = vmatmul.bf16.gmra.mxu0 %v372
    %v4625 = vpop.f32.mrf.mxu0
    %v4626 = vadd.f32 %v4537, %v4625
    %v4627 = vpop.f32.mrf.mxu0
    %v4628 = vadd.f32 %v4539, %v4627
    %4629 = vmatmul.bf16.gmra.mxu0 %v380
    %v4630 = vpop.f32.mrf.mxu0
    %v4631 = vadd.f32 %v4542, %v4630
    %v4632 = vpop.f32.mrf.mxu0
    %v4633 = vadd.f32 %v4544, %v4632
    %4634 = vmatmul.bf16.gmra.mxu0 %v388
    %v4635 = vpop.f32.mrf.mxu0
    %v4636 = vadd.f32 %v4547, %v4635
    %v4637 = vpop.f32.mrf.mxu0
    %v4638 = vadd.f32 %v4549, %v4637
    %4639 = vmatmul.bf16.gmra.mxu0 %v396
    %v4640 = vpop.f32.mrf.mxu0
    %v4641 = vadd.f32 %v4552, %v4640
    %v4642 = vpop.f32.mrf.mxu0
    %v4643 = vadd.f32 %v4554, %v4642
    %4644 = vmatmul.bf16.gmra.mxu0 %v404
    %v4645 = vpop.f32.mrf.mxu0
    %v4646 = vadd.f32 %v4557, %v4645
    %v4647 = vpop.f32.mrf.mxu0
    %v4648 = vadd.f32 %v4559, %v4647
    %4649 = vmatmul.bf16.gmra.mxu0 %v412
    %v4650 = vpop.f32.mrf.mxu0
    %v4651 = vadd.f32 %v4562, %v4650
    %v4652 = vpop.f32.mrf.mxu0
    %v4653 = vadd.f32 %v4564, %v4652
    %4654 = vmatmul.bf16.gmra.mxu0 %v420
    %v4655 = vpop.f32.mrf.mxu0
    %v4656 = vadd.f32 %v4567, %v4655
    %v4657 = vpop.f32.mrf.mxu0
    %v4658 = vadd.f32 %v4569, %v4657
    %4659 = vmatmul.bf16.gmra.mxu0 %v428
    %v4660 = vpop.f32.mrf.mxu0
    %v4661 = vadd.f32 %v4572, %v4660
    %v4662 = vpop.f32.mrf.mxu0
    %v4663 = vadd.f32 %v4574, %v4662
    %4664 = vmatmul.bf16.gmra.mxu0 %v436
    %v4665 = vpop.f32.mrf.mxu0
    %v4666 = vadd.f32 %v4577, %v4665
    %v4667 = vpop.f32.mrf.mxu0
    %v4668 = vadd.f32 %v4579, %v4667
    %4669 = vmatmul.bf16.gmra.mxu0 %v444
    %v4670 = vpop.f32.mrf.mxu0
    %v4671 = vadd.f32 %v4582, %v4670
    %v4672 = vpop.f32.mrf.mxu0
    %v4673 = vadd.f32 %v4584, %v4672
    %4674 = vmatmul.bf16.gmra.mxu0 %v452
    %v4675 = vpop.f32.mrf.mxu0
    %v4676 = vadd.f32 %v4587, %v4675
    %v4677 = vpop.f32.mrf.mxu0
    %v4678 = vadd.f32 %v4589, %v4677
    %4679 = vmatmul.bf16.gmra.mxu0 %v460
    %v4680 = vpop.f32.mrf.mxu0
    %v4681 = vadd.f32 %v4592, %v4680
    %v4682 = vpop.f32.mrf.mxu0
    %v4683 = vadd.f32 %v4594, %v4682
    %4684 = vmatmul.bf16.gmra.mxu0 %v468
    %v4685 = vpop.f32.mrf.mxu0
    %v4686 = vadd.f32 %v4597, %v4685
    %v4687 = vpop.f32.mrf.mxu0
    %v4688 = vadd.f32 %v4599, %v4687
    %4689 = vmatmul.bf16.gmra.mxu0 %v476
    %v4690 = vpop.f32.mrf.mxu0
    %v4691 = vadd.f32 %v4602, %v4690
    %v4692 = vpop.f32.mrf.mxu0
    %v4693 = vadd.f32 %v4604, %v4692
    %4694 = vdwg.mxu0
    %4695 = vmatpush.bf16.msra.mxu0 %v1736
    %4696 = vmatpush.bf16.msra.mxu0 %v1732
    %4697 = vmatpush.bf16.msra.mxu0 %v1728
    %4698 = vmatpush.bf16.msra.mxu0 %v1724
    %4699 = vmatpush.bf16.msra.mxu0 %v1720
    %4700 = vmatpush.bf16.msra.mxu0 %v1716
    %4701 = vmatpush.bf16.msra.mxu0 %v1712
    %4702 = vmatpush.bf16.msra.mxu0 %v1708
    %4703 = vmatmul.bf16.gmra.mxu0 %v357
    %v4704 = vpop.f32.mrf.mxu0
    %v4705 = vadd.f32 %v4616, %v4704
    %v4706 = vpop.f32.mrf.mxu0
    %v4707 = vadd.f32 %v4618, %v4706
    %4708 = vmatmul.bf16.gmra.mxu0 %v365
    %v4709 = vpop.f32.mrf.mxu0
    %v4710 = vadd.f32 %v4621, %v4709
    %v4711 = vpop.f32.mrf.mxu0
    %v4712 = vadd.f32 %v4623, %v4711
    %4713 = vmatmul.bf16.gmra.mxu0 %v373
    %v4714 = vpop.f32.mrf.mxu0
    %v4715 = vadd.f32 %v4626, %v4714
    %v4716 = vpop.f32.mrf.mxu0
    %v4717 = vadd.f32 %v4628, %v4716
    %4718 = vmatmul.bf16.gmra.mxu0 %v381
    %v4719 = vpop.f32.mrf.mxu0
    %v4720 = vadd.f32 %v4631, %v4719
    %v4721 = vpop.f32.mrf.mxu0
    %v4722 = vadd.f32 %v4633, %v4721
    %4723 = vmatmul.bf16.gmra.mxu0 %v389
    %v4724 = vpop.f32.mrf.mxu0
    %v4725 = vadd.f32 %v4636, %v4724
    %v4726 = vpop.f32.mrf.mxu0
    %v4727 = vadd.f32 %v4638, %v4726
    %4728 = vmatmul.bf16.gmra.mxu0 %v397
    %v4729 = vpop.f32.mrf.mxu0
    %v4730 = vadd.f32 %v4641, %v4729
    %v4731 = vpop.f32.mrf.mxu0
    %v4732 = vadd.f32 %v4643, %v4731
    %4733 = vmatmul.bf16.gmra.mxu0 %v405
    %v4734 = vpop.f32.mrf.mxu0
    %v4735 = vadd.f32 %v4646, %v4734
    %v4736 = vpop.f32.mrf.mxu0
    %v4737 = vadd.f32 %v4648, %v4736
    %4738 = vmatmul.bf16.gmra.mxu0 %v413
    %v4739 = vpop.f32.mrf.mxu0
    %v4740 = vadd.f32 %v4651, %v4739
    %v4741 = vpop.f32.mrf.mxu0
    %v4742 = vadd.f32 %v4653, %v4741
    %4743 = vmatmul.bf16.gmra.mxu0 %v421
    %v4744 = vpop.f32.mrf.mxu0
    %v4745 = vadd.f32 %v4656, %v4744
    %v4746 = vpop.f32.mrf.mxu0
    %v4747 = vadd.f32 %v4658, %v4746
    %4748 = vmatmul.bf16.gmra.mxu0 %v429
    %v4749 = vpop.f32.mrf.mxu0
    %v4750 = vadd.f32 %v4661, %v4749
    %v4751 = vpop.f32.mrf.mxu0
    %v4752 = vadd.f32 %v4663, %v4751
    %4753 = vmatmul.bf16.gmra.mxu0 %v437
    %v4754 = vpop.f32.mrf.mxu0
    %v4755 = vadd.f32 %v4666, %v4754
    %v4756 = vpop.f32.mrf.mxu0
    %v4757 = vadd.f32 %v4668, %v4756
    %4758 = vmatmul.bf16.gmra.mxu0 %v445
    %v4759 = vpop.f32.mrf.mxu0
    %v4760 = vadd.f32 %v4671, %v4759
    %v4761 = vpop.f32.mrf.mxu0
    %v4762 = vadd.f32 %v4673, %v4761
    %4763 = vmatmul.bf16.gmra.mxu0 %v453
    %v4764 = vpop.f32.mrf.mxu0
    %v4765 = vadd.f32 %v4676, %v4764
    %v4766 = vpop.f32.mrf.mxu0
    %v4767 = vadd.f32 %v4678, %v4766
    %4768 = vmatmul.bf16.gmra.mxu0 %v461
    %v4769 = vpop.f32.mrf.mxu0
    %v4770 = vadd.f32 %v4681, %v4769
    %v4771 = vpop.f32.mrf.mxu0
    %v4772 = vadd.f32 %v4683, %v4771
    %4773 = vmatmul.bf16.gmra.mxu0 %v469
    %v4774 = vpop.f32.mrf.mxu0
    %v4775 = vadd.f32 %v4686, %v4774
    %v4776 = vpop.f32.mrf.mxu0
    %v4777 = vadd.f32 %v4688, %v4776
    %4778 = vmatmul.bf16.gmra.mxu0 %v477
    %v4779 = vpop.f32.mrf.mxu0
    %v4780 = vadd.f32 %v4691, %v4779
    %v4781 = vpop.f32.mrf.mxu0
    %v4782 = vadd.f32 %v4693, %v4781
    %4783 = vdwg.mxu0
    %4784 = vmatpush.bf16.msra.mxu0 %v1768
    %4785 = vmatpush.bf16.msra.mxu0 %v1764
    %4786 = vmatpush.bf16.msra.mxu0 %v1760
    %4787 = vmatpush.bf16.msra.mxu0 %v1756
    %4788 = vmatpush.bf16.msra.mxu0 %v1752
    %4789 = vmatpush.bf16.msra.mxu0 %v1748
    %4790 = vmatpush.bf16.msra.mxu0 %v1744
    %4791 = vmatpush.bf16.msra.mxu0 %v1740
    %4792 = vmatmul.bf16.gmra.mxu0 %v358
    %v4793 = vpop.f32.mrf.mxu0
    %v4794 = vadd.f32 %v4705, %v4793
    %v4795 = vpop.f32.mrf.mxu0
    %v4796 = vadd.f32 %v4707, %v4795
    %4797 = vmatmul.bf16.gmra.mxu0 %v366
    %v4798 = vpop.f32.mrf.mxu0
    %v4799 = vadd.f32 %v4710, %v4798
    %v4800 = vpop.f32.mrf.mxu0
    %v4801 = vadd.f32 %v4712, %v4800
    %4802 = vmatmul.bf16.gmra.mxu0 %v374
    %v4803 = vpop.f32.mrf.mxu0
    %v4804 = vadd.f32 %v4715, %v4803
    %v4805 = vpop.f32.mrf.mxu0
    %v4806 = vadd.f32 %v4717, %v4805
    %4807 = vmatmul.bf16.gmra.mxu0 %v382
    %v4808 = vpop.f32.mrf.mxu0
    %v4809 = vadd.f32 %v4720, %v4808
    %v4810 = vpop.f32.mrf.mxu0
    %v4811 = vadd.f32 %v4722, %v4810
    %4812 = vmatmul.bf16.gmra.mxu0 %v390
    %v4813 = vpop.f32.mrf.mxu0
    %v4814 = vadd.f32 %v4725, %v4813
    %v4815 = vpop.f32.mrf.mxu0
    %v4816 = vadd.f32 %v4727, %v4815
    %4817 = vmatmul.bf16.gmra.mxu0 %v398
    %v4818 = vpop.f32.mrf.mxu0
    %v4819 = vadd.f32 %v4730, %v4818
    %v4820 = vpop.f32.mrf.mxu0
    %v4821 = vadd.f32 %v4732, %v4820
    %4822 = vmatmul.bf16.gmra.mxu0 %v406
    %v4823 = vpop.f32.mrf.mxu0
    %v4824 = vadd.f32 %v4735, %v4823
    %v4825 = vpop.f32.mrf.mxu0
    %v4826 = vadd.f32 %v4737, %v4825
    %4827 = vmatmul.bf16.gmra.mxu0 %v414
    %v4828 = vpop.f32.mrf.mxu0
    %v4829 = vadd.f32 %v4740, %v4828
    %v4830 = vpop.f32.mrf.mxu0
    %v4831 = vadd.f32 %v4742, %v4830
    %4832 = vmatmul.bf16.gmra.mxu0 %v422
    %v4833 = vpop.f32.mrf.mxu0
    %v4834 = vadd.f32 %v4745, %v4833
    %v4835 = vpop.f32.mrf.mxu0
    %v4836 = vadd.f32 %v4747, %v4835
    %4837 = vmatmul.bf16.gmra.mxu0 %v430
    %v4838 = vpop.f32.mrf.mxu0
    %v4839 = vadd.f32 %v4750, %v4838
    %v4840 = vpop.f32.mrf.mxu0
    %v4841 = vadd.f32 %v4752, %v4840
    %4842 = vmatmul.bf16.gmra.mxu0 %v438
    %v4843 = vpop.f32.mrf.mxu0
    %v4844 = vadd.f32 %v4755, %v4843
    %v4845 = vpop.f32.mrf.mxu0
    %v4846 = vadd.f32 %v4757, %v4845
    %4847 = vmatmul.bf16.gmra.mxu0 %v446
    %v4848 = vpop.f32.mrf.mxu0
    %v4849 = vadd.f32 %v4760, %v4848
    %v4850 = vpop.f32.mrf.mxu0
    %v4851 = vadd.f32 %v4762, %v4850
    %4852 = vmatmul.bf16.gmra.mxu0 %v454
    %v4853 = vpop.f32.mrf.mxu0
    %v4854 = vadd.f32 %v4765, %v4853
    %v4855 = vpop.f32.mrf.mxu0
    %v4856 = vadd.f32 %v4767, %v4855
    %4857 = vmatmul.bf16.gmra.mxu0 %v462
    %v4858 = vpop.f32.mrf.mxu0
    %v4859 = vadd.f32 %v4770, %v4858
    %v4860 = vpop.f32.mrf.mxu0
    %v4861 = vadd.f32 %v4772, %v4860
    %4862 = vmatmul.bf16.gmra.mxu0 %v470
    %v4863 = vpop.f32.mrf.mxu0
    %v4864 = vadd.f32 %v4775, %v4863
    %v4865 = vpop.f32.mrf.mxu0
    %v4866 = vadd.f32 %v4777, %v4865
    %4867 = vmatmul.bf16.gmra.mxu0 %v478
    %v4868 = vpop.f32.mrf.mxu0
    %v4869 = vadd.f32 %v4780, %v4868
    %v4870 = vpop.f32.mrf.mxu0
    %v4871 = vadd.f32 %v4782, %v4870
    %4872 = vdwg.mxu0
    %v4873 = vmax.f32 %v2658, 0.0
    %v4874 = vmax.f32 %v3370, 0.0
    %v4875 = vmax.f32 %v4082, 0.0
    %v4876 = vmax.f32 %v4794, 0.0
    %v4877 = vmax.f32 %v2660, 0.0
    %v4878 = vmax.f32 %v3372, 0.0
    %v4879 = vmax.f32 %v4084, 0.0
    %v4880 = vmax.f32 %v4796, 0.0
    %v4881 = vmax.f32 %v2663, 0.0
    %v4882 = vmax.f32 %v3375, 0.0
    %v4883 = vmax.f32 %v4087, 0.0
    %v4884 = vmax.f32 %v4799, 0.0
    %v4885 = vmax.f32 %v2665, 0.0
    %v4886 = vmax.f32 %v3377, 0.0
    %v4887 = vmax.f32 %v4089, 0.0
    %v4888 = vmax.f32 %v4801, 0.0
    %v4889 = vmax.f32 %v2668, 0.0
    %v4890 = vmax.f32 %v3380, 0.0
    %v4891 = vmax.f32 %v4092, 0.0
    %v4892 = vmax.f32 %v4804, 0.0
    %v4893 = vmax.f32 %v2670, 0.0
    %v4894 = vmax.f32 %v3382, 0.0
    %v4895 = vmax.f32 %v4094, 0.0
    %v4896 = vmax.f32 %v4806, 0.0
    %v4897 = vmax.f32 %v2673, 0.0
    %v4898 = vmax.f32 %v3385, 0.0
    %v4899 = vmax.f32 %v4097, 0.0
    %v4900 = vmax.f32 %v4809, 0.0
    %v4901 = vmax.f32 %v2675, 0.0
    %v4902 = vmax.f32 %v3387, 0.0
    %v4903 = vmax.f32 %v4099, 0.0
    %v4904 = vmax.f32 %v4811, 0.0
    %v4905 = vmax.f32 %v2678, 0.0
    %v4906 = vmax.f32 %v3390, 0.0
    %v4907 = vmax.f32 %v4102, 0.0
    %v4908 = vmax.f32 %v4814, 0.0
    %v4909 = vmax.f32 %v2680, 0.0
    %v4910 = vmax.f32 %v3392, 0.0
    %v4911 = vmax.f32 %v4104, 0.0
    %v4912 = vmax.f32 %v4816, 0.0
    %v4913 = vmax.f32 %v2683, 0.0
    %v4914 = vmax.f32 %v3395, 0.0
    %v4915 = vmax.f32 %v4107, 0.0
    %v4916 = vmax.f32 %v4819, 0.0
    %v4917 = vmax.f32 %v2685, 0.0
    %v4918 = vmax.f32 %v3397, 0.0
    %v4919 = vmax.f32 %v4109, 0.0
    %v4920 = vmax.f32 %v4821, 0.0
    %v4921 = vmax.f32 %v2688, 0.0
    %v4922 = vmax.f32 %v3400, 0.0
    %v4923 = vmax.f32 %v4112, 0.0
    %v4924 = vmax.f32 %v4824, 0.0
    %v4925 = vmax.f32 %v2690, 0.0
    %v4926 = vmax.f32 %v3402, 0.0
    %v4927 = vmax.f32 %v4114, 0.0
    %v4928 = vmax.f32 %v4826, 0.0
    %v4929 = vmax.f32 %v2693, 0.0
    %v4930 = vmax.f32 %v3405, 0.0
    %v4931 = vmax.f32 %v4117, 0.0
    %v4932 = vmax.f32 %v4829, 0.0
    %v4933 = vmax.f32 %v2695, 0.0
    %v4934 = vmax.f32 %v3407, 0.0
    %v4935 = vmax.f32 %v4119, 0.0
    %v4936 = vmax.f32 %v4831, 0.0
    %v4937 = vmax.f32 %v2698, 0.0
    %v4938 = vmax.f32 %v3410, 0.0
    %v4939 = vmax.f32 %v4122, 0.0
    %v4940 = vmax.f32 %v4834, 0.0
    %v4941 = vmax.f32 %v2700, 0.0
    %v4942 = vmax.f32 %v3412, 0.0
    %v4943 = vmax.f32 %v4124, 0.0
    %v4944 = vmax.f32 %v4836, 0.0
    %v4945 = vmax.f32 %v2703, 0.0
    %v4946 = vmax.f32 %v3415, 0.0
    %v4947 = vmax.f32 %v4127, 0.0
    %v4948 = vmax.f32 %v4839, 0.0
    %v4949 = vmax.f32 %v2705, 0.0
    %v4950 = vmax.f32 %v3417, 0.0
    %v4951 = vmax.f32 %v4129, 0.0
    %v4952 = vmax.f32 %v4841, 0.0
    %v4953 = vmax.f32 %v2708, 0.0
    %v4954 = vmax.f32 %v3420, 0.0
    %v4955 = vmax.f32 %v4132, 0.0
    %v4956 = vmax.f32 %v4844, 0.0
    %v4957 = vmax.f32 %v2710, 0.0
    %v4958 = vmax.f32 %v3422, 0.0
    %v4959 = vmax.f32 %v4134, 0.0
    %v4960 = vmax.f32 %v4846, 0.0
    %v4961 = vmax.f32 %v2713, 0.0
    %v4962 = vmax.f32 %v3425, 0.0
    %v4963 = vmax.f32 %v4137, 0.0
    %v4964 = vmax.f32 %v4849, 0.0
    %v4965 = vmax.f32 %v2715, 0.0
    %v4966 = vmax.f32 %v3427, 0.0
    %v4967 = vmax.f32 %v4139, 0.0
    %v4968 = vmax.f32 %v4851, 0.0
    %v4969 = vmax.f32 %v2718, 0.0
    %v4970 = vmax.f32 %v3430, 0.0
    %v4971 = vmax.f32 %v4142, 0.0
    %v4972 = vmax.f32 %v4854, 0.0
    %v4973 = vmax.f32 %v2720, 0.0
    %v4974 = vmax.f32 %v3432, 0.0
    %v4975 = vmax.f32 %v4144, 0.0
    %v4976 = vmax.f32 %v4856, 0.0
    %v4977 = vmax.f32 %v2723, 0.0
    %v4978 = vmax.f32 %v3435, 0.0
    %v4979 = vmax.f32 %v4147, 0.0
    %v4980 = vmax.f32 %v4859, 0.0
    %v4981 = vmax.f32 %v2725, 0.0
    %v4982 = vmax.f32 %v3437, 0.0
    %v4983 = vmax.f32 %v4149, 0.0
    %v4984 = vmax.f32 %v4861, 0.0
    %v4985 = vmax.f32 %v2728, 0.0
    %v4986 = vmax.f32 %v3440, 0.0
    %v4987 = vmax.f32 %v4152, 0.0
    %v4988 = vmax.f32 %v4864, 0.0
    %v4989 = vmax.f32 %v2730, 0.0
    %v4990 = vmax.f32 %v3442, 0.0
    %v4991 = vmax.f32 %v4154, 0.0
    %v4992 = vmax.f32 %v4866, 0.0
    %v4993 = vmax.f32 %v2733, 0.0
    %v4994 = vmax.f32 %v3445, 0.0
    %v4995 = vmax.f32 %v4157, 0.0
    %v4996 = vmax.f32 %v4869, 0.0
    %v4997 = vmax.f32 %v2735, 0.0
    %v4998 = vmax.f32 %v3447, 0.0
    %v4999 = vmax.f32 %v4159, 0.0
    %v5000 = vmax.f32 %v4871, 0.0
    %v5001 = vpack.c.bf16 %v4877, %v4873
    %v5002 = vpack.c.bf16 %v4878, %v4874
    %v5003 = vpack.c.bf16 %v4879, %v4875
    %v5004 = vpack.c.bf16 %v4880, %v4876
    %v5005 = vpack.c.bf16 %v4885, %v4881
    %v5006 = vpack.c.bf16 %v4886, %v4882
    %v5007 = vpack.c.bf16 %v4887, %v4883
    %v5008 = vpack.c.bf16 %v4888, %v4884
    %v5009 = vpack.c.bf16 %v4893, %v4889
    %v5010 = vpack.c.bf16 %v4894, %v4890
    %v5011 = vpack.c.bf16 %v4895, %v4891
    %v5012 = vpack.c.bf16 %v4896, %v4892
    %v5013 = vpack.c.bf16 %v4901, %v4897
    %v5014 = vpack.c.bf16 %v4902, %v4898
    %v5015 = vpack.c.bf16 %v4903, %v4899
    %v5016 = vpack.c.bf16 %v4904, %v4900
    %v5017 = vpack.c.bf16 %v4909, %v4905
    %v5018 = vpack.c.bf16 %v4910, %v4906
    %v5019 = vpack.c.bf16 %v4911, %v4907
    %v5020 = vpack.c.bf16 %v4912, %v4908
    %v5021 = vpack.c.bf16 %v4917, %v4913
    %v5022 = vpack.c.bf16 %v4918, %v4914
    %v5023 = vpack.c.bf16 %v4919, %v4915
    %v5024 = vpack.c.bf16 %v4920, %v4916
    %v5025 = vpack.c.bf16 %v4925, %v4921
    %v5026 = vpack.c.bf16 %v4926, %v4922
    %v5027 = vpack.c.bf16 %v4927, %v4923
    %v5028 = vpack.c.bf16 %v4928, %v4924
    %v5029 = vpack.c.bf16 %v4933, %v4929
    %v5030 = vpack.c.bf16 %v4934, %v4930
    %v5031 = vpack.c.bf16 %v4935, %v4931
    %v5032 = vpack.c.bf16 %v4936, %v4932
    %v5033 = vpack.c.bf16 %v4941, %v4937
    %v5034 = vpack.c.bf16 %v4942, %v4938
    %v5035 = vpack.c.bf16 %v4943, %v4939
    %v5036 = vpack.c.bf16 %v4944, %v4940
    %v5037 = vpack.c.bf16 %v4949, %v4945
    %v5038 = vpack.c.bf16 %v4950, %v4946
    %v5039 = vpack.c.bf16 %v4951, %v4947
    %v5040 = vpack.c.bf16 %v4952, %v4948
    %v5041 = vpack.c.bf16 %v4957, %v4953
    %v5042 = vpack.c.bf16 %v4958, %v4954
    %v5043 = vpack.c.bf16 %v4959, %v4955
    %v5044 = vpack.c.bf16 %v4960, %v4956
    %v5045 = vpack.c.bf16 %v4965, %v4961
    %v5046 = vpack.c.bf16 %v4966, %v4962
    %v5047 = vpack.c.bf16 %v4967, %v4963
    %v5048 = vpack.c.bf16 %v4968, %v4964
    %v5049 = vpack.c.bf16 %v4973, %v4969
    %v5050 = vpack.c.bf16 %v4974, %v4970
    %v5051 = vpack.c.bf16 %v4975, %v4971
    %v5052 = vpack.c.bf16 %v4976, %v4972
    %v5053 = vpack.c.bf16 %v4981, %v4977
    %v5054 = vpack.c.bf16 %v4982, %v4978
    %v5055 = vpack.c.bf16 %v4983, %v4979
    %v5056 = vpack.c.bf16 %v4984, %v4980
    %v5057 = vpack.c.bf16 %v4989, %v4985
    %v5058 = vpack.c.bf16 %v4990, %v4986
    %v5059 = vpack.c.bf16 %v4991, %v4987
    %v5060 = vpack.c.bf16 %v4992, %v4988
    %v5061 = vpack.c.bf16 %v4997, %v4993
    %v5062 = vpack.c.bf16 %v4998, %v4994
    %v5063 = vpack.c.bf16 %v4999, %v4995
    %v5064 = vpack.c.bf16 %v5000, %v4996
    %v5065 = vld [vmem:[#allocation8] sm:$0xff]
    %v5066 = vld [vmem:[#allocation8 + $0x8] sm:$0xff]
    %v5067 = vld [vmem:[#allocation8 + $0x10] sm:$0xff]
    %v5068 = vld [vmem:[#allocation8 + $0x18] sm:$0xff]
    %v5069 = vld [vmem:[#allocation8 + $0x20] sm:$0xff]
    %v5070 = vld [vmem:[#allocation8 + $0x28] sm:$0xff]
    %v5071 = vld [vmem:[#allocation8 + $0x30] sm:$0xff]
    %v5072 = vld [vmem:[#allocation8 + $0x38] sm:$0xff]
    %v5073 = vld [vmem:[#allocation8 + $0x40] sm:$0xff]
    %v5074 = vld [vmem:[#allocation8 + $0x48] sm:$0xff]
    %v5075 = vld [vmem:[#allocation8 + $0x50] sm:$0xff]
    %v5076 = vld [vmem:[#allocation8 + $0x58] sm:$0xff]
    %v5077 = vld [vmem:[#allocation8 + $0x60] sm:$0xff]
    %v5078 = vld [vmem:[#allocation8 + $0x68] sm:$0xff]
    %v5079 = vld [vmem:[#allocation8 + $0x70] sm:$0xff]
    %v5080 = vld [vmem:[#allocation8 + $0x78] sm:$0xff]
    %v5081 = vld [vmem:[#allocation8 + $0x80] sm:$0xff]
    %v5082 = vld [vmem:[#allocation8 + $0x88] sm:$0xff]
    %v5083 = vld [vmem:[#allocation8 + $0x90] sm:$0xff]
    %v5084 = vld [vmem:[#allocation8 + $0x98] sm:$0xff]
    %v5085 = vld [vmem:[#allocation8 + $0xa0] sm:$0xff]
    %v5086 = vld [vmem:[#allocation8 + $0xa8] sm:$0xff]
    %v5087 = vld [vmem:[#allocation8 + $0xb0] sm:$0xff]
    %v5088 = vld [vmem:[#allocation8 + $0xb8] sm:$0xff]
    %v5089 = vld [vmem:[#allocation8 + $0xc0] sm:$0xff]
    %v5090 = vld [vmem:[#allocation8 + $0xc8] sm:$0xff]
    %v5091 = vld [vmem:[#allocation8 + $0xd0] sm:$0xff]
    %v5092 = vld [vmem:[#allocation8 + $0xd8] sm:$0xff]
    %v5093 = vld [vmem:[#allocation8 + $0xe0] sm:$0xff]
    %v5094 = vld [vmem:[#allocation8 + $0xe8] sm:$0xff]
    %v5095 = vld [vmem:[#allocation8 + $0xf0] sm:$0xff]
    %v5096 = vld [vmem:[#allocation8 + $0xf8] sm:$0xff]
    %v5097 = vld [vmem:[#allocation8 + $0x100] sm:$0xff]
    %v5098 = vld [vmem:[#allocation8 + $0x108] sm:$0xff]
    %v5099 = vld [vmem:[#allocation8 + $0x110] sm:$0xff]
    %v5100 = vld [vmem:[#allocation8 + $0x118] sm:$0xff]
    %v5101 = vld [vmem:[#allocation8 + $0x120] sm:$0xff]
    %v5102 = vld [vmem:[#allocation8 + $0x128] sm:$0xff]
    %v5103 = vld [vmem:[#allocation8 + $0x130] sm:$0xff]
    %v5104 = vld [vmem:[#allocation8 + $0x138] sm:$0xff]
    %v5105 = vld [vmem:[#allocation8 + $0x140] sm:$0xff]
    %v5106 = vld [vmem:[#allocation8 + $0x148] sm:$0xff]
    %v5107 = vld [vmem:[#allocation8 + $0x150] sm:$0xff]
    %v5108 = vld [vmem:[#allocation8 + $0x158] sm:$0xff]
    %v5109 = vld [vmem:[#allocation8 + $0x160] sm:$0xff]
    %v5110 = vld [vmem:[#allocation8 + $0x168] sm:$0xff]
    %v5111 = vld [vmem:[#allocation8 + $0x170] sm:$0xff]
    %v5112 = vld [vmem:[#allocation8 + $0x178] sm:$0xff]
    %v5113 = vld [vmem:[#allocation8 + $0x180] sm:$0xff]
    %v5114 = vld [vmem:[#allocation8 + $0x188] sm:$0xff]
    %v5115 = vld [vmem:[#allocation8 + $0x190] sm:$0xff]
    %v5116 = vld [vmem:[#allocation8 + $0x198] sm:$0xff]
    %v5117 = vld [vmem:[#allocation8 + $0x1a0] sm:$0xff]
    %v5118 = vld [vmem:[#allocation8 + $0x1a8] sm:$0xff]
    %v5119 = vld [vmem:[#allocation8 + $0x1b0] sm:$0xff]
    %v5120 = vld [vmem:[#allocation8 + $0x1b8] sm:$0xff]
    %v5121 = vld [vmem:[#allocation8 + $0x1c0] sm:$0xff]
    %v5122 = vld [vmem:[#allocation8 + $0x1c8] sm:$0xff]
    %v5123 = vld [vmem:[#allocation8 + $0x1d0] sm:$0xff]
    %v5124 = vld [vmem:[#allocation8 + $0x1d8] sm:$0xff]
    %v5125 = vld [vmem:[#allocation8 + $0x1e0] sm:$0xff]
    %v5126 = vld [vmem:[#allocation8 + $0x1e8] sm:$0xff]
    %v5127 = vld [vmem:[#allocation8 + $0x1f0] sm:$0xff]
    %v5128 = vld [vmem:[#allocation8 + $0x1f8] sm:$0xff]
    %v5129 = vld [vmem:[#allocation8 + $0x200] sm:$0xff]
    %v5130 = vld [vmem:[#allocation8 + $0x208] sm:$0xff]
    %v5131 = vld [vmem:[#allocation8 + $0x210] sm:$0xff]
    %v5132 = vld [vmem:[#allocation8 + $0x218] sm:$0xff]
    %v5133 = vld [vmem:[#allocation8 + $0x220] sm:$0xff]
    %v5134 = vld [vmem:[#allocation8 + $0x228] sm:$0xff]
    %v5135 = vld [vmem:[#allocation8 + $0x230] sm:$0xff]
    %v5136 = vld [vmem:[#allocation8 + $0x238] sm:$0xff]
    %v5137 = vld [vmem:[#allocation8 + $0x240] sm:$0xff]
    %v5138 = vld [vmem:[#allocation8 + $0x248] sm:$0xff]
    %v5139 = vld [vmem:[#allocation8 + $0x250] sm:$0xff]
    %v5140 = vld [vmem:[#allocation8 + $0x258] sm:$0xff]
    %v5141 = vld [vmem:[#allocation8 + $0x260] sm:$0xff]
    %v5142 = vld [vmem:[#allocation8 + $0x268] sm:$0xff]
    %v5143 = vld [vmem:[#allocation8 + $0x270] sm:$0xff]
    %v5144 = vld [vmem:[#allocation8 + $0x278] sm:$0xff]
    %v5145 = vld [vmem:[#allocation8 + $0x280] sm:$0xff]
    %v5146 = vld [vmem:[#allocation8 + $0x288] sm:$0xff]
    %v5147 = vld [vmem:[#allocation8 + $0x290] sm:$0xff]
    %v5148 = vld [vmem:[#allocation8 + $0x298] sm:$0xff]
    %v5149 = vld [vmem:[#allocation8 + $0x2a0] sm:$0xff]
    %v5150 = vld [vmem:[#allocation8 + $0x2a8] sm:$0xff]
    %v5151 = vld [vmem:[#allocation8 + $0x2b0] sm:$0xff]
    %v5152 = vld [vmem:[#allocation8 + $0x2b8] sm:$0xff]
    %v5153 = vld [vmem:[#allocation8 + $0x2c0] sm:$0xff]
    %v5154 = vld [vmem:[#allocation8 + $0x2c8] sm:$0xff]
    %v5155 = vld [vmem:[#allocation8 + $0x2d0] sm:$0xff]
    %v5156 = vld [vmem:[#allocation8 + $0x2d8] sm:$0xff]
    %v5157 = vld [vmem:[#allocation8 + $0x2e0] sm:$0xff]
    %v5158 = vld [vmem:[#allocation8 + $0x2e8] sm:$0xff]
    %v5159 = vld [vmem:[#allocation8 + $0x2f0] sm:$0xff]
    %v5160 = vld [vmem:[#allocation8 + $0x2f8] sm:$0xff]
    %v5161 = vld [vmem:[#allocation8 + $0x300] sm:$0xff]
    %v5162 = vld [vmem:[#allocation8 + $0x308] sm:$0xff]
    %v5163 = vld [vmem:[#allocation8 + $0x310] sm:$0xff]
    %v5164 = vld [vmem:[#allocation8 + $0x318] sm:$0xff]
    %v5165 = vld [vmem:[#allocation8 + $0x320] sm:$0xff]
    %v5166 = vld [vmem:[#allocation8 + $0x328] sm:$0xff]
    %v5167 = vld [vmem:[#allocation8 + $0x330] sm:$0xff]
    %v5168 = vld [vmem:[#allocation8 + $0x338] sm:$0xff]
    %v5169 = vld [vmem:[#allocation8 + $0x340] sm:$0xff]
    %v5170 = vld [vmem:[#allocation8 + $0x348] sm:$0xff]
    %v5171 = vld [vmem:[#allocation8 + $0x350] sm:$0xff]
    %v5172 = vld [vmem:[#allocation8 + $0x358] sm:$0xff]
    %v5173 = vld [vmem:[#allocation8 + $0x360] sm:$0xff]
    %v5174 = vld [vmem:[#allocation8 + $0x368] sm:$0xff]
    %v5175 = vld [vmem:[#allocation8 + $0x370] sm:$0xff]
    %v5176 = vld [vmem:[#allocation8 + $0x378] sm:$0xff]
    %v5177 = vld [vmem:[#allocation8 + $0x380] sm:$0xff]
    %v5178 = vld [vmem:[#allocation8 + $0x388] sm:$0xff]
    %v5179 = vld [vmem:[#allocation8 + $0x390] sm:$0xff]
    %v5180 = vld [vmem:[#allocation8 + $0x398] sm:$0xff]
    %v5181 = vld [vmem:[#allocation8 + $0x3a0] sm:$0xff]
    %v5182 = vld [vmem:[#allocation8 + $0x3a8] sm:$0xff]
    %v5183 = vld [vmem:[#allocation8 + $0x3b0] sm:$0xff]
    %v5184 = vld [vmem:[#allocation8 + $0x3b8] sm:$0xff]
    %v5185 = vld [vmem:[#allocation8 + $0x3c0] sm:$0xff]
    %v5186 = vld [vmem:[#allocation8 + $0x3c8] sm:$0xff]
    %v5187 = vld [vmem:[#allocation8 + $0x3d0] sm:$0xff]
    %v5188 = vld [vmem:[#allocation8 + $0x3d8] sm:$0xff]
    %v5189 = vld [vmem:[#allocation8 + $0x3e0] sm:$0xff]
    %v5190 = vld [vmem:[#allocation8 + $0x3e8] sm:$0xff]
    %v5191 = vld [vmem:[#allocation8 + $0x3f0] sm:$0xff]
    %v5192 = vld [vmem:[#allocation8 + $0x3f8] sm:$0xff]
    %v5193 = vld [vmem:[#allocation8 + $0x400] sm:$0xff]
    %v5194 = vld [vmem:[#allocation8 + $0x408] sm:$0xff]
    %v5195 = vld [vmem:[#allocation8 + $0x410] sm:$0xff]
    %v5196 = vld [vmem:[#allocation8 + $0x418] sm:$0xff]
    %v5197 = vld [vmem:[#allocation8 + $0x420] sm:$0xff]
    %v5198 = vld [vmem:[#allocation8 + $0x428] sm:$0xff]
    %v5199 = vld [vmem:[#allocation8 + $0x430] sm:$0xff]
    %v5200 = vld [vmem:[#allocation8 + $0x438] sm:$0xff]
    %v5201 = vld [vmem:[#allocation8 + $0x440] sm:$0xff]
    %v5202 = vld [vmem:[#allocation8 + $0x448] sm:$0xff]
    %v5203 = vld [vmem:[#allocation8 + $0x450] sm:$0xff]
    %v5204 = vld [vmem:[#allocation8 + $0x458] sm:$0xff]
    %v5205 = vld [vmem:[#allocation8 + $0x460] sm:$0xff]
    %v5206 = vld [vmem:[#allocation8 + $0x468] sm:$0xff]
    %v5207 = vld [vmem:[#allocation8 + $0x470] sm:$0xff]
    %v5208 = vld [vmem:[#allocation8 + $0x478] sm:$0xff]
    %v5209 = vld [vmem:[#allocation8 + $0x480] sm:$0xff]
    %v5210 = vld [vmem:[#allocation8 + $0x488] sm:$0xff]
    %v5211 = vld [vmem:[#allocation8 + $0x490] sm:$0xff]
    %v5212 = vld [vmem:[#allocation8 + $0x498] sm:$0xff]
    %v5213 = vld [vmem:[#allocation8 + $0x4a0] sm:$0xff]
    %v5214 = vld [vmem:[#allocation8 + $0x4a8] sm:$0xff]
    %v5215 = vld [vmem:[#allocation8 + $0x4b0] sm:$0xff]
    %v5216 = vld [vmem:[#allocation8 + $0x4b8] sm:$0xff]
    %v5217 = vld [vmem:[#allocation8 + $0x4c0] sm:$0xff]
    %v5218 = vld [vmem:[#allocation8 + $0x4c8] sm:$0xff]
    %v5219 = vld [vmem:[#allocation8 + $0x4d0] sm:$0xff]
    %v5220 = vld [vmem:[#allocation8 + $0x4d8] sm:$0xff]
    %v5221 = vld [vmem:[#allocation8 + $0x4e0] sm:$0xff]
    %v5222 = vld [vmem:[#allocation8 + $0x4e8] sm:$0xff]
    %v5223 = vld [vmem:[#allocation8 + $0x4f0] sm:$0xff]
    %v5224 = vld [vmem:[#allocation8 + $0x4f8] sm:$0xff]
    %v5225 = vld [vmem:[#allocation8 + $0x500] sm:$0xff]
    %v5226 = vld [vmem:[#allocation8 + $0x508] sm:$0xff]
    %v5227 = vld [vmem:[#allocation8 + $0x510] sm:$0xff]
    %v5228 = vld [vmem:[#allocation8 + $0x518] sm:$0xff]
    %v5229 = vld [vmem:[#allocation8 + $0x520] sm:$0xff]
    %v5230 = vld [vmem:[#allocation8 + $0x528] sm:$0xff]
    %v5231 = vld [vmem:[#allocation8 + $0x530] sm:$0xff]
    %v5232 = vld [vmem:[#allocation8 + $0x538] sm:$0xff]
    %v5233 = vld [vmem:[#allocation8 + $0x540] sm:$0xff]
    %v5234 = vld [vmem:[#allocation8 + $0x548] sm:$0xff]
    %v5235 = vld [vmem:[#allocation8 + $0x550] sm:$0xff]
    %v5236 = vld [vmem:[#allocation8 + $0x558] sm:$0xff]
    %v5237 = vld [vmem:[#allocation8 + $0x560] sm:$0xff]
    %v5238 = vld [vmem:[#allocation8 + $0x568] sm:$0xff]
    %v5239 = vld [vmem:[#allocation8 + $0x570] sm:$0xff]
    %v5240 = vld [vmem:[#allocation8 + $0x578] sm:$0xff]
    %v5241 = vld [vmem:[#allocation8 + $0x580] sm:$0xff]
    %v5242 = vld [vmem:[#allocation8 + $0x588] sm:$0xff]
    %v5243 = vld [vmem:[#allocation8 + $0x590] sm:$0xff]
    %v5244 = vld [vmem:[#allocation8 + $0x598] sm:$0xff]
    %v5245 = vld [vmem:[#allocation8 + $0x5a0] sm:$0xff]
    %v5246 = vld [vmem:[#allocation8 + $0x5a8] sm:$0xff]
    %v5247 = vld [vmem:[#allocation8 + $0x5b0] sm:$0xff]
    %v5248 = vld [vmem:[#allocation8 + $0x5b8] sm:$0xff]
    %v5249 = vld [vmem:[#allocation8 + $0x5c0] sm:$0xff]
    %v5250 = vld [vmem:[#allocation8 + $0x5c8] sm:$0xff]
    %v5251 = vld [vmem:[#allocation8 + $0x5d0] sm:$0xff]
    %v5252 = vld [vmem:[#allocation8 + $0x5d8] sm:$0xff]
    %v5253 = vld [vmem:[#allocation8 + $0x5e0] sm:$0xff]
    %v5254 = vld [vmem:[#allocation8 + $0x5e8] sm:$0xff]
    %v5255 = vld [vmem:[#allocation8 + $0x5f0] sm:$0xff]
    %v5256 = vld [vmem:[#allocation8 + $0x5f8] sm:$0xff]
    %v5257 = vld [vmem:[#allocation8 + $0x600] sm:$0xff]
    %v5258 = vld [vmem:[#allocation8 + $0x608] sm:$0xff]
    %v5259 = vld [vmem:[#allocation8 + $0x610] sm:$0xff]
    %v5260 = vld [vmem:[#allocation8 + $0x618] sm:$0xff]
    %v5261 = vld [vmem:[#allocation8 + $0x620] sm:$0xff]
    %v5262 = vld [vmem:[#allocation8 + $0x628] sm:$0xff]
    %v5263 = vld [vmem:[#allocation8 + $0x630] sm:$0xff]
    %v5264 = vld [vmem:[#allocation8 + $0x638] sm:$0xff]
    %v5265 = vld [vmem:[#allocation8 + $0x640] sm:$0xff]
    %v5266 = vld [vmem:[#allocation8 + $0x648] sm:$0xff]
    %v5267 = vld [vmem:[#allocation8 + $0x650] sm:$0xff]
    %v5268 = vld [vmem:[#allocation8 + $0x658] sm:$0xff]
    %v5269 = vld [vmem:[#allocation8 + $0x660] sm:$0xff]
    %v5270 = vld [vmem:[#allocation8 + $0x668] sm:$0xff]
    %v5271 = vld [vmem:[#allocation8 + $0x670] sm:$0xff]
    %v5272 = vld [vmem:[#allocation8 + $0x678] sm:$0xff]
    %v5273 = vld [vmem:[#allocation8 + $0x680] sm:$0xff]
    %v5274 = vld [vmem:[#allocation8 + $0x688] sm:$0xff]
    %v5275 = vld [vmem:[#allocation8 + $0x690] sm:$0xff]
    %v5276 = vld [vmem:[#allocation8 + $0x698] sm:$0xff]
    %v5277 = vld [vmem:[#allocation8 + $0x6a0] sm:$0xff]
    %v5278 = vld [vmem:[#allocation8 + $0x6a8] sm:$0xff]
    %v5279 = vld [vmem:[#allocation8 + $0x6b0] sm:$0xff]
    %v5280 = vld [vmem:[#allocation8 + $0x6b8] sm:$0xff]
    %v5281 = vld [vmem:[#allocation8 + $0x6c0] sm:$0xff]
    %v5282 = vld [vmem:[#allocation8 + $0x6c8] sm:$0xff]
    %v5283 = vld [vmem:[#allocation8 + $0x6d0] sm:$0xff]
    %v5284 = vld [vmem:[#allocation8 + $0x6d8] sm:$0xff]
    %v5285 = vld [vmem:[#allocation8 + $0x6e0] sm:$0xff]
    %v5286 = vld [vmem:[#allocation8 + $0x6e8] sm:$0xff]
    %v5287 = vld [vmem:[#allocation8 + $0x6f0] sm:$0xff]
    %v5288 = vld [vmem:[#allocation8 + $0x6f8] sm:$0xff]
    %v5289 = vld [vmem:[#allocation8 + $0x700] sm:$0xff]
    %v5290 = vld [vmem:[#allocation8 + $0x708] sm:$0xff]
    %v5291 = vld [vmem:[#allocation8 + $0x710] sm:$0xff]
    %v5292 = vld [vmem:[#allocation8 + $0x718] sm:$0xff]
    %v5293 = vld [vmem:[#allocation8 + $0x720] sm:$0xff]
    %v5294 = vld [vmem:[#allocation8 + $0x728] sm:$0xff]
    %v5295 = vld [vmem:[#allocation8 + $0x730] sm:$0xff]
    %v5296 = vld [vmem:[#allocation8 + $0x738] sm:$0xff]
    %v5297 = vld [vmem:[#allocation8 + $0x740] sm:$0xff]
    %v5298 = vld [vmem:[#allocation8 + $0x748] sm:$0xff]
    %v5299 = vld [vmem:[#allocation8 + $0x750] sm:$0xff]
    %v5300 = vld [vmem:[#allocation8 + $0x758] sm:$0xff]
    %v5301 = vld [vmem:[#allocation8 + $0x760] sm:$0xff]
    %v5302 = vld [vmem:[#allocation8 + $0x768] sm:$0xff]
    %v5303 = vld [vmem:[#allocation8 + $0x770] sm:$0xff]
    %v5304 = vld [vmem:[#allocation8 + $0x778] sm:$0xff]
    %v5305 = vld [vmem:[#allocation8 + $0x780] sm:$0xff]
    %v5306 = vld [vmem:[#allocation8 + $0x788] sm:$0xff]
    %v5307 = vld [vmem:[#allocation8 + $0x790] sm:$0xff]
    %v5308 = vld [vmem:[#allocation8 + $0x798] sm:$0xff]
    %v5309 = vld [vmem:[#allocation8 + $0x7a0] sm:$0xff]
    %v5310 = vld [vmem:[#allocation8 + $0x7a8] sm:$0xff]
    %v5311 = vld [vmem:[#allocation8 + $0x7b0] sm:$0xff]
    %v5312 = vld [vmem:[#allocation8 + $0x7b8] sm:$0xff]
    %v5313 = vld [vmem:[#allocation8 + $0x7c0] sm:$0xff]
    %v5314 = vld [vmem:[#allocation8 + $0x7c8] sm:$0xff]
    %v5315 = vld [vmem:[#allocation8 + $0x7d0] sm:$0xff]
    %v5316 = vld [vmem:[#allocation8 + $0x7d8] sm:$0xff]
    %v5317 = vld [vmem:[#allocation8 + $0x7e0] sm:$0xff]
    %v5318 = vld [vmem:[#allocation8 + $0x7e8] sm:$0xff]
    %v5319 = vld [vmem:[#allocation8 + $0x7f0] sm:$0xff]
    %v5320 = vld [vmem:[#allocation8 + $0x7f8] sm:$0xff]
    %v5321 = vld [vmem:[#allocation10] sm:$0xff]
    %v5323 = vperm.slane %v5321, 0
    %v5324 = vperm.slane %v5321, 1
    %v5325 = vperm.slane %v5321, 2
    %v5326 = vperm.slane %v5321, 3
    %v5327 = vperm.slane %v5321, 4
    %v5328 = vperm.slane %v5321, 5
    %v5329 = vperm.slane %v5321, 6
    %v5330 = vperm.slane %v5321, 7
    %v5595 = vunpack.c.l.b16 %v5065
    %v5596 = vunpack.c.h.b16 %v5065
    %v5597 = vunpack.c.l.b16 %v5066
    %v5598 = vunpack.c.h.b16 %v5066
    %v5599 = vunpack.c.l.b16 %v5067
    %v5600 = vunpack.c.h.b16 %v5067
    %v5601 = vunpack.c.l.b16 %v5068
    %v5602 = vunpack.c.h.b16 %v5068
    %v5603 = vunpack.c.l.b16 %v5069
    %v5604 = vunpack.c.h.b16 %v5069
    %v5605 = vunpack.c.l.b16 %v5070
    %v5606 = vunpack.c.h.b16 %v5070
    %v5607 = vunpack.c.l.b16 %v5071
    %v5608 = vunpack.c.h.b16 %v5071
    %v5609 = vunpack.c.l.b16 %v5072
    %v5610 = vunpack.c.h.b16 %v5072
    %v5611 = vunpack.c.l.b16 %v5073
    %v5612 = vunpack.c.h.b16 %v5073
    %v5613 = vunpack.c.l.b16 %v5074
    %v5614 = vunpack.c.h.b16 %v5074
    %v5615 = vunpack.c.l.b16 %v5075
    %v5616 = vunpack.c.h.b16 %v5075
    %v5617 = vunpack.c.l.b16 %v5076
    %v5618 = vunpack.c.h.b16 %v5076
    %v5619 = vunpack.c.l.b16 %v5077
    %v5620 = vunpack.c.h.b16 %v5077
    %v5621 = vunpack.c.l.b16 %v5078
    %v5622 = vunpack.c.h.b16 %v5078
    %v5623 = vunpack.c.l.b16 %v5079
    %v5624 = vunpack.c.h.b16 %v5079
    %v5625 = vunpack.c.l.b16 %v5080
    %v5626 = vunpack.c.h.b16 %v5080
    %v5627 = vunpack.c.l.b16 %v5081
    %v5628 = vunpack.c.h.b16 %v5081
    %v5629 = vunpack.c.l.b16 %v5082
    %v5630 = vunpack.c.h.b16 %v5082
    %v5631 = vunpack.c.l.b16 %v5083
    %v5632 = vunpack.c.h.b16 %v5083
    %v5633 = vunpack.c.l.b16 %v5084
    %v5634 = vunpack.c.h.b16 %v5084
    %v5635 = vunpack.c.l.b16 %v5085
    %v5636 = vunpack.c.h.b16 %v5085
    %v5637 = vunpack.c.l.b16 %v5086
    %v5638 = vunpack.c.h.b16 %v5086
    %v5639 = vunpack.c.l.b16 %v5087
    %v5640 = vunpack.c.h.b16 %v5087
    %v5641 = vunpack.c.l.b16 %v5088
    %v5642 = vunpack.c.h.b16 %v5088
    %v5643 = vunpack.c.l.b16 %v5089
    %v5644 = vunpack.c.h.b16 %v5089
    %v5645 = vunpack.c.l.b16 %v5090
    %v5646 = vunpack.c.h.b16 %v5090
    %v5647 = vunpack.c.l.b16 %v5091
    %v5648 = vunpack.c.h.b16 %v5091
    %v5649 = vunpack.c.l.b16 %v5092
    %v5650 = vunpack.c.h.b16 %v5092
    %v5651 = vunpack.c.l.b16 %v5093
    %v5652 = vunpack.c.h.b16 %v5093
    %v5653 = vunpack.c.l.b16 %v5094
    %v5654 = vunpack.c.h.b16 %v5094
    %v5655 = vunpack.c.l.b16 %v5095
    %v5656 = vunpack.c.h.b16 %v5095
    %v5657 = vunpack.c.l.b16 %v5096
    %v5658 = vunpack.c.h.b16 %v5096
    %v5659 = vunpack.c.l.b16 %v5097
    %v5660 = vunpack.c.h.b16 %v5097
    %v5661 = vunpack.c.l.b16 %v5098
    %v5662 = vunpack.c.h.b16 %v5098
    %v5663 = vunpack.c.l.b16 %v5099
    %v5664 = vunpack.c.h.b16 %v5099
    %v5665 = vunpack.c.l.b16 %v5100
    %v5666 = vunpack.c.h.b16 %v5100
    %v5667 = vunpack.c.l.b16 %v5101
    %v5668 = vunpack.c.h.b16 %v5101
    %v5669 = vunpack.c.l.b16 %v5102
    %v5670 = vunpack.c.h.b16 %v5102
    %v5671 = vunpack.c.l.b16 %v5103
    %v5672 = vunpack.c.h.b16 %v5103
    %v5673 = vunpack.c.l.b16 %v5104
    %v5674 = vunpack.c.h.b16 %v5104
    %v5675 = vunpack.c.l.b16 %v5105
    %v5676 = vunpack.c.h.b16 %v5105
    %v5677 = vunpack.c.l.b16 %v5106
    %v5678 = vunpack.c.h.b16 %v5106
    %v5679 = vunpack.c.l.b16 %v5107
    %v5680 = vunpack.c.h.b16 %v5107
    %v5681 = vunpack.c.l.b16 %v5108
    %v5682 = vunpack.c.h.b16 %v5108
    %v5683 = vunpack.c.l.b16 %v5109
    %v5684 = vunpack.c.h.b16 %v5109
    %v5685 = vunpack.c.l.b16 %v5110
    %v5686 = vunpack.c.h.b16 %v5110
    %v5687 = vunpack.c.l.b16 %v5111
    %v5688 = vunpack.c.h.b16 %v5111
    %v5689 = vunpack.c.l.b16 %v5112
    %v5690 = vunpack.c.h.b16 %v5112
    %v5691 = vunpack.c.l.b16 %v5113
    %v5692 = vunpack.c.h.b16 %v5113
    %v5693 = vunpack.c.l.b16 %v5114
    %v5694 = vunpack.c.h.b16 %v5114
    %v5695 = vunpack.c.l.b16 %v5115
    %v5696 = vunpack.c.h.b16 %v5115
    %v5697 = vunpack.c.l.b16 %v5116
    %v5698 = vunpack.c.h.b16 %v5116
    %v5699 = vunpack.c.l.b16 %v5117
    %v5700 = vunpack.c.h.b16 %v5117
    %v5701 = vunpack.c.l.b16 %v5118
    %v5702 = vunpack.c.h.b16 %v5118
    %v5703 = vunpack.c.l.b16 %v5119
    %v5704 = vunpack.c.h.b16 %v5119
    %v5705 = vunpack.c.l.b16 %v5120
    %v5706 = vunpack.c.h.b16 %v5120
    %v5707 = vunpack.c.l.b16 %v5121
    %v5708 = vunpack.c.h.b16 %v5121
    %v5709 = vunpack.c.l.b16 %v5122
    %v5710 = vunpack.c.h.b16 %v5122
    %v5711 = vunpack.c.l.b16 %v5123
    %v5712 = vunpack.c.h.b16 %v5123
    %v5713 = vunpack.c.l.b16 %v5124
    %v5714 = vunpack.c.h.b16 %v5124
    %v5715 = vunpack.c.l.b16 %v5125
    %v5716 = vunpack.c.h.b16 %v5125
    %v5717 = vunpack.c.l.b16 %v5126
    %v5718 = vunpack.c.h.b16 %v5126
    %v5719 = vunpack.c.l.b16 %v5127
    %v5720 = vunpack.c.h.b16 %v5127
    %v5721 = vunpack.c.l.b16 %v5128
    %v5722 = vunpack.c.h.b16 %v5128
    %v5723 = vunpack.c.l.b16 %v5129
    %v5724 = vunpack.c.h.b16 %v5129
    %v5725 = vunpack.c.l.b16 %v5130
    %v5726 = vunpack.c.h.b16 %v5130
    %v5727 = vunpack.c.l.b16 %v5131
    %v5728 = vunpack.c.h.b16 %v5131
    %v5729 = vunpack.c.l.b16 %v5132
    %v5730 = vunpack.c.h.b16 %v5132
    %v5731 = vunpack.c.l.b16 %v5133
    %v5732 = vunpack.c.h.b16 %v5133
    %v5733 = vunpack.c.l.b16 %v5134
    %v5734 = vunpack.c.h.b16 %v5134
    %v5735 = vunpack.c.l.b16 %v5135
    %v5736 = vunpack.c.h.b16 %v5135
    %v5737 = vunpack.c.l.b16 %v5136
    %v5738 = vunpack.c.h.b16 %v5136
    %v5739 = vunpack.c.l.b16 %v5137
    %v5740 = vunpack.c.h.b16 %v5137
    %v5741 = vunpack.c.l.b16 %v5138
    %v5742 = vunpack.c.h.b16 %v5138
    %v5743 = vunpack.c.l.b16 %v5139
    %v5744 = vunpack.c.h.b16 %v5139
    %v5745 = vunpack.c.l.b16 %v5140
    %v5746 = vunpack.c.h.b16 %v5140
    %v5747 = vunpack.c.l.b16 %v5141
    %v5748 = vunpack.c.h.b16 %v5141
    %v5749 = vunpack.c.l.b16 %v5142
    %v5750 = vunpack.c.h.b16 %v5142
    %v5751 = vunpack.c.l.b16 %v5143
    %v5752 = vunpack.c.h.b16 %v5143
    %v5753 = vunpack.c.l.b16 %v5144
    %v5754 = vunpack.c.h.b16 %v5144
    %v5755 = vunpack.c.l.b16 %v5145
    %v5756 = vunpack.c.h.b16 %v5145
    %v5757 = vunpack.c.l.b16 %v5146
    %v5758 = vunpack.c.h.b16 %v5146
    %v5759 = vunpack.c.l.b16 %v5147
    %v5760 = vunpack.c.h.b16 %v5147
    %v5761 = vunpack.c.l.b16 %v5148
    %v5762 = vunpack.c.h.b16 %v5148
    %v5763 = vunpack.c.l.b16 %v5149
    %v5764 = vunpack.c.h.b16 %v5149
    %v5765 = vunpack.c.l.b16 %v5150
    %v5766 = vunpack.c.h.b16 %v5150
    %v5767 = vunpack.c.l.b16 %v5151
    %v5768 = vunpack.c.h.b16 %v5151
    %v5769 = vunpack.c.l.b16 %v5152
    %v5770 = vunpack.c.h.b16 %v5152
    %v5771 = vunpack.c.l.b16 %v5153
    %v5772 = vunpack.c.h.b16 %v5153
    %v5773 = vunpack.c.l.b16 %v5154
    %v5774 = vunpack.c.h.b16 %v5154
    %v5775 = vunpack.c.l.b16 %v5155
    %v5776 = vunpack.c.h.b16 %v5155
    %v5777 = vunpack.c.l.b16 %v5156
    %v5778 = vunpack.c.h.b16 %v5156
    %v5779 = vunpack.c.l.b16 %v5157
    %v5780 = vunpack.c.h.b16 %v5157
    %v5781 = vunpack.c.l.b16 %v5158
    %v5782 = vunpack.c.h.b16 %v5158
    %v5783 = vunpack.c.l.b16 %v5159
    %v5784 = vunpack.c.h.b16 %v5159
    %v5785 = vunpack.c.l.b16 %v5160
    %v5786 = vunpack.c.h.b16 %v5160
    %v5787 = vunpack.c.l.b16 %v5161
    %v5788 = vunpack.c.h.b16 %v5161
    %v5789 = vunpack.c.l.b16 %v5162
    %v5790 = vunpack.c.h.b16 %v5162
    %v5791 = vunpack.c.l.b16 %v5163
    %v5792 = vunpack.c.h.b16 %v5163
    %v5793 = vunpack.c.l.b16 %v5164
    %v5794 = vunpack.c.h.b16 %v5164
    %v5795 = vunpack.c.l.b16 %v5165
    %v5796 = vunpack.c.h.b16 %v5165
    %v5797 = vunpack.c.l.b16 %v5166
    %v5798 = vunpack.c.h.b16 %v5166
    %v5799 = vunpack.c.l.b16 %v5167
    %v5800 = vunpack.c.h.b16 %v5167
    %v5801 = vunpack.c.l.b16 %v5168
    %v5802 = vunpack.c.h.b16 %v5168
    %v5803 = vunpack.c.l.b16 %v5169
    %v5804 = vunpack.c.h.b16 %v5169
    %v5805 = vunpack.c.l.b16 %v5170
    %v5806 = vunpack.c.h.b16 %v5170
    %v5807 = vunpack.c.l.b16 %v5171
    %v5808 = vunpack.c.h.b16 %v5171
    %v5809 = vunpack.c.l.b16 %v5172
    %v5810 = vunpack.c.h.b16 %v5172
    %v5811 = vunpack.c.l.b16 %v5173
    %v5812 = vunpack.c.h.b16 %v5173
    %v5813 = vunpack.c.l.b16 %v5174
    %v5814 = vunpack.c.h.b16 %v5174
    %v5815 = vunpack.c.l.b16 %v5175
    %v5816 = vunpack.c.h.b16 %v5175
    %v5817 = vunpack.c.l.b16 %v5176
    %v5818 = vunpack.c.h.b16 %v5176
    %v5819 = vunpack.c.l.b16 %v5177
    %v5820 = vunpack.c.h.b16 %v5177
    %v5821 = vunpack.c.l.b16 %v5178
    %v5822 = vunpack.c.h.b16 %v5178
    %v5823 = vunpack.c.l.b16 %v5179
    %v5824 = vunpack.c.h.b16 %v5179
    %v5825 = vunpack.c.l.b16 %v5180
    %v5826 = vunpack.c.h.b16 %v5180
    %v5827 = vunpack.c.l.b16 %v5181
    %v5828 = vunpack.c.h.b16 %v5181
    %v5829 = vunpack.c.l.b16 %v5182
    %v5830 = vunpack.c.h.b16 %v5182
    %v5831 = vunpack.c.l.b16 %v5183
    %v5832 = vunpack.c.h.b16 %v5183
    %v5833 = vunpack.c.l.b16 %v5184
    %v5834 = vunpack.c.h.b16 %v5184
    %v5835 = vunpack.c.l.b16 %v5185
    %v5836 = vunpack.c.h.b16 %v5185
    %v5837 = vunpack.c.l.b16 %v5186
    %v5838 = vunpack.c.h.b16 %v5186
    %v5839 = vunpack.c.l.b16 %v5187
    %v5840 = vunpack.c.h.b16 %v5187
    %v5841 = vunpack.c.l.b16 %v5188
    %v5842 = vunpack.c.h.b16 %v5188
    %v5843 = vunpack.c.l.b16 %v5189
    %v5844 = vunpack.c.h.b16 %v5189
    %v5845 = vunpack.c.l.b16 %v5190
    %v5846 = vunpack.c.h.b16 %v5190
    %v5847 = vunpack.c.l.b16 %v5191
    %v5848 = vunpack.c.h.b16 %v5191
    %v5849 = vunpack.c.l.b16 %v5192
    %v5850 = vunpack.c.h.b16 %v5192
    %v5851 = vunpack.c.l.b16 %v5193
    %v5852 = vunpack.c.h.b16 %v5193
    %v5853 = vunpack.c.l.b16 %v5194
    %v5854 = vunpack.c.h.b16 %v5194
    %v5855 = vunpack.c.l.b16 %v5195
    %v5856 = vunpack.c.h.b16 %v5195
    %v5857 = vunpack.c.l.b16 %v5196
    %v5858 = vunpack.c.h.b16 %v5196
    %v5859 = vunpack.c.l.b16 %v5197
    %v5860 = vunpack.c.h.b16 %v5197
    %v5861 = vunpack.c.l.b16 %v5198
    %v5862 = vunpack.c.h.b16 %v5198
    %v5863 = vunpack.c.l.b16 %v5199
    %v5864 = vunpack.c.h.b16 %v5199
    %v5865 = vunpack.c.l.b16 %v5200
    %v5866 = vunpack.c.h.b16 %v5200
    %v5867 = vunpack.c.l.b16 %v5201
    %v5868 = vunpack.c.h.b16 %v5201
    %v5869 = vunpack.c.l.b16 %v5202
    %v5870 = vunpack.c.h.b16 %v5202
    %v5871 = vunpack.c.l.b16 %v5203
    %v5872 = vunpack.c.h.b16 %v5203
    %v5873 = vunpack.c.l.b16 %v5204
    %v5874 = vunpack.c.h.b16 %v5204
    %v5875 = vunpack.c.l.b16 %v5205
    %v5876 = vunpack.c.h.b16 %v5205
    %v5877 = vunpack.c.l.b16 %v5206
    %v5878 = vunpack.c.h.b16 %v5206
    %v5879 = vunpack.c.l.b16 %v5207
    %v5880 = vunpack.c.h.b16 %v5207
    %v5881 = vunpack.c.l.b16 %v5208
    %v5882 = vunpack.c.h.b16 %v5208
    %v5883 = vunpack.c.l.b16 %v5209
    %v5884 = vunpack.c.h.b16 %v5209
    %v5885 = vunpack.c.l.b16 %v5210
    %v5886 = vunpack.c.h.b16 %v5210
    %v5887 = vunpack.c.l.b16 %v5211
    %v5888 = vunpack.c.h.b16 %v5211
    %v5889 = vunpack.c.l.b16 %v5212
    %v5890 = vunpack.c.h.b16 %v5212
    %v5891 = vunpack.c.l.b16 %v5213
    %v5892 = vunpack.c.h.b16 %v5213
    %v5893 = vunpack.c.l.b16 %v5214
    %v5894 = vunpack.c.h.b16 %v5214
    %v5895 = vunpack.c.l.b16 %v5215
    %v5896 = vunpack.c.h.b16 %v5215
    %v5897 = vunpack.c.l.b16 %v5216
    %v5898 = vunpack.c.h.b16 %v5216
    %v5899 = vunpack.c.l.b16 %v5217
    %v5900 = vunpack.c.h.b16 %v5217
    %v5901 = vunpack.c.l.b16 %v5218
    %v5902 = vunpack.c.h.b16 %v5218
    %v5903 = vunpack.c.l.b16 %v5219
    %v5904 = vunpack.c.h.b16 %v5219
    %v5905 = vunpack.c.l.b16 %v5220
    %v5906 = vunpack.c.h.b16 %v5220
    %v5907 = vunpack.c.l.b16 %v5221
    %v5908 = vunpack.c.h.b16 %v5221
    %v5909 = vunpack.c.l.b16 %v5222
    %v5910 = vunpack.c.h.b16 %v5222
    %v5911 = vunpack.c.l.b16 %v5223
    %v5912 = vunpack.c.h.b16 %v5223
    %v5913 = vunpack.c.l.b16 %v5224
    %v5914 = vunpack.c.h.b16 %v5224
    %v5915 = vunpack.c.l.b16 %v5225
    %v5916 = vunpack.c.h.b16 %v5225
    %v5917 = vunpack.c.l.b16 %v5226
    %v5918 = vunpack.c.h.b16 %v5226
    %v5919 = vunpack.c.l.b16 %v5227
    %v5920 = vunpack.c.h.b16 %v5227
    %v5921 = vunpack.c.l.b16 %v5228
    %v5922 = vunpack.c.h.b16 %v5228
    %v5923 = vunpack.c.l.b16 %v5229
    %v5924 = vunpack.c.h.b16 %v5229
    %v5925 = vunpack.c.l.b16 %v5230
    %v5926 = vunpack.c.h.b16 %v5230
    %v5927 = vunpack.c.l.b16 %v5231
    %v5928 = vunpack.c.h.b16 %v5231
    %v5929 = vunpack.c.l.b16 %v5232
    %v5930 = vunpack.c.h.b16 %v5232
    %v5931 = vunpack.c.l.b16 %v5233
    %v5932 = vunpack.c.h.b16 %v5233
    %v5933 = vunpack.c.l.b16 %v5234
    %v5934 = vunpack.c.h.b16 %v5234
    %v5935 = vunpack.c.l.b16 %v5235
    %v5936 = vunpack.c.h.b16 %v5235
    %v5937 = vunpack.c.l.b16 %v5236
    %v5938 = vunpack.c.h.b16 %v5236
    %v5939 = vunpack.c.l.b16 %v5237
    %v5940 = vunpack.c.h.b16 %v5237
    %v5941 = vunpack.c.l.b16 %v5238
    %v5942 = vunpack.c.h.b16 %v5238
    %v5943 = vunpack.c.l.b16 %v5239
    %v5944 = vunpack.c.h.b16 %v5239
    %v5945 = vunpack.c.l.b16 %v5240
    %v5946 = vunpack.c.h.b16 %v5240
    %v5947 = vunpack.c.l.b16 %v5241
    %v5948 = vunpack.c.h.b16 %v5241
    %v5949 = vunpack.c.l.b16 %v5242
    %v5950 = vunpack.c.h.b16 %v5242
    %v5951 = vunpack.c.l.b16 %v5243
    %v5952 = vunpack.c.h.b16 %v5243
    %v5953 = vunpack.c.l.b16 %v5244
    %v5954 = vunpack.c.h.b16 %v5244
    %v5955 = vunpack.c.l.b16 %v5245
    %v5956 = vunpack.c.h.b16 %v5245
    %v5957 = vunpack.c.l.b16 %v5246
    %v5958 = vunpack.c.h.b16 %v5246
    %v5959 = vunpack.c.l.b16 %v5247
    %v5960 = vunpack.c.h.b16 %v5247
    %v5961 = vunpack.c.l.b16 %v5248
    %v5962 = vunpack.c.h.b16 %v5248
    %v5963 = vunpack.c.l.b16 %v5249
    %v5964 = vunpack.c.h.b16 %v5249
    %v5965 = vunpack.c.l.b16 %v5250
    %v5966 = vunpack.c.h.b16 %v5250
    %v5967 = vunpack.c.l.b16 %v5251
    %v5968 = vunpack.c.h.b16 %v5251
    %v5969 = vunpack.c.l.b16 %v5252
    %v5970 = vunpack.c.h.b16 %v5252
    %v5971 = vunpack.c.l.b16 %v5253
    %v5972 = vunpack.c.h.b16 %v5253
    %v5973 = vunpack.c.l.b16 %v5254
    %v5974 = vunpack.c.h.b16 %v5254
    %v5975 = vunpack.c.l.b16 %v5255
    %v5976 = vunpack.c.h.b16 %v5255
    %v5977 = vunpack.c.l.b16 %v5256
    %v5978 = vunpack.c.h.b16 %v5256
    %v5979 = vunpack.c.l.b16 %v5257
    %v5980 = vunpack.c.h.b16 %v5257
    %v5981 = vunpack.c.l.b16 %v5258
    %v5982 = vunpack.c.h.b16 %v5258
    %v5983 = vunpack.c.l.b16 %v5259
    %v5984 = vunpack.c.h.b16 %v5259
    %v5985 = vunpack.c.l.b16 %v5260
    %v5986 = vunpack.c.h.b16 %v5260
    %v5987 = vunpack.c.l.b16 %v5261
    %v5988 = vunpack.c.h.b16 %v5261
    %v5989 = vunpack.c.l.b16 %v5262
    %v5990 = vunpack.c.h.b16 %v5262
    %v5991 = vunpack.c.l.b16 %v5263
    %v5992 = vunpack.c.h.b16 %v5263
    %v5993 = vunpack.c.l.b16 %v5264
    %v5994 = vunpack.c.h.b16 %v5264
    %v5995 = vunpack.c.l.b16 %v5265
    %v5996 = vunpack.c.h.b16 %v5265
    %v5997 = vunpack.c.l.b16 %v5266
    %v5998 = vunpack.c.h.b16 %v5266
    %v5999 = vunpack.c.l.b16 %v5267
    %v6000 = vunpack.c.h.b16 %v5267
    %v6001 = vunpack.c.l.b16 %v5268
    %v6002 = vunpack.c.h.b16 %v5268
    %v6003 = vunpack.c.l.b16 %v5269
    %v6004 = vunpack.c.h.b16 %v5269
    %v6005 = vunpack.c.l.b16 %v5270
    %v6006 = vunpack.c.h.b16 %v5270
    %v6007 = vunpack.c.l.b16 %v5271
    %v6008 = vunpack.c.h.b16 %v5271
    %v6009 = vunpack.c.l.b16 %v5272
    %v6010 = vunpack.c.h.b16 %v5272
    %v6011 = vunpack.c.l.b16 %v5273
    %v6012 = vunpack.c.h.b16 %v5273
    %v6013 = vunpack.c.l.b16 %v5274
    %v6014 = vunpack.c.h.b16 %v5274
    %v6015 = vunpack.c.l.b16 %v5275
    %v6016 = vunpack.c.h.b16 %v5275
    %v6017 = vunpack.c.l.b16 %v5276
    %v6018 = vunpack.c.h.b16 %v5276
    %v6019 = vunpack.c.l.b16 %v5277
    %v6020 = vunpack.c.h.b16 %v5277
    %v6021 = vunpack.c.l.b16 %v5278
    %v6022 = vunpack.c.h.b16 %v5278
    %v6023 = vunpack.c.l.b16 %v5279
    %v6024 = vunpack.c.h.b16 %v5279
    %v6025 = vunpack.c.l.b16 %v5280
    %v6026 = vunpack.c.h.b16 %v5280
    %v6027 = vunpack.c.l.b16 %v5281
    %v6028 = vunpack.c.h.b16 %v5281
    %v6029 = vunpack.c.l.b16 %v5282
    %v6030 = vunpack.c.h.b16 %v5282
    %v6031 = vunpack.c.l.b16 %v5283
    %v6032 = vunpack.c.h.b16 %v5283
    %v6033 = vunpack.c.l.b16 %v5284
    %v6034 = vunpack.c.h.b16 %v5284
    %v6035 = vunpack.c.l.b16 %v5285
    %v6036 = vunpack.c.h.b16 %v5285
    %v6037 = vunpack.c.l.b16 %v5286
    %v6038 = vunpack.c.h.b16 %v5286
    %v6039 = vunpack.c.l.b16 %v5287
    %v6040 = vunpack.c.h.b16 %v5287
    %v6041 = vunpack.c.l.b16 %v5288
    %v6042 = vunpack.c.h.b16 %v5288
    %v6043 = vunpack.c.l.b16 %v5289
    %v6044 = vunpack.c.h.b16 %v5289
    %v6045 = vunpack.c.l.b16 %v5290
    %v6046 = vunpack.c.h.b16 %v5290
    %v6047 = vunpack.c.l.b16 %v5291
    %v6048 = vunpack.c.h.b16 %v5291
    %v6049 = vunpack.c.l.b16 %v5292
    %v6050 = vunpack.c.h.b16 %v5292
    %v6051 = vunpack.c.l.b16 %v5293
    %v6052 = vunpack.c.h.b16 %v5293
    %v6053 = vunpack.c.l.b16 %v5294
    %v6054 = vunpack.c.h.b16 %v5294
    %v6055 = vunpack.c.l.b16 %v5295
    %v6056 = vunpack.c.h.b16 %v5295
    %v6057 = vunpack.c.l.b16 %v5296
    %v6058 = vunpack.c.h.b16 %v5296
    %v6059 = vunpack.c.l.b16 %v5297
    %v6060 = vunpack.c.h.b16 %v5297
    %v6061 = vunpack.c.l.b16 %v5298
    %v6062 = vunpack.c.h.b16 %v5298
    %v6063 = vunpack.c.l.b16 %v5299
    %v6064 = vunpack.c.h.b16 %v5299
    %v6065 = vunpack.c.l.b16 %v5300
    %v6066 = vunpack.c.h.b16 %v5300
    %v6067 = vunpack.c.l.b16 %v5301
    %v6068 = vunpack.c.h.b16 %v5301
    %v6069 = vunpack.c.l.b16 %v5302
    %v6070 = vunpack.c.h.b16 %v5302
    %v6071 = vunpack.c.l.b16 %v5303
    %v6072 = vunpack.c.h.b16 %v5303
    %v6073 = vunpack.c.l.b16 %v5304
    %v6074 = vunpack.c.h.b16 %v5304
    %v6075 = vunpack.c.l.b16 %v5305
    %v6076 = vunpack.c.h.b16 %v5305
    %v6077 = vunpack.c.l.b16 %v5306
    %v6078 = vunpack.c.h.b16 %v5306
    %v6079 = vunpack.c.l.b16 %v5307
    %v6080 = vunpack.c.h.b16 %v5307
    %v6081 = vunpack.c.l.b16 %v5308
    %v6082 = vunpack.c.h.b16 %v5308
    %v6083 = vunpack.c.l.b16 %v5309
    %v6084 = vunpack.c.h.b16 %v5309
    %v6085 = vunpack.c.l.b16 %v5310
    %v6086 = vunpack.c.h.b16 %v5310
    %v6087 = vunpack.c.l.b16 %v5311
    %v6088 = vunpack.c.h.b16 %v5311
    %v6089 = vunpack.c.l.b16 %v5312
    %v6090 = vunpack.c.h.b16 %v5312
    %v6091 = vunpack.c.l.b16 %v5313
    %v6092 = vunpack.c.h.b16 %v5313
    %v6093 = vunpack.c.l.b16 %v5314
    %v6094 = vunpack.c.h.b16 %v5314
    %v6095 = vunpack.c.l.b16 %v5315
    %v6096 = vunpack.c.h.b16 %v5315
    %v6097 = vunpack.c.l.b16 %v5316
    %v6098 = vunpack.c.h.b16 %v5316
    %v6099 = vunpack.c.l.b16 %v5317
    %v6100 = vunpack.c.h.b16 %v5317
    %v6101 = vunpack.c.l.b16 %v5318
    %v6102 = vunpack.c.h.b16 %v5318
    %v6103 = vunpack.c.l.b16 %v5319
    %v6104 = vunpack.c.h.b16 %v5319
    %v6105 = vunpack.c.l.b16 %v5320
    %v6106 = vunpack.c.h.b16 %v5320
    %v6107 = vpack.c.b16 %v5603, %v5595
    %v6108 = vpack.c.b16 %v5604, %v5596
    %v6109 = vpack.c.b16 %v5605, %v5597
    %v6110 = vpack.c.b16 %v5606, %v5598
    %v6111 = vpack.c.b16 %v5607, %v5599
    %v6112 = vpack.c.b16 %v5608, %v5600
    %v6113 = vpack.c.b16 %v5609, %v5601
    %v6114 = vpack.c.b16 %v5610, %v5602
    %v6115 = vpack.c.b16 %v5619, %v5611
    %v6116 = vpack.c.b16 %v5620, %v5612
    %v6117 = vpack.c.b16 %v5621, %v5613
    %v6118 = vpack.c.b16 %v5622, %v5614
    %v6119 = vpack.c.b16 %v5623, %v5615
    %v6120 = vpack.c.b16 %v5624, %v5616
    %v6121 = vpack.c.b16 %v5625, %v5617
    %v6122 = vpack.c.b16 %v5626, %v5618
    %v6123 = vpack.c.b16 %v5635, %v5627
    %v6124 = vpack.c.b16 %v5636, %v5628
    %v6125 = vpack.c.b16 %v5637, %v5629
    %v6126 = vpack.c.b16 %v5638, %v5630
    %v6127 = vpack.c.b16 %v5639, %v5631
    %v6128 = vpack.c.b16 %v5640, %v5632
    %v6129 = vpack.c.b16 %v5641, %v5633
    %v6130 = vpack.c.b16 %v5642, %v5634
    %v6131 = vpack.c.b16 %v5651, %v5643
    %v6132 = vpack.c.b16 %v5652, %v5644
    %v6133 = vpack.c.b16 %v5653, %v5645
    %v6134 = vpack.c.b16 %v5654, %v5646
    %v6135 = vpack.c.b16 %v5655, %v5647
    %v6136 = vpack.c.b16 %v5656, %v5648
    %v6137 = vpack.c.b16 %v5657, %v5649
    %v6138 = vpack.c.b16 %v5658, %v5650
    %v6139 = vpack.c.b16 %v5667, %v5659
    %v6140 = vpack.c.b16 %v5668, %v5660
    %v6141 = vpack.c.b16 %v5669, %v5661
    %v6142 = vpack.c.b16 %v5670, %v5662
    %v6143 = vpack.c.b16 %v5671, %v5663
    %v6144 = vpack.c.b16 %v5672, %v5664
    %v6145 = vpack.c.b16 %v5673, %v5665
    %v6146 = vpack.c.b16 %v5674, %v5666
    %v6147 = vpack.c.b16 %v5683, %v5675
    %v6148 = vpack.c.b16 %v5684, %v5676
    %v6149 = vpack.c.b16 %v5685, %v5677
    %v6150 = vpack.c.b16 %v5686, %v5678
    %v6151 = vpack.c.b16 %v5687, %v5679
    %v6152 = vpack.c.b16 %v5688, %v5680
    %v6153 = vpack.c.b16 %v5689, %v5681
    %v6154 = vpack.c.b16 %v5690, %v5682
    %v6155 = vpack.c.b16 %v5699, %v5691
    %v6156 = vpack.c.b16 %v5700, %v5692
    %v6157 = vpack.c.b16 %v5701, %v5693
    %v6158 = vpack.c.b16 %v5702, %v5694
    %v6159 = vpack.c.b16 %v5703, %v5695
    %v6160 = vpack.c.b16 %v5704, %v5696
    %v6161 = vpack.c.b16 %v5705, %v5697
    %v6162 = vpack.c.b16 %v5706, %v5698
    %v6163 = vpack.c.b16 %v5715, %v5707
    %v6164 = vpack.c.b16 %v5716, %v5708
    %v6165 = vpack.c.b16 %v5717, %v5709
    %v6166 = vpack.c.b16 %v5718, %v5710
    %v6167 = vpack.c.b16 %v5719, %v5711
    %v6168 = vpack.c.b16 %v5720, %v5712
    %v6169 = vpack.c.b16 %v5721, %v5713
    %v6170 = vpack.c.b16 %v5722, %v5714
    %v6171 = vpack.c.b16 %v5731, %v5723
    %v6172 = vpack.c.b16 %v5732, %v5724
    %v6173 = vpack.c.b16 %v5733, %v5725
    %v6174 = vpack.c.b16 %v5734, %v5726
    %v6175 = vpack.c.b16 %v5735, %v5727
    %v6176 = vpack.c.b16 %v5736, %v5728
    %v6177 = vpack.c.b16 %v5737, %v5729
    %v6178 = vpack.c.b16 %v5738, %v5730
    %v6179 = vpack.c.b16 %v5747, %v5739
    %v6180 = vpack.c.b16 %v5748, %v5740
    %v6181 = vpack.c.b16 %v5749, %v5741
    %v6182 = vpack.c.b16 %v5750, %v5742
    %v6183 = vpack.c.b16 %v5751, %v5743
    %v6184 = vpack.c.b16 %v5752, %v5744
    %v6185 = vpack.c.b16 %v5753, %v5745
    %v6186 = vpack.c.b16 %v5754, %v5746
    %v6187 = vpack.c.b16 %v5763, %v5755
    %v6188 = vpack.c.b16 %v5764, %v5756
    %v6189 = vpack.c.b16 %v5765, %v5757
    %v6190 = vpack.c.b16 %v5766, %v5758
    %v6191 = vpack.c.b16 %v5767, %v5759
    %v6192 = vpack.c.b16 %v5768, %v5760
    %v6193 = vpack.c.b16 %v5769, %v5761
    %v6194 = vpack.c.b16 %v5770, %v5762
    %v6195 = vpack.c.b16 %v5779, %v5771
    %v6196 = vpack.c.b16 %v5780, %v5772
    %v6197 = vpack.c.b16 %v5781, %v5773
    %v6198 = vpack.c.b16 %v5782, %v5774
    %v6199 = vpack.c.b16 %v5783, %v5775
    %v6200 = vpack.c.b16 %v5784, %v5776
    %v6201 = vpack.c.b16 %v5785, %v5777
    %v6202 = vpack.c.b16 %v5786, %v5778
    %v6203 = vpack.c.b16 %v5795, %v5787
    %v6204 = vpack.c.b16 %v5796, %v5788
    %v6205 = vpack.c.b16 %v5797, %v5789
    %v6206 = vpack.c.b16 %v5798, %v5790
    %v6207 = vpack.c.b16 %v5799, %v5791
    %v6208 = vpack.c.b16 %v5800, %v5792
    %v6209 = vpack.c.b16 %v5801, %v5793
    %v6210 = vpack.c.b16 %v5802, %v5794
    %v6211 = vpack.c.b16 %v5811, %v5803
    %v6212 = vpack.c.b16 %v5812, %v5804
    %v6213 = vpack.c.b16 %v5813, %v5805
    %v6214 = vpack.c.b16 %v5814, %v5806
    %v6215 = vpack.c.b16 %v5815, %v5807
    %v6216 = vpack.c.b16 %v5816, %v5808
    %v6217 = vpack.c.b16 %v5817, %v5809
    %v6218 = vpack.c.b16 %v5818, %v5810
    %v6219 = vpack.c.b16 %v5827, %v5819
    %v6220 = vpack.c.b16 %v5828, %v5820
    %v6221 = vpack.c.b16 %v5829, %v5821
    %v6222 = vpack.c.b16 %v5830, %v5822
    %v6223 = vpack.c.b16 %v5831, %v5823
    %v6224 = vpack.c.b16 %v5832, %v5824
    %v6225 = vpack.c.b16 %v5833, %v5825
    %v6226 = vpack.c.b16 %v5834, %v5826
    %v6227 = vpack.c.b16 %v5843, %v5835
    %v6228 = vpack.c.b16 %v5844, %v5836
    %v6229 = vpack.c.b16 %v5845, %v5837
    %v6230 = vpack.c.b16 %v5846, %v5838
    %v6231 = vpack.c.b16 %v5847, %v5839
    %v6232 = vpack.c.b16 %v5848, %v5840
    %v6233 = vpack.c.b16 %v5849, %v5841
    %v6234 = vpack.c.b16 %v5850, %v5842
    %v6235 = vpack.c.b16 %v5859, %v5851
    %v6236 = vpack.c.b16 %v5860, %v5852
    %v6237 = vpack.c.b16 %v5861, %v5853
    %v6238 = vpack.c.b16 %v5862, %v5854
    %v6239 = vpack.c.b16 %v5863, %v5855
    %v6240 = vpack.c.b16 %v5864, %v5856
    %v6241 = vpack.c.b16 %v5865, %v5857
    %v6242 = vpack.c.b16 %v5866, %v5858
    %v6243 = vpack.c.b16 %v5875, %v5867
    %v6244 = vpack.c.b16 %v5876, %v5868
    %v6245 = vpack.c.b16 %v5877, %v5869
    %v6246 = vpack.c.b16 %v5878, %v5870
    %v6247 = vpack.c.b16 %v5879, %v5871
    %v6248 = vpack.c.b16 %v5880, %v5872
    %v6249 = vpack.c.b16 %v5881, %v5873
    %v6250 = vpack.c.b16 %v5882, %v5874
    %v6251 = vpack.c.b16 %v5891, %v5883
    %v6252 = vpack.c.b16 %v5892, %v5884
    %v6253 = vpack.c.b16 %v5893, %v5885
    %v6254 = vpack.c.b16 %v5894, %v5886
    %v6255 = vpack.c.b16 %v5895, %v5887
    %v6256 = vpack.c.b16 %v5896, %v5888
    %v6257 = vpack.c.b16 %v5897, %v5889
    %v6258 = vpack.c.b16 %v5898, %v5890
    %v6259 = vpack.c.b16 %v5907, %v5899
    %v6260 = vpack.c.b16 %v5908, %v5900
    %v6261 = vpack.c.b16 %v5909, %v5901
    %v6262 = vpack.c.b16 %v5910, %v5902
    %v6263 = vpack.c.b16 %v5911, %v5903
    %v6264 = vpack.c.b16 %v5912, %v5904
    %v6265 = vpack.c.b16 %v5913, %v5905
    %v6266 = vpack.c.b16 %v5914, %v5906
    %v6267 = vpack.c.b16 %v5923, %v5915
    %v6268 = vpack.c.b16 %v5924, %v5916
    %v6269 = vpack.c.b16 %v5925, %v5917
    %v6270 = vpack.c.b16 %v5926, %v5918
    %v6271 = vpack.c.b16 %v5927, %v5919
    %v6272 = vpack.c.b16 %v5928, %v5920
    %v6273 = vpack.c.b16 %v5929, %v5921
    %v6274 = vpack.c.b16 %v5930, %v5922
    %v6275 = vpack.c.b16 %v5939, %v5931
    %v6276 = vpack.c.b16 %v5940, %v5932
    %v6277 = vpack.c.b16 %v5941, %v5933
    %v6278 = vpack.c.b16 %v5942, %v5934
    %v6279 = vpack.c.b16 %v5943, %v5935
    %v6280 = vpack.c.b16 %v5944, %v5936
    %v6281 = vpack.c.b16 %v5945, %v5937
    %v6282 = vpack.c.b16 %v5946, %v5938
    %v6283 = vpack.c.b16 %v5955, %v5947
    %v6284 = vpack.c.b16 %v5956, %v5948
    %v6285 = vpack.c.b16 %v5957, %v5949
    %v6286 = vpack.c.b16 %v5958, %v5950
    %v6287 = vpack.c.b16 %v5959, %v5951
    %v6288 = vpack.c.b16 %v5960, %v5952
    %v6289 = vpack.c.b16 %v5961, %v5953
    %v6290 = vpack.c.b16 %v5962, %v5954
    %v6291 = vpack.c.b16 %v5971, %v5963
    %v6292 = vpack.c.b16 %v5972, %v5964
    %v6293 = vpack.c.b16 %v5973, %v5965
    %v6294 = vpack.c.b16 %v5974, %v5966
    %v6295 = vpack.c.b16 %v5975, %v5967
    %v6296 = vpack.c.b16 %v5976, %v5968
    %v6297 = vpack.c.b16 %v5977, %v5969
    %v6298 = vpack.c.b16 %v5978, %v5970
    %v6299 = vpack.c.b16 %v5987, %v5979
    %v6300 = vpack.c.b16 %v5988, %v5980
    %v6301 = vpack.c.b16 %v5989, %v5981
    %v6302 = vpack.c.b16 %v5990, %v5982
    %v6303 = vpack.c.b16 %v5991, %v5983
    %v6304 = vpack.c.b16 %v5992, %v5984
    %v6305 = vpack.c.b16 %v5993, %v5985
    %v6306 = vpack.c.b16 %v5994, %v5986
    %v6307 = vpack.c.b16 %v6003, %v5995
    %v6308 = vpack.c.b16 %v6004, %v5996
    %v6309 = vpack.c.b16 %v6005, %v5997
    %v6310 = vpack.c.b16 %v6006, %v5998
    %v6311 = vpack.c.b16 %v6007, %v5999
    %v6312 = vpack.c.b16 %v6008, %v6000
    %v6313 = vpack.c.b16 %v6009, %v6001
    %v6314 = vpack.c.b16 %v6010, %v6002
    %v6315 = vpack.c.b16 %v6019, %v6011
    %v6316 = vpack.c.b16 %v6020, %v6012
    %v6317 = vpack.c.b16 %v6021, %v6013
    %v6318 = vpack.c.b16 %v6022, %v6014
    %v6319 = vpack.c.b16 %v6023, %v6015
    %v6320 = vpack.c.b16 %v6024, %v6016
    %v6321 = vpack.c.b16 %v6025, %v6017
    %v6322 = vpack.c.b16 %v6026, %v6018
    %v6323 = vpack.c.b16 %v6035, %v6027
    %v6324 = vpack.c.b16 %v6036, %v6028
    %v6325 = vpack.c.b16 %v6037, %v6029
    %v6326 = vpack.c.b16 %v6038, %v6030
    %v6327 = vpack.c.b16 %v6039, %v6031
    %v6328 = vpack.c.b16 %v6040, %v6032
    %v6329 = vpack.c.b16 %v6041, %v6033
    %v6330 = vpack.c.b16 %v6042, %v6034
    %v6331 = vpack.c.b16 %v6051, %v6043
    %v6332 = vpack.c.b16 %v6052, %v6044
    %v6333 = vpack.c.b16 %v6053, %v6045
    %v6334 = vpack.c.b16 %v6054, %v6046
    %v6335 = vpack.c.b16 %v6055, %v6047
    %v6336 = vpack.c.b16 %v6056, %v6048
    %v6337 = vpack.c.b16 %v6057, %v6049
    %v6338 = vpack.c.b16 %v6058, %v6050
    %v6339 = vpack.c.b16 %v6067, %v6059
    %v6340 = vpack.c.b16 %v6068, %v6060
    %v6341 = vpack.c.b16 %v6069, %v6061
    %v6342 = vpack.c.b16 %v6070, %v6062
    %v6343 = vpack.c.b16 %v6071, %v6063
    %v6344 = vpack.c.b16 %v6072, %v6064
    %v6345 = vpack.c.b16 %v6073, %v6065
    %v6346 = vpack.c.b16 %v6074, %v6066
    %v6347 = vpack.c.b16 %v6083, %v6075
    %v6348 = vpack.c.b16 %v6084, %v6076
    %v6349 = vpack.c.b16 %v6085, %v6077
    %v6350 = vpack.c.b16 %v6086, %v6078
    %v6351 = vpack.c.b16 %v6087, %v6079
    %v6352 = vpack.c.b16 %v6088, %v6080
    %v6353 = vpack.c.b16 %v6089, %v6081
    %v6354 = vpack.c.b16 %v6090, %v6082
    %v6355 = vpack.c.b16 %v6099, %v6091
    %v6356 = vpack.c.b16 %v6100, %v6092
    %v6357 = vpack.c.b16 %v6101, %v6093
    %v6358 = vpack.c.b16 %v6102, %v6094
    %v6359 = vpack.c.b16 %v6103, %v6095
    %v6360 = vpack.c.b16 %v6104, %v6096
    %v6361 = vpack.c.b16 %v6105, %v6097
    %v6362 = vpack.c.b16 %v6106, %v6098
    %6619 = vmatpush.bf16.msra.mxu0 %v6163
    %6620 = vmatpush.bf16.msra.mxu0 %v6155
    %6621 = vmatpush.bf16.msra.mxu0 %v6147
    %6622 = vmatpush.bf16.msra.mxu0 %v6139
    %6623 = vmatpush.bf16.msra.mxu0 %v6131
    %6624 = vmatpush.bf16.msra.mxu0 %v6123
    %6625 = vmatpush.bf16.msra.mxu0 %v6115
    %6626 = vmatpush.bf16.msra.mxu0 %v6107
    %6627 = vmatmul.bf16.gmra.mxu0 %v5001
    %v6628 = vpop.f32.mrf.mxu0
    %v6629 = vadd.f32 %v5323, %v6628
    %v6630 = vpop.f32.mrf.mxu0
    %v6631 = vadd.f32 %v5323, %v6630
    %6632 = vmatmul.bf16.gmra.mxu0 %v5005
    %v6633 = vpop.f32.mrf.mxu0
    %v6634 = vadd.f32 %v5323, %v6633
    %v6635 = vpop.f32.mrf.mxu0
    %v6636 = vadd.f32 %v5323, %v6635
    %6637 = vmatmul.bf16.gmra.mxu0 %v5009
    %v6638 = vpop.f32.mrf.mxu0
    %v6639 = vadd.f32 %v5323, %v6638
    %v6640 = vpop.f32.mrf.mxu0
    %v6641 = vadd.f32 %v5323, %v6640
    %6642 = vmatmul.bf16.gmra.mxu0 %v5013
    %v6643 = vpop.f32.mrf.mxu0
    %v6644 = vadd.f32 %v5323, %v6643
    %v6645 = vpop.f32.mrf.mxu0
    %v6646 = vadd.f32 %v5323, %v6645
    %6647 = vmatmul.bf16.gmra.mxu0 %v5017
    %v6648 = vpop.f32.mrf.mxu0
    %v6649 = vadd.f32 %v5323, %v6648
    %v6650 = vpop.f32.mrf.mxu0
    %v6651 = vadd.f32 %v5323, %v6650
    %6652 = vmatmul.bf16.gmra.mxu0 %v5021
    %v6653 = vpop.f32.mrf.mxu0
    %v6654 = vadd.f32 %v5323, %v6653
    %v6655 = vpop.f32.mrf.mxu0
    %v6656 = vadd.f32 %v5323, %v6655
    %6657 = vmatmul.bf16.gmra.mxu0 %v5025
    %v6658 = vpop.f32.mrf.mxu0
    %v6659 = vadd.f32 %v5323, %v6658
    %v6660 = vpop.f32.mrf.mxu0
    %v6661 = vadd.f32 %v5323, %v6660
    %6662 = vmatmul.bf16.gmra.mxu0 %v5029
    %v6663 = vpop.f32.mrf.mxu0
    %v6664 = vadd.f32 %v5323, %v6663
    %v6665 = vpop.f32.mrf.mxu0
    %v6666 = vadd.f32 %v5323, %v6665
    %6667 = vmatmul.bf16.gmra.mxu0 %v5033
    %v6668 = vpop.f32.mrf.mxu0
    %v6669 = vadd.f32 %v5323, %v6668
    %v6670 = vpop.f32.mrf.mxu0
    %v6671 = vadd.f32 %v5323, %v6670
    %6672 = vmatmul.bf16.gmra.mxu0 %v5037
    %v6673 = vpop.f32.mrf.mxu0
    %v6674 = vadd.f32 %v5323, %v6673
    %v6675 = vpop.f32.mrf.mxu0
    %v6676 = vadd.f32 %v5323, %v6675
    %6677 = vmatmul.bf16.gmra.mxu0 %v5041
    %v6678 = vpop.f32.mrf.mxu0
    %v6679 = vadd.f32 %v5323, %v6678
    %v6680 = vpop.f32.mrf.mxu0
    %v6681 = vadd.f32 %v5323, %v6680
    %6682 = vmatmul.bf16.gmra.mxu0 %v5045
    %v6683 = vpop.f32.mrf.mxu0
    %v6684 = vadd.f32 %v5323, %v6683
    %v6685 = vpop.f32.mrf.mxu0
    %v6686 = vadd.f32 %v5323, %v6685
    %6687 = vmatmul.bf16.gmra.mxu0 %v5049
    %v6688 = vpop.f32.mrf.mxu0
    %v6689 = vadd.f32 %v5323, %v6688
    %v6690 = vpop.f32.mrf.mxu0
    %v6691 = vadd.f32 %v5323, %v6690
    %6692 = vmatmul.bf16.gmra.mxu0 %v5053
    %v6693 = vpop.f32.mrf.mxu0
    %v6694 = vadd.f32 %v5323, %v6693
    %v6695 = vpop.f32.mrf.mxu0
    %v6696 = vadd.f32 %v5323, %v6695
    %6697 = vmatmul.bf16.gmra.mxu0 %v5057
    %v6698 = vpop.f32.mrf.mxu0
    %v6699 = vadd.f32 %v5323, %v6698
    %v6700 = vpop.f32.mrf.mxu0
    %v6701 = vadd.f32 %v5323, %v6700
    %6702 = vmatmul.bf16.gmra.mxu0 %v5061
    %v6703 = vpop.f32.mrf.mxu0
    %v6704 = vadd.f32 %v5323, %v6703
    %v6705 = vpop.f32.mrf.mxu0
    %v6706 = vadd.f32 %v5323, %v6705
    %6707 = vdwg.mxu0
    %6708 = vmatpush.bf16.msra.mxu0 %v6227
    %6709 = vmatpush.bf16.msra.mxu0 %v6219
    %6710 = vmatpush.bf16.msra.mxu0 %v6211
    %6711 = vmatpush.bf16.msra.mxu0 %v6203
    %6712 = vmatpush.bf16.msra.mxu0 %v6195
    %6713 = vmatpush.bf16.msra.mxu0 %v6187
    %6714 = vmatpush.bf16.msra.mxu0 %v6179
    %6715 = vmatpush.bf16.msra.mxu0 %v6171
    %6716 = vmatmul.bf16.gmra.mxu0 %v5002
    %v6717 = vpop.f32.mrf.mxu0
    %v6718 = vadd.f32 %v6629, %v6717
    %v6719 = vpop.f32.mrf.mxu0
    %v6720 = vadd.f32 %v6631, %v6719
    %6721 = vmatmul.bf16.gmra.mxu0 %v5006
    %v6722 = vpop.f32.mrf.mxu0
    %v6723 = vadd.f32 %v6634, %v6722
    %v6724 = vpop.f32.mrf.mxu0
    %v6725 = vadd.f32 %v6636, %v6724
    %6726 = vmatmul.bf16.gmra.mxu0 %v5010
    %v6727 = vpop.f32.mrf.mxu0
    %v6728 = vadd.f32 %v6639, %v6727
    %v6729 = vpop.f32.mrf.mxu0
    %v6730 = vadd.f32 %v6641, %v6729
    %6731 = vmatmul.bf16.gmra.mxu0 %v5014
    %v6732 = vpop.f32.mrf.mxu0
    %v6733 = vadd.f32 %v6644, %v6732
    %v6734 = vpop.f32.mrf.mxu0
    %v6735 = vadd.f32 %v6646, %v6734
    %6736 = vmatmul.bf16.gmra.mxu0 %v5018
    %v6737 = vpop.f32.mrf.mxu0
    %v6738 = vadd.f32 %v6649, %v6737
    %v6739 = vpop.f32.mrf.mxu0
    %v6740 = vadd.f32 %v6651, %v6739
    %6741 = vmatmul.bf16.gmra.mxu0 %v5022
    %v6742 = vpop.f32.mrf.mxu0
    %v6743 = vadd.f32 %v6654, %v6742
    %v6744 = vpop.f32.mrf.mxu0
    %v6745 = vadd.f32 %v6656, %v6744
    %6746 = vmatmul.bf16.gmra.mxu0 %v5026
    %v6747 = vpop.f32.mrf.mxu0
    %v6748 = vadd.f32 %v6659, %v6747
    %v6749 = vpop.f32.mrf.mxu0
    %v6750 = vadd.f32 %v6661, %v6749
    %6751 = vmatmul.bf16.gmra.mxu0 %v5030
    %v6752 = vpop.f32.mrf.mxu0
    %v6753 = vadd.f32 %v6664, %v6752
    %v6754 = vpop.f32.mrf.mxu0
    %v6755 = vadd.f32 %v6666, %v6754
    %6756 = vmatmul.bf16.gmra.mxu0 %v5034
    %v6757 = vpop.f32.mrf.mxu0
    %v6758 = vadd.f32 %v6669, %v6757
    %v6759 = vpop.f32.mrf.mxu0
    %v6760 = vadd.f32 %v6671, %v6759
    %6761 = vmatmul.bf16.gmra.mxu0 %v5038
    %v6762 = vpop.f32.mrf.mxu0
    %v6763 = vadd.f32 %v6674, %v6762
    %v6764 = vpop.f32.mrf.mxu0
    %v6765 = vadd.f32 %v6676, %v6764
    %6766 = vmatmul.bf16.gmra.mxu0 %v5042
    %v6767 = vpop.f32.mrf.mxu0
    %v6768 = vadd.f32 %v6679, %v6767
    %v6769 = vpop.f32.mrf.mxu0
    %v6770 = vadd.f32 %v6681, %v6769
    %6771 = vmatmul.bf16.gmra.mxu0 %v5046
    %v6772 = vpop.f32.mrf.mxu0
    %v6773 = vadd.f32 %v6684, %v6772
    %v6774 = vpop.f32.mrf.mxu0
    %v6775 = vadd.f32 %v6686, %v6774
    %6776 = vmatmul.bf16.gmra.mxu0 %v5050
    %v6777 = vpop.f32.mrf.mxu0
    %v6778 = vadd.f32 %v6689, %v6777
    %v6779 = vpop.f32.mrf.mxu0
    %v6780 = vadd.f32 %v6691, %v6779
    %6781 = vmatmul.bf16.gmra.mxu0 %v5054
    %v6782 = vpop.f32.mrf.mxu0
    %v6783 = vadd.f32 %v6694, %v6782
    %v6784 = vpop.f32.mrf.mxu0
    %v6785 = vadd.f32 %v6696, %v6784
    %6786 = vmatmul.bf16.gmra.mxu0 %v5058
    %v6787 = vpop.f32.mrf.mxu0
    %v6788 = vadd.f32 %v6699, %v6787
    %v6789 = vpop.f32.mrf.mxu0
    %v6790 = vadd.f32 %v6701, %v6789
    %6791 = vmatmul.bf16.gmra.mxu0 %v5062
    %v6792 = vpop.f32.mrf.mxu0
    %v6793 = vadd.f32 %v6704, %v6792
    %v6794 = vpop.f32.mrf.mxu0
    %v6795 = vadd.f32 %v6706, %v6794
    %6796 = vdwg.mxu0
    %6797 = vmatpush.bf16.msra.mxu0 %v6291
    %6798 = vmatpush.bf16.msra.mxu0 %v6283
    %6799 = vmatpush.bf16.msra.mxu0 %v6275
    %6800 = vmatpush.bf16.msra.mxu0 %v6267
    %6801 = vmatpush.bf16.msra.mxu0 %v6259
    %6802 = vmatpush.bf16.msra.mxu0 %v6251
    %6803 = vmatpush.bf16.msra.mxu0 %v6243
    %6804 = vmatpush.bf16.msra.mxu0 %v6235
    %6805 = vmatmul.bf16.gmra.mxu0 %v5003
    %v6806 = vpop.f32.mrf.mxu0
    %v6807 = vadd.f32 %v6718, %v6806
    %v6808 = vpop.f32.mrf.mxu0
    %v6809 = vadd.f32 %v6720, %v6808
    %6810 = vmatmul.bf16.gmra.mxu0 %v5007
    %v6811 = vpop.f32.mrf.mxu0
    %v6812 = vadd.f32 %v6723, %v6811
    %v6813 = vpop.f32.mrf.mxu0
    %v6814 = vadd.f32 %v6725, %v6813
    %6815 = vmatmul.bf16.gmra.mxu0 %v5011
    %v6816 = vpop.f32.mrf.mxu0
    %v6817 = vadd.f32 %v6728, %v6816
    %v6818 = vpop.f32.mrf.mxu0
    %v6819 = vadd.f32 %v6730, %v6818
    %6820 = vmatmul.bf16.gmra.mxu0 %v5015
    %v6821 = vpop.f32.mrf.mxu0
    %v6822 = vadd.f32 %v6733, %v6821
    %v6823 = vpop.f32.mrf.mxu0
    %v6824 = vadd.f32 %v6735, %v6823
    %6825 = vmatmul.bf16.gmra.mxu0 %v5019
    %v6826 = vpop.f32.mrf.mxu0
    %v6827 = vadd.f32 %v6738, %v6826
    %v6828 = vpop.f32.mrf.mxu0
    %v6829 = vadd.f32 %v6740, %v6828
    %6830 = vmatmul.bf16.gmra.mxu0 %v5023
    %v6831 = vpop.f32.mrf.mxu0
    %v6832 = vadd.f32 %v6743, %v6831
    %v6833 = vpop.f32.mrf.mxu0
    %v6834 = vadd.f32 %v6745, %v6833
    %6835 = vmatmul.bf16.gmra.mxu0 %v5027
    %v6836 = vpop.f32.mrf.mxu0
    %v6837 = vadd.f32 %v6748, %v6836
    %v6838 = vpop.f32.mrf.mxu0
    %v6839 = vadd.f32 %v6750, %v6838
    %6840 = vmatmul.bf16.gmra.mxu0 %v5031
    %v6841 = vpop.f32.mrf.mxu0
    %v6842 = vadd.f32 %v6753, %v6841
    %v6843 = vpop.f32.mrf.mxu0
    %v6844 = vadd.f32 %v6755, %v6843
    %6845 = vmatmul.bf16.gmra.mxu0 %v5035
    %v6846 = vpop.f32.mrf.mxu0
    %v6847 = vadd.f32 %v6758, %v6846
    %v6848 = vpop.f32.mrf.mxu0
    %v6849 = vadd.f32 %v6760, %v6848
    %6850 = vmatmul.bf16.gmra.mxu0 %v5039
    %v6851 = vpop.f32.mrf.mxu0
    %v6852 = vadd.f32 %v6763, %v6851
    %v6853 = vpop.f32.mrf.mxu0
    %v6854 = vadd.f32 %v6765, %v6853
    %6855 = vmatmul.bf16.gmra.mxu0 %v5043
    %v6856 = vpop.f32.mrf.mxu0
    %v6857 = vadd.f32 %v6768, %v6856
    %v6858 = vpop.f32.mrf.mxu0
    %v6859 = vadd.f32 %v6770, %v6858
    %6860 = vmatmul.bf16.gmra.mxu0 %v5047
    %v6861 = vpop.f32.mrf.mxu0
    %v6862 = vadd.f32 %v6773, %v6861
    %v6863 = vpop.f32.mrf.mxu0
    %v6864 = vadd.f32 %v6775, %v6863
    %6865 = vmatmul.bf16.gmra.mxu0 %v5051
    %v6866 = vpop.f32.mrf.mxu0
    %v6867 = vadd.f32 %v6778, %v6866
    %v6868 = vpop.f32.mrf.mxu0
    %v6869 = vadd.f32 %v6780, %v6868
    %6870 = vmatmul.bf16.gmra.mxu0 %v5055
    %v6871 = vpop.f32.mrf.mxu0
    %v6872 = vadd.f32 %v6783, %v6871
    %v6873 = vpop.f32.mrf.mxu0
    %v6874 = vadd.f32 %v6785, %v6873
    %6875 = vmatmul.bf16.gmra.mxu0 %v5059
    %v6876 = vpop.f32.mrf.mxu0
    %v6877 = vadd.f32 %v6788, %v6876
    %v6878 = vpop.f32.mrf.mxu0
    %v6879 = vadd.f32 %v6790, %v6878
    %6880 = vmatmul.bf16.gmra.mxu0 %v5063
    %v6881 = vpop.f32.mrf.mxu0
    %v6882 = vadd.f32 %v6793, %v6881
    %v6883 = vpop.f32.mrf.mxu0
    %v6884 = vadd.f32 %v6795, %v6883
    %6885 = vdwg.mxu0
    %6886 = vmatpush.bf16.msra.mxu0 %v6355
    %6887 = vmatpush.bf16.msra.mxu0 %v6347
    %6888 = vmatpush.bf16.msra.mxu0 %v6339
    %6889 = vmatpush.bf16.msra.mxu0 %v6331
    %6890 = vmatpush.bf16.msra.mxu0 %v6323
    %6891 = vmatpush.bf16.msra.mxu0 %v6315
    %6892 = vmatpush.bf16.msra.mxu0 %v6307
    %6893 = vmatpush.bf16.msra.mxu0 %v6299
    %6894 = vmatmul.bf16.gmra.mxu0 %v5004
    %v6895 = vpop.f32.mrf.mxu0
    %v6896 = vadd.f32 %v6807, %v6895
    %v6897 = vpop.f32.mrf.mxu0
    %v6898 = vadd.f32 %v6809, %v6897
    %6899 = vmatmul.bf16.gmra.mxu0 %v5008
    %v6900 = vpop.f32.mrf.mxu0
    %v6901 = vadd.f32 %v6812, %v6900
    %v6902 = vpop.f32.mrf.mxu0
    %v6903 = vadd.f32 %v6814, %v6902
    %6904 = vmatmul.bf16.gmra.mxu0 %v5012
    %v6905 = vpop.f32.mrf.mxu0
    %v6906 = vadd.f32 %v6817, %v6905
    %v6907 = vpop.f32.mrf.mxu0
    %v6908 = vadd.f32 %v6819, %v6907
    %6909 = vmatmul.bf16.gmra.mxu0 %v5016
    %v6910 = vpop.f32.mrf.mxu0
    %v6911 = vadd.f32 %v6822, %v6910
    %v6912 = vpop.f32.mrf.mxu0
    %v6913 = vadd.f32 %v6824, %v6912
    %6914 = vmatmul.bf16.gmra.mxu0 %v5020
    %v6915 = vpop.f32.mrf.mxu0
    %v6916 = vadd.f32 %v6827, %v6915
    %v6917 = vpop.f32.mrf.mxu0
    %v6918 = vadd.f32 %v6829, %v6917
    %6919 = vmatmul.bf16.gmra.mxu0 %v5024
    %v6920 = vpop.f32.mrf.mxu0
    %v6921 = vadd.f32 %v6832, %v6920
    %v6922 = vpop.f32.mrf.mxu0
    %v6923 = vadd.f32 %v6834, %v6922
    %6924 = vmatmul.bf16.gmra.mxu0 %v5028
    %v6925 = vpop.f32.mrf.mxu0
    %v6926 = vadd.f32 %v6837, %v6925
    %v6927 = vpop.f32.mrf.mxu0
    %v6928 = vadd.f32 %v6839, %v6927
    %6929 = vmatmul.bf16.gmra.mxu0 %v5032
    %v6930 = vpop.f32.mrf.mxu0
    %v6931 = vadd.f32 %v6842, %v6930
    %v6932 = vpop.f32.mrf.mxu0
    %v6933 = vadd.f32 %v6844, %v6932
    %6934 = vmatmul.bf16.gmra.mxu0 %v5036
    %v6935 = vpop.f32.mrf.mxu0
    %v6936 = vadd.f32 %v6847, %v6935
    %v6937 = vpop.f32.mrf.mxu0
    %v6938 = vadd.f32 %v6849, %v6937
    %6939 = vmatmul.bf16.gmra.mxu0 %v5040
    %v6940 = vpop.f32.mrf.mxu0
    %v6941 = vadd.f32 %v6852, %v6940
    %v6942 = vpop.f32.mrf.mxu0
    %v6943 = vadd.f32 %v6854, %v6942
    %6944 = vmatmul.bf16.gmra.mxu0 %v5044
    %v6945 = vpop.f32.mrf.mxu0
    %v6946 = vadd.f32 %v6857, %v6945
    %v6947 = vpop.f32.mrf.mxu0
    %v6948 = vadd.f32 %v6859, %v6947
    %6949 = vmatmul.bf16.gmra.mxu0 %v5048
    %v6950 = vpop.f32.mrf.mxu0
    %v6951 = vadd.f32 %v6862, %v6950
    %v6952 = vpop.f32.mrf.mxu0
    %v6953 = vadd.f32 %v6864, %v6952
    %6954 = vmatmul.bf16.gmra.mxu0 %v5052
    %v6955 = vpop.f32.mrf.mxu0
    %v6956 = vadd.f32 %v6867, %v6955
    %v6957 = vpop.f32.mrf.mxu0
    %v6958 = vadd.f32 %v6869, %v6957
    %6959 = vmatmul.bf16.gmra.mxu0 %v5056
    %v6960 = vpop.f32.mrf.mxu0
    %v6961 = vadd.f32 %v6872, %v6960
    %v6962 = vpop.f32.mrf.mxu0
    %v6963 = vadd.f32 %v6874, %v6962
    %6964 = vmatmul.bf16.gmra.mxu0 %v5060
    %v6965 = vpop.f32.mrf.mxu0
    %v6966 = vadd.f32 %v6877, %v6965
    %v6967 = vpop.f32.mrf.mxu0
    %v6968 = vadd.f32 %v6879, %v6967
    %6969 = vmatmul.bf16.gmra.mxu0 %v5064
    %v6970 = vpop.f32.mrf.mxu0
    %v6971 = vadd.f32 %v6882, %v6970
    %v6972 = vpop.f32.mrf.mxu0
    %v6973 = vadd.f32 %v6884, %v6972
    %6974 = vdwg.mxu0
    %6975 = vmatpush.bf16.msra.mxu0 %v6164
    %6976 = vmatpush.bf16.msra.mxu0 %v6156
    %6977 = vmatpush.bf16.msra.mxu0 %v6148
    %6978 = vmatpush.bf16.msra.mxu0 %v6140
    %6979 = vmatpush.bf16.msra.mxu0 %v6132
    %6980 = vmatpush.bf16.msra.mxu0 %v6124
    %6981 = vmatpush.bf16.msra.mxu0 %v6116
    %6982 = vmatpush.bf16.msra.mxu0 %v6108
    %6983 = vmatmul.bf16.gmra.mxu0 %v5001
    %v6984 = vpop.f32.mrf.mxu0
    %v6985 = vadd.f32 %v5324, %v6984
    %v6986 = vpop.f32.mrf.mxu0
    %v6987 = vadd.f32 %v5324, %v6986
    %6988 = vmatmul.bf16.gmra.mxu0 %v5005
    %v6989 = vpop.f32.mrf.mxu0
    %v6990 = vadd.f32 %v5324, %v6989
    %v6991 = vpop.f32.mrf.mxu0
    %v6992 = vadd.f32 %v5324, %v6991
    %6993 = vmatmul.bf16.gmra.mxu0 %v5009
    %v6994 = vpop.f32.mrf.mxu0
    %v6995 = vadd.f32 %v5324, %v6994
    %v6996 = vpop.f32.mrf.mxu0
    %v6997 = vadd.f32 %v5324, %v6996
    %6998 = vmatmul.bf16.gmra.mxu0 %v5013
    %v6999 = vpop.f32.mrf.mxu0
    %v7000 = vadd.f32 %v5324, %v6999
    %v7001 = vpop.f32.mrf.mxu0
    %v7002 = vadd.f32 %v5324, %v7001
    %7003 = vmatmul.bf16.gmra.mxu0 %v5017
    %v7004 = vpop.f32.mrf.mxu0
    %v7005 = vadd.f32 %v5324, %v7004
    %v7006 = vpop.f32.mrf.mxu0
    %v7007 = vadd.f32 %v5324, %v7006
    %7008 = vmatmul.bf16.gmra.mxu0 %v5021
    %v7009 = vpop.f32.mrf.mxu0
    %v7010 = vadd.f32 %v5324, %v7009
    %v7011 = vpop.f32.mrf.mxu0
    %v7012 = vadd.f32 %v5324, %v7011
    %7013 = vmatmul.bf16.gmra.mxu0 %v5025
    %v7014 = vpop.f32.mrf.mxu0
    %v7015 = vadd.f32 %v5324, %v7014
    %v7016 = vpop.f32.mrf.mxu0
    %v7017 = vadd.f32 %v5324, %v7016
    %7018 = vmatmul.bf16.gmra.mxu0 %v5029
    %v7019 = vpop.f32.mrf.mxu0
    %v7020 = vadd.f32 %v5324, %v7019
    %v7021 = vpop.f32.mrf.mxu0
    %v7022 = vadd.f32 %v5324, %v7021
    %7023 = vmatmul.bf16.gmra.mxu0 %v5033
    %v7024 = vpop.f32.mrf.mxu0
    %v7025 = vadd.f32 %v5324, %v7024
    %v7026 = vpop.f32.mrf.mxu0
    %v7027 = vadd.f32 %v5324, %v7026
    %7028 = vmatmul.bf16.gmra.mxu0 %v5037
    %v7029 = vpop.f32.mrf.mxu0
    %v7030 = vadd.f32 %v5324, %v7029
    %v7031 = vpop.f32.mrf.mxu0
    %v7032 = vadd.f32 %v5324, %v7031
    %7033 = vmatmul.bf16.gmra.mxu0 %v5041
    %v7034 = vpop.f32.mrf.mxu0
    %v7035 = vadd.f32 %v5324, %v7034
    %v7036 = vpop.f32.mrf.mxu0
    %v7037 = vadd.f32 %v5324, %v7036
    %7038 = vmatmul.bf16.gmra.mxu0 %v5045
    %v7039 = vpop.f32.mrf.mxu0
    %v7040 = vadd.f32 %v5324, %v7039
    %v7041 = vpop.f32.mrf.mxu0
    %v7042 = vadd.f32 %v5324, %v7041
    %7043 = vmatmul.bf16.gmra.mxu0 %v5049
    %v7044 = vpop.f32.mrf.mxu0
    %v7045 = vadd.f32 %v5324, %v7044
    %v7046 = vpop.f32.mrf.mxu0
    %v7047 = vadd.f32 %v5324, %v7046
    %7048 = vmatmul.bf16.gmra.mxu0 %v5053
    %v7049 = vpop.f32.mrf.mxu0
    %v7050 = vadd.f32 %v5324, %v7049
    %v7051 = vpop.f32.mrf.mxu0
    %v7052 = vadd.f32 %v5324, %v7051
    %7053 = vmatmul.bf16.gmra.mxu0 %v5057
    %v7054 = vpop.f32.mrf.mxu0
    %v7055 = vadd.f32 %v5324, %v7054
    %v7056 = vpop.f32.mrf.mxu0
    %v7057 = vadd.f32 %v5324, %v7056
    %7058 = vmatmul.bf16.gmra.mxu0 %v5061
    %v7059 = vpop.f32.mrf.mxu0
    %v7060 = vadd.f32 %v5324, %v7059
    %v7061 = vpop.f32.mrf.mxu0
    %v7062 = vadd.f32 %v5324, %v7061
    %7063 = vdwg.mxu0
    %7064 = vmatpush.bf16.msra.mxu0 %v6228
    %7065 = vmatpush.bf16.msra.mxu0 %v6220
    %7066 = vmatpush.bf16.msra.mxu0 %v6212
    %7067 = vmatpush.bf16.msra.mxu0 %v6204
    %7068 = vmatpush.bf16.msra.mxu0 %v6196
    %7069 = vmatpush.bf16.msra.mxu0 %v6188
    %7070 = vmatpush.bf16.msra.mxu0 %v6180
    %7071 = vmatpush.bf16.msra.mxu0 %v6172
    %7072 = vmatmul.bf16.gmra.mxu0 %v5002
    %v7073 = vpop.f32.mrf.mxu0
    %v7074 = vadd.f32 %v6985, %v7073
    %v7075 = vpop.f32.mrf.mxu0
    %v7076 = vadd.f32 %v6987, %v7075
    %7077 = vmatmul.bf16.gmra.mxu0 %v5006
    %v7078 = vpop.f32.mrf.mxu0
    %v7079 = vadd.f32 %v6990, %v7078
    %v7080 = vpop.f32.mrf.mxu0
    %v7081 = vadd.f32 %v6992, %v7080
    %7082 = vmatmul.bf16.gmra.mxu0 %v5010
    %v7083 = vpop.f32.mrf.mxu0
    %v7084 = vadd.f32 %v6995, %v7083
    %v7085 = vpop.f32.mrf.mxu0
    %v7086 = vadd.f32 %v6997, %v7085
    %7087 = vmatmul.bf16.gmra.mxu0 %v5014
    %v7088 = vpop.f32.mrf.mxu0
    %v7089 = vadd.f32 %v7000, %v7088
    %v7090 = vpop.f32.mrf.mxu0
    %v7091 = vadd.f32 %v7002, %v7090
    %7092 = vmatmul.bf16.gmra.mxu0 %v5018
    %v7093 = vpop.f32.mrf.mxu0
    %v7094 = vadd.f32 %v7005, %v7093
    %v7095 = vpop.f32.mrf.mxu0
    %v7096 = vadd.f32 %v7007, %v7095
    %7097 = vmatmul.bf16.gmra.mxu0 %v5022
    %v7098 = vpop.f32.mrf.mxu0
    %v7099 = vadd.f32 %v7010, %v7098
    %v7100 = vpop.f32.mrf.mxu0
    %v7101 = vadd.f32 %v7012, %v7100
    %7102 = vmatmul.bf16.gmra.mxu0 %v5026
    %v7103 = vpop.f32.mrf.mxu0
    %v7104 = vadd.f32 %v7015, %v7103
    %v7105 = vpop.f32.mrf.mxu0
    %v7106 = vadd.f32 %v7017, %v7105
    %7107 = vmatmul.bf16.gmra.mxu0 %v5030
    %v7108 = vpop.f32.mrf.mxu0
    %v7109 = vadd.f32 %v7020, %v7108
    %v7110 = vpop.f32.mrf.mxu0
    %v7111 = vadd.f32 %v7022, %v7110
    %7112 = vmatmul.bf16.gmra.mxu0 %v5034
    %v7113 = vpop.f32.mrf.mxu0
    %v7114 = vadd.f32 %v7025, %v7113
    %v7115 = vpop.f32.mrf.mxu0
    %v7116 = vadd.f32 %v7027, %v7115
    %7117 = vmatmul.bf16.gmra.mxu0 %v5038
    %v7118 = vpop.f32.mrf.mxu0
    %v7119 = vadd.f32 %v7030, %v7118
    %v7120 = vpop.f32.mrf.mxu0
    %v7121 = vadd.f32 %v7032, %v7120
    %7122 = vmatmul.bf16.gmra.mxu0 %v5042
    %v7123 = vpop.f32.mrf.mxu0
    %v7124 = vadd.f32 %v7035, %v7123
    %v7125 = vpop.f32.mrf.mxu0
    %v7126 = vadd.f32 %v7037, %v7125
    %7127 = vmatmul.bf16.gmra.mxu0 %v5046
    %v7128 = vpop.f32.mrf.mxu0
    %v7129 = vadd.f32 %v7040, %v7128
    %v7130 = vpop.f32.mrf.mxu0
    %v7131 = vadd.f32 %v7042, %v7130
    %7132 = vmatmul.bf16.gmra.mxu0 %v5050
    %v7133 = vpop.f32.mrf.mxu0
    %v7134 = vadd.f32 %v7045, %v7133
    %v7135 = vpop.f32.mrf.mxu0
    %v7136 = vadd.f32 %v7047, %v7135
    %7137 = vmatmul.bf16.gmra.mxu0 %v5054
    %v7138 = vpop.f32.mrf.mxu0
    %v7139 = vadd.f32 %v7050, %v7138
    %v7140 = vpop.f32.mrf.mxu0
    %v7141 = vadd.f32 %v7052, %v7140
    %7142 = vmatmul.bf16.gmra.mxu0 %v5058
    %v7143 = vpop.f32.mrf.mxu0
    %v7144 = vadd.f32 %v7055, %v7143
    %v7145 = vpop.f32.mrf.mxu0
    %v7146 = vadd.f32 %v7057, %v7145
    %7147 = vmatmul.bf16.gmra.mxu0 %v5062
    %v7148 = vpop.f32.mrf.mxu0
    %v7149 = vadd.f32 %v7060, %v7148
    %v7150 = vpop.f32.mrf.mxu0
    %v7151 = vadd.f32 %v7062, %v7150
    %7152 = vdwg.mxu0
    %7153 = vmatpush.bf16.msra.mxu0 %v6292
    %7154 = vmatpush.bf16.msra.mxu0 %v6284
    %7155 = vmatpush.bf16.msra.mxu0 %v6276
    %7156 = vmatpush.bf16.msra.mxu0 %v6268
    %7157 = vmatpush.bf16.msra.mxu0 %v6260
    %7158 = vmatpush.bf16.msra.mxu0 %v6252
    %7159 = vmatpush.bf16.msra.mxu0 %v6244
    %7160 = vmatpush.bf16.msra.mxu0 %v6236
    %7161 = vmatmul.bf16.gmra.mxu0 %v5003
    %v7162 = vpop.f32.mrf.mxu0
    %v7163 = vadd.f32 %v7074, %v7162
    %v7164 = vpop.f32.mrf.mxu0
    %v7165 = vadd.f32 %v7076, %v7164
    %7166 = vmatmul.bf16.gmra.mxu0 %v5007
    %v7167 = vpop.f32.mrf.mxu0
    %v7168 = vadd.f32 %v7079, %v7167
    %v7169 = vpop.f32.mrf.mxu0
    %v7170 = vadd.f32 %v7081, %v7169
    %7171 = vmatmul.bf16.gmra.mxu0 %v5011
    %v7172 = vpop.f32.mrf.mxu0
    %v7173 = vadd.f32 %v7084, %v7172
    %v7174 = vpop.f32.mrf.mxu0
    %v7175 = vadd.f32 %v7086, %v7174
    %7176 = vmatmul.bf16.gmra.mxu0 %v5015
    %v7177 = vpop.f32.mrf.mxu0
    %v7178 = vadd.f32 %v7089, %v7177
    %v7179 = vpop.f32.mrf.mxu0
    %v7180 = vadd.f32 %v7091, %v7179
    %7181 = vmatmul.bf16.gmra.mxu0 %v5019
    %v7182 = vpop.f32.mrf.mxu0
    %v7183 = vadd.f32 %v7094, %v7182
    %v7184 = vpop.f32.mrf.mxu0
    %v7185 = vadd.f32 %v7096, %v7184
    %7186 = vmatmul.bf16.gmra.mxu0 %v5023
    %v7187 = vpop.f32.mrf.mxu0
    %v7188 = vadd.f32 %v7099, %v7187
    %v7189 = vpop.f32.mrf.mxu0
    %v7190 = vadd.f32 %v7101, %v7189
    %7191 = vmatmul.bf16.gmra.mxu0 %v5027
    %v7192 = vpop.f32.mrf.mxu0
    %v7193 = vadd.f32 %v7104, %v7192
    %v7194 = vpop.f32.mrf.mxu0
    %v7195 = vadd.f32 %v7106, %v7194
    %7196 = vmatmul.bf16.gmra.mxu0 %v5031
    %v7197 = vpop.f32.mrf.mxu0
    %v7198 = vadd.f32 %v7109, %v7197
    %v7199 = vpop.f32.mrf.mxu0
    %v7200 = vadd.f32 %v7111, %v7199
    %7201 = vmatmul.bf16.gmra.mxu0 %v5035
    %v7202 = vpop.f32.mrf.mxu0
    %v7203 = vadd.f32 %v7114, %v7202
    %v7204 = vpop.f32.mrf.mxu0
    %v7205 = vadd.f32 %v7116, %v7204
    %7206 = vmatmul.bf16.gmra.mxu0 %v5039
    %v7207 = vpop.f32.mrf.mxu0
    %v7208 = vadd.f32 %v7119, %v7207
    %v7209 = vpop.f32.mrf.mxu0
    %v7210 = vadd.f32 %v7121, %v7209
    %7211 = vmatmul.bf16.gmra.mxu0 %v5043
    %v7212 = vpop.f32.mrf.mxu0
    %v7213 = vadd.f32 %v7124, %v7212
    %v7214 = vpop.f32.mrf.mxu0
    %v7215 = vadd.f32 %v7126, %v7214
    %7216 = vmatmul.bf16.gmra.mxu0 %v5047
    %v7217 = vpop.f32.mrf.mxu0
    %v7218 = vadd.f32 %v7129, %v7217
    %v7219 = vpop.f32.mrf.mxu0
    %v7220 = vadd.f32 %v7131, %v7219
    %7221 = vmatmul.bf16.gmra.mxu0 %v5051
    %v7222 = vpop.f32.mrf.mxu0
    %v7223 = vadd.f32 %v7134, %v7222
    %v7224 = vpop.f32.mrf.mxu0
    %v7225 = vadd.f32 %v7136, %v7224
    %7226 = vmatmul.bf16.gmra.mxu0 %v5055
    %v7227 = vpop.f32.mrf.mxu0
    %v7228 = vadd.f32 %v7139, %v7227
    %v7229 = vpop.f32.mrf.mxu0
    %v7230 = vadd.f32 %v7141, %v7229
    %7231 = vmatmul.bf16.gmra.mxu0 %v5059
    %v7232 = vpop.f32.mrf.mxu0
    %v7233 = vadd.f32 %v7144, %v7232
    %v7234 = vpop.f32.mrf.mxu0
    %v7235 = vadd.f32 %v7146, %v7234
    %7236 = vmatmul.bf16.gmra.mxu0 %v5063
    %v7237 = vpop.f32.mrf.mxu0
    %v7238 = vadd.f32 %v7149, %v7237
    %v7239 = vpop.f32.mrf.mxu0
    %v7240 = vadd.f32 %v7151, %v7239
    %7241 = vdwg.mxu0
    %7242 = vmatpush.bf16.msra.mxu0 %v6356
    %7243 = vmatpush.bf16.msra.mxu0 %v6348
    %7244 = vmatpush.bf16.msra.mxu0 %v6340
    %7245 = vmatpush.bf16.msra.mxu0 %v6332
    %7246 = vmatpush.bf16.msra.mxu0 %v6324
    %7247 = vmatpush.bf16.msra.mxu0 %v6316
    %7248 = vmatpush.bf16.msra.mxu0 %v6308
    %7249 = vmatpush.bf16.msra.mxu0 %v6300
    %7250 = vmatmul.bf16.gmra.mxu0 %v5004
    %v7251 = vpop.f32.mrf.mxu0
    %v7252 = vadd.f32 %v7163, %v7251
    %v7253 = vpop.f32.mrf.mxu0
    %v7254 = vadd.f32 %v7165, %v7253
    %7255 = vmatmul.bf16.gmra.mxu0 %v5008
    %v7256 = vpop.f32.mrf.mxu0
    %v7257 = vadd.f32 %v7168, %v7256
    %v7258 = vpop.f32.mrf.mxu0
    %v7259 = vadd.f32 %v7170, %v7258
    %7260 = vmatmul.bf16.gmra.mxu0 %v5012
    %v7261 = vpop.f32.mrf.mxu0
    %v7262 = vadd.f32 %v7173, %v7261
    %v7263 = vpop.f32.mrf.mxu0
    %v7264 = vadd.f32 %v7175, %v7263
    %7265 = vmatmul.bf16.gmra.mxu0 %v5016
    %v7266 = vpop.f32.mrf.mxu0
    %v7267 = vadd.f32 %v7178, %v7266
    %v7268 = vpop.f32.mrf.mxu0
    %v7269 = vadd.f32 %v7180, %v7268
    %7270 = vmatmul.bf16.gmra.mxu0 %v5020
    %v7271 = vpop.f32.mrf.mxu0
    %v7272 = vadd.f32 %v7183, %v7271
    %v7273 = vpop.f32.mrf.mxu0
    %v7274 = vadd.f32 %v7185, %v7273
    %7275 = vmatmul.bf16.gmra.mxu0 %v5024
    %v7276 = vpop.f32.mrf.mxu0
    %v7277 = vadd.f32 %v7188, %v7276
    %v7278 = vpop.f32.mrf.mxu0
    %v7279 = vadd.f32 %v7190, %v7278
    %7280 = vmatmul.bf16.gmra.mxu0 %v5028
    %v7281 = vpop.f32.mrf.mxu0
    %v7282 = vadd.f32 %v7193, %v7281
    %v7283 = vpop.f32.mrf.mxu0
    %v7284 = vadd.f32 %v7195, %v7283
    %7285 = vmatmul.bf16.gmra.mxu0 %v5032
    %v7286 = vpop.f32.mrf.mxu0
    %v7287 = vadd.f32 %v7198, %v7286
    %v7288 = vpop.f32.mrf.mxu0
    %v7289 = vadd.f32 %v7200, %v7288
    %7290 = vmatmul.bf16.gmra.mxu0 %v5036
    %v7291 = vpop.f32.mrf.mxu0
    %v7292 = vadd.f32 %v7203, %v7291
    %v7293 = vpop.f32.mrf.mxu0
    %v7294 = vadd.f32 %v7205, %v7293
    %7295 = vmatmul.bf16.gmra.mxu0 %v5040
    %v7296 = vpop.f32.mrf.mxu0
    %v7297 = vadd.f32 %v7208, %v7296
    %v7298 = vpop.f32.mrf.mxu0
    %v7299 = vadd.f32 %v7210, %v7298
    %7300 = vmatmul.bf16.gmra.mxu0 %v5044
    %v7301 = vpop.f32.mrf.mxu0
    %v7302 = vadd.f32 %v7213, %v7301
    %v7303 = vpop.f32.mrf.mxu0
    %v7304 = vadd.f32 %v7215, %v7303
    %7305 = vmatmul.bf16.gmra.mxu0 %v5048
    %v7306 = vpop.f32.mrf.mxu0
    %v7307 = vadd.f32 %v7218, %v7306
    %v7308 = vpop.f32.mrf.mxu0
    %v7309 = vadd.f32 %v7220, %v7308
    %7310 = vmatmul.bf16.gmra.mxu0 %v5052
    %v7311 = vpop.f32.mrf.mxu0
    %v7312 = vadd.f32 %v7223, %v7311
    %v7313 = vpop.f32.mrf.mxu0
    %v7314 = vadd.f32 %v7225, %v7313
    %7315 = vmatmul.bf16.gmra.mxu0 %v5056
    %v7316 = vpop.f32.mrf.mxu0
    %v7317 = vadd.f32 %v7228, %v7316
    %v7318 = vpop.f32.mrf.mxu0
    %v7319 = vadd.f32 %v7230, %v7318
    %7320 = vmatmul.bf16.gmra.mxu0 %v5060
    %v7321 = vpop.f32.mrf.mxu0
    %v7322 = vadd.f32 %v7233, %v7321
    %v7323 = vpop.f32.mrf.mxu0
    %v7324 = vadd.f32 %v7235, %v7323
    %7325 = vmatmul.bf16.gmra.mxu0 %v5064
    %v7326 = vpop.f32.mrf.mxu0
    %v7327 = vadd.f32 %v7238, %v7326
    %v7328 = vpop.f32.mrf.mxu0
    %v7329 = vadd.f32 %v7240, %v7328
    %7330 = vdwg.mxu0
    %7331 = vmatpush.bf16.msra.mxu0 %v6165
    %7332 = vmatpush.bf16.msra.mxu0 %v6157
    %7333 = vmatpush.bf16.msra.mxu0 %v6149
    %7334 = vmatpush.bf16.msra.mxu0 %v6141
    %7335 = vmatpush.bf16.msra.mxu0 %v6133
    %7336 = vmatpush.bf16.msra.mxu0 %v6125
    %7337 = vmatpush.bf16.msra.mxu0 %v6117
    %7338 = vmatpush.bf16.msra.mxu0 %v6109
    %7339 = vmatmul.bf16.gmra.mxu0 %v5001
    %v7340 = vpop.f32.mrf.mxu0
    %v7341 = vadd.f32 %v5325, %v7340
    %v7342 = vpop.f32.mrf.mxu0
    %v7343 = vadd.f32 %v5325, %v7342
    %7344 = vmatmul.bf16.gmra.mxu0 %v5005
    %v7345 = vpop.f32.mrf.mxu0
    %v7346 = vadd.f32 %v5325, %v7345
    %v7347 = vpop.f32.mrf.mxu0
    %v7348 = vadd.f32 %v5325, %v7347
    %7349 = vmatmul.bf16.gmra.mxu0 %v5009
    %v7350 = vpop.f32.mrf.mxu0
    %v7351 = vadd.f32 %v5325, %v7350
    %v7352 = vpop.f32.mrf.mxu0
    %v7353 = vadd.f32 %v5325, %v7352
    %7354 = vmatmul.bf16.gmra.mxu0 %v5013
    %v7355 = vpop.f32.mrf.mxu0
    %v7356 = vadd.f32 %v5325, %v7355
    %v7357 = vpop.f32.mrf.mxu0
    %v7358 = vadd.f32 %v5325, %v7357
    %7359 = vmatmul.bf16.gmra.mxu0 %v5017
    %v7360 = vpop.f32.mrf.mxu0
    %v7361 = vadd.f32 %v5325, %v7360
    %v7362 = vpop.f32.mrf.mxu0
    %v7363 = vadd.f32 %v5325, %v7362
    %7364 = vmatmul.bf16.gmra.mxu0 %v5021
    %v7365 = vpop.f32.mrf.mxu0
    %v7366 = vadd.f32 %v5325, %v7365
    %v7367 = vpop.f32.mrf.mxu0
    %v7368 = vadd.f32 %v5325, %v7367
    %7369 = vmatmul.bf16.gmra.mxu0 %v5025
    %v7370 = vpop.f32.mrf.mxu0
    %v7371 = vadd.f32 %v5325, %v7370
    %v7372 = vpop.f32.mrf.mxu0
    %v7373 = vadd.f32 %v5325, %v7372
    %7374 = vmatmul.bf16.gmra.mxu0 %v5029
    %v7375 = vpop.f32.mrf.mxu0
    %v7376 = vadd.f32 %v5325, %v7375
    %v7377 = vpop.f32.mrf.mxu0
    %v7378 = vadd.f32 %v5325, %v7377
    %7379 = vmatmul.bf16.gmra.mxu0 %v5033
    %v7380 = vpop.f32.mrf.mxu0
    %v7381 = vadd.f32 %v5325, %v7380
    %v7382 = vpop.f32.mrf.mxu0
    %v7383 = vadd.f32 %v5325, %v7382
    %7384 = vmatmul.bf16.gmra.mxu0 %v5037
    %v7385 = vpop.f32.mrf.mxu0
    %v7386 = vadd.f32 %v5325, %v7385
    %v7387 = vpop.f32.mrf.mxu0
    %v7388 = vadd.f32 %v5325, %v7387
    %7389 = vmatmul.bf16.gmra.mxu0 %v5041
    %v7390 = vpop.f32.mrf.mxu0
    %v7391 = vadd.f32 %v5325, %v7390
    %v7392 = vpop.f32.mrf.mxu0
    %v7393 = vadd.f32 %v5325, %v7392
    %7394 = vmatmul.bf16.gmra.mxu0 %v5045
    %v7395 = vpop.f32.mrf.mxu0
    %v7396 = vadd.f32 %v5325, %v7395
    %v7397 = vpop.f32.mrf.mxu0
    %v7398 = vadd.f32 %v5325, %v7397
    %7399 = vmatmul.bf16.gmra.mxu0 %v5049
    %v7400 = vpop.f32.mrf.mxu0
    %v7401 = vadd.f32 %v5325, %v7400
    %v7402 = vpop.f32.mrf.mxu0
    %v7403 = vadd.f32 %v5325, %v7402
    %7404 = vmatmul.bf16.gmra.mxu0 %v5053
    %v7405 = vpop.f32.mrf.mxu0
    %v7406 = vadd.f32 %v5325, %v7405
    %v7407 = vpop.f32.mrf.mxu0
    %v7408 = vadd.f32 %v5325, %v7407
    %7409 = vmatmul.bf16.gmra.mxu0 %v5057
    %v7410 = vpop.f32.mrf.mxu0
    %v7411 = vadd.f32 %v5325, %v7410
    %v7412 = vpop.f32.mrf.mxu0
    %v7413 = vadd.f32 %v5325, %v7412
    %7414 = vmatmul.bf16.gmra.mxu0 %v5061
    %v7415 = vpop.f32.mrf.mxu0
    %v7416 = vadd.f32 %v5325, %v7415
    %v7417 = vpop.f32.mrf.mxu0
    %v7418 = vadd.f32 %v5325, %v7417
    %7419 = vdwg.mxu0
    %7420 = vmatpush.bf16.msra.mxu0 %v6229
    %7421 = vmatpush.bf16.msra.mxu0 %v6221
    %7422 = vmatpush.bf16.msra.mxu0 %v6213
    %7423 = vmatpush.bf16.msra.mxu0 %v6205
    %7424 = vmatpush.bf16.msra.mxu0 %v6197
    %7425 = vmatpush.bf16.msra.mxu0 %v6189
    %7426 = vmatpush.bf16.msra.mxu0 %v6181
    %7427 = vmatpush.bf16.msra.mxu0 %v6173
    %7428 = vmatmul.bf16.gmra.mxu0 %v5002
    %v7429 = vpop.f32.mrf.mxu0
    %v7430 = vadd.f32 %v7341, %v7429
    %v7431 = vpop.f32.mrf.mxu0
    %v7432 = vadd.f32 %v7343, %v7431
    %7433 = vmatmul.bf16.gmra.mxu0 %v5006
    %v7434 = vpop.f32.mrf.mxu0
    %v7435 = vadd.f32 %v7346, %v7434
    %v7436 = vpop.f32.mrf.mxu0
    %v7437 = vadd.f32 %v7348, %v7436
    %7438 = vmatmul.bf16.gmra.mxu0 %v5010
    %v7439 = vpop.f32.mrf.mxu0
    %v7440 = vadd.f32 %v7351, %v7439
    %v7441 = vpop.f32.mrf.mxu0
    %v7442 = vadd.f32 %v7353, %v7441
    %7443 = vmatmul.bf16.gmra.mxu0 %v5014
    %v7444 = vpop.f32.mrf.mxu0
    %v7445 = vadd.f32 %v7356, %v7444
    %v7446 = vpop.f32.mrf.mxu0
    %v7447 = vadd.f32 %v7358, %v7446
    %7448 = vmatmul.bf16.gmra.mxu0 %v5018
    %v7449 = vpop.f32.mrf.mxu0
    %v7450 = vadd.f32 %v7361, %v7449
    %v7451 = vpop.f32.mrf.mxu0
    %v7452 = vadd.f32 %v7363, %v7451
    %7453 = vmatmul.bf16.gmra.mxu0 %v5022
    %v7454 = vpop.f32.mrf.mxu0
    %v7455 = vadd.f32 %v7366, %v7454
    %v7456 = vpop.f32.mrf.mxu0
    %v7457 = vadd.f32 %v7368, %v7456
    %7458 = vmatmul.bf16.gmra.mxu0 %v5026
    %v7459 = vpop.f32.mrf.mxu0
    %v7460 = vadd.f32 %v7371, %v7459
    %v7461 = vpop.f32.mrf.mxu0
    %v7462 = vadd.f32 %v7373, %v7461
    %7463 = vmatmul.bf16.gmra.mxu0 %v5030
    %v7464 = vpop.f32.mrf.mxu0
    %v7465 = vadd.f32 %v7376, %v7464
    %v7466 = vpop.f32.mrf.mxu0
    %v7467 = vadd.f32 %v7378, %v7466
    %7468 = vmatmul.bf16.gmra.mxu0 %v5034
    %v7469 = vpop.f32.mrf.mxu0
    %v7470 = vadd.f32 %v7381, %v7469
    %v7471 = vpop.f32.mrf.mxu0
    %v7472 = vadd.f32 %v7383, %v7471
    %7473 = vmatmul.bf16.gmra.mxu0 %v5038
    %v7474 = vpop.f32.mrf.mxu0
    %v7475 = vadd.f32 %v7386, %v7474
    %v7476 = vpop.f32.mrf.mxu0
    %v7477 = vadd.f32 %v7388, %v7476
    %7478 = vmatmul.bf16.gmra.mxu0 %v5042
    %v7479 = vpop.f32.mrf.mxu0
    %v7480 = vadd.f32 %v7391, %v7479
    %v7481 = vpop.f32.mrf.mxu0
    %v7482 = vadd.f32 %v7393, %v7481
    %7483 = vmatmul.bf16.gmra.mxu0 %v5046
    %v7484 = vpop.f32.mrf.mxu0
    %v7485 = vadd.f32 %v7396, %v7484
    %v7486 = vpop.f32.mrf.mxu0
    %v7487 = vadd.f32 %v7398, %v7486
    %7488 = vmatmul.bf16.gmra.mxu0 %v5050
    %v7489 = vpop.f32.mrf.mxu0
    %v7490 = vadd.f32 %v7401, %v7489
    %v7491 = vpop.f32.mrf.mxu0
    %v7492 = vadd.f32 %v7403, %v7491
    %7493 = vmatmul.bf16.gmra.mxu0 %v5054
    %v7494 = vpop.f32.mrf.mxu0
    %v7495 = vadd.f32 %v7406, %v7494
    %v7496 = vpop.f32.mrf.mxu0
    %v7497 = vadd.f32 %v7408, %v7496
    %7498 = vmatmul.bf16.gmra.mxu0 %v5058
    %v7499 = vpop.f32.mrf.mxu0
    %v7500 = vadd.f32 %v7411, %v7499
    %v7501 = vpop.f32.mrf.mxu0
    %v7502 = vadd.f32 %v7413, %v7501
    %7503 = vmatmul.bf16.gmra.mxu0 %v5062
    %v7504 = vpop.f32.mrf.mxu0
    %v7505 = vadd.f32 %v7416, %v7504
    %v7506 = vpop.f32.mrf.mxu0
    %v7507 = vadd.f32 %v7418, %v7506
    %7508 = vdwg.mxu0
    %7509 = vmatpush.bf16.msra.mxu0 %v6293
    %7510 = vmatpush.bf16.msra.mxu0 %v6285
    %7511 = vmatpush.bf16.msra.mxu0 %v6277
    %7512 = vmatpush.bf16.msra.mxu0 %v6269
    %7513 = vmatpush.bf16.msra.mxu0 %v6261
    %7514 = vmatpush.bf16.msra.mxu0 %v6253
    %7515 = vmatpush.bf16.msra.mxu0 %v6245
    %7516 = vmatpush.bf16.msra.mxu0 %v6237
    %7517 = vmatmul.bf16.gmra.mxu0 %v5003
    %v7518 = vpop.f32.mrf.mxu0
    %v7519 = vadd.f32 %v7430, %v7518
    %v7520 = vpop.f32.mrf.mxu0
    %v7521 = vadd.f32 %v7432, %v7520
    %7522 = vmatmul.bf16.gmra.mxu0 %v5007
    %v7523 = vpop.f32.mrf.mxu0
    %v7524 = vadd.f32 %v7435, %v7523
    %v7525 = vpop.f32.mrf.mxu0
    %v7526 = vadd.f32 %v7437, %v7525
    %7527 = vmatmul.bf16.gmra.mxu0 %v5011
    %v7528 = vpop.f32.mrf.mxu0
    %v7529 = vadd.f32 %v7440, %v7528
    %v7530 = vpop.f32.mrf.mxu0
    %v7531 = vadd.f32 %v7442, %v7530
    %7532 = vmatmul.bf16.gmra.mxu0 %v5015
    %v7533 = vpop.f32.mrf.mxu0
    %v7534 = vadd.f32 %v7445, %v7533
    %v7535 = vpop.f32.mrf.mxu0
    %v7536 = vadd.f32 %v7447, %v7535
    %7537 = vmatmul.bf16.gmra.mxu0 %v5019
    %v7538 = vpop.f32.mrf.mxu0
    %v7539 = vadd.f32 %v7450, %v7538
    %v7540 = vpop.f32.mrf.mxu0
    %v7541 = vadd.f32 %v7452, %v7540
    %7542 = vmatmul.bf16.gmra.mxu0 %v5023
    %v7543 = vpop.f32.mrf.mxu0
    %v7544 = vadd.f32 %v7455, %v7543
    %v7545 = vpop.f32.mrf.mxu0
    %v7546 = vadd.f32 %v7457, %v7545
    %7547 = vmatmul.bf16.gmra.mxu0 %v5027
    %v7548 = vpop.f32.mrf.mxu0
    %v7549 = vadd.f32 %v7460, %v7548
    %v7550 = vpop.f32.mrf.mxu0
    %v7551 = vadd.f32 %v7462, %v7550
    %7552 = vmatmul.bf16.gmra.mxu0 %v5031
    %v7553 = vpop.f32.mrf.mxu0
    %v7554 = vadd.f32 %v7465, %v7553
    %v7555 = vpop.f32.mrf.mxu0
    %v7556 = vadd.f32 %v7467, %v7555
    %7557 = vmatmul.bf16.gmra.mxu0 %v5035
    %v7558 = vpop.f32.mrf.mxu0
    %v7559 = vadd.f32 %v7470, %v7558
    %v7560 = vpop.f32.mrf.mxu0
    %v7561 = vadd.f32 %v7472, %v7560
    %7562 = vmatmul.bf16.gmra.mxu0 %v5039
    %v7563 = vpop.f32.mrf.mxu0
    %v7564 = vadd.f32 %v7475, %v7563
    %v7565 = vpop.f32.mrf.mxu0
    %v7566 = vadd.f32 %v7477, %v7565
    %7567 = vmatmul.bf16.gmra.mxu0 %v5043
    %v7568 = vpop.f32.mrf.mxu0
    %v7569 = vadd.f32 %v7480, %v7568
    %v7570 = vpop.f32.mrf.mxu0
    %v7571 = vadd.f32 %v7482, %v7570
    %7572 = vmatmul.bf16.gmra.mxu0 %v5047
    %v7573 = vpop.f32.mrf.mxu0
    %v7574 = vadd.f32 %v7485, %v7573
    %v7575 = vpop.f32.mrf.mxu0
    %v7576 = vadd.f32 %v7487, %v7575
    %7577 = vmatmul.bf16.gmra.mxu0 %v5051
    %v7578 = vpop.f32.mrf.mxu0
    %v7579 = vadd.f32 %v7490, %v7578
    %v7580 = vpop.f32.mrf.mxu0
    %v7581 = vadd.f32 %v7492, %v7580
    %7582 = vmatmul.bf16.gmra.mxu0 %v5055
    %v7583 = vpop.f32.mrf.mxu0
    %v7584 = vadd.f32 %v7495, %v7583
    %v7585 = vpop.f32.mrf.mxu0
    %v7586 = vadd.f32 %v7497, %v7585
    %7587 = vmatmul.bf16.gmra.mxu0 %v5059
    %v7588 = vpop.f32.mrf.mxu0
    %v7589 = vadd.f32 %v7500, %v7588
    %v7590 = vpop.f32.mrf.mxu0
    %v7591 = vadd.f32 %v7502, %v7590
    %7592 = vmatmul.bf16.gmra.mxu0 %v5063
    %v7593 = vpop.f32.mrf.mxu0
    %v7594 = vadd.f32 %v7505, %v7593
    %v7595 = vpop.f32.mrf.mxu0
    %v7596 = vadd.f32 %v7507, %v7595
    %7597 = vdwg.mxu0
    %7598 = vmatpush.bf16.msra.mxu0 %v6357
    %7599 = vmatpush.bf16.msra.mxu0 %v6349
    %7600 = vmatpush.bf16.msra.mxu0 %v6341
    %7601 = vmatpush.bf16.msra.mxu0 %v6333
    %7602 = vmatpush.bf16.msra.mxu0 %v6325
    %7603 = vmatpush.bf16.msra.mxu0 %v6317
    %7604 = vmatpush.bf16.msra.mxu0 %v6309
    %7605 = vmatpush.bf16.msra.mxu0 %v6301
    %7606 = vmatmul.bf16.gmra.mxu0 %v5004
    %v7607 = vpop.f32.mrf.mxu0
    %v7608 = vadd.f32 %v7519, %v7607
    %v7609 = vpop.f32.mrf.mxu0
    %v7610 = vadd.f32 %v7521, %v7609
    %7611 = vmatmul.bf16.gmra.mxu0 %v5008
    %v7612 = vpop.f32.mrf.mxu0
    %v7613 = vadd.f32 %v7524, %v7612
    %v7614 = vpop.f32.mrf.mxu0
    %v7615 = vadd.f32 %v7526, %v7614
    %7616 = vmatmul.bf16.gmra.mxu0 %v5012
    %v7617 = vpop.f32.mrf.mxu0
    %v7618 = vadd.f32 %v7529, %v7617
    %v7619 = vpop.f32.mrf.mxu0
    %v7620 = vadd.f32 %v7531, %v7619
    %7621 = vmatmul.bf16.gmra.mxu0 %v5016
    %v7622 = vpop.f32.mrf.mxu0
    %v7623 = vadd.f32 %v7534, %v7622
    %v7624 = vpop.f32.mrf.mxu0
    %v7625 = vadd.f32 %v7536, %v7624
    %7626 = vmatmul.bf16.gmra.mxu0 %v5020
    %v7627 = vpop.f32.mrf.mxu0
    %v7628 = vadd.f32 %v7539, %v7627
    %v7629 = vpop.f32.mrf.mxu0
    %v7630 = vadd.f32 %v7541, %v7629
    %7631 = vmatmul.bf16.gmra.mxu0 %v5024
    %v7632 = vpop.f32.mrf.mxu0
    %v7633 = vadd.f32 %v7544, %v7632
    %v7634 = vpop.f32.mrf.mxu0
    %v7635 = vadd.f32 %v7546, %v7634
    %7636 = vmatmul.bf16.gmra.mxu0 %v5028
    %v7637 = vpop.f32.mrf.mxu0
    %v7638 = vadd.f32 %v7549, %v7637
    %v7639 = vpop.f32.mrf.mxu0
    %v7640 = vadd.f32 %v7551, %v7639
    %7641 = vmatmul.bf16.gmra.mxu0 %v5032
    %v7642 = vpop.f32.mrf.mxu0
    %v7643 = vadd.f32 %v7554, %v7642
    %v7644 = vpop.f32.mrf.mxu0
    %v7645 = vadd.f32 %v7556, %v7644
    %7646 = vmatmul.bf16.gmra.mxu0 %v5036
    %v7647 = vpop.f32.mrf.mxu0
    %v7648 = vadd.f32 %v7559, %v7647
    %v7649 = vpop.f32.mrf.mxu0
    %v7650 = vadd.f32 %v7561, %v7649
    %7651 = vmatmul.bf16.gmra.mxu0 %v5040
    %v7652 = vpop.f32.mrf.mxu0
    %v7653 = vadd.f32 %v7564, %v7652
    %v7654 = vpop.f32.mrf.mxu0
    %v7655 = vadd.f32 %v7566, %v7654
    %7656 = vmatmul.bf16.gmra.mxu0 %v5044
    %v7657 = vpop.f32.mrf.mxu0
    %v7658 = vadd.f32 %v7569, %v7657
    %v7659 = vpop.f32.mrf.mxu0
    %v7660 = vadd.f32 %v7571, %v7659
    %7661 = vmatmul.bf16.gmra.mxu0 %v5048
    %v7662 = vpop.f32.mrf.mxu0
    %v7663 = vadd.f32 %v7574, %v7662
    %v7664 = vpop.f32.mrf.mxu0
    %v7665 = vadd.f32 %v7576, %v7664
    %7666 = vmatmul.bf16.gmra.mxu0 %v5052
    %v7667 = vpop.f32.mrf.mxu0
    %v7668 = vadd.f32 %v7579, %v7667
    %v7669 = vpop.f32.mrf.mxu0
    %v7670 = vadd.f32 %v7581, %v7669
    %7671 = vmatmul.bf16.gmra.mxu0 %v5056
    %v7672 = vpop.f32.mrf.mxu0
    %v7673 = vadd.f32 %v7584, %v7672
    %v7674 = vpop.f32.mrf.mxu0
    %v7675 = vadd.f32 %v7586, %v7674
    %7676 = vmatmul.bf16.gmra.mxu0 %v5060
    %v7677 = vpop.f32.mrf.mxu0
    %v7678 = vadd.f32 %v7589, %v7677
    %v7679 = vpop.f32.mrf.mxu0
    %v7680 = vadd.f32 %v7591, %v7679
    %7681 = vmatmul.bf16.gmra.mxu0 %v5064
    %v7682 = vpop.f32.mrf.mxu0
    %v7683 = vadd.f32 %v7594, %v7682
    %v7684 = vpop.f32.mrf.mxu0
    %v7685 = vadd.f32 %v7596, %v7684
    %7686 = vdwg.mxu0
    %7687 = vmatpush.bf16.msra.mxu0 %v6166
    %7688 = vmatpush.bf16.msra.mxu0 %v6158
    %7689 = vmatpush.bf16.msra.mxu0 %v6150
    %7690 = vmatpush.bf16.msra.mxu0 %v6142
    %7691 = vmatpush.bf16.msra.mxu0 %v6134
    %7692 = vmatpush.bf16.msra.mxu0 %v6126
    %7693 = vmatpush.bf16.msra.mxu0 %v6118
    %7694 = vmatpush.bf16.msra.mxu0 %v6110
    %7695 = vmatmul.bf16.gmra.mxu0 %v5001
    %v7696 = vpop.f32.mrf.mxu0
    %v7697 = vadd.f32 %v5326, %v7696
    %v7698 = vpop.f32.mrf.mxu0
    %v7699 = vadd.f32 %v5326, %v7698
    %7700 = vmatmul.bf16.gmra.mxu0 %v5005
    %v7701 = vpop.f32.mrf.mxu0
    %v7702 = vadd.f32 %v5326, %v7701
    %v7703 = vpop.f32.mrf.mxu0
    %v7704 = vadd.f32 %v5326, %v7703
    %7705 = vmatmul.bf16.gmra.mxu0 %v5009
    %v7706 = vpop.f32.mrf.mxu0
    %v7707 = vadd.f32 %v5326, %v7706
    %v7708 = vpop.f32.mrf.mxu0
    %v7709 = vadd.f32 %v5326, %v7708
    %7710 = vmatmul.bf16.gmra.mxu0 %v5013
    %v7711 = vpop.f32.mrf.mxu0
    %v7712 = vadd.f32 %v5326, %v7711
    %v7713 = vpop.f32.mrf.mxu0
    %v7714 = vadd.f32 %v5326, %v7713
    %7715 = vmatmul.bf16.gmra.mxu0 %v5017
    %v7716 = vpop.f32.mrf.mxu0
    %v7717 = vadd.f32 %v5326, %v7716
    %v7718 = vpop.f32.mrf.mxu0
    %v7719 = vadd.f32 %v5326, %v7718
    %7720 = vmatmul.bf16.gmra.mxu0 %v5021
    %v7721 = vpop.f32.mrf.mxu0
    %v7722 = vadd.f32 %v5326, %v7721
    %v7723 = vpop.f32.mrf.mxu0
    %v7724 = vadd.f32 %v5326, %v7723
    %7725 = vmatmul.bf16.gmra.mxu0 %v5025
    %v7726 = vpop.f32.mrf.mxu0
    %v7727 = vadd.f32 %v5326, %v7726
    %v7728 = vpop.f32.mrf.mxu0
    %v7729 = vadd.f32 %v5326, %v7728
    %7730 = vmatmul.bf16.gmra.mxu0 %v5029
    %v7731 = vpop.f32.mrf.mxu0
    %v7732 = vadd.f32 %v5326, %v7731
    %v7733 = vpop.f32.mrf.mxu0
    %v7734 = vadd.f32 %v5326, %v7733
    %7735 = vmatmul.bf16.gmra.mxu0 %v5033
    %v7736 = vpop.f32.mrf.mxu0
    %v7737 = vadd.f32 %v5326, %v7736
    %v7738 = vpop.f32.mrf.mxu0
    %v7739 = vadd.f32 %v5326, %v7738
    %7740 = vmatmul.bf16.gmra.mxu0 %v5037
    %v7741 = vpop.f32.mrf.mxu0
    %v7742 = vadd.f32 %v5326, %v7741
    %v7743 = vpop.f32.mrf.mxu0
    %v7744 = vadd.f32 %v5326, %v7743
    %7745 = vmatmul.bf16.gmra.mxu0 %v5041
    %v7746 = vpop.f32.mrf.mxu0
    %v7747 = vadd.f32 %v5326, %v7746
    %v7748 = vpop.f32.mrf.mxu0
    %v7749 = vadd.f32 %v5326, %v7748
    %7750 = vmatmul.bf16.gmra.mxu0 %v5045
    %v7751 = vpop.f32.mrf.mxu0
    %v7752 = vadd.f32 %v5326, %v7751
    %v7753 = vpop.f32.mrf.mxu0
    %v7754 = vadd.f32 %v5326, %v7753
    %7755 = vmatmul.bf16.gmra.mxu0 %v5049
    %v7756 = vpop.f32.mrf.mxu0
    %v7757 = vadd.f32 %v5326, %v7756
    %v7758 = vpop.f32.mrf.mxu0
    %v7759 = vadd.f32 %v5326, %v7758
    %7760 = vmatmul.bf16.gmra.mxu0 %v5053
    %v7761 = vpop.f32.mrf.mxu0
    %v7762 = vadd.f32 %v5326, %v7761
    %v7763 = vpop.f32.mrf.mxu0
    %v7764 = vadd.f32 %v5326, %v7763
    %7765 = vmatmul.bf16.gmra.mxu0 %v5057
    %v7766 = vpop.f32.mrf.mxu0
    %v7767 = vadd.f32 %v5326, %v7766
    %v7768 = vpop.f32.mrf.mxu0
    %v7769 = vadd.f32 %v5326, %v7768
    %7770 = vmatmul.bf16.gmra.mxu0 %v5061
    %v7771 = vpop.f32.mrf.mxu0
    %v7772 = vadd.f32 %v5326, %v7771
    %v7773 = vpop.f32.mrf.mxu0
    %v7774 = vadd.f32 %v5326, %v7773
    %7775 = vdwg.mxu0
    %7776 = vmatpush.bf16.msra.mxu0 %v6230
    %7777 = vmatpush.bf16.msra.mxu0 %v6222
    %7778 = vmatpush.bf16.msra.mxu0 %v6214
    %7779 = vmatpush.bf16.msra.mxu0 %v6206
    %7780 = vmatpush.bf16.msra.mxu0 %v6198
    %7781 = vmatpush.bf16.msra.mxu0 %v6190
    %7782 = vmatpush.bf16.msra.mxu0 %v6182
    %7783 = vmatpush.bf16.msra.mxu0 %v6174
    %7784 = vmatmul.bf16.gmra.mxu0 %v5002
    %v7785 = vpop.f32.mrf.mxu0
    %v7786 = vadd.f32 %v7697, %v7785
    %v7787 = vpop.f32.mrf.mxu0
    %v7788 = vadd.f32 %v7699, %v7787
    %7789 = vmatmul.bf16.gmra.mxu0 %v5006
    %v7790 = vpop.f32.mrf.mxu0
    %v7791 = vadd.f32 %v7702, %v7790
    %v7792 = vpop.f32.mrf.mxu0
    %v7793 = vadd.f32 %v7704, %v7792
    %7794 = vmatmul.bf16.gmra.mxu0 %v5010
    %v7795 = vpop.f32.mrf.mxu0
    %v7796 = vadd.f32 %v7707, %v7795
    %v7797 = vpop.f32.mrf.mxu0
    %v7798 = vadd.f32 %v7709, %v7797
    %7799 = vmatmul.bf16.gmra.mxu0 %v5014
    %v7800 = vpop.f32.mrf.mxu0
    %v7801 = vadd.f32 %v7712, %v7800
    %v7802 = vpop.f32.mrf.mxu0
    %v7803 = vadd.f32 %v7714, %v7802
    %7804 = vmatmul.bf16.gmra.mxu0 %v5018
    %v7805 = vpop.f32.mrf.mxu0
    %v7806 = vadd.f32 %v7717, %v7805
    %v7807 = vpop.f32.mrf.mxu0
    %v7808 = vadd.f32 %v7719, %v7807
    %7809 = vmatmul.bf16.gmra.mxu0 %v5022
    %v7810 = vpop.f32.mrf.mxu0
    %v7811 = vadd.f32 %v7722, %v7810
    %v7812 = vpop.f32.mrf.mxu0
    %v7813 = vadd.f32 %v7724, %v7812
    %7814 = vmatmul.bf16.gmra.mxu0 %v5026
    %v7815 = vpop.f32.mrf.mxu0
    %v7816 = vadd.f32 %v7727, %v7815
    %v7817 = vpop.f32.mrf.mxu0
    %v7818 = vadd.f32 %v7729, %v7817
    %7819 = vmatmul.bf16.gmra.mxu0 %v5030
    %v7820 = vpop.f32.mrf.mxu0
    %v7821 = vadd.f32 %v7732, %v7820
    %v7822 = vpop.f32.mrf.mxu0
    %v7823 = vadd.f32 %v7734, %v7822
    %7824 = vmatmul.bf16.gmra.mxu0 %v5034
    %v7825 = vpop.f32.mrf.mxu0
    %v7826 = vadd.f32 %v7737, %v7825
    %v7827 = vpop.f32.mrf.mxu0
    %v7828 = vadd.f32 %v7739, %v7827
    %7829 = vmatmul.bf16.gmra.mxu0 %v5038
    %v7830 = vpop.f32.mrf.mxu0
    %v7831 = vadd.f32 %v7742, %v7830
    %v7832 = vpop.f32.mrf.mxu0
    %v7833 = vadd.f32 %v7744, %v7832
    %7834 = vmatmul.bf16.gmra.mxu0 %v5042
    %v7835 = vpop.f32.mrf.mxu0
    %v7836 = vadd.f32 %v7747, %v7835
    %v7837 = vpop.f32.mrf.mxu0
    %v7838 = vadd.f32 %v7749, %v7837
    %7839 = vmatmul.bf16.gmra.mxu0 %v5046
    %v7840 = vpop.f32.mrf.mxu0
    %v7841 = vadd.f32 %v7752, %v7840
    %v7842 = vpop.f32.mrf.mxu0
    %v7843 = vadd.f32 %v7754, %v7842
    %7844 = vmatmul.bf16.gmra.mxu0 %v5050
    %v7845 = vpop.f32.mrf.mxu0
    %v7846 = vadd.f32 %v7757, %v7845
    %v7847 = vpop.f32.mrf.mxu0
    %v7848 = vadd.f32 %v7759, %v7847
    %7849 = vmatmul.bf16.gmra.mxu0 %v5054
    %v7850 = vpop.f32.mrf.mxu0
    %v7851 = vadd.f32 %v7762, %v7850
    %v7852 = vpop.f32.mrf.mxu0
    %v7853 = vadd.f32 %v7764, %v7852
    %7854 = vmatmul.bf16.gmra.mxu0 %v5058
    %v7855 = vpop.f32.mrf.mxu0
    %v7856 = vadd.f32 %v7767, %v7855
    %v7857 = vpop.f32.mrf.mxu0
    %v7858 = vadd.f32 %v7769, %v7857
    %7859 = vmatmul.bf16.gmra.mxu0 %v5062
    %v7860 = vpop.f32.mrf.mxu0
    %v7861 = vadd.f32 %v7772, %v7860
    %v7862 = vpop.f32.mrf.mxu0
    %v7863 = vadd.f32 %v7774, %v7862
    %7864 = vdwg.mxu0
    %7865 = vmatpush.bf16.msra.mxu0 %v6294
    %7866 = vmatpush.bf16.msra.mxu0 %v6286
    %7867 = vmatpush.bf16.msra.mxu0 %v6278
    %7868 = vmatpush.bf16.msra.mxu0 %v6270
    %7869 = vmatpush.bf16.msra.mxu0 %v6262
    %7870 = vmatpush.bf16.msra.mxu0 %v6254
    %7871 = vmatpush.bf16.msra.mxu0 %v6246
    %7872 = vmatpush.bf16.msra.mxu0 %v6238
    %7873 = vmatmul.bf16.gmra.mxu0 %v5003
    %v7874 = vpop.f32.mrf.mxu0
    %v7875 = vadd.f32 %v7786, %v7874
    %v7876 = vpop.f32.mrf.mxu0
    %v7877 = vadd.f32 %v7788, %v7876
    %7878 = vmatmul.bf16.gmra.mxu0 %v5007
    %v7879 = vpop.f32.mrf.mxu0
    %v7880 = vadd.f32 %v7791, %v7879
    %v7881 = vpop.f32.mrf.mxu0
    %v7882 = vadd.f32 %v7793, %v7881
    %7883 = vmatmul.bf16.gmra.mxu0 %v5011
    %v7884 = vpop.f32.mrf.mxu0
    %v7885 = vadd.f32 %v7796, %v7884
    %v7886 = vpop.f32.mrf.mxu0
    %v7887 = vadd.f32 %v7798, %v7886
    %7888 = vmatmul.bf16.gmra.mxu0 %v5015
    %v7889 = vpop.f32.mrf.mxu0
    %v7890 = vadd.f32 %v7801, %v7889
    %v7891 = vpop.f32.mrf.mxu0
    %v7892 = vadd.f32 %v7803, %v7891
    %7893 = vmatmul.bf16.gmra.mxu0 %v5019
    %v7894 = vpop.f32.mrf.mxu0
    %v7895 = vadd.f32 %v7806, %v7894
    %v7896 = vpop.f32.mrf.mxu0
    %v7897 = vadd.f32 %v7808, %v7896
    %7898 = vmatmul.bf16.gmra.mxu0 %v5023
    %v7899 = vpop.f32.mrf.mxu0
    %v7900 = vadd.f32 %v7811, %v7899
    %v7901 = vpop.f32.mrf.mxu0
    %v7902 = vadd.f32 %v7813, %v7901
    %7903 = vmatmul.bf16.gmra.mxu0 %v5027
    %v7904 = vpop.f32.mrf.mxu0
    %v7905 = vadd.f32 %v7816, %v7904
    %v7906 = vpop.f32.mrf.mxu0
    %v7907 = vadd.f32 %v7818, %v7906
    %7908 = vmatmul.bf16.gmra.mxu0 %v5031
    %v7909 = vpop.f32.mrf.mxu0
    %v7910 = vadd.f32 %v7821, %v7909
    %v7911 = vpop.f32.mrf.mxu0
    %v7912 = vadd.f32 %v7823, %v7911
    %7913 = vmatmul.bf16.gmra.mxu0 %v5035
    %v7914 = vpop.f32.mrf.mxu0
    %v7915 = vadd.f32 %v7826, %v7914
    %v7916 = vpop.f32.mrf.mxu0
    %v7917 = vadd.f32 %v7828, %v7916
    %7918 = vmatmul.bf16.gmra.mxu0 %v5039
    %v7919 = vpop.f32.mrf.mxu0
    %v7920 = vadd.f32 %v7831, %v7919
    %v7921 = vpop.f32.mrf.mxu0
    %v7922 = vadd.f32 %v7833, %v7921
    %7923 = vmatmul.bf16.gmra.mxu0 %v5043
    %v7924 = vpop.f32.mrf.mxu0
    %v7925 = vadd.f32 %v7836, %v7924
    %v7926 = vpop.f32.mrf.mxu0
    %v7927 = vadd.f32 %v7838, %v7926
    %7928 = vmatmul.bf16.gmra.mxu0 %v5047
    %v7929 = vpop.f32.mrf.mxu0
    %v7930 = vadd.f32 %v7841, %v7929
    %v7931 = vpop.f32.mrf.mxu0
    %v7932 = vadd.f32 %v7843, %v7931
    %7933 = vmatmul.bf16.gmra.mxu0 %v5051
    %v7934 = vpop.f32.mrf.mxu0
    %v7935 = vadd.f32 %v7846, %v7934
    %v7936 = vpop.f32.mrf.mxu0
    %v7937 = vadd.f32 %v7848, %v7936
    %7938 = vmatmul.bf16.gmra.mxu0 %v5055
    %v7939 = vpop.f32.mrf.mxu0
    %v7940 = vadd.f32 %v7851, %v7939
    %v7941 = vpop.f32.mrf.mxu0
    %v7942 = vadd.f32 %v7853, %v7941
    %7943 = vmatmul.bf16.gmra.mxu0 %v5059
    %v7944 = vpop.f32.mrf.mxu0
    %v7945 = vadd.f32 %v7856, %v7944
    %v7946 = vpop.f32.mrf.mxu0
    %v7947 = vadd.f32 %v7858, %v7946
    %7948 = vmatmul.bf16.gmra.mxu0 %v5063
    %v7949 = vpop.f32.mrf.mxu0
    %v7950 = vadd.f32 %v7861, %v7949
    %v7951 = vpop.f32.mrf.mxu0
    %v7952 = vadd.f32 %v7863, %v7951
    %7953 = vdwg.mxu0
    %7954 = vmatpush.bf16.msra.mxu0 %v6358
    %7955 = vmatpush.bf16.msra.mxu0 %v6350
    %7956 = vmatpush.bf16.msra.mxu0 %v6342
    %7957 = vmatpush.bf16.msra.mxu0 %v6334
    %7958 = vmatpush.bf16.msra.mxu0 %v6326
    %7959 = vmatpush.bf16.msra.mxu0 %v6318
    %7960 = vmatpush.bf16.msra.mxu0 %v6310
    %7961 = vmatpush.bf16.msra.mxu0 %v6302
    %7962 = vmatmul.bf16.gmra.mxu0 %v5004
    %v7963 = vpop.f32.mrf.mxu0
    %v7964 = vadd.f32 %v7875, %v7963
    %v7965 = vpop.f32.mrf.mxu0
    %v7966 = vadd.f32 %v7877, %v7965
    %7967 = vmatmul.bf16.gmra.mxu0 %v5008
    %v7968 = vpop.f32.mrf.mxu0
    %v7969 = vadd.f32 %v7880, %v7968
    %v7970 = vpop.f32.mrf.mxu0
    %v7971 = vadd.f32 %v7882, %v7970
    %7972 = vmatmul.bf16.gmra.mxu0 %v5012
    %v7973 = vpop.f32.mrf.mxu0
    %v7974 = vadd.f32 %v7885, %v7973
    %v7975 = vpop.f32.mrf.mxu0
    %v7976 = vadd.f32 %v7887, %v7975
    %7977 = vmatmul.bf16.gmra.mxu0 %v5016
    %v7978 = vpop.f32.mrf.mxu0
    %v7979 = vadd.f32 %v7890, %v7978
    %v7980 = vpop.f32.mrf.mxu0
    %v7981 = vadd.f32 %v7892, %v7980
    %7982 = vmatmul.bf16.gmra.mxu0 %v5020
    %v7983 = vpop.f32.mrf.mxu0
    %v7984 = vadd.f32 %v7895, %v7983
    %v7985 = vpop.f32.mrf.mxu0
    %v7986 = vadd.f32 %v7897, %v7985
    %7987 = vmatmul.bf16.gmra.mxu0 %v5024
    %v7988 = vpop.f32.mrf.mxu0
    %v7989 = vadd.f32 %v7900, %v7988
    %v7990 = vpop.f32.mrf.mxu0
    %v7991 = vadd.f32 %v7902, %v7990
    %7992 = vmatmul.bf16.gmra.mxu0 %v5028
    %v7993 = vpop.f32.mrf.mxu0
    %v7994 = vadd.f32 %v7905, %v7993
    %v7995 = vpop.f32.mrf.mxu0
    %v7996 = vadd.f32 %v7907, %v7995
    %7997 = vmatmul.bf16.gmra.mxu0 %v5032
    %v7998 = vpop.f32.mrf.mxu0
    %v7999 = vadd.f32 %v7910, %v7998
    %v8000 = vpop.f32.mrf.mxu0
    %v8001 = vadd.f32 %v7912, %v8000
    %8002 = vmatmul.bf16.gmra.mxu0 %v5036
    %v8003 = vpop.f32.mrf.mxu0
    %v8004 = vadd.f32 %v7915, %v8003
    %v8005 = vpop.f32.mrf.mxu0
    %v8006 = vadd.f32 %v7917, %v8005
    %8007 = vmatmul.bf16.gmra.mxu0 %v5040
    %v8008 = vpop.f32.mrf.mxu0
    %v8009 = vadd.f32 %v7920, %v8008
    %v8010 = vpop.f32.mrf.mxu0
    %v8011 = vadd.f32 %v7922, %v8010
    %8012 = vmatmul.bf16.gmra.mxu0 %v5044
    %v8013 = vpop.f32.mrf.mxu0
    %v8014 = vadd.f32 %v7925, %v8013
    %v8015 = vpop.f32.mrf.mxu0
    %v8016 = vadd.f32 %v7927, %v8015
    %8017 = vmatmul.bf16.gmra.mxu0 %v5048
    %v8018 = vpop.f32.mrf.mxu0
    %v8019 = vadd.f32 %v7930, %v8018
    %v8020 = vpop.f32.mrf.mxu0
    %v8021 = vadd.f32 %v7932, %v8020
    %8022 = vmatmul.bf16.gmra.mxu0 %v5052
    %v8023 = vpop.f32.mrf.mxu0
    %v8024 = vadd.f32 %v7935, %v8023
    %v8025 = vpop.f32.mrf.mxu0
    %v8026 = vadd.f32 %v7937, %v8025
    %8027 = vmatmul.bf16.gmra.mxu0 %v5056
    %v8028 = vpop.f32.mrf.mxu0
    %v8029 = vadd.f32 %v7940, %v8028
    %v8030 = vpop.f32.mrf.mxu0
    %v8031 = vadd.f32 %v7942, %v8030
    %8032 = vmatmul.bf16.gmra.mxu0 %v5060
    %v8033 = vpop.f32.mrf.mxu0
    %v8034 = vadd.f32 %v7945, %v8033
    %v8035 = vpop.f32.mrf.mxu0
    %v8036 = vadd.f32 %v7947, %v8035
    %8037 = vmatmul.bf16.gmra.mxu0 %v5064
    %v8038 = vpop.f32.mrf.mxu0
    %v8039 = vadd.f32 %v7950, %v8038
    %v8040 = vpop.f32.mrf.mxu0
    %v8041 = vadd.f32 %v7952, %v8040
    %8042 = vdwg.mxu0
    %8043 = vmatpush.bf16.msra.mxu0 %v6167
    %8044 = vmatpush.bf16.msra.mxu0 %v6159
    %8045 = vmatpush.bf16.msra.mxu0 %v6151
    %8046 = vmatpush.bf16.msra.mxu0 %v6143
    %8047 = vmatpush.bf16.msra.mxu0 %v6135
    %8048 = vmatpush.bf16.msra.mxu0 %v6127
    %8049 = vmatpush.bf16.msra.mxu0 %v6119
    %8050 = vmatpush.bf16.msra.mxu0 %v6111
    %8051 = vmatmul.bf16.gmra.mxu0 %v5001
    %v8052 = vpop.f32.mrf.mxu0
    %v8053 = vadd.f32 %v5327, %v8052
    %v8054 = vpop.f32.mrf.mxu0
    %v8055 = vadd.f32 %v5327, %v8054
    %8056 = vmatmul.bf16.gmra.mxu0 %v5005
    %v8057 = vpop.f32.mrf.mxu0
    %v8058 = vadd.f32 %v5327, %v8057
    %v8059 = vpop.f32.mrf.mxu0
    %v8060 = vadd.f32 %v5327, %v8059
    %8061 = vmatmul.bf16.gmra.mxu0 %v5009
    %v8062 = vpop.f32.mrf.mxu0
    %v8063 = vadd.f32 %v5327, %v8062
    %v8064 = vpop.f32.mrf.mxu0
    %v8065 = vadd.f32 %v5327, %v8064
    %8066 = vmatmul.bf16.gmra.mxu0 %v5013
    %v8067 = vpop.f32.mrf.mxu0
    %v8068 = vadd.f32 %v5327, %v8067
    %v8069 = vpop.f32.mrf.mxu0
    %v8070 = vadd.f32 %v5327, %v8069
    %8071 = vmatmul.bf16.gmra.mxu0 %v5017
    %v8072 = vpop.f32.mrf.mxu0
    %v8073 = vadd.f32 %v5327, %v8072
    %v8074 = vpop.f32.mrf.mxu0
    %v8075 = vadd.f32 %v5327, %v8074
    %8076 = vmatmul.bf16.gmra.mxu0 %v5021
    %v8077 = vpop.f32.mrf.mxu0
    %v8078 = vadd.f32 %v5327, %v8077
    %v8079 = vpop.f32.mrf.mxu0
    %v8080 = vadd.f32 %v5327, %v8079
    %8081 = vmatmul.bf16.gmra.mxu0 %v5025
    %v8082 = vpop.f32.mrf.mxu0
    %v8083 = vadd.f32 %v5327, %v8082
    %v8084 = vpop.f32.mrf.mxu0
    %v8085 = vadd.f32 %v5327, %v8084
    %8086 = vmatmul.bf16.gmra.mxu0 %v5029
    %v8087 = vpop.f32.mrf.mxu0
    %v8088 = vadd.f32 %v5327, %v8087
    %v8089 = vpop.f32.mrf.mxu0
    %v8090 = vadd.f32 %v5327, %v8089
    %8091 = vmatmul.bf16.gmra.mxu0 %v5033
    %v8092 = vpop.f32.mrf.mxu0
    %v8093 = vadd.f32 %v5327, %v8092
    %v8094 = vpop.f32.mrf.mxu0
    %v8095 = vadd.f32 %v5327, %v8094
    %8096 = vmatmul.bf16.gmra.mxu0 %v5037
    %v8097 = vpop.f32.mrf.mxu0
    %v8098 = vadd.f32 %v5327, %v8097
    %v8099 = vpop.f32.mrf.mxu0
    %v8100 = vadd.f32 %v5327, %v8099
    %8101 = vmatmul.bf16.gmra.mxu0 %v5041
    %v8102 = vpop.f32.mrf.mxu0
    %v8103 = vadd.f32 %v5327, %v8102
    %v8104 = vpop.f32.mrf.mxu0
    %v8105 = vadd.f32 %v5327, %v8104
    %8106 = vmatmul.bf16.gmra.mxu0 %v5045
    %v8107 = vpop.f32.mrf.mxu0
    %v8108 = vadd.f32 %v5327, %v8107
    %v8109 = vpop.f32.mrf.mxu0
    %v8110 = vadd.f32 %v5327, %v8109
    %8111 = vmatmul.bf16.gmra.mxu0 %v5049
    %v8112 = vpop.f32.mrf.mxu0
    %v8113 = vadd.f32 %v5327, %v8112
    %v8114 = vpop.f32.mrf.mxu0
    %v8115 = vadd.f32 %v5327, %v8114
    %8116 = vmatmul.bf16.gmra.mxu0 %v5053
    %v8117 = vpop.f32.mrf.mxu0
    %v8118 = vadd.f32 %v5327, %v8117
    %v8119 = vpop.f32.mrf.mxu0
    %v8120 = vadd.f32 %v5327, %v8119
    %8121 = vmatmul.bf16.gmra.mxu0 %v5057
    %v8122 = vpop.f32.mrf.mxu0
    %v8123 = vadd.f32 %v5327, %v8122
    %v8124 = vpop.f32.mrf.mxu0
    %v8125 = vadd.f32 %v5327, %v8124
    %8126 = vmatmul.bf16.gmra.mxu0 %v5061
    %v8127 = vpop.f32.mrf.mxu0
    %v8128 = vadd.f32 %v5327, %v8127
    %v8129 = vpop.f32.mrf.mxu0
    %v8130 = vadd.f32 %v5327, %v8129
    %8131 = vdwg.mxu0
    %8132 = vmatpush.bf16.msra.mxu0 %v6231
    %8133 = vmatpush.bf16.msra.mxu0 %v6223
    %8134 = vmatpush.bf16.msra.mxu0 %v6215
    %8135 = vmatpush.bf16.msra.mxu0 %v6207
    %8136 = vmatpush.bf16.msra.mxu0 %v6199
    %8137 = vmatpush.bf16.msra.mxu0 %v6191
    %8138 = vmatpush.bf16.msra.mxu0 %v6183
    %8139 = vmatpush.bf16.msra.mxu0 %v6175
    %8140 = vmatmul.bf16.gmra.mxu0 %v5002
    %v8141 = vpop.f32.mrf.mxu0
    %v8142 = vadd.f32 %v8053, %v8141
    %v8143 = vpop.f32.mrf.mxu0
    %v8144 = vadd.f32 %v8055, %v8143
    %8145 = vmatmul.bf16.gmra.mxu0 %v5006
    %v8146 = vpop.f32.mrf.mxu0
    %v8147 = vadd.f32 %v8058, %v8146
    %v8148 = vpop.f32.mrf.mxu0
    %v8149 = vadd.f32 %v8060, %v8148
    %8150 = vmatmul.bf16.gmra.mxu0 %v5010
    %v8151 = vpop.f32.mrf.mxu0
    %v8152 = vadd.f32 %v8063, %v8151
    %v8153 = vpop.f32.mrf.mxu0
    %v8154 = vadd.f32 %v8065, %v8153
    %8155 = vmatmul.bf16.gmra.mxu0 %v5014
    %v8156 = vpop.f32.mrf.mxu0
    %v8157 = vadd.f32 %v8068, %v8156
    %v8158 = vpop.f32.mrf.mxu0
    %v8159 = vadd.f32 %v8070, %v8158
    %8160 = vmatmul.bf16.gmra.mxu0 %v5018
    %v8161 = vpop.f32.mrf.mxu0
    %v8162 = vadd.f32 %v8073, %v8161
    %v8163 = vpop.f32.mrf.mxu0
    %v8164 = vadd.f32 %v8075, %v8163
    %8165 = vmatmul.bf16.gmra.mxu0 %v5022
    %v8166 = vpop.f32.mrf.mxu0
    %v8167 = vadd.f32 %v8078, %v8166
    %v8168 = vpop.f32.mrf.mxu0
    %v8169 = vadd.f32 %v8080, %v8168
    %8170 = vmatmul.bf16.gmra.mxu0 %v5026
    %v8171 = vpop.f32.mrf.mxu0
    %v8172 = vadd.f32 %v8083, %v8171
    %v8173 = vpop.f32.mrf.mxu0
    %v8174 = vadd.f32 %v8085, %v8173
    %8175 = vmatmul.bf16.gmra.mxu0 %v5030
    %v8176 = vpop.f32.mrf.mxu0
    %v8177 = vadd.f32 %v8088, %v8176
    %v8178 = vpop.f32.mrf.mxu0
    %v8179 = vadd.f32 %v8090, %v8178
    %8180 = vmatmul.bf16.gmra.mxu0 %v5034
    %v8181 = vpop.f32.mrf.mxu0
    %v8182 = vadd.f32 %v8093, %v8181
    %v8183 = vpop.f32.mrf.mxu0
    %v8184 = vadd.f32 %v8095, %v8183
    %8185 = vmatmul.bf16.gmra.mxu0 %v5038
    %v8186 = vpop.f32.mrf.mxu0
    %v8187 = vadd.f32 %v8098, %v8186
    %v8188 = vpop.f32.mrf.mxu0
    %v8189 = vadd.f32 %v8100, %v8188
    %8190 = vmatmul.bf16.gmra.mxu0 %v5042
    %v8191 = vpop.f32.mrf.mxu0
    %v8192 = vadd.f32 %v8103, %v8191
    %v8193 = vpop.f32.mrf.mxu0
    %v8194 = vadd.f32 %v8105, %v8193
    %8195 = vmatmul.bf16.gmra.mxu0 %v5046
    %v8196 = vpop.f32.mrf.mxu0
    %v8197 = vadd.f32 %v8108, %v8196
    %v8198 = vpop.f32.mrf.mxu0
    %v8199 = vadd.f32 %v8110, %v8198
    %8200 = vmatmul.bf16.gmra.mxu0 %v5050
    %v8201 = vpop.f32.mrf.mxu0
    %v8202 = vadd.f32 %v8113, %v8201
    %v8203 = vpop.f32.mrf.mxu0
    %v8204 = vadd.f32 %v8115, %v8203
    %8205 = vmatmul.bf16.gmra.mxu0 %v5054
    %v8206 = vpop.f32.mrf.mxu0
    %v8207 = vadd.f32 %v8118, %v8206
    %v8208 = vpop.f32.mrf.mxu0
    %v8209 = vadd.f32 %v8120, %v8208
    %8210 = vmatmul.bf16.gmra.mxu0 %v5058
    %v8211 = vpop.f32.mrf.mxu0
    %v8212 = vadd.f32 %v8123, %v8211
    %v8213 = vpop.f32.mrf.mxu0
    %v8214 = vadd.f32 %v8125, %v8213
    %8215 = vmatmul.bf16.gmra.mxu0 %v5062
    %v8216 = vpop.f32.mrf.mxu0
    %v8217 = vadd.f32 %v8128, %v8216
    %v8218 = vpop.f32.mrf.mxu0
    %v8219 = vadd.f32 %v8130, %v8218
    %8220 = vdwg.mxu0
    %8221 = vmatpush.bf16.msra.mxu0 %v6295
    %8222 = vmatpush.bf16.msra.mxu0 %v6287
    %8223 = vmatpush.bf16.msra.mxu0 %v6279
    %8224 = vmatpush.bf16.msra.mxu0 %v6271
    %8225 = vmatpush.bf16.msra.mxu0 %v6263
    %8226 = vmatpush.bf16.msra.mxu0 %v6255
    %8227 = vmatpush.bf16.msra.mxu0 %v6247
    %8228 = vmatpush.bf16.msra.mxu0 %v6239
    %8229 = vmatmul.bf16.gmra.mxu0 %v5003
    %v8230 = vpop.f32.mrf.mxu0
    %v8231 = vadd.f32 %v8142, %v8230
    %v8232 = vpop.f32.mrf.mxu0
    %v8233 = vadd.f32 %v8144, %v8232
    %8234 = vmatmul.bf16.gmra.mxu0 %v5007
    %v8235 = vpop.f32.mrf.mxu0
    %v8236 = vadd.f32 %v8147, %v8235
    %v8237 = vpop.f32.mrf.mxu0
    %v8238 = vadd.f32 %v8149, %v8237
    %8239 = vmatmul.bf16.gmra.mxu0 %v5011
    %v8240 = vpop.f32.mrf.mxu0
    %v8241 = vadd.f32 %v8152, %v8240
    %v8242 = vpop.f32.mrf.mxu0
    %v8243 = vadd.f32 %v8154, %v8242
    %8244 = vmatmul.bf16.gmra.mxu0 %v5015
    %v8245 = vpop.f32.mrf.mxu0
    %v8246 = vadd.f32 %v8157, %v8245
    %v8247 = vpop.f32.mrf.mxu0
    %v8248 = vadd.f32 %v8159, %v8247
    %8249 = vmatmul.bf16.gmra.mxu0 %v5019
    %v8250 = vpop.f32.mrf.mxu0
    %v8251 = vadd.f32 %v8162, %v8250
    %v8252 = vpop.f32.mrf.mxu0
    %v8253 = vadd.f32 %v8164, %v8252
    %8254 = vmatmul.bf16.gmra.mxu0 %v5023
    %v8255 = vpop.f32.mrf.mxu0
    %v8256 = vadd.f32 %v8167, %v8255
    %v8257 = vpop.f32.mrf.mxu0
    %v8258 = vadd.f32 %v8169, %v8257
    %8259 = vmatmul.bf16.gmra.mxu0 %v5027
    %v8260 = vpop.f32.mrf.mxu0
    %v8261 = vadd.f32 %v8172, %v8260
    %v8262 = vpop.f32.mrf.mxu0
    %v8263 = vadd.f32 %v8174, %v8262
    %8264 = vmatmul.bf16.gmra.mxu0 %v5031
    %v8265 = vpop.f32.mrf.mxu0
    %v8266 = vadd.f32 %v8177, %v8265
    %v8267 = vpop.f32.mrf.mxu0
    %v8268 = vadd.f32 %v8179, %v8267
    %8269 = vmatmul.bf16.gmra.mxu0 %v5035
    %v8270 = vpop.f32.mrf.mxu0
    %v8271 = vadd.f32 %v8182, %v8270
    %v8272 = vpop.f32.mrf.mxu0
    %v8273 = vadd.f32 %v8184, %v8272
    %8274 = vmatmul.bf16.gmra.mxu0 %v5039
    %v8275 = vpop.f32.mrf.mxu0
    %v8276 = vadd.f32 %v8187, %v8275
    %v8277 = vpop.f32.mrf.mxu0
    %v8278 = vadd.f32 %v8189, %v8277
    %8279 = vmatmul.bf16.gmra.mxu0 %v5043
    %v8280 = vpop.f32.mrf.mxu0
    %v8281 = vadd.f32 %v8192, %v8280
    %v8282 = vpop.f32.mrf.mxu0
    %v8283 = vadd.f32 %v8194, %v8282
    %8284 = vmatmul.bf16.gmra.mxu0 %v5047
    %v8285 = vpop.f32.mrf.mxu0
    %v8286 = vadd.f32 %v8197, %v8285
    %v8287 = vpop.f32.mrf.mxu0
    %v8288 = vadd.f32 %v8199, %v8287
    %8289 = vmatmul.bf16.gmra.mxu0 %v5051
    %v8290 = vpop.f32.mrf.mxu0
    %v8291 = vadd.f32 %v8202, %v8290
    %v8292 = vpop.f32.mrf.mxu0
    %v8293 = vadd.f32 %v8204, %v8292
    %8294 = vmatmul.bf16.gmra.mxu0 %v5055
    %v8295 = vpop.f32.mrf.mxu0
    %v8296 = vadd.f32 %v8207, %v8295
    %v8297 = vpop.f32.mrf.mxu0
    %v8298 = vadd.f32 %v8209, %v8297
    %8299 = vmatmul.bf16.gmra.mxu0 %v5059
    %v8300 = vpop.f32.mrf.mxu0
    %v8301 = vadd.f32 %v8212, %v8300
    %v8302 = vpop.f32.mrf.mxu0
    %v8303 = vadd.f32 %v8214, %v8302
    %8304 = vmatmul.bf16.gmra.mxu0 %v5063
    %v8305 = vpop.f32.mrf.mxu0
    %v8306 = vadd.f32 %v8217, %v8305
    %v8307 = vpop.f32.mrf.mxu0
    %v8308 = vadd.f32 %v8219, %v8307
    %8309 = vdwg.mxu0
    %8310 = vmatpush.bf16.msra.mxu0 %v6359
    %8311 = vmatpush.bf16.msra.mxu0 %v6351
    %8312 = vmatpush.bf16.msra.mxu0 %v6343
    %8313 = vmatpush.bf16.msra.mxu0 %v6335
    %8314 = vmatpush.bf16.msra.mxu0 %v6327
    %8315 = vmatpush.bf16.msra.mxu0 %v6319
    %8316 = vmatpush.bf16.msra.mxu0 %v6311
    %8317 = vmatpush.bf16.msra.mxu0 %v6303
    %8318 = vmatmul.bf16.gmra.mxu0 %v5004
    %v8319 = vpop.f32.mrf.mxu0
    %v8320 = vadd.f32 %v8231, %v8319
    %v8321 = vpop.f32.mrf.mxu0
    %v8322 = vadd.f32 %v8233, %v8321
    %8323 = vmatmul.bf16.gmra.mxu0 %v5008
    %v8324 = vpop.f32.mrf.mxu0
    %v8325 = vadd.f32 %v8236, %v8324
    %v8326 = vpop.f32.mrf.mxu0
    %v8327 = vadd.f32 %v8238, %v8326
    %8328 = vmatmul.bf16.gmra.mxu0 %v5012
    %v8329 = vpop.f32.mrf.mxu0
    %v8330 = vadd.f32 %v8241, %v8329
    %v8331 = vpop.f32.mrf.mxu0
    %v8332 = vadd.f32 %v8243, %v8331
    %8333 = vmatmul.bf16.gmra.mxu0 %v5016
    %v8334 = vpop.f32.mrf.mxu0
    %v8335 = vadd.f32 %v8246, %v8334
    %v8336 = vpop.f32.mrf.mxu0
    %v8337 = vadd.f32 %v8248, %v8336
    %8338 = vmatmul.bf16.gmra.mxu0 %v5020
    %v8339 = vpop.f32.mrf.mxu0
    %v8340 = vadd.f32 %v8251, %v8339
    %v8341 = vpop.f32.mrf.mxu0
    %v8342 = vadd.f32 %v8253, %v8341
    %8343 = vmatmul.bf16.gmra.mxu0 %v5024
    %v8344 = vpop.f32.mrf.mxu0
    %v8345 = vadd.f32 %v8256, %v8344
    %v8346 = vpop.f32.mrf.mxu0
    %v8347 = vadd.f32 %v8258, %v8346
    %8348 = vmatmul.bf16.gmra.mxu0 %v5028
    %v8349 = vpop.f32.mrf.mxu0
    %v8350 = vadd.f32 %v8261, %v8349
    %v8351 = vpop.f32.mrf.mxu0
    %v8352 = vadd.f32 %v8263, %v8351
    %8353 = vmatmul.bf16.gmra.mxu0 %v5032
    %v8354 = vpop.f32.mrf.mxu0
    %v8355 = vadd.f32 %v8266, %v8354
    %v8356 = vpop.f32.mrf.mxu0
    %v8357 = vadd.f32 %v8268, %v8356
    %8358 = vmatmul.bf16.gmra.mxu0 %v5036
    %v8359 = vpop.f32.mrf.mxu0
    %v8360 = vadd.f32 %v8271, %v8359
    %v8361 = vpop.f32.mrf.mxu0
    %v8362 = vadd.f32 %v8273, %v8361
    %8363 = vmatmul.bf16.gmra.mxu0 %v5040
    %v8364 = vpop.f32.mrf.mxu0
    %v8365 = vadd.f32 %v8276, %v8364
    %v8366 = vpop.f32.mrf.mxu0
    %v8367 = vadd.f32 %v8278, %v8366
    %8368 = vmatmul.bf16.gmra.mxu0 %v5044
    %v8369 = vpop.f32.mrf.mxu0
    %v8370 = vadd.f32 %v8281, %v8369
    %v8371 = vpop.f32.mrf.mxu0
    %v8372 = vadd.f32 %v8283, %v8371
    %8373 = vmatmul.bf16.gmra.mxu0 %v5048
    %v8374 = vpop.f32.mrf.mxu0
    %v8375 = vadd.f32 %v8286, %v8374
    %v8376 = vpop.f32.mrf.mxu0
    %v8377 = vadd.f32 %v8288, %v8376
    %8378 = vmatmul.bf16.gmra.mxu0 %v5052
    %v8379 = vpop.f32.mrf.mxu0
    %v8380 = vadd.f32 %v8291, %v8379
    %v8381 = vpop.f32.mrf.mxu0
    %v8382 = vadd.f32 %v8293, %v8381
    %8383 = vmatmul.bf16.gmra.mxu0 %v5056
    %v8384 = vpop.f32.mrf.mxu0
    %v8385 = vadd.f32 %v8296, %v8384
    %v8386 = vpop.f32.mrf.mxu0
    %v8387 = vadd.f32 %v8298, %v8386
    %8388 = vmatmul.bf16.gmra.mxu0 %v5060
    %v8389 = vpop.f32.mrf.mxu0
    %v8390 = vadd.f32 %v8301, %v8389
    %v8391 = vpop.f32.mrf.mxu0
    %v8392 = vadd.f32 %v8303, %v8391
    %8393 = vmatmul.bf16.gmra.mxu0 %v5064
    %v8394 = vpop.f32.mrf.mxu0
    %v8395 = vadd.f32 %v8306, %v8394
    %v8396 = vpop.f32.mrf.mxu0
    %v8397 = vadd.f32 %v8308, %v8396
    %8398 = vdwg.mxu0
    %8399 = vmatpush.bf16.msra.mxu0 %v6168
    %8400 = vmatpush.bf16.msra.mxu0 %v6160
    %8401 = vmatpush.bf16.msra.mxu0 %v6152
    %8402 = vmatpush.bf16.msra.mxu0 %v6144
    %8403 = vmatpush.bf16.msra.mxu0 %v6136
    %8404 = vmatpush.bf16.msra.mxu0 %v6128
    %8405 = vmatpush.bf16.msra.mxu0 %v6120
    %8406 = vmatpush.bf16.msra.mxu0 %v6112
    %8407 = vmatmul.bf16.gmra.mxu0 %v5001
    %v8408 = vpop.f32.mrf.mxu0
    %v8409 = vadd.f32 %v5328, %v8408
    %v8410 = vpop.f32.mrf.mxu0
    %v8411 = vadd.f32 %v5328, %v8410
    %8412 = vmatmul.bf16.gmra.mxu0 %v5005
    %v8413 = vpop.f32.mrf.mxu0
    %v8414 = vadd.f32 %v5328, %v8413
    %v8415 = vpop.f32.mrf.mxu0
    %v8416 = vadd.f32 %v5328, %v8415
    %8417 = vmatmul.bf16.gmra.mxu0 %v5009
    %v8418 = vpop.f32.mrf.mxu0
    %v8419 = vadd.f32 %v5328, %v8418
    %v8420 = vpop.f32.mrf.mxu0
    %v8421 = vadd.f32 %v5328, %v8420
    %8422 = vmatmul.bf16.gmra.mxu0 %v5013
    %v8423 = vpop.f32.mrf.mxu0
    %v8424 = vadd.f32 %v5328, %v8423
    %v8425 = vpop.f32.mrf.mxu0
    %v8426 = vadd.f32 %v5328, %v8425
    %8427 = vmatmul.bf16.gmra.mxu0 %v5017
    %v8428 = vpop.f32.mrf.mxu0
    %v8429 = vadd.f32 %v5328, %v8428
    %v8430 = vpop.f32.mrf.mxu0
    %v8431 = vadd.f32 %v5328, %v8430
    %8432 = vmatmul.bf16.gmra.mxu0 %v5021
    %v8433 = vpop.f32.mrf.mxu0
    %v8434 = vadd.f32 %v5328, %v8433
    %v8435 = vpop.f32.mrf.mxu0
    %v8436 = vadd.f32 %v5328, %v8435
    %8437 = vmatmul.bf16.gmra.mxu0 %v5025
    %v8438 = vpop.f32.mrf.mxu0
    %v8439 = vadd.f32 %v5328, %v8438
    %v8440 = vpop.f32.mrf.mxu0
    %v8441 = vadd.f32 %v5328, %v8440
    %8442 = vmatmul.bf16.gmra.mxu0 %v5029
    %v8443 = vpop.f32.mrf.mxu0
    %v8444 = vadd.f32 %v5328, %v8443
    %v8445 = vpop.f32.mrf.mxu0
    %v8446 = vadd.f32 %v5328, %v8445
    %8447 = vmatmul.bf16.gmra.mxu0 %v5033
    %v8448 = vpop.f32.mrf.mxu0
    %v8449 = vadd.f32 %v5328, %v8448
    %v8450 = vpop.f32.mrf.mxu0
    %v8451 = vadd.f32 %v5328, %v8450
    %8452 = vmatmul.bf16.gmra.mxu0 %v5037
    %v8453 = vpop.f32.mrf.mxu0
    %v8454 = vadd.f32 %v5328, %v8453
    %v8455 = vpop.f32.mrf.mxu0
    %v8456 = vadd.f32 %v5328, %v8455
    %8457 = vmatmul.bf16.gmra.mxu0 %v5041
    %v8458 = vpop.f32.mrf.mxu0
    %v8459 = vadd.f32 %v5328, %v8458
    %v8460 = vpop.f32.mrf.mxu0
    %v8461 = vadd.f32 %v5328, %v8460
    %8462 = vmatmul.bf16.gmra.mxu0 %v5045
    %v8463 = vpop.f32.mrf.mxu0
    %v8464 = vadd.f32 %v5328, %v8463
    %v8465 = vpop.f32.mrf.mxu0
    %v8466 = vadd.f32 %v5328, %v8465
    %8467 = vmatmul.bf16.gmra.mxu0 %v5049
    %v8468 = vpop.f32.mrf.mxu0
    %v8469 = vadd.f32 %v5328, %v8468
    %v8470 = vpop.f32.mrf.mxu0
    %v8471 = vadd.f32 %v5328, %v8470
    %8472 = vmatmul.bf16.gmra.mxu0 %v5053
    %v8473 = vpop.f32.mrf.mxu0
    %v8474 = vadd.f32 %v5328, %v8473
    %v8475 = vpop.f32.mrf.mxu0
    %v8476 = vadd.f32 %v5328, %v8475
    %8477 = vmatmul.bf16.gmra.mxu0 %v5057
    %v8478 = vpop.f32.mrf.mxu0
    %v8479 = vadd.f32 %v5328, %v8478
    %v8480 = vpop.f32.mrf.mxu0
    %v8481 = vadd.f32 %v5328, %v8480
    %8482 = vmatmul.bf16.gmra.mxu0 %v5061
    %v8483 = vpop.f32.mrf.mxu0
    %v8484 = vadd.f32 %v5328, %v8483
    %v8485 = vpop.f32.mrf.mxu0
    %v8486 = vadd.f32 %v5328, %v8485
    %8487 = vdwg.mxu0
    %8488 = vmatpush.bf16.msra.mxu0 %v6232
    %8489 = vmatpush.bf16.msra.mxu0 %v6224
    %8490 = vmatpush.bf16.msra.mxu0 %v6216
    %8491 = vmatpush.bf16.msra.mxu0 %v6208
    %8492 = vmatpush.bf16.msra.mxu0 %v6200
    %8493 = vmatpush.bf16.msra.mxu0 %v6192
    %8494 = vmatpush.bf16.msra.mxu0 %v6184
    %8495 = vmatpush.bf16.msra.mxu0 %v6176
    %8496 = vmatmul.bf16.gmra.mxu0 %v5002
    %v8497 = vpop.f32.mrf.mxu0
    %v8498 = vadd.f32 %v8409, %v8497
    %v8499 = vpop.f32.mrf.mxu0
    %v8500 = vadd.f32 %v8411, %v8499
    %8501 = vmatmul.bf16.gmra.mxu0 %v5006
    %v8502 = vpop.f32.mrf.mxu0
    %v8503 = vadd.f32 %v8414, %v8502
    %v8504 = vpop.f32.mrf.mxu0
    %v8505 = vadd.f32 %v8416, %v8504
    %8506 = vmatmul.bf16.gmra.mxu0 %v5010
    %v8507 = vpop.f32.mrf.mxu0
    %v8508 = vadd.f32 %v8419, %v8507
    %v8509 = vpop.f32.mrf.mxu0
    %v8510 = vadd.f32 %v8421, %v8509
    %8511 = vmatmul.bf16.gmra.mxu0 %v5014
    %v8512 = vpop.f32.mrf.mxu0
    %v8513 = vadd.f32 %v8424, %v8512
    %v8514 = vpop.f32.mrf.mxu0
    %v8515 = vadd.f32 %v8426, %v8514
    %8516 = vmatmul.bf16.gmra.mxu0 %v5018
    %v8517 = vpop.f32.mrf.mxu0
    %v8518 = vadd.f32 %v8429, %v8517
    %v8519 = vpop.f32.mrf.mxu0
    %v8520 = vadd.f32 %v8431, %v8519
    %8521 = vmatmul.bf16.gmra.mxu0 %v5022
    %v8522 = vpop.f32.mrf.mxu0
    %v8523 = vadd.f32 %v8434, %v8522
    %v8524 = vpop.f32.mrf.mxu0
    %v8525 = vadd.f32 %v8436, %v8524
    %8526 = vmatmul.bf16.gmra.mxu0 %v5026
    %v8527 = vpop.f32.mrf.mxu0
    %v8528 = vadd.f32 %v8439, %v8527
    %v8529 = vpop.f32.mrf.mxu0
    %v8530 = vadd.f32 %v8441, %v8529
    %8531 = vmatmul.bf16.gmra.mxu0 %v5030
    %v8532 = vpop.f32.mrf.mxu0
    %v8533 = vadd.f32 %v8444, %v8532
    %v8534 = vpop.f32.mrf.mxu0
    %v8535 = vadd.f32 %v8446, %v8534
    %8536 = vmatmul.bf16.gmra.mxu0 %v5034
    %v8537 = vpop.f32.mrf.mxu0
    %v8538 = vadd.f32 %v8449, %v8537
    %v8539 = vpop.f32.mrf.mxu0
    %v8540 = vadd.f32 %v8451, %v8539
    %8541 = vmatmul.bf16.gmra.mxu0 %v5038
    %v8542 = vpop.f32.mrf.mxu0
    %v8543 = vadd.f32 %v8454, %v8542
    %v8544 = vpop.f32.mrf.mxu0
    %v8545 = vadd.f32 %v8456, %v8544
    %8546 = vmatmul.bf16.gmra.mxu0 %v5042
    %v8547 = vpop.f32.mrf.mxu0
    %v8548 = vadd.f32 %v8459, %v8547
    %v8549 = vpop.f32.mrf.mxu0
    %v8550 = vadd.f32 %v8461, %v8549
    %8551 = vmatmul.bf16.gmra.mxu0 %v5046
    %v8552 = vpop.f32.mrf.mxu0
    %v8553 = vadd.f32 %v8464, %v8552
    %v8554 = vpop.f32.mrf.mxu0
    %v8555 = vadd.f32 %v8466, %v8554
    %8556 = vmatmul.bf16.gmra.mxu0 %v5050
    %v8557 = vpop.f32.mrf.mxu0
    %v8558 = vadd.f32 %v8469, %v8557
    %v8559 = vpop.f32.mrf.mxu0
    %v8560 = vadd.f32 %v8471, %v8559
    %8561 = vmatmul.bf16.gmra.mxu0 %v5054
    %v8562 = vpop.f32.mrf.mxu0
    %v8563 = vadd.f32 %v8474, %v8562
    %v8564 = vpop.f32.mrf.mxu0
    %v8565 = vadd.f32 %v8476, %v8564
    %8566 = vmatmul.bf16.gmra.mxu0 %v5058
    %v8567 = vpop.f32.mrf.mxu0
    %v8568 = vadd.f32 %v8479, %v8567
    %v8569 = vpop.f32.mrf.mxu0
    %v8570 = vadd.f32 %v8481, %v8569
    %8571 = vmatmul.bf16.gmra.mxu0 %v5062
    %v8572 = vpop.f32.mrf.mxu0
    %v8573 = vadd.f32 %v8484, %v8572
    %v8574 = vpop.f32.mrf.mxu0
    %v8575 = vadd.f32 %v8486, %v8574
    %8576 = vdwg.mxu0
    %8577 = vmatpush.bf16.msra.mxu0 %v6296
    %8578 = vmatpush.bf16.msra.mxu0 %v6288
    %8579 = vmatpush.bf16.msra.mxu0 %v6280
    %8580 = vmatpush.bf16.msra.mxu0 %v6272
    %8581 = vmatpush.bf16.msra.mxu0 %v6264
    %8582 = vmatpush.bf16.msra.mxu0 %v6256
    %8583 = vmatpush.bf16.msra.mxu0 %v6248
    %8584 = vmatpush.bf16.msra.mxu0 %v6240
    %8585 = vmatmul.bf16.gmra.mxu0 %v5003
    %v8586 = vpop.f32.mrf.mxu0
    %v8587 = vadd.f32 %v8498, %v8586
    %v8588 = vpop.f32.mrf.mxu0
    %v8589 = vadd.f32 %v8500, %v8588
    %8590 = vmatmul.bf16.gmra.mxu0 %v5007
    %v8591 = vpop.f32.mrf.mxu0
    %v8592 = vadd.f32 %v8503, %v8591
    %v8593 = vpop.f32.mrf.mxu0
    %v8594 = vadd.f32 %v8505, %v8593
    %8595 = vmatmul.bf16.gmra.mxu0 %v5011
    %v8596 = vpop.f32.mrf.mxu0
    %v8597 = vadd.f32 %v8508, %v8596
    %v8598 = vpop.f32.mrf.mxu0
    %v8599 = vadd.f32 %v8510, %v8598
    %8600 = vmatmul.bf16.gmra.mxu0 %v5015
    %v8601 = vpop.f32.mrf.mxu0
    %v8602 = vadd.f32 %v8513, %v8601
    %v8603 = vpop.f32.mrf.mxu0
    %v8604 = vadd.f32 %v8515, %v8603
    %8605 = vmatmul.bf16.gmra.mxu0 %v5019
    %v8606 = vpop.f32.mrf.mxu0
    %v8607 = vadd.f32 %v8518, %v8606
    %v8608 = vpop.f32.mrf.mxu0
    %v8609 = vadd.f32 %v8520, %v8608
    %8610 = vmatmul.bf16.gmra.mxu0 %v5023
    %v8611 = vpop.f32.mrf.mxu0
    %v8612 = vadd.f32 %v8523, %v8611
    %v8613 = vpop.f32.mrf.mxu0
    %v8614 = vadd.f32 %v8525, %v8613
    %8615 = vmatmul.bf16.gmra.mxu0 %v5027
    %v8616 = vpop.f32.mrf.mxu0
    %v8617 = vadd.f32 %v8528, %v8616
    %v8618 = vpop.f32.mrf.mxu0
    %v8619 = vadd.f32 %v8530, %v8618
    %8620 = vmatmul.bf16.gmra.mxu0 %v5031
    %v8621 = vpop.f32.mrf.mxu0
    %v8622 = vadd.f32 %v8533, %v8621
    %v8623 = vpop.f32.mrf.mxu0
    %v8624 = vadd.f32 %v8535, %v8623
    %8625 = vmatmul.bf16.gmra.mxu0 %v5035
    %v8626 = vpop.f32.mrf.mxu0
    %v8627 = vadd.f32 %v8538, %v8626
    %v8628 = vpop.f32.mrf.mxu0
    %v8629 = vadd.f32 %v8540, %v8628
    %8630 = vmatmul.bf16.gmra.mxu0 %v5039
    %v8631 = vpop.f32.mrf.mxu0
    %v8632 = vadd.f32 %v8543, %v8631
    %v8633 = vpop.f32.mrf.mxu0
    %v8634 = vadd.f32 %v8545, %v8633
    %8635 = vmatmul.bf16.gmra.mxu0 %v5043
    %v8636 = vpop.f32.mrf.mxu0
    %v8637 = vadd.f32 %v8548, %v8636
    %v8638 = vpop.f32.mrf.mxu0
    %v8639 = vadd.f32 %v8550, %v8638
    %8640 = vmatmul.bf16.gmra.mxu0 %v5047
    %v8641 = vpop.f32.mrf.mxu0
    %v8642 = vadd.f32 %v8553, %v8641
    %v8643 = vpop.f32.mrf.mxu0
    %v8644 = vadd.f32 %v8555, %v8643
    %8645 = vmatmul.bf16.gmra.mxu0 %v5051
    %v8646 = vpop.f32.mrf.mxu0
    %v8647 = vadd.f32 %v8558, %v8646
    %v8648 = vpop.f32.mrf.mxu0
    %v8649 = vadd.f32 %v8560, %v8648
    %8650 = vmatmul.bf16.gmra.mxu0 %v5055
    %v8651 = vpop.f32.mrf.mxu0
    %v8652 = vadd.f32 %v8563, %v8651
    %v8653 = vpop.f32.mrf.mxu0
    %v8654 = vadd.f32 %v8565, %v8653
    %8655 = vmatmul.bf16.gmra.mxu0 %v5059
    %v8656 = vpop.f32.mrf.mxu0
    %v8657 = vadd.f32 %v8568, %v8656
    %v8658 = vpop.f32.mrf.mxu0
    %v8659 = vadd.f32 %v8570, %v8658
    %8660 = vmatmul.bf16.gmra.mxu0 %v5063
    %v8661 = vpop.f32.mrf.mxu0
    %v8662 = vadd.f32 %v8573, %v8661
    %v8663 = vpop.f32.mrf.mxu0
    %v8664 = vadd.f32 %v8575, %v8663
    %8665 = vdwg.mxu0
    %8666 = vmatpush.bf16.msra.mxu0 %v6360
    %8667 = vmatpush.bf16.msra.mxu0 %v6352
    %8668 = vmatpush.bf16.msra.mxu0 %v6344
    %8669 = vmatpush.bf16.msra.mxu0 %v6336
    %8670 = vmatpush.bf16.msra.mxu0 %v6328
    %8671 = vmatpush.bf16.msra.mxu0 %v6320
    %8672 = vmatpush.bf16.msra.mxu0 %v6312
    %8673 = vmatpush.bf16.msra.mxu0 %v6304
    %8674 = vmatmul.bf16.gmra.mxu0 %v5004
    %v8675 = vpop.f32.mrf.mxu0
    %v8676 = vadd.f32 %v8587, %v8675
    %v8677 = vpop.f32.mrf.mxu0
    %v8678 = vadd.f32 %v8589, %v8677
    %8679 = vmatmul.bf16.gmra.mxu0 %v5008
    %v8680 = vpop.f32.mrf.mxu0
    %v8681 = vadd.f32 %v8592, %v8680
    %v8682 = vpop.f32.mrf.mxu0
    %v8683 = vadd.f32 %v8594, %v8682
    %8684 = vmatmul.bf16.gmra.mxu0 %v5012
    %v8685 = vpop.f32.mrf.mxu0
    %v8686 = vadd.f32 %v8597, %v8685
    %v8687 = vpop.f32.mrf.mxu0
    %v8688 = vadd.f32 %v8599, %v8687
    %8689 = vmatmul.bf16.gmra.mxu0 %v5016
    %v8690 = vpop.f32.mrf.mxu0
    %v8691 = vadd.f32 %v8602, %v8690
    %v8692 = vpop.f32.mrf.mxu0
    %v8693 = vadd.f32 %v8604, %v8692
    %8694 = vmatmul.bf16.gmra.mxu0 %v5020
    %v8695 = vpop.f32.mrf.mxu0
    %v8696 = vadd.f32 %v8607, %v8695
    %v8697 = vpop.f32.mrf.mxu0
    %v8698 = vadd.f32 %v8609, %v8697
    %8699 = vmatmul.bf16.gmra.mxu0 %v5024
    %v8700 = vpop.f32.mrf.mxu0
    %v8701 = vadd.f32 %v8612, %v8700
    %v8702 = vpop.f32.mrf.mxu0
    %v8703 = vadd.f32 %v8614, %v8702
    %8704 = vmatmul.bf16.gmra.mxu0 %v5028
    %v8705 = vpop.f32.mrf.mxu0
    %v8706 = vadd.f32 %v8617, %v8705
    %v8707 = vpop.f32.mrf.mxu0
    %v8708 = vadd.f32 %v8619, %v8707
    %8709 = vmatmul.bf16.gmra.mxu0 %v5032
    %v8710 = vpop.f32.mrf.mxu0
    %v8711 = vadd.f32 %v8622, %v8710
    %v8712 = vpop.f32.mrf.mxu0
    %v8713 = vadd.f32 %v8624, %v8712
    %8714 = vmatmul.bf16.gmra.mxu0 %v5036
    %v8715 = vpop.f32.mrf.mxu0
    %v8716 = vadd.f32 %v8627, %v8715
    %v8717 = vpop.f32.mrf.mxu0
    %v8718 = vadd.f32 %v8629, %v8717
    %8719 = vmatmul.bf16.gmra.mxu0 %v5040
    %v8720 = vpop.f32.mrf.mxu0
    %v8721 = vadd.f32 %v8632, %v8720
    %v8722 = vpop.f32.mrf.mxu0
    %v8723 = vadd.f32 %v8634, %v8722
    %8724 = vmatmul.bf16.gmra.mxu0 %v5044
    %v8725 = vpop.f32.mrf.mxu0
    %v8726 = vadd.f32 %v8637, %v8725
    %v8727 = vpop.f32.mrf.mxu0
    %v8728 = vadd.f32 %v8639, %v8727
    %8729 = vmatmul.bf16.gmra.mxu0 %v5048
    %v8730 = vpop.f32.mrf.mxu0
    %v8731 = vadd.f32 %v8642, %v8730
    %v8732 = vpop.f32.mrf.mxu0
    %v8733 = vadd.f32 %v8644, %v8732
    %8734 = vmatmul.bf16.gmra.mxu0 %v5052
    %v8735 = vpop.f32.mrf.mxu0
    %v8736 = vadd.f32 %v8647, %v8735
    %v8737 = vpop.f32.mrf.mxu0
    %v8738 = vadd.f32 %v8649, %v8737
    %8739 = vmatmul.bf16.gmra.mxu0 %v5056
    %v8740 = vpop.f32.mrf.mxu0
    %v8741 = vadd.f32 %v8652, %v8740
    %v8742 = vpop.f32.mrf.mxu0
    %v8743 = vadd.f32 %v8654, %v8742
    %8744 = vmatmul.bf16.gmra.mxu0 %v5060
    %v8745 = vpop.f32.mrf.mxu0
    %v8746 = vadd.f32 %v8657, %v8745
    %v8747 = vpop.f32.mrf.mxu0
    %v8748 = vadd.f32 %v8659, %v8747
    %8749 = vmatmul.bf16.gmra.mxu0 %v5064
    %v8750 = vpop.f32.mrf.mxu0
    %v8751 = vadd.f32 %v8662, %v8750
    %v8752 = vpop.f32.mrf.mxu0
    %v8753 = vadd.f32 %v8664, %v8752
    %8754 = vdwg.mxu0
    %8755 = vmatpush.bf16.msra.mxu0 %v6169
    %8756 = vmatpush.bf16.msra.mxu0 %v6161
    %8757 = vmatpush.bf16.msra.mxu0 %v6153
    %8758 = vmatpush.bf16.msra.mxu0 %v6145
    %8759 = vmatpush.bf16.msra.mxu0 %v6137
    %8760 = vmatpush.bf16.msra.mxu0 %v6129
    %8761 = vmatpush.bf16.msra.mxu0 %v6121
    %8762 = vmatpush.bf16.msra.mxu0 %v6113
    %8763 = vmatmul.bf16.gmra.mxu0 %v5001
    %v8764 = vpop.f32.mrf.mxu0
    %v8765 = vadd.f32 %v5329, %v8764
    %v8766 = vpop.f32.mrf.mxu0
    %v8767 = vadd.f32 %v5329, %v8766
    %8768 = vmatmul.bf16.gmra.mxu0 %v5005
    %v8769 = vpop.f32.mrf.mxu0
    %v8770 = vadd.f32 %v5329, %v8769
    %v8771 = vpop.f32.mrf.mxu0
    %v8772 = vadd.f32 %v5329, %v8771
    %8773 = vmatmul.bf16.gmra.mxu0 %v5009
    %v8774 = vpop.f32.mrf.mxu0
    %v8775 = vadd.f32 %v5329, %v8774
    %v8776 = vpop.f32.mrf.mxu0
    %v8777 = vadd.f32 %v5329, %v8776
    %8778 = vmatmul.bf16.gmra.mxu0 %v5013
    %v8779 = vpop.f32.mrf.mxu0
    %v8780 = vadd.f32 %v5329, %v8779
    %v8781 = vpop.f32.mrf.mxu0
    %v8782 = vadd.f32 %v5329, %v8781
    %8783 = vmatmul.bf16.gmra.mxu0 %v5017
    %v8784 = vpop.f32.mrf.mxu0
    %v8785 = vadd.f32 %v5329, %v8784
    %v8786 = vpop.f32.mrf.mxu0
    %v8787 = vadd.f32 %v5329, %v8786
    %8788 = vmatmul.bf16.gmra.mxu0 %v5021
    %v8789 = vpop.f32.mrf.mxu0
    %v8790 = vadd.f32 %v5329, %v8789
    %v8791 = vpop.f32.mrf.mxu0
    %v8792 = vadd.f32 %v5329, %v8791
    %8793 = vmatmul.bf16.gmra.mxu0 %v5025
    %v8794 = vpop.f32.mrf.mxu0
    %v8795 = vadd.f32 %v5329, %v8794
    %v8796 = vpop.f32.mrf.mxu0
    %v8797 = vadd.f32 %v5329, %v8796
    %8798 = vmatmul.bf16.gmra.mxu0 %v5029
    %v8799 = vpop.f32.mrf.mxu0
    %v8800 = vadd.f32 %v5329, %v8799
    %v8801 = vpop.f32.mrf.mxu0
    %v8802 = vadd.f32 %v5329, %v8801
    %8803 = vmatmul.bf16.gmra.mxu0 %v5033
    %v8804 = vpop.f32.mrf.mxu0
    %v8805 = vadd.f32 %v5329, %v8804
    %v8806 = vpop.f32.mrf.mxu0
    %v8807 = vadd.f32 %v5329, %v8806
    %8808 = vmatmul.bf16.gmra.mxu0 %v5037
    %v8809 = vpop.f32.mrf.mxu0
    %v8810 = vadd.f32 %v5329, %v8809
    %v8811 = vpop.f32.mrf.mxu0
    %v8812 = vadd.f32 %v5329, %v8811
    %8813 = vmatmul.bf16.gmra.mxu0 %v5041
    %v8814 = vpop.f32.mrf.mxu0
    %v8815 = vadd.f32 %v5329, %v8814
    %v8816 = vpop.f32.mrf.mxu0
    %v8817 = vadd.f32 %v5329, %v8816
    %8818 = vmatmul.bf16.gmra.mxu0 %v5045
    %v8819 = vpop.f32.mrf.mxu0
    %v8820 = vadd.f32 %v5329, %v8819
    %v8821 = vpop.f32.mrf.mxu0
    %v8822 = vadd.f32 %v5329, %v8821
    %8823 = vmatmul.bf16.gmra.mxu0 %v5049
    %v8824 = vpop.f32.mrf.mxu0
    %v8825 = vadd.f32 %v5329, %v8824
    %v8826 = vpop.f32.mrf.mxu0
    %v8827 = vadd.f32 %v5329, %v8826
    %8828 = vmatmul.bf16.gmra.mxu0 %v5053
    %v8829 = vpop.f32.mrf.mxu0
    %v8830 = vadd.f32 %v5329, %v8829
    %v8831 = vpop.f32.mrf.mxu0
    %v8832 = vadd.f32 %v5329, %v8831
    %8833 = vmatmul.bf16.gmra.mxu0 %v5057
    %v8834 = vpop.f32.mrf.mxu0
    %v8835 = vadd.f32 %v5329, %v8834
    %v8836 = vpop.f32.mrf.mxu0
    %v8837 = vadd.f32 %v5329, %v8836
    %8838 = vmatmul.bf16.gmra.mxu0 %v5061
    %v8839 = vpop.f32.mrf.mxu0
    %v8840 = vadd.f32 %v5329, %v8839
    %v8841 = vpop.f32.mrf.mxu0
    %v8842 = vadd.f32 %v5329, %v8841
    %8843 = vdwg.mxu0
    %8844 = vmatpush.bf16.msra.mxu0 %v6233
    %8845 = vmatpush.bf16.msra.mxu0 %v6225
    %8846 = vmatpush.bf16.msra.mxu0 %v6217
    %8847 = vmatpush.bf16.msra.mxu0 %v6209
    %8848 = vmatpush.bf16.msra.mxu0 %v6201
    %8849 = vmatpush.bf16.msra.mxu0 %v6193
    %8850 = vmatpush.bf16.msra.mxu0 %v6185
    %8851 = vmatpush.bf16.msra.mxu0 %v6177
    %8852 = vmatmul.bf16.gmra.mxu0 %v5002
    %v8853 = vpop.f32.mrf.mxu0
    %v8854 = vadd.f32 %v8765, %v8853
    %v8855 = vpop.f32.mrf.mxu0
    %v8856 = vadd.f32 %v8767, %v8855
    %8857 = vmatmul.bf16.gmra.mxu0 %v5006
    %v8858 = vpop.f32.mrf.mxu0
    %v8859 = vadd.f32 %v8770, %v8858
    %v8860 = vpop.f32.mrf.mxu0
    %v8861 = vadd.f32 %v8772, %v8860
    %8862 = vmatmul.bf16.gmra.mxu0 %v5010
    %v8863 = vpop.f32.mrf.mxu0
    %v8864 = vadd.f32 %v8775, %v8863
    %v8865 = vpop.f32.mrf.mxu0
    %v8866 = vadd.f32 %v8777, %v8865
    %8867 = vmatmul.bf16.gmra.mxu0 %v5014
    %v8868 = vpop.f32.mrf.mxu0
    %v8869 = vadd.f32 %v8780, %v8868
    %v8870 = vpop.f32.mrf.mxu0
    %v8871 = vadd.f32 %v8782, %v8870
    %8872 = vmatmul.bf16.gmra.mxu0 %v5018
    %v8873 = vpop.f32.mrf.mxu0
    %v8874 = vadd.f32 %v8785, %v8873
    %v8875 = vpop.f32.mrf.mxu0
    %v8876 = vadd.f32 %v8787, %v8875
    %8877 = vmatmul.bf16.gmra.mxu0 %v5022
    %v8878 = vpop.f32.mrf.mxu0
    %v8879 = vadd.f32 %v8790, %v8878
    %v8880 = vpop.f32.mrf.mxu0
    %v8881 = vadd.f32 %v8792, %v8880
    %8882 = vmatmul.bf16.gmra.mxu0 %v5026
    %v8883 = vpop.f32.mrf.mxu0
    %v8884 = vadd.f32 %v8795, %v8883
    %v8885 = vpop.f32.mrf.mxu0
    %v8886 = vadd.f32 %v8797, %v8885
    %8887 = vmatmul.bf16.gmra.mxu0 %v5030
    %v8888 = vpop.f32.mrf.mxu0
    %v8889 = vadd.f32 %v8800, %v8888
    %v8890 = vpop.f32.mrf.mxu0
    %v8891 = vadd.f32 %v8802, %v8890
    %8892 = vmatmul.bf16.gmra.mxu0 %v5034
    %v8893 = vpop.f32.mrf.mxu0
    %v8894 = vadd.f32 %v8805, %v8893
    %v8895 = vpop.f32.mrf.mxu0
    %v8896 = vadd.f32 %v8807, %v8895
    %8897 = vmatmul.bf16.gmra.mxu0 %v5038
    %v8898 = vpop.f32.mrf.mxu0
    %v8899 = vadd.f32 %v8810, %v8898
    %v8900 = vpop.f32.mrf.mxu0
    %v8901 = vadd.f32 %v8812, %v8900
    %8902 = vmatmul.bf16.gmra.mxu0 %v5042
    %v8903 = vpop.f32.mrf.mxu0
    %v8904 = vadd.f32 %v8815, %v8903
    %v8905 = vpop.f32.mrf.mxu0
    %v8906 = vadd.f32 %v8817, %v8905
    %8907 = vmatmul.bf16.gmra.mxu0 %v5046
    %v8908 = vpop.f32.mrf.mxu0
    %v8909 = vadd.f32 %v8820, %v8908
    %v8910 = vpop.f32.mrf.mxu0
    %v8911 = vadd.f32 %v8822, %v8910
    %8912 = vmatmul.bf16.gmra.mxu0 %v5050
    %v8913 = vpop.f32.mrf.mxu0
    %v8914 = vadd.f32 %v8825, %v8913
    %v8915 = vpop.f32.mrf.mxu0
    %v8916 = vadd.f32 %v8827, %v8915
    %8917 = vmatmul.bf16.gmra.mxu0 %v5054
    %v8918 = vpop.f32.mrf.mxu0
    %v8919 = vadd.f32 %v8830, %v8918
    %v8920 = vpop.f32.mrf.mxu0
    %v8921 = vadd.f32 %v8832, %v8920
    %8922 = vmatmul.bf16.gmra.mxu0 %v5058
    %v8923 = vpop.f32.mrf.mxu0
    %v8924 = vadd.f32 %v8835, %v8923
    %v8925 = vpop.f32.mrf.mxu0
    %v8926 = vadd.f32 %v8837, %v8925
    %8927 = vmatmul.bf16.gmra.mxu0 %v5062
    %v8928 = vpop.f32.mrf.mxu0
    %v8929 = vadd.f32 %v8840, %v8928
    %v8930 = vpop.f32.mrf.mxu0
    %v8931 = vadd.f32 %v8842, %v8930
    %8932 = vdwg.mxu0
    %8933 = vmatpush.bf16.msra.mxu0 %v6297
    %8934 = vmatpush.bf16.msra.mxu0 %v6289
    %8935 = vmatpush.bf16.msra.mxu0 %v6281
    %8936 = vmatpush.bf16.msra.mxu0 %v6273
    %8937 = vmatpush.bf16.msra.mxu0 %v6265
    %8938 = vmatpush.bf16.msra.mxu0 %v6257
    %8939 = vmatpush.bf16.msra.mxu0 %v6249
    %8940 = vmatpush.bf16.msra.mxu0 %v6241
    %8941 = vmatmul.bf16.gmra.mxu0 %v5003
    %v8942 = vpop.f32.mrf.mxu0
    %v8943 = vadd.f32 %v8854, %v8942
    %v8944 = vpop.f32.mrf.mxu0
    %v8945 = vadd.f32 %v8856, %v8944
    %8946 = vmatmul.bf16.gmra.mxu0 %v5007
    %v8947 = vpop.f32.mrf.mxu0
    %v8948 = vadd.f32 %v8859, %v8947
    %v8949 = vpop.f32.mrf.mxu0
    %v8950 = vadd.f32 %v8861, %v8949
    %8951 = vmatmul.bf16.gmra.mxu0 %v5011
    %v8952 = vpop.f32.mrf.mxu0
    %v8953 = vadd.f32 %v8864, %v8952
    %v8954 = vpop.f32.mrf.mxu0
    %v8955 = vadd.f32 %v8866, %v8954
    %8956 = vmatmul.bf16.gmra.mxu0 %v5015
    %v8957 = vpop.f32.mrf.mxu0
    %v8958 = vadd.f32 %v8869, %v8957
    %v8959 = vpop.f32.mrf.mxu0
    %v8960 = vadd.f32 %v8871, %v8959
    %8961 = vmatmul.bf16.gmra.mxu0 %v5019
    %v8962 = vpop.f32.mrf.mxu0
    %v8963 = vadd.f32 %v8874, %v8962
    %v8964 = vpop.f32.mrf.mxu0
    %v8965 = vadd.f32 %v8876, %v8964
    %8966 = vmatmul.bf16.gmra.mxu0 %v5023
    %v8967 = vpop.f32.mrf.mxu0
    %v8968 = vadd.f32 %v8879, %v8967
    %v8969 = vpop.f32.mrf.mxu0
    %v8970 = vadd.f32 %v8881, %v8969
    %8971 = vmatmul.bf16.gmra.mxu0 %v5027
    %v8972 = vpop.f32.mrf.mxu0
    %v8973 = vadd.f32 %v8884, %v8972
    %v8974 = vpop.f32.mrf.mxu0
    %v8975 = vadd.f32 %v8886, %v8974
    %8976 = vmatmul.bf16.gmra.mxu0 %v5031
    %v8977 = vpop.f32.mrf.mxu0
    %v8978 = vadd.f32 %v8889, %v8977
    %v8979 = vpop.f32.mrf.mxu0
    %v8980 = vadd.f32 %v8891, %v8979
    %8981 = vmatmul.bf16.gmra.mxu0 %v5035
    %v8982 = vpop.f32.mrf.mxu0
    %v8983 = vadd.f32 %v8894, %v8982
    %v8984 = vpop.f32.mrf.mxu0
    %v8985 = vadd.f32 %v8896, %v8984
    %8986 = vmatmul.bf16.gmra.mxu0 %v5039
    %v8987 = vpop.f32.mrf.mxu0
    %v8988 = vadd.f32 %v8899, %v8987
    %v8989 = vpop.f32.mrf.mxu0
    %v8990 = vadd.f32 %v8901, %v8989
    %8991 = vmatmul.bf16.gmra.mxu0 %v5043
    %v8992 = vpop.f32.mrf.mxu0
    %v8993 = vadd.f32 %v8904, %v8992
    %v8994 = vpop.f32.mrf.mxu0
    %v8995 = vadd.f32 %v8906, %v8994
    %8996 = vmatmul.bf16.gmra.mxu0 %v5047
    %v8997 = vpop.f32.mrf.mxu0
    %v8998 = vadd.f32 %v8909, %v8997
    %v8999 = vpop.f32.mrf.mxu0
    %v9000 = vadd.f32 %v8911, %v8999
    %9001 = vmatmul.bf16.gmra.mxu0 %v5051
    %v9002 = vpop.f32.mrf.mxu0
    %v9003 = vadd.f32 %v8914, %v9002
    %v9004 = vpop.f32.mrf.mxu0
    %v9005 = vadd.f32 %v8916, %v9004
    %9006 = vmatmul.bf16.gmra.mxu0 %v5055
    %v9007 = vpop.f32.mrf.mxu0
    %v9008 = vadd.f32 %v8919, %v9007
    %v9009 = vpop.f32.mrf.mxu0
    %v9010 = vadd.f32 %v8921, %v9009
    %9011 = vmatmul.bf16.gmra.mxu0 %v5059
    %v9012 = vpop.f32.mrf.mxu0
    %v9013 = vadd.f32 %v8924, %v9012
    %v9014 = vpop.f32.mrf.mxu0
    %v9015 = vadd.f32 %v8926, %v9014
    %9016 = vmatmul.bf16.gmra.mxu0 %v5063
    %v9017 = vpop.f32.mrf.mxu0
    %v9018 = vadd.f32 %v8929, %v9017
    %v9019 = vpop.f32.mrf.mxu0
    %v9020 = vadd.f32 %v8931, %v9019
    %9021 = vdwg.mxu0
    %9022 = vmatpush.bf16.msra.mxu0 %v6361
    %9023 = vmatpush.bf16.msra.mxu0 %v6353
    %9024 = vmatpush.bf16.msra.mxu0 %v6345
    %9025 = vmatpush.bf16.msra.mxu0 %v6337
    %9026 = vmatpush.bf16.msra.mxu0 %v6329
    %9027 = vmatpush.bf16.msra.mxu0 %v6321
    %9028 = vmatpush.bf16.msra.mxu0 %v6313
    %9029 = vmatpush.bf16.msra.mxu0 %v6305
    %9030 = vmatmul.bf16.gmra.mxu0 %v5004
    %v9031 = vpop.f32.mrf.mxu0
    %v9032 = vadd.f32 %v8943, %v9031
    %v9033 = vpop.f32.mrf.mxu0
    %v9034 = vadd.f32 %v8945, %v9033
    %9035 = vmatmul.bf16.gmra.mxu0 %v5008
    %v9036 = vpop.f32.mrf.mxu0
    %v9037 = vadd.f32 %v8948, %v9036
    %v9038 = vpop.f32.mrf.mxu0
    %v9039 = vadd.f32 %v8950, %v9038
    %9040 = vmatmul.bf16.gmra.mxu0 %v5012
    %v9041 = vpop.f32.mrf.mxu0
    %v9042 = vadd.f32 %v8953, %v9041
    %v9043 = vpop.f32.mrf.mxu0
    %v9044 = vadd.f32 %v8955, %v9043
    %9045 = vmatmul.bf16.gmra.mxu0 %v5016
    %v9046 = vpop.f32.mrf.mxu0
    %v9047 = vadd.f32 %v8958, %v9046
    %v9048 = vpop.f32.mrf.mxu0
    %v9049 = vadd.f32 %v8960, %v9048
    %9050 = vmatmul.bf16.gmra.mxu0 %v5020
    %v9051 = vpop.f32.mrf.mxu0
    %v9052 = vadd.f32 %v8963, %v9051
    %v9053 = vpop.f32.mrf.mxu0
    %v9054 = vadd.f32 %v8965, %v9053
    %9055 = vmatmul.bf16.gmra.mxu0 %v5024
    %v9056 = vpop.f32.mrf.mxu0
    %v9057 = vadd.f32 %v8968, %v9056
    %v9058 = vpop.f32.mrf.mxu0
    %v9059 = vadd.f32 %v8970, %v9058
    %9060 = vmatmul.bf16.gmra.mxu0 %v5028
    %v9061 = vpop.f32.mrf.mxu0
    %v9062 = vadd.f32 %v8973, %v9061
    %v9063 = vpop.f32.mrf.mxu0
    %v9064 = vadd.f32 %v8975, %v9063
    %9065 = vmatmul.bf16.gmra.mxu0 %v5032
    %v9066 = vpop.f32.mrf.mxu0
    %v9067 = vadd.f32 %v8978, %v9066
    %v9068 = vpop.f32.mrf.mxu0
    %v9069 = vadd.f32 %v8980, %v9068
    %9070 = vmatmul.bf16.gmra.mxu0 %v5036
    %v9071 = vpop.f32.mrf.mxu0
    %v9072 = vadd.f32 %v8983, %v9071
    %v9073 = vpop.f32.mrf.mxu0
    %v9074 = vadd.f32 %v8985, %v9073
    %9075 = vmatmul.bf16.gmra.mxu0 %v5040
    %v9076 = vpop.f32.mrf.mxu0
    %v9077 = vadd.f32 %v8988, %v9076
    %v9078 = vpop.f32.mrf.mxu0
    %v9079 = vadd.f32 %v8990, %v9078
    %9080 = vmatmul.bf16.gmra.mxu0 %v5044
    %v9081 = vpop.f32.mrf.mxu0
    %v9082 = vadd.f32 %v8993, %v9081
    %v9083 = vpop.f32.mrf.mxu0
    %v9084 = vadd.f32 %v8995, %v9083
    %9085 = vmatmul.bf16.gmra.mxu0 %v5048
    %v9086 = vpop.f32.mrf.mxu0
    %v9087 = vadd.f32 %v8998, %v9086
    %v9088 = vpop.f32.mrf.mxu0
    %v9089 = vadd.f32 %v9000, %v9088
    %9090 = vmatmul.bf16.gmra.mxu0 %v5052
    %v9091 = vpop.f32.mrf.mxu0
    %v9092 = vadd.f32 %v9003, %v9091
    %v9093 = vpop.f32.mrf.mxu0
    %v9094 = vadd.f32 %v9005, %v9093
    %9095 = vmatmul.bf16.gmra.mxu0 %v5056
    %v9096 = vpop.f32.mrf.mxu0
    %v9097 = vadd.f32 %v9008, %v9096
    %v9098 = vpop.f32.mrf.mxu0
    %v9099 = vadd.f32 %v9010, %v9098
    %9100 = vmatmul.bf16.gmra.mxu0 %v5060
    %v9101 = vpop.f32.mrf.mxu0
    %v9102 = vadd.f32 %v9013, %v9101
    %v9103 = vpop.f32.mrf.mxu0
    %v9104 = vadd.f32 %v9015, %v9103
    %9105 = vmatmul.bf16.gmra.mxu0 %v5064
    %v9106 = vpop.f32.mrf.mxu0
    %v9107 = vadd.f32 %v9018, %v9106
    %v9108 = vpop.f32.mrf.mxu0
    %v9109 = vadd.f32 %v9020, %v9108
    %9110 = vdwg.mxu0
    %9111 = vmatpush.bf16.msra.mxu0 %v6170
    %9112 = vmatpush.bf16.msra.mxu0 %v6162
    %9113 = vmatpush.bf16.msra.mxu0 %v6154
    %9114 = vmatpush.bf16.msra.mxu0 %v6146
    %9115 = vmatpush.bf16.msra.mxu0 %v6138
    %9116 = vmatpush.bf16.msra.mxu0 %v6130
    %9117 = vmatpush.bf16.msra.mxu0 %v6122
    %9118 = vmatpush.bf16.msra.mxu0 %v6114
    %9119 = vmatmul.bf16.gmra.mxu0 %v5001
    %v9120 = vpop.f32.mrf.mxu0
    %v9121 = vadd.f32 %v5330, %v9120
    %v9122 = vpop.f32.mrf.mxu0
    %v9123 = vadd.f32 %v5330, %v9122
    %9124 = vmatmul.bf16.gmra.mxu0 %v5005
    %v9125 = vpop.f32.mrf.mxu0
    %v9126 = vadd.f32 %v5330, %v9125
    %v9127 = vpop.f32.mrf.mxu0
    %v9128 = vadd.f32 %v5330, %v9127
    %9129 = vmatmul.bf16.gmra.mxu0 %v5009
    %v9130 = vpop.f32.mrf.mxu0
    %v9131 = vadd.f32 %v5330, %v9130
    %v9132 = vpop.f32.mrf.mxu0
    %v9133 = vadd.f32 %v5330, %v9132
    %9134 = vmatmul.bf16.gmra.mxu0 %v5013
    %v9135 = vpop.f32.mrf.mxu0
    %v9136 = vadd.f32 %v5330, %v9135
    %v9137 = vpop.f32.mrf.mxu0
    %v9138 = vadd.f32 %v5330, %v9137
    %9139 = vmatmul.bf16.gmra.mxu0 %v5017
    %v9140 = vpop.f32.mrf.mxu0
    %v9141 = vadd.f32 %v5330, %v9140
    %v9142 = vpop.f32.mrf.mxu0
    %v9143 = vadd.f32 %v5330, %v9142
    %9144 = vmatmul.bf16.gmra.mxu0 %v5021
    %v9145 = vpop.f32.mrf.mxu0
    %v9146 = vadd.f32 %v5330, %v9145
    %v9147 = vpop.f32.mrf.mxu0
    %v9148 = vadd.f32 %v5330, %v9147
    %9149 = vmatmul.bf16.gmra.mxu0 %v5025
    %v9150 = vpop.f32.mrf.mxu0
    %v9151 = vadd.f32 %v5330, %v9150
    %v9152 = vpop.f32.mrf.mxu0
    %v9153 = vadd.f32 %v5330, %v9152
    %9154 = vmatmul.bf16.gmra.mxu0 %v5029
    %v9155 = vpop.f32.mrf.mxu0
    %v9156 = vadd.f32 %v5330, %v9155
    %v9157 = vpop.f32.mrf.mxu0
    %v9158 = vadd.f32 %v5330, %v9157
    %9159 = vmatmul.bf16.gmra.mxu0 %v5033
    %v9160 = vpop.f32.mrf.mxu0
    %v9161 = vadd.f32 %v5330, %v9160
    %v9162 = vpop.f32.mrf.mxu0
    %v9163 = vadd.f32 %v5330, %v9162
    %9164 = vmatmul.bf16.gmra.mxu0 %v5037
    %v9165 = vpop.f32.mrf.mxu0
    %v9166 = vadd.f32 %v5330, %v9165
    %v9167 = vpop.f32.mrf.mxu0
    %v9168 = vadd.f32 %v5330, %v9167
    %9169 = vmatmul.bf16.gmra.mxu0 %v5041
    %v9170 = vpop.f32.mrf.mxu0
    %v9171 = vadd.f32 %v5330, %v9170
    %v9172 = vpop.f32.mrf.mxu0
    %v9173 = vadd.f32 %v5330, %v9172
    %9174 = vmatmul.bf16.gmra.mxu0 %v5045
    %v9175 = vpop.f32.mrf.mxu0
    %v9176 = vadd.f32 %v5330, %v9175
    %v9177 = vpop.f32.mrf.mxu0
    %v9178 = vadd.f32 %v5330, %v9177
    %9179 = vmatmul.bf16.gmra.mxu0 %v5049
    %v9180 = vpop.f32.mrf.mxu0
    %v9181 = vadd.f32 %v5330, %v9180
    %v9182 = vpop.f32.mrf.mxu0
    %v9183 = vadd.f32 %v5330, %v9182
    %9184 = vmatmul.bf16.gmra.mxu0 %v5053
    %v9185 = vpop.f32.mrf.mxu0
    %v9186 = vadd.f32 %v5330, %v9185
    %v9187 = vpop.f32.mrf.mxu0
    %v9188 = vadd.f32 %v5330, %v9187
    %9189 = vmatmul.bf16.gmra.mxu0 %v5057
    %v9190 = vpop.f32.mrf.mxu0
    %v9191 = vadd.f32 %v5330, %v9190
    %v9192 = vpop.f32.mrf.mxu0
    %v9193 = vadd.f32 %v5330, %v9192
    %9194 = vmatmul.bf16.gmra.mxu0 %v5061
    %v9195 = vpop.f32.mrf.mxu0
    %v9196 = vadd.f32 %v5330, %v9195
    %v9197 = vpop.f32.mrf.mxu0
    %v9198 = vadd.f32 %v5330, %v9197
    %9199 = vdwg.mxu0
    %9200 = vmatpush.bf16.msra.mxu0 %v6234
    %9201 = vmatpush.bf16.msra.mxu0 %v6226
    %9202 = vmatpush.bf16.msra.mxu0 %v6218
    %9203 = vmatpush.bf16.msra.mxu0 %v6210
    %9204 = vmatpush.bf16.msra.mxu0 %v6202
    %9205 = vmatpush.bf16.msra.mxu0 %v6194
    %9206 = vmatpush.bf16.msra.mxu0 %v6186
    %9207 = vmatpush.bf16.msra.mxu0 %v6178
    %9208 = vmatmul.bf16.gmra.mxu0 %v5002
    %v9209 = vpop.f32.mrf.mxu0
    %v9210 = vadd.f32 %v9121, %v9209
    %v9211 = vpop.f32.mrf.mxu0
    %v9212 = vadd.f32 %v9123, %v9211
    %9213 = vmatmul.bf16.gmra.mxu0 %v5006
    %v9214 = vpop.f32.mrf.mxu0
    %v9215 = vadd.f32 %v9126, %v9214
    %v9216 = vpop.f32.mrf.mxu0
    %v9217 = vadd.f32 %v9128, %v9216
    %9218 = vmatmul.bf16.gmra.mxu0 %v5010
    %v9219 = vpop.f32.mrf.mxu0
    %v9220 = vadd.f32 %v9131, %v9219
    %v9221 = vpop.f32.mrf.mxu0
    %v9222 = vadd.f32 %v9133, %v9221
    %9223 = vmatmul.bf16.gmra.mxu0 %v5014
    %v9224 = vpop.f32.mrf.mxu0
    %v9225 = vadd.f32 %v9136, %v9224
    %v9226 = vpop.f32.mrf.mxu0
    %v9227 = vadd.f32 %v9138, %v9226
    %9228 = vmatmul.bf16.gmra.mxu0 %v5018
    %v9229 = vpop.f32.mrf.mxu0
    %v9230 = vadd.f32 %v9141, %v9229
    %v9231 = vpop.f32.mrf.mxu0
    %v9232 = vadd.f32 %v9143, %v9231
    %9233 = vmatmul.bf16.gmra.mxu0 %v5022
    %v9234 = vpop.f32.mrf.mxu0
    %v9235 = vadd.f32 %v9146, %v9234
    %v9236 = vpop.f32.mrf.mxu0
    %v9237 = vadd.f32 %v9148, %v9236
    %9238 = vmatmul.bf16.gmra.mxu0 %v5026
    %v9239 = vpop.f32.mrf.mxu0
    %v9240 = vadd.f32 %v9151, %v9239
    %v9241 = vpop.f32.mrf.mxu0
    %v9242 = vadd.f32 %v9153, %v9241
    %9243 = vmatmul.bf16.gmra.mxu0 %v5030
    %v9244 = vpop.f32.mrf.mxu0
    %v9245 = vadd.f32 %v9156, %v9244
    %v9246 = vpop.f32.mrf.mxu0
    %v9247 = vadd.f32 %v9158, %v9246
    %9248 = vmatmul.bf16.gmra.mxu0 %v5034
    %v9249 = vpop.f32.mrf.mxu0
    %v9250 = vadd.f32 %v9161, %v9249
    %v9251 = vpop.f32.mrf.mxu0
    %v9252 = vadd.f32 %v9163, %v9251
    %9253 = vmatmul.bf16.gmra.mxu0 %v5038
    %v9254 = vpop.f32.mrf.mxu0
    %v9255 = vadd.f32 %v9166, %v9254
    %v9256 = vpop.f32.mrf.mxu0
    %v9257 = vadd.f32 %v9168, %v9256
    %9258 = vmatmul.bf16.gmra.mxu0 %v5042
    %v9259 = vpop.f32.mrf.mxu0
    %v9260 = vadd.f32 %v9171, %v9259
    %v9261 = vpop.f32.mrf.mxu0
    %v9262 = vadd.f32 %v9173, %v9261
    %9263 = vmatmul.bf16.gmra.mxu0 %v5046
    %v9264 = vpop.f32.mrf.mxu0
    %v9265 = vadd.f32 %v9176, %v9264
    %v9266 = vpop.f32.mrf.mxu0
    %v9267 = vadd.f32 %v9178, %v9266
    %9268 = vmatmul.bf16.gmra.mxu0 %v5050
    %v9269 = vpop.f32.mrf.mxu0
    %v9270 = vadd.f32 %v9181, %v9269
    %v9271 = vpop.f32.mrf.mxu0
    %v9272 = vadd.f32 %v9183, %v9271
    %9273 = vmatmul.bf16.gmra.mxu0 %v5054
    %v9274 = vpop.f32.mrf.mxu0
    %v9275 = vadd.f32 %v9186, %v9274
    %v9276 = vpop.f32.mrf.mxu0
    %v9277 = vadd.f32 %v9188, %v9276
    %9278 = vmatmul.bf16.gmra.mxu0 %v5058
    %v9279 = vpop.f32.mrf.mxu0
    %v9280 = vadd.f32 %v9191, %v9279
    %v9281 = vpop.f32.mrf.mxu0
    %v9282 = vadd.f32 %v9193, %v9281
    %9283 = vmatmul.bf16.gmra.mxu0 %v5062
    %v9284 = vpop.f32.mrf.mxu0
    %v9285 = vadd.f32 %v9196, %v9284
    %v9286 = vpop.f32.mrf.mxu0
    %v9287 = vadd.f32 %v9198, %v9286
    %9288 = vdwg.mxu0
    %9289 = vmatpush.bf16.msra.mxu0 %v6298
    %9290 = vmatpush.bf16.msra.mxu0 %v6290
    %9291 = vmatpush.bf16.msra.mxu0 %v6282
    %9292 = vmatpush.bf16.msra.mxu0 %v6274
    %9293 = vmatpush.bf16.msra.mxu0 %v6266
    %9294 = vmatpush.bf16.msra.mxu0 %v6258
    %9295 = vmatpush.bf16.msra.mxu0 %v6250
    %9296 = vmatpush.bf16.msra.mxu0 %v6242
    %9297 = vmatmul.bf16.gmra.mxu0 %v5003
    %v9298 = vpop.f32.mrf.mxu0
    %v9299 = vadd.f32 %v9210, %v9298
    %v9300 = vpop.f32.mrf.mxu0
    %v9301 = vadd.f32 %v9212, %v9300
    %9302 = vmatmul.bf16.gmra.mxu0 %v5007
    %v9303 = vpop.f32.mrf.mxu0
    %v9304 = vadd.f32 %v9215, %v9303
    %v9305 = vpop.f32.mrf.mxu0
    %v9306 = vadd.f32 %v9217, %v9305
    %9307 = vmatmul.bf16.gmra.mxu0 %v5011
    %v9308 = vpop.f32.mrf.mxu0
    %v9309 = vadd.f32 %v9220, %v9308
    %v9310 = vpop.f32.mrf.mxu0
    %v9311 = vadd.f32 %v9222, %v9310
    %9312 = vmatmul.bf16.gmra.mxu0 %v5015
    %v9313 = vpop.f32.mrf.mxu0
    %v9314 = vadd.f32 %v9225, %v9313
    %v9315 = vpop.f32.mrf.mxu0
    %v9316 = vadd.f32 %v9227, %v9315
    %9317 = vmatmul.bf16.gmra.mxu0 %v5019
    %v9318 = vpop.f32.mrf.mxu0
    %v9319 = vadd.f32 %v9230, %v9318
    %v9320 = vpop.f32.mrf.mxu0
    %v9321 = vadd.f32 %v9232, %v9320
    %9322 = vmatmul.bf16.gmra.mxu0 %v5023
    %v9323 = vpop.f32.mrf.mxu0
    %v9324 = vadd.f32 %v9235, %v9323
    %v9325 = vpop.f32.mrf.mxu0
    %v9326 = vadd.f32 %v9237, %v9325
    %9327 = vmatmul.bf16.gmra.mxu0 %v5027
    %v9328 = vpop.f32.mrf.mxu0
    %v9329 = vadd.f32 %v9240, %v9328
    %v9330 = vpop.f32.mrf.mxu0
    %v9331 = vadd.f32 %v9242, %v9330
    %9332 = vmatmul.bf16.gmra.mxu0 %v5031
    %v9333 = vpop.f32.mrf.mxu0
    %v9334 = vadd.f32 %v9245, %v9333
    %v9335 = vpop.f32.mrf.mxu0
    %v9336 = vadd.f32 %v9247, %v9335
    %9337 = vmatmul.bf16.gmra.mxu0 %v5035
    %v9338 = vpop.f32.mrf.mxu0
    %v9339 = vadd.f32 %v9250, %v9338
    %v9340 = vpop.f32.mrf.mxu0
    %v9341 = vadd.f32 %v9252, %v9340
    %9342 = vmatmul.bf16.gmra.mxu0 %v5039
    %v9343 = vpop.f32.mrf.mxu0
    %v9344 = vadd.f32 %v9255, %v9343
    %v9345 = vpop.f32.mrf.mxu0
    %v9346 = vadd.f32 %v9257, %v9345
    %9347 = vmatmul.bf16.gmra.mxu0 %v5043
    %v9348 = vpop.f32.mrf.mxu0
    %v9349 = vadd.f32 %v9260, %v9348
    %v9350 = vpop.f32.mrf.mxu0
    %v9351 = vadd.f32 %v9262, %v9350
    %9352 = vmatmul.bf16.gmra.mxu0 %v5047
    %v9353 = vpop.f32.mrf.mxu0
    %v9354 = vadd.f32 %v9265, %v9353
    %v9355 = vpop.f32.mrf.mxu0
    %v9356 = vadd.f32 %v9267, %v9355
    %9357 = vmatmul.bf16.gmra.mxu0 %v5051
    %v9358 = vpop.f32.mrf.mxu0
    %v9359 = vadd.f32 %v9270, %v9358
    %v9360 = vpop.f32.mrf.mxu0
    %v9361 = vadd.f32 %v9272, %v9360
    %9362 = vmatmul.bf16.gmra.mxu0 %v5055
    %v9363 = vpop.f32.mrf.mxu0
    %v9364 = vadd.f32 %v9275, %v9363
    %v9365 = vpop.f32.mrf.mxu0
    %v9366 = vadd.f32 %v9277, %v9365
    %9367 = vmatmul.bf16.gmra.mxu0 %v5059
    %v9368 = vpop.f32.mrf.mxu0
    %v9369 = vadd.f32 %v9280, %v9368
    %v9370 = vpop.f32.mrf.mxu0
    %v9371 = vadd.f32 %v9282, %v9370
    %9372 = vmatmul.bf16.gmra.mxu0 %v5063
    %v9373 = vpop.f32.mrf.mxu0
    %v9374 = vadd.f32 %v9285, %v9373
    %v9375 = vpop.f32.mrf.mxu0
    %v9376 = vadd.f32 %v9287, %v9375
    %9377 = vdwg.mxu0
    %9378 = vmatpush.bf16.msra.mxu0 %v6362
    %9379 = vmatpush.bf16.msra.mxu0 %v6354
    %9380 = vmatpush.bf16.msra.mxu0 %v6346
    %9381 = vmatpush.bf16.msra.mxu0 %v6338
    %9382 = vmatpush.bf16.msra.mxu0 %v6330
    %9383 = vmatpush.bf16.msra.mxu0 %v6322
    %9384 = vmatpush.bf16.msra.mxu0 %v6314
    %9385 = vmatpush.bf16.msra.mxu0 %v6306
    %9386 = vmatmul.bf16.gmra.mxu0 %v5004
    %v9387 = vpop.f32.mrf.mxu0
    %v9388 = vadd.f32 %v9299, %v9387
    %v9389 = vpop.f32.mrf.mxu0
    %v9390 = vadd.f32 %v9301, %v9389
    %9391 = vmatmul.bf16.gmra.mxu0 %v5008
    %v9392 = vpop.f32.mrf.mxu0
    %v9393 = vadd.f32 %v9304, %v9392
    %v9394 = vpop.f32.mrf.mxu0
    %v9395 = vadd.f32 %v9306, %v9394
    %9396 = vmatmul.bf16.gmra.mxu0 %v5012
    %v9397 = vpop.f32.mrf.mxu0
    %v9398 = vadd.f32 %v9309, %v9397
    %v9399 = vpop.f32.mrf.mxu0
    %v9400 = vadd.f32 %v9311, %v9399
    %9401 = vmatmul.bf16.gmra.mxu0 %v5016
    %v9402 = vpop.f32.mrf.mxu0
    %v9403 = vadd.f32 %v9314, %v9402
    %v9404 = vpop.f32.mrf.mxu0
    %v9405 = vadd.f32 %v9316, %v9404
    %9406 = vmatmul.bf16.gmra.mxu0 %v5020
    %v9407 = vpop.f32.mrf.mxu0
    %v9408 = vadd.f32 %v9319, %v9407
    %v9409 = vpop.f32.mrf.mxu0
    %v9410 = vadd.f32 %v9321, %v9409
    %9411 = vmatmul.bf16.gmra.mxu0 %v5024
    %v9412 = vpop.f32.mrf.mxu0
    %v9413 = vadd.f32 %v9324, %v9412
    %v9414 = vpop.f32.mrf.mxu0
    %v9415 = vadd.f32 %v9326, %v9414
    %9416 = vmatmul.bf16.gmra.mxu0 %v5028
    %v9417 = vpop.f32.mrf.mxu0
    %v9418 = vadd.f32 %v9329, %v9417
    %v9419 = vpop.f32.mrf.mxu0
    %v9420 = vadd.f32 %v9331, %v9419
    %9421 = vmatmul.bf16.gmra.mxu0 %v5032
    %v9422 = vpop.f32.mrf.mxu0
    %v9423 = vadd.f32 %v9334, %v9422
    %v9424 = vpop.f32.mrf.mxu0
    %v9425 = vadd.f32 %v9336, %v9424
    %9426 = vmatmul.bf16.gmra.mxu0 %v5036
    %v9427 = vpop.f32.mrf.mxu0
    %v9428 = vadd.f32 %v9339, %v9427
    %v9429 = vpop.f32.mrf.mxu0
    %v9430 = vadd.f32 %v9341, %v9429
    %9431 = vmatmul.bf16.gmra.mxu0 %v5040
    %v9432 = vpop.f32.mrf.mxu0
    %v9433 = vadd.f32 %v9344, %v9432
    %v9434 = vpop.f32.mrf.mxu0
    %v9435 = vadd.f32 %v9346, %v9434
    %9436 = vmatmul.bf16.gmra.mxu0 %v5044
    %v9437 = vpop.f32.mrf.mxu0
    %v9438 = vadd.f32 %v9349, %v9437
    %v9439 = vpop.f32.mrf.mxu0
    %v9440 = vadd.f32 %v9351, %v9439
    %9441 = vmatmul.bf16.gmra.mxu0 %v5048
    %v9442 = vpop.f32.mrf.mxu0
    %v9443 = vadd.f32 %v9354, %v9442
    %v9444 = vpop.f32.mrf.mxu0
    %v9445 = vadd.f32 %v9356, %v9444
    %9446 = vmatmul.bf16.gmra.mxu0 %v5052
    %v9447 = vpop.f32.mrf.mxu0
    %v9448 = vadd.f32 %v9359, %v9447
    %v9449 = vpop.f32.mrf.mxu0
    %v9450 = vadd.f32 %v9361, %v9449
    %9451 = vmatmul.bf16.gmra.mxu0 %v5056
    %v9452 = vpop.f32.mrf.mxu0
    %v9453 = vadd.f32 %v9364, %v9452
    %v9454 = vpop.f32.mrf.mxu0
    %v9455 = vadd.f32 %v9366, %v9454
    %9456 = vmatmul.bf16.gmra.mxu0 %v5060
    %v9457 = vpop.f32.mrf.mxu0
    %v9458 = vadd.f32 %v9369, %v9457
    %v9459 = vpop.f32.mrf.mxu0
    %v9460 = vadd.f32 %v9371, %v9459
    %9461 = vmatmul.bf16.gmra.mxu0 %v5064
    %v9462 = vpop.f32.mrf.mxu0
    %v9463 = vadd.f32 %v9374, %v9462
    %v9464 = vpop.f32.mrf.mxu0
    %v9465 = vadd.f32 %v9376, %v9464
    %9466 = vdwg.mxu0
    %9467 = vst [vmem:[#allocation11] sm:$0xff] %v6896
    %9468 = vst [vmem:[#allocation11 + $0x8] sm:$0xff] %v7252
    %9469 = vst [vmem:[#allocation11 + $0x10] sm:$0xff] %v7608
    %9470 = vst [vmem:[#allocation11 + $0x18] sm:$0xff] %v7964
    %9471 = vst [vmem:[#allocation11 + $0x20] sm:$0xff] %v8320
    %9472 = vst [vmem:[#allocation11 + $0x28] sm:$0xff] %v8676
    %9473 = vst [vmem:[#allocation11 + $0x30] sm:$0xff] %v9032
    %9474 = vst [vmem:[#allocation11 + $0x38] sm:$0xff] %v9388
    %9475 = vst [vmem:[#allocation11 + $0x40] sm:$0xff] %v6898
    %9476 = vst [vmem:[#allocation11 + $0x48] sm:$0xff] %v7254
    %9477 = vst [vmem:[#allocation11 + $0x50] sm:$0xff] %v7610
    %9478 = vst [vmem:[#allocation11 + $0x58] sm:$0xff] %v7966
    %9479 = vst [vmem:[#allocation11 + $0x60] sm:$0xff] %v8322
    %9480 = vst [vmem:[#allocation11 + $0x68] sm:$0xff] %v8678
    %9481 = vst [vmem:[#allocation11 + $0x70] sm:$0xff] %v9034
    %9482 = vst [vmem:[#allocation11 + $0x78] sm:$0xff] %v9390
    %9483 = vst [vmem:[#allocation11 + $0x80] sm:$0xff] %v6901
    %9484 = vst [vmem:[#allocation11 + $0x88] sm:$0xff] %v7257
    %9485 = vst [vmem:[#allocation11 + $0x90] sm:$0xff] %v7613
    %9486 = vst [vmem:[#allocation11 + $0x98] sm:$0xff] %v7969
    %9487 = vst [vmem:[#allocation11 + $0xa0] sm:$0xff] %v8325
    %9488 = vst [vmem:[#allocation11 + $0xa8] sm:$0xff] %v8681
    %9489 = vst [vmem:[#allocation11 + $0xb0] sm:$0xff] %v9037
    %9490 = vst [vmem:[#allocation11 + $0xb8] sm:$0xff] %v9393
    %9491 = vst [vmem:[#allocation11 + $0xc0] sm:$0xff] %v6903
    %9492 = vst [vmem:[#allocation11 + $0xc8] sm:$0xff] %v7259
    %9493 = vst [vmem:[#allocation11 + $0xd0] sm:$0xff] %v7615
    %9494 = vst [vmem:[#allocation11 + $0xd8] sm:$0xff] %v7971
    %9495 = vst [vmem:[#allocation11 + $0xe0] sm:$0xff] %v8327
    %9496 = vst [vmem:[#allocation11 + $0xe8] sm:$0xff] %v8683
    %9497 = vst [vmem:[#allocation11 + $0xf0] sm:$0xff] %v9039
    %9498 = vst [vmem:[#allocation11 + $0xf8] sm:$0xff] %v9395
    %9499 = vst [vmem:[#allocation11 + $0x100] sm:$0xff] %v6906
    %9500 = vst [vmem:[#allocation11 + $0x108] sm:$0xff] %v7262
    %9501 = vst [vmem:[#allocation11 + $0x110] sm:$0xff] %v7618
    %9502 = vst [vmem:[#allocation11 + $0x118] sm:$0xff] %v7974
    %9503 = vst [vmem:[#allocation11 + $0x120] sm:$0xff] %v8330
    %9504 = vst [vmem:[#allocation11 + $0x128] sm:$0xff] %v8686
    %9505 = vst [vmem:[#allocation11 + $0x130] sm:$0xff] %v9042
    %9506 = vst [vmem:[#allocation11 + $0x138] sm:$0xff] %v9398
    %9507 = vst [vmem:[#allocation11 + $0x140] sm:$0xff] %v6908
    %9508 = vst [vmem:[#allocation11 + $0x148] sm:$0xff] %v7264
    %9509 = vst [vmem:[#allocation11 + $0x150] sm:$0xff] %v7620
    %9510 = vst [vmem:[#allocation11 + $0x158] sm:$0xff] %v7976
    %9511 = vst [vmem:[#allocation11 + $0x160] sm:$0xff] %v8332
    %9512 = vst [vmem:[#allocation11 + $0x168] sm:$0xff] %v8688
    %9513 = vst [vmem:[#allocation11 + $0x170] sm:$0xff] %v9044
    %9514 = vst [vmem:[#allocation11 + $0x178] sm:$0xff] %v9400
    %9515 = vst [vmem:[#allocation11 + $0x180] sm:$0xff] %v6911
    %9516 = vst [vmem:[#allocation11 + $0x188] sm:$0xff] %v7267
    %9517 = vst [vmem:[#allocation11 + $0x190] sm:$0xff] %v7623
    %9518 = vst [vmem:[#allocation11 + $0x198] sm:$0xff] %v7979
    %9519 = vst [vmem:[#allocation11 + $0x1a0] sm:$0xff] %v8335
    %9520 = vst [vmem:[#allocation11 + $0x1a8] sm:$0xff] %v8691
    %9521 = vst [vmem:[#allocation11 + $0x1b0] sm:$0xff] %v9047
    %9522 = vst [vmem:[#allocation11 + $0x1b8] sm:$0xff] %v9403
    %9523 = vst [vmem:[#allocation11 + $0x1c0] sm:$0xff] %v6913
    %9524 = vst [vmem:[#allocation11 + $0x1c8] sm:$0xff] %v7269
    %9525 = vst [vmem:[#allocation11 + $0x1d0] sm:$0xff] %v7625
    %9526 = vst [vmem:[#allocation11 + $0x1d8] sm:$0xff] %v7981
    %9527 = vst [vmem:[#allocation11 + $0x1e0] sm:$0xff] %v8337
    %9528 = vst [vmem:[#allocation11 + $0x1e8] sm:$0xff] %v8693
    %9529 = vst [vmem:[#allocation11 + $0x1f0] sm:$0xff] %v9049
    %9530 = vst [vmem:[#allocation11 + $0x1f8] sm:$0xff] %v9405
    %9531 = vst [vmem:[#allocation11 + $0x200] sm:$0xff] %v6916
    %9532 = vst [vmem:[#allocation11 + $0x208] sm:$0xff] %v7272
    %9533 = vst [vmem:[#allocation11 + $0x210] sm:$0xff] %v7628
    %9534 = vst [vmem:[#allocation11 + $0x218] sm:$0xff] %v7984
    %9535 = vst [vmem:[#allocation11 + $0x220] sm:$0xff] %v8340
    %9536 = vst [vmem:[#allocation11 + $0x228] sm:$0xff] %v8696
    %9537 = vst [vmem:[#allocation11 + $0x230] sm:$0xff] %v9052
    %9538 = vst [vmem:[#allocation11 + $0x238] sm:$0xff] %v9408
    %9539 = vst [vmem:[#allocation11 + $0x240] sm:$0xff] %v6918
    %9540 = vst [vmem:[#allocation11 + $0x248] sm:$0xff] %v7274
    %9541 = vst [vmem:[#allocation11 + $0x250] sm:$0xff] %v7630
    %9542 = vst [vmem:[#allocation11 + $0x258] sm:$0xff] %v7986
    %9543 = vst [vmem:[#allocation11 + $0x260] sm:$0xff] %v8342
    %9544 = vst [vmem:[#allocation11 + $0x268] sm:$0xff] %v8698
    %9545 = vst [vmem:[#allocation11 + $0x270] sm:$0xff] %v9054
    %9546 = vst [vmem:[#allocation11 + $0x278] sm:$0xff] %v9410
    %9547 = vst [vmem:[#allocation11 + $0x280] sm:$0xff] %v6921
    %9548 = vst [vmem:[#allocation11 + $0x288] sm:$0xff] %v7277
    %9549 = vst [vmem:[#allocation11 + $0x290] sm:$0xff] %v7633
    %9550 = vst [vmem:[#allocation11 + $0x298] sm:$0xff] %v7989
    %9551 = vst [vmem:[#allocation11 + $0x2a0] sm:$0xff] %v8345
    %9552 = vst [vmem:[#allocation11 + $0x2a8] sm:$0xff] %v8701
    %9553 = vst [vmem:[#allocation11 + $0x2b0] sm:$0xff] %v9057
    %9554 = vst [vmem:[#allocation11 + $0x2b8] sm:$0xff] %v9413
    %9555 = vst [vmem:[#allocation11 + $0x2c0] sm:$0xff] %v6923
    %9556 = vst [vmem:[#allocation11 + $0x2c8] sm:$0xff] %v7279
    %9557 = vst [vmem:[#allocation11 + $0x2d0] sm:$0xff] %v7635
    %9558 = vst [vmem:[#allocation11 + $0x2d8] sm:$0xff] %v7991
    %9559 = vst [vmem:[#allocation11 + $0x2e0] sm:$0xff] %v8347
    %9560 = vst [vmem:[#allocation11 + $0x2e8] sm:$0xff] %v8703
    %9561 = vst [vmem:[#allocation11 + $0x2f0] sm:$0xff] %v9059
    %9562 = vst [vmem:[#allocation11 + $0x2f8] sm:$0xff] %v9415
    %9563 = vst [vmem:[#allocation11 + $0x300] sm:$0xff] %v6926
    %9564 = vst [vmem:[#allocation11 + $0x308] sm:$0xff] %v7282
    %9565 = vst [vmem:[#allocation11 + $0x310] sm:$0xff] %v7638
    %9566 = vst [vmem:[#allocation11 + $0x318] sm:$0xff] %v7994
    %9567 = vst [vmem:[#allocation11 + $0x320] sm:$0xff] %v8350
    %9568 = vst [vmem:[#allocation11 + $0x328] sm:$0xff] %v8706
    %9569 = vst [vmem:[#allocation11 + $0x330] sm:$0xff] %v9062
    %9570 = vst [vmem:[#allocation11 + $0x338] sm:$0xff] %v9418
    %9571 = vst [vmem:[#allocation11 + $0x340] sm:$0xff] %v6928
    %9572 = vst [vmem:[#allocation11 + $0x348] sm:$0xff] %v7284
    %9573 = vst [vmem:[#allocation11 + $0x350] sm:$0xff] %v7640
    %9574 = vst [vmem:[#allocation11 + $0x358] sm:$0xff] %v7996
    %9575 = vst [vmem:[#allocation11 + $0x360] sm:$0xff] %v8352
    %9576 = vst [vmem:[#allocation11 + $0x368] sm:$0xff] %v8708
    %9577 = vst [vmem:[#allocation11 + $0x370] sm:$0xff] %v9064
    %9578 = vst [vmem:[#allocation11 + $0x378] sm:$0xff] %v9420
    %9579 = vst [vmem:[#allocation11 + $0x380] sm:$0xff] %v6931
    %9580 = vst [vmem:[#allocation11 + $0x388] sm:$0xff] %v7287
    %9581 = vst [vmem:[#allocation11 + $0x390] sm:$0xff] %v7643
    %9582 = vst [vmem:[#allocation11 + $0x398] sm:$0xff] %v7999
    %9583 = vst [vmem:[#allocation11 + $0x3a0] sm:$0xff] %v8355
    %9584 = vst [vmem:[#allocation11 + $0x3a8] sm:$0xff] %v8711
    %9585 = vst [vmem:[#allocation11 + $0x3b0] sm:$0xff] %v9067
    %9586 = vst [vmem:[#allocation11 + $0x3b8] sm:$0xff] %v9423
    %9587 = vst [vmem:[#allocation11 + $0x3c0] sm:$0xff] %v6933
    %9588 = vst [vmem:[#allocation11 + $0x3c8] sm:$0xff] %v7289
    %9589 = vst [vmem:[#allocation11 + $0x3d0] sm:$0xff] %v7645
    %9590 = vst [vmem:[#allocation11 + $0x3d8] sm:$0xff] %v8001
    %9591 = vst [vmem:[#allocation11 + $0x3e0] sm:$0xff] %v8357
    %9592 = vst [vmem:[#allocation11 + $0x3e8] sm:$0xff] %v8713
    %9593 = vst [vmem:[#allocation11 + $0x3f0] sm:$0xff] %v9069
    %9594 = vst [vmem:[#allocation11 + $0x3f8] sm:$0xff] %v9425
    %9595 = vst [vmem:[#allocation11 + $0x400] sm:$0xff] %v6936
    %9596 = vst [vmem:[#allocation11 + $0x408] sm:$0xff] %v7292
    %9597 = vst [vmem:[#allocation11 + $0x410] sm:$0xff] %v7648
    %9598 = vst [vmem:[#allocation11 + $0x418] sm:$0xff] %v8004
    %9599 = vst [vmem:[#allocation11 + $0x420] sm:$0xff] %v8360
    %9600 = vst [vmem:[#allocation11 + $0x428] sm:$0xff] %v8716
    %9601 = vst [vmem:[#allocation11 + $0x430] sm:$0xff] %v9072
    %9602 = vst [vmem:[#allocation11 + $0x438] sm:$0xff] %v9428
    %9603 = vst [vmem:[#allocation11 + $0x440] sm:$0xff] %v6938
    %9604 = vst [vmem:[#allocation11 + $0x448] sm:$0xff] %v7294
    %9605 = vst [vmem:[#allocation11 + $0x450] sm:$0xff] %v7650
    %9606 = vst [vmem:[#allocation11 + $0x458] sm:$0xff] %v8006
    %9607 = vst [vmem:[#allocation11 + $0x460] sm:$0xff] %v8362
    %9608 = vst [vmem:[#allocation11 + $0x468] sm:$0xff] %v8718
    %9609 = vst [vmem:[#allocation11 + $0x470] sm:$0xff] %v9074
    %9610 = vst [vmem:[#allocation11 + $0x478] sm:$0xff] %v9430
    %9611 = vst [vmem:[#allocation11 + $0x480] sm:$0xff] %v6941
    %9612 = vst [vmem:[#allocation11 + $0x488] sm:$0xff] %v7297
    %9613 = vst [vmem:[#allocation11 + $0x490] sm:$0xff] %v7653
    %9614 = vst [vmem:[#allocation11 + $0x498] sm:$0xff] %v8009
    %9615 = vst [vmem:[#allocation11 + $0x4a0] sm:$0xff] %v8365
    %9616 = vst [vmem:[#allocation11 + $0x4a8] sm:$0xff] %v8721
    %9617 = vst [vmem:[#allocation11 + $0x4b0] sm:$0xff] %v9077
    %9618 = vst [vmem:[#allocation11 + $0x4b8] sm:$0xff] %v9433
    %9619 = vst [vmem:[#allocation11 + $0x4c0] sm:$0xff] %v6943
    %9620 = vst [vmem:[#allocation11 + $0x4c8] sm:$0xff] %v7299
    %9621 = vst [vmem:[#allocation11 + $0x4d0] sm:$0xff] %v7655
    %9622 = vst [vmem:[#allocation11 + $0x4d8] sm:$0xff] %v8011
    %9623 = vst [vmem:[#allocation11 + $0x4e0] sm:$0xff] %v8367
    %9624 = vst [vmem:[#allocation11 + $0x4e8] sm:$0xff] %v8723
    %9625 = vst [vmem:[#allocation11 + $0x4f0] sm:$0xff] %v9079
    %9626 = vst [vmem:[#allocation11 + $0x4f8] sm:$0xff] %v9435
    %9627 = vst [vmem:[#allocation11 + $0x500] sm:$0xff] %v6946
    %9628 = vst [vmem:[#allocation11 + $0x508] sm:$0xff] %v7302
    %9629 = vst [vmem:[#allocation11 + $0x510] sm:$0xff] %v7658
    %9630 = vst [vmem:[#allocation11 + $0x518] sm:$0xff] %v8014
    %9631 = vst [vmem:[#allocation11 + $0x520] sm:$0xff] %v8370
    %9632 = vst [vmem:[#allocation11 + $0x528] sm:$0xff] %v8726
    %9633 = vst [vmem:[#allocation11 + $0x530] sm:$0xff] %v9082
    %9634 = vst [vmem:[#allocation11 + $0x538] sm:$0xff] %v9438
    %9635 = vst [vmem:[#allocation11 + $0x540] sm:$0xff] %v6948
    %9636 = vst [vmem:[#allocation11 + $0x548] sm:$0xff] %v7304
    %9637 = vst [vmem:[#allocation11 + $0x550] sm:$0xff] %v7660
    %9638 = vst [vmem:[#allocation11 + $0x558] sm:$0xff] %v8016
    %9639 = vst [vmem:[#allocation11 + $0x560] sm:$0xff] %v8372
    %9640 = vst [vmem:[#allocation11 + $0x568] sm:$0xff] %v8728
    %9641 = vst [vmem:[#allocation11 + $0x570] sm:$0xff] %v9084
    %9642 = vst [vmem:[#allocation11 + $0x578] sm:$0xff] %v9440
    %9643 = vst [vmem:[#allocation11 + $0x580] sm:$0xff] %v6951
    %9644 = vst [vmem:[#allocation11 + $0x588] sm:$0xff] %v7307
    %9645 = vst [vmem:[#allocation11 + $0x590] sm:$0xff] %v7663
    %9646 = vst [vmem:[#allocation11 + $0x598] sm:$0xff] %v8019
    %9647 = vst [vmem:[#allocation11 + $0x5a0] sm:$0xff] %v8375
    %9648 = vst [vmem:[#allocation11 + $0x5a8] sm:$0xff] %v8731
    %9649 = vst [vmem:[#allocation11 + $0x5b0] sm:$0xff] %v9087
    %9650 = vst [vmem:[#allocation11 + $0x5b8] sm:$0xff] %v9443
    %9651 = vst [vmem:[#allocation11 + $0x5c0] sm:$0xff] %v6953
    %9652 = vst [vmem:[#allocation11 + $0x5c8] sm:$0xff] %v7309
    %9653 = vst [vmem:[#allocation11 + $0x5d0] sm:$0xff] %v7665
    %9654 = vst [vmem:[#allocation11 + $0x5d8] sm:$0xff] %v8021
    %9655 = vst [vmem:[#allocation11 + $0x5e0] sm:$0xff] %v8377
    %9656 = vst [vmem:[#allocation11 + $0x5e8] sm:$0xff] %v8733
    %9657 = vst [vmem:[#allocation11 + $0x5f0] sm:$0xff] %v9089
    %9658 = vst [vmem:[#allocation11 + $0x5f8] sm:$0xff] %v9445
    %9659 = vst [vmem:[#allocation11 + $0x600] sm:$0xff] %v6956
    %9660 = vst [vmem:[#allocation11 + $0x608] sm:$0xff] %v7312
    %9661 = vst [vmem:[#allocation11 + $0x610] sm:$0xff] %v7668
    %9662 = vst [vmem:[#allocation11 + $0x618] sm:$0xff] %v8024
    %9663 = vst [vmem:[#allocation11 + $0x620] sm:$0xff] %v8380
    %9664 = vst [vmem:[#allocation11 + $0x628] sm:$0xff] %v8736
    %9665 = vst [vmem:[#allocation11 + $0x630] sm:$0xff] %v9092
    %9666 = vst [vmem:[#allocation11 + $0x638] sm:$0xff] %v9448
    %9667 = vst [vmem:[#allocation11 + $0x640] sm:$0xff] %v6958
    %9668 = vst [vmem:[#allocation11 + $0x648] sm:$0xff] %v7314
    %9669 = vst [vmem:[#allocation11 + $0x650] sm:$0xff] %v7670
    %9670 = vst [vmem:[#allocation11 + $0x658] sm:$0xff] %v8026
    %9671 = vst [vmem:[#allocation11 + $0x660] sm:$0xff] %v8382
    %9672 = vst [vmem:[#allocation11 + $0x668] sm:$0xff] %v8738
    %9673 = vst [vmem:[#allocation11 + $0x670] sm:$0xff] %v9094
    %9674 = vst [vmem:[#allocation11 + $0x678] sm:$0xff] %v9450
    %9675 = vst [vmem:[#allocation11 + $0x680] sm:$0xff] %v6961
    %9676 = vst [vmem:[#allocation11 + $0x688] sm:$0xff] %v7317
    %9677 = vst [vmem:[#allocation11 + $0x690] sm:$0xff] %v7673
    %9678 = vst [vmem:[#allocation11 + $0x698] sm:$0xff] %v8029
    %9679 = vst [vmem:[#allocation11 + $0x6a0] sm:$0xff] %v8385
    %9680 = vst [vmem:[#allocation11 + $0x6a8] sm:$0xff] %v8741
    %9681 = vst [vmem:[#allocation11 + $0x6b0] sm:$0xff] %v9097
    %9682 = vst [vmem:[#allocation11 + $0x6b8] sm:$0xff] %v9453
    %9683 = vst [vmem:[#allocation11 + $0x6c0] sm:$0xff] %v6963
    %9684 = vst [vmem:[#allocation11 + $0x6c8] sm:$0xff] %v7319
    %9685 = vst [vmem:[#allocation11 + $0x6d0] sm:$0xff] %v7675
    %9686 = vst [vmem:[#allocation11 + $0x6d8] sm:$0xff] %v8031
    %9687 = vst [vmem:[#allocation11 + $0x6e0] sm:$0xff] %v8387
    %9688 = vst [vmem:[#allocation11 + $0x6e8] sm:$0xff] %v8743
    %9689 = vst [vmem:[#allocation11 + $0x6f0] sm:$0xff] %v9099
    %9690 = vst [vmem:[#allocation11 + $0x6f8] sm:$0xff] %v9455
    %9691 = vst [vmem:[#allocation11 + $0x700] sm:$0xff] %v6966
    %9692 = vst [vmem:[#allocation11 + $0x708] sm:$0xff] %v7322
    %9693 = vst [vmem:[#allocation11 + $0x710] sm:$0xff] %v7678
    %9694 = vst [vmem:[#allocation11 + $0x718] sm:$0xff] %v8034
    %9695 = vst [vmem:[#allocation11 + $0x720] sm:$0xff] %v8390
    %9696 = vst [vmem:[#allocation11 + $0x728] sm:$0xff] %v8746
    %9697 = vst [vmem:[#allocation11 + $0x730] sm:$0xff] %v9102
    %9698 = vst [vmem:[#allocation11 + $0x738] sm:$0xff] %v9458
    %9699 = vst [vmem:[#allocation11 + $0x740] sm:$0xff] %v6968
    %9700 = vst [vmem:[#allocation11 + $0x748] sm:$0xff] %v7324
    %9701 = vst [vmem:[#allocation11 + $0x750] sm:$0xff] %v7680
    %9702 = vst [vmem:[#allocation11 + $0x758] sm:$0xff] %v8036
    %9703 = vst [vmem:[#allocation11 + $0x760] sm:$0xff] %v8392
    %9704 = vst [vmem:[#allocation11 + $0x768] sm:$0xff] %v8748
    %9705 = vst [vmem:[#allocation11 + $0x770] sm:$0xff] %v9104
    %9706 = vst [vmem:[#allocation11 + $0x778] sm:$0xff] %v9460
    %9707 = vst [vmem:[#allocation11 + $0x780] sm:$0xff] %v6971
    %9708 = vst [vmem:[#allocation11 + $0x788] sm:$0xff] %v7327
    %9709 = vst [vmem:[#allocation11 + $0x790] sm:$0xff] %v7683
    %9710 = vst [vmem:[#allocation11 + $0x798] sm:$0xff] %v8039
    %9711 = vst [vmem:[#allocation11 + $0x7a0] sm:$0xff] %v8395
    %9712 = vst [vmem:[#allocation11 + $0x7a8] sm:$0xff] %v8751
    %9713 = vst [vmem:[#allocation11 + $0x7b0] sm:$0xff] %v9107
    %9714 = vst [vmem:[#allocation11 + $0x7b8] sm:$0xff] %v9463
    %9715 = vst [vmem:[#allocation11 + $0x7c0] sm:$0xff] %v6973
    %9716 = vst [vmem:[#allocation11 + $0x7c8] sm:$0xff] %v7329
    %9717 = vst [vmem:[#allocation11 + $0x7d0] sm:$0xff] %v7685
    %9718 = vst [vmem:[#allocation11 + $0x7d8] sm:$0xff] %v8041
    %9719 = vst [vmem:[#allocation11 + $0x7e0] sm:$0xff] %v8397
    %9720 = vst [vmem:[#allocation11 + $0x7e8] sm:$0xff] %v8753
    %9721 = vst [vmem:[#allocation11 + $0x7f0] sm:$0xff] %v9109
    %9722 = vst [vmem:[#allocation11 + $0x7f8] sm:$0xff] %v9465
    // Predicated region
    $region42: #{tpu_custom_call.1} parent=1 // pred_check
      _
    $region43: #{tpu_custom_call.1} parent=1 // pred_check_branch
      %9724 = sbr.rel (0) target = $region45
    $region44: #{tpu_custom_call.1} parent=1 // pred_region
      %9726 = vsyncadd [#allocation4], 0
      %s9727 = sshll.u32 [#allocation11], 4
      %s9728 = int_to_ptr.vmem [resolvable:$true] %s9727
      %s9729 = sshll.u32 %s5, 4
      %s9730 = int_to_ptr.hbm [resolvable:$true] %s9729
      %9735 = dma.vmem_to_hbm [thread:$0]  %s9728, 32768, %s9730, [#allocation4], 1024, 1024, 64
    $region45: #{tpu_custom_call.1} parent=1 // pred_fallthru
      _
    // Predicated region
    $region46: #{tpu_custom_call.1} parent=1 // pred_check
      _
    $region47: #{tpu_custom_call.1} parent=1 // pred_check_branch
      %9737 = sbr.rel (0) target = $region49
    $region48: #{tpu_custom_call.1} parent=1 // pred_region
      %9739 = dma.done [#allocation4], 32768
    $region49: #{tpu_custom_call.1} parent=1 // pred_fallthru
      _
    %9740 = vsyncpa [#allocation3], 1
    %9741 = vsyncpa [#allocation6], 1
    %9742 = vsyncpa [#allocation9], 1
    %9743 = vsyncpa [#allocation4], 1

</llo_original>
